<compile_context>
chip_gen: v7x
topology: tpu7x:2x2x1
jax: 0.10.0
libtpu: 0.0.40
codegen_flags: <defaults>
</compile_context>

<pallas_src>
import functools
from types import SimpleNamespace as NS

import numpy as np
import jax
import jax.numpy as jnp
from jax.experimental import pallas as pl
from jax.experimental.pallas import tpu as pltpu


def _round_up(x, m):
    return (x + m - 1) // m * m


# ----------------------------------------------------------------------------
# Pallas kernels
# ----------------------------------------------------------------------------
def _matmul_kernel(a_ref, w_ref, b_ref, o_ref, *, act, n_out):
    # bf16 x bf16 -> f32 accumulation on the MXU; f32 epilogue (bias / ReLU);
    # only the true N output lanes are stored (narrow, un-padded writeback).
    acc = jnp.dot(a_ref[...], w_ref[...], preferred_element_type=jnp.float32)
    acc = acc + b_ref[...]
    if act == "relu":
        acc = jnp.maximum(acc, 0.0)
    if n_out != acc.shape[1]:
        acc = acc[:, :n_out]
    o_ref[...] = acc.astype(o_ref.dtype)


def pallas_matmul(a_bf, layer, act=None, out_dtype=jnp.bfloat16):
    """y = a @ W + b (+ optional ReLU).

    a_bf: (M, Kp) bf16 with K already padded to the weight slab's Kp.
    layer["w"]: (Kp, Np) bf16; layer["b"]: (1, Np) f32.
    Returns (M, N) in `out_dtype` with N = layer["n"] (no padded lanes stored).
    """
    Wp, bp = layer["w"], layer["b"]
    Kp, Np = Wp.shape
    N = layer["n"]
    M = a_bf.shape[0]
    assert a_bf.shape[1] == Kp, (a_bf.shape, Wp.shape)

    Mp = _round_up(M, 16)                 # bf16 packs 16 rows per vreg
    if Mp != M:
        a_bf = jnp.pad(a_bf, ((0, Mp - M), (0, 0)))

    # Collapsed M grid: 1 step when it fits, else exactly 2 parallel blocks
    # (one per TensorCore on v7x; only 2 pipeline steps on v5e/v6e).
    if Mp <= 2048:
        tile_m = Mp
    else:
        tile_m = Mp // 2 if Mp % 2 == 0 else Mp
    grid_m = Mp // tile_m

    cost = pl.CostEstimate(
        flops=2 * Mp * Kp * Np,
        transcendentals=0,
        bytes_accessed=(Mp * Kp * 2 + Kp * Np * 2
                        + Mp * N * jnp.dtype(out_dtype).itemsize),
    )
    out = pl.pallas_call(
        functools.partial(_matmul_kernel, act=act, n_out=N),
        out_shape=jax.ShapeDtypeStruct((Mp, N), out_dtype),
        grid=(grid_m,),
        in_specs=[
            pl.BlockSpec((tile_m, Kp), lambda i: (i, 0)),
            pl.BlockSpec((Kp, Np), lambda i: (0, 0)),   # weight VMEM-resident
            pl.BlockSpec((1, Np), lambda i: (0, 0)),
        ],
        out_specs=pl.BlockSpec((tile_m, N), lambda i: (i, 0)),
        compiler_params=pltpu.CompilerParams(dimension_semantics=("parallel",)),
        cost_estimate=cost,
    )(a_bf, Wp, bp)
    return out[:M] if Mp != M else out


def _latent_head_kernel(flat_ref, c_ref, wmv_ref, bmv_ref, wdec_ref, bdec_ref,
                        w1_ref, b1_ref, w2_ref, b2_ref,
                        mv_ref, dec_ref, gb_ref, *, n_mv, n_gb):
    # fc_mu || fc_var fused as one matmul: lanes [0:L) = mu, [L:2L) = log_var.
    mv = jnp.dot(flat_ref[...], wmv_ref[...],
                 preferred_element_type=jnp.float32) + bmv_ref[...]
    mv_ref[...] = mv[:, :n_mv]
    # decode_input(mu): wdec rows >= Latent are zero, so contracting the full
    # padded mv (which still carries log_var in lanes [L:2L)) yields mu @ Wdec.
    dec = jnp.dot(mv.astype(jnp.bfloat16), wdec_ref[...],
                  preferred_element_type=jnp.float32) + bdec_ref[...]
    dec_ref[...] = dec.astype(dec_ref.dtype)
    # cond_proj (ReLU) -> FiLM projection; hidden h stays local (not stored).
    h = jnp.dot(c_ref[...], w1_ref[...],
                preferred_element_type=jnp.float32) + b1_ref[...]
    h = jnp.maximum(h, 0.0)
    gb = jnp.dot(h.astype(jnp.bfloat16), w2_ref[...],
                 preferred_element_type=jnp.float32) + b2_ref[...]
    gb_ref[...] = gb[:, :n_gb]


def latent_head(params, flat_bf, c, latent_dim):
    """Single pallas_call for every tiny (M=batch) matmul in the network."""
    lmv, ldec = params["fc_mu_var"], params["decode_input"]
    l1, l2 = params["cond_proj"], params["film"]
    B = flat_bf.shape[0]
    Mp = _round_up(B, 16)

    Kmv = lmv["w"].shape[0]
    Kc = l1["w"].shape[0]
    flat_p = jnp.pad(flat_bf, ((0, Mp - B), (0, Kmv - flat_bf.shape[1])))
    c_p = jnp.pad(c.astype(jnp.bfloat16), ((0, Mp - B), (0, Kc - c.shape[1])))

    def full(shape):
        return pl.BlockSpec(shape, lambda i, _s=len(shape): (0,) * _s)

    n_mv, n_dec, n_gb = lmv["n"], ldec["n"], l2["n"]
    mv, dec, gb = pl.pallas_call(
        functools.partial(_latent_head_kernel, n_mv=n_mv, n_gb=n_gb),
        out_shape=(jax.ShapeDtypeStruct((Mp, n_mv), jnp.float32),
                   jax.ShapeDtypeStruct((Mp, n_dec), jnp.bfloat16),
                   jax.ShapeDtypeStruct((Mp, n_gb), jnp.float32)),
        grid=(1,),
        in_specs=[
            full((Mp, Kmv)), full((Mp, Kc)),
            full(lmv["w"].shape), full(lmv["b"].shape),
            full(ldec["w"].shape), full(ldec["b"].shape),
            full(l1["w"].shape), full(l1["b"].shape),
            full(l2["w"].shape), full(l2["b"].shape),
        ],
        out_specs=(full((Mp, n_mv)), full((Mp, n_dec)), full((Mp, n_gb))),
    )(flat_p, c_p, lmv["w"], lmv["b"], ldec["w"], ldec["b"],
      l1["w"], l1["b"], l2["w"], l2["b"])
    L = latent_dim
    return mv[:B, :L], mv[:B, L:2 * L], dec[:B], gb[:B]


# ----------------------------------------------------------------------------
# Weight preparation (pad/reshape once at init)
# ----------------------------------------------------------------------------
def _prep_linear(W, b, kp=None):
    """W: (K, N), b: (N,) -> zero-padded bf16 weight slab + f32 bias row."""
    K, N = W.shape
    Kp = kp if kp is not None else _round_up(K, 128)
    Np = _round_up(N, 128)
    Wp = jnp.zeros((Kp, Np), jnp.bfloat16).at[:K, :N].set(W.astype(jnp.bfloat16))
    bp = jnp.zeros((1, Np), jnp.float32).at[0, :N].set(b.astype(jnp.float32))
    return {"w": Wp, "b": bp, "k": K, "n": N}


def _prep_conv(W, b):
    """W: (Cout, Cin, kt, kh, kw) torch layout -> im2col matrix for
    channels-last patches ordered (dt, dh, dw, cin)."""
    Cout, Cin, kt, kh, kw = W.shape
    Wm = jnp.transpose(W, (2, 3, 4, 1, 0)).reshape(kt * kh * kw * Cin, Cout)
    lyr = _prep_linear(Wm, b)
    lyr["ksize"] = (kt, kh, kw)
    lyr["cin"] = Cin
    lyr["cout"] = Cout
    return lyr


# ----------------------------------------------------------------------------
# Conv3d via lane-dense bf16 im2col (channels-last) + Pallas matmul
# ----------------------------------------------------------------------------
def conv3d(x, layer, stride, pad, act="relu", out_dtype=jnp.bfloat16):
    """x: [B, T, H, W, Cin] channels-last bf16. Returns [B, To, Ho, Wo, Cout]."""
    B, T, H, W, Cin = x.shape
    kt, kh, kw = layer["ksize"]
    s = stride
    xp = jnp.pad(x, ((0, 0), (pad, pad), (pad, pad), (pad, pad), (0, 0)))
    To = (T + 2 * pad - kt) // s + 1
    Ho = (H + 2 * pad - kh) // s + 1
    Wo = (W + 2 * pad - kw) // s + 1

    # TODO(synk): fold the im2col (and the preceding nearest-upsample) into the
    # Pallas kernel itself (VMEM-resident patch build); kept in XLA here since
    # the tiny channel counts (Cin 1..8) make in-kernel relayouts fragile, but
    # all glue now moves bf16 and K lands pre-padded (no extra pad/cast passes).
    cols = []
    for dt in range(kt):
        for dh in range(kh):
            for dw in range(kw):
                cols.append(
                    xp[:, dt:dt + s * To:s, dh:dh + s * Ho:s, dw:dw + s * Wo:s, :]
                )
    K = kt * kh * kw * Cin
    Kp = layer["w"].shape[0]
    if Kp > K:  # K-pad folded into the concat -> no separate operand pad op.
        cols.append(jnp.zeros((B, To, Ho, Wo, Kp - K), x.dtype))
    pat = jnp.concatenate(cols, axis=-1).reshape(B * To * Ho * Wo, Kp)
    y = pallas_matmul(pat, layer, act=act, out_dtype=out_dtype)
    return y.reshape(B, To, Ho, Wo, layer["n"])


def upsample_nearest3d(x, r):
    """Single-pass nearest upsample for channels-last [B, T, H, W, C] (bf16)."""
    B, T, H, W, C = x.shape
    x = x[:, :, None, :, None, :, None, :]
    x = jnp.broadcast_to(x, (B, T, r, H, r, W, r, C))
    return x.reshape(B, T * r, H * r, W * r, C)


# ----------------------------------------------------------------------------
# Parameter initialization (deterministic, PyTorch-uniform-like)
# ----------------------------------------------------------------------------
def init_linear(key, fan_in, fan_out):
    kw, kb = jax.random.split(key)
    s = 1.0 / np.sqrt(fan_in)
    W = jax.random.uniform(kw, (fan_in, fan_out), jnp.float32, -s, s)
    b = jax.random.uniform(kb, (fan_out,), jnp.float32, -s, s)
    return W, b


def init_conv3d(key, cin, cout, k):
    kw, kb = jax.random.split(key)
    fan_in = cin * k * k * k
    s = 1.0 / np.sqrt(fan_in)
    W = jax.random.uniform(kw, (cout, cin, k, k, k), jnp.float32, -s, s)
    b = jax.random.uniform(kb, (cout,), jnp.float32, -s, s)
    return W, b


def init_generator_params(cfg, key):
    keys = iter(jax.random.split(key, 64))
    p = {}
    enc = cfg.Enc
    chans = [enc.in_channel] + list(enc.hidden_channels) + [enc.out_channel]
    # TODO(synk): Conv3dEnc internals not provided; Conv3d + ReLU per layer.
    p["enc_convs"] = [
        _prep_conv(*init_conv3d(next(keys), chans[i], chans[i + 1], enc.kernel))
        for i in range(enc.num_layers)
    ]
    final_feat = enc.out_channel * int(np.prod(enc.final_dim))
    # fc_mu || fc_var fused along N -> one matmul per forward.
    Wmu, bmu = init_linear(next(keys), final_feat, cfg.Latent)
    Wvar, bvar = init_linear(next(keys), final_feat, cfg.Latent)
    p["fc_mu_var"] = _prep_linear(jnp.concatenate([Wmu, Wvar], axis=1),
                                  jnp.concatenate([bmu, bvar], axis=0))
    # decode_input's padded K must match fc_mu_var's padded N (fused head).
    p["decode_input"] = _prep_linear(*init_linear(next(keys), cfg.Latent, final_feat),
                                     kp=p["fc_mu_var"]["w"].shape[1])

    dec = cfg.Dec
    # TODO(synk): Conv3dDec internals not provided; shape-consistent approximation
    # (cond proj + FiLM + pre-convs + nearest-upsample convs + final conv).
    p["cond_proj"] = _prep_linear(*init_linear(next(keys), cfg.num_conds,
                                               dec.cond_proj_dim))
    p["film"] = _prep_linear(*init_linear(next(keys), dec.cond_proj_dim,
                                          2 * enc.out_channel),
                             kp=p["cond_proj"]["w"].shape[1])
    k = dec.up_conv.args[0]
    p["pre_convs"] = [
        _prep_conv(*init_conv3d(next(keys), enc.out_channel, enc.out_channel, k))
        for _ in range(dec.num_pre_conv)
    ]
    up_chans = [enc.out_channel] + list(dec.up_conv.hidden_channels)
    p["up_convs"] = [
        _prep_conv(*init_conv3d(next(keys), up_chans[i], up_chans[i + 1], k))
        for i in range(dec.num_rescale)
    ]
    p["final_conv"] = _prep_conv(*init_conv3d(next(keys), up_chans[-1], 1, k))
    return p


# ----------------------------------------------------------------------------
# Generator forward
# ----------------------------------------------------------------------------
def decoder_forward(cfg, params, feat, gb):
    """feat: [B, Td, Hd, Wd, C] channels-last bf16; gb: [B, 2C] f32 (FiLM)."""
    dec = cfg.Dec
    _, s, pd = dec.up_conv.args
    B = feat.shape[0]
    C = feat.shape[-1]

    gamma = gb[:, :C][:, None, None, None, :]
    beta = gb[:, C:][:, None, None, None, :]
    feat = (feat.astype(jnp.float32) * (1.0 + gamma) + beta).astype(jnp.bfloat16)

    for lyr in params["pre_convs"]:
        feat = conv3d(feat, lyr, stride=s, pad=pd, act="relu")

    for lyr in params["up_convs"]:
        feat = upsample_nearest3d(feat, dec.rescale)
        feat = conv3d(feat, lyr, stride=s, pad=pd, act="relu")

    out = conv3d(feat, params["final_conv"], stride=s, pad=pd, act=None,
                 out_dtype=jnp.float32)                      # [B,T,H,W,1] f32
    # TODO(synk): trilinear resize has no Pallas equivalent; jax.image.resize.
    out = jax.image.resize(out, (B,) + tuple(dec.final_interpolate) + (1,),
                           method="linear")
    return out[..., 0]


def generator_forward(cfg, params, x, c, eps_key=None, training=False):
    """x: [B, 1, T, H, W] (NCDHW, torch layout); c: [B, num_conds]."""
    B = x.shape[0]
    enc = cfg.Enc

    # NCDHW -> channels-last once, bf16 once; stay bf16/channels-last throughout.
    feat = jnp.transpose(x, (0, 2, 3, 4, 1)).astype(jnp.bfloat16)
    for lyr in params["enc_convs"]:
        feat = conv3d(feat, lyr, stride=enc.stride, pad=enc.pad, act="relu")

    # torch.flatten(start_dim=1) in NCDHW order (tiny tensor).
    flat = jnp.transpose(feat, (0, 4, 1, 2, 3)).reshape(B, -1)

    # One pallas_call: fc_mu||fc_var, decode_input(mu), cond_proj -> FiLM.
    mu, log_var, dec_in, gb = latent_head(params, flat, c, cfg.Latent)

    if training:
        # Reparameterized latent replaces the eval-path decode_input(mu).
        eps = jax.random.normal(eps_key, mu.shape, jnp.float32)
        z = eps * jnp.exp(0.5 * log_var) + mu          # tiny (B, Latent)
        Kp = params["decode_input"]["w"].shape[0]
        z_bf = jnp.pad(z.astype(jnp.bfloat16), ((0, 0), (0, Kp - z.shape[1])))
        dec_in = pallas_matmul(z_bf, params["decode_input"], act=None,
                               out_dtype=jnp.bfloat16)

    dec_feat = dec_in.reshape(B, enc.out_channel, *enc.final_dim)
    dec_feat = jnp.transpose(dec_feat, (0, 2, 3, 4, 1))       # channels-last
    result = decoder_forward(cfg, params, dec_feat, gb)
    return [result, mu, log_var]


# ----------------------------------------------------------------------------
# main
# ----------------------------------------------------------------------------
if __name__ == "__main__":
    cfg = NS(
        Latent=16,
        num_conds=4,
        Enc=NS(
            num_layers=2,
            in_channel=1,
            out_channel=8,
            hidden_channels=[4],
            kernel=3,
            stride=2,
            pad=1,
            final_dim=(2, 4, 4),      # [B,1,8,16,16] -> two stride-2 convs -> (2,4,4)
        ),
        Dec=NS(
            cond_proj_dim=8,
            num_pre_conv=1,
            num_rescale=2,
            rescale=2,
            up_conv=NS(hidden_channels=[8, 4], args=(3, 1, 1)),
            final_interpolate=(8, 16, 16),
        ),
    )

    root = jax.random.PRNGKey(0)
    k_params, k_x, k_c, _k_eps = jax.random.split(root, 4)

    params = init_generator_params(cfg, k_params)
    x = jax.random.normal(k_x, (2, 1, 8, 16, 16), jnp.float32)   # [bs, 1, t, h, w]
    c = jax.random.uniform(k_c, (2, cfg.num_conds), jnp.float32)

    # cfg / params captured in closure so all metadata stays static under jit.
    fwd_eval = jax.jit(lambda xx, cc: generator_forward(cfg, params, xx, cc,
                                                        training=False))
    out, mu, log_var = fwd_eval(x, c)
    jax.block_until_ready(out)
    jax.block_until_ready(mu)
    jax.block_until_ready(log_var)

    assert out.shape == (2,) + tuple(cfg.Dec.final_interpolate)
    assert mu.shape == (2, cfg.Latent) and log_var.shape == (2, cfg.Latent)
    assert bool(jnp.all(jnp.isfinite(out)))
    print("KERNEL_OK")
</pallas_src>

<mosaic_0001>
module attributes {stable_mosaic.version = 11 : i64} {
  func.func @_matmul_kernel(%arg0: i32, %arg1: memref<512x128xbf16, #tpu.memory_space<vmem>>, %arg2: memref<128x128xbf16, #tpu.memory_space<vmem>>, %arg3: memref<1x128xf32, #tpu.memory_space<vmem>>, %arg4: memref<512x4xbf16, #tpu.memory_space<vmem>>) attributes {dimension_semantics = [#tpu.dimension_semantics<parallel>], iteration_bounds = array<i64: 1>, scalar_prefetch = 0 : i64, scratch_operands = 0 : i64, tpu.core_type = #tpu.core_type<tc>, window_params = [{transform_indices = @transform_0, window_bounds = array<i64: 512, 128>}, {pipeline_mode = #tpu.pipeline_mode<synchronous>, transform_indices = @transform_1, window_bounds = array<i64: 128, 128>}, {pipeline_mode = #tpu.pipeline_mode<synchronous>, transform_indices = @transform_2, window_bounds = array<i64: 1, 128>}, {transform_indices = @transform_3, window_bounds = array<i64: 512, 4>}]} {
    %c0 = arith.constant 0 : index
    %c0_0 = arith.constant 0 : index
    %0 = vector.load %arg1[%c0, %c0_0] : memref<512x128xbf16, #tpu.memory_space<vmem>>, vector<512x128xbf16>
    %c0_1 = arith.constant 0 : index
    %c0_2 = arith.constant 0 : index
    %1 = vector.load %arg2[%c0_1, %c0_2] : memref<128x128xbf16, #tpu.memory_space<vmem>>, vector<128x128xbf16>
    %cst = arith.constant dense<0.000000e+00> : vector<512x128xf32>
    %2 = tpu.matmul %0, %1, %cst {dimension_numbers = #tpu.dot_dimension_numbers<[1], [0], [0], [1], [0, 0, 1, 1], [], []>} : vector<512x128xbf16>, vector<128x128xbf16>, vector<512x128xf32> -> vector<512x128xf32>
    %c0_3 = arith.constant 0 : index
    %c0_4 = arith.constant 0 : index
    %3 = vector.load %arg3[%c0_3, %c0_4] : memref<1x128xf32, #tpu.memory_space<vmem>>, vector<1x128xf32>
    %4 = vector.broadcast %3 : vector<1x128xf32> to vector<512x128xf32>
    %5 = arith.addf %2, %4 : vector<512x128xf32>
    %cst_5 = arith.constant 0.000000e+00 : f32
    %6 = vector.broadcast %cst_5 : f32 to vector<512x128xf32>
    %7 = arith.maximumf %5, %6 : vector<512x128xf32>
    %8 = vector.extract_strided_slice %7 {offsets = [0, 0], sizes = [512, 4], strides = [1, 1]} : vector<512x128xf32> to vector<512x4xf32>
    %9 = arith.truncf %8 : vector<512x4xf32> to vector<512x4xbf16>
    %c0_6 = arith.constant 0 : index
    %c0_7 = arith.constant 0 : index
    %10 = vector.load %arg4[%c0_6, %c0_7] : memref<512x4xbf16, #tpu.memory_space<vmem>>, vector<512x4xbf16>
    tpu.vector_store %arg4[%c0_6, %c0_7], %9 {strides = array<i32>} : memref<512x4xbf16, #tpu.memory_space<vmem>>, vector<512x4xbf16>,
    return
  }
  func.func @transform_0(%arg0: i32) -> (i32, i32) {
    %c0_i32 = arith.constant 0 : i32
    %c0_i32_0 = arith.constant 0 : i32
    return %arg0, %c0_i32 : i32, i32
  }
  func.func @transform_1(%arg0: i32) -> (i32, i32) {
    %c0_i32 = arith.constant 0 : i32
    %c0_i32_0 = arith.constant 0 : i32
    %c0_i32_1 = arith.constant 0 : i32
    return %c0_i32, %c0_i32_0 : i32, i32
  }
  func.func @transform_2(%arg0: i32) -> (i32, i32) {
    %c0_i32 = arith.constant 0 : i32
    %c0_i32_0 = arith.constant 0 : i32
    %c0_i32_1 = arith.constant 0 : i32
    return %c0_i32, %c0_i32_0 : i32, i32
  }
  func.func @transform_3(%arg0: i32) -> (i32, i32) {
    %c0_i32 = arith.constant 0 : i32
    %c0_i32_0 = arith.constant 0 : i32
    return %arg0, %c0_i32 : i32, i32
  }
}

module attributes {stable_mosaic.version = 11 : i64} {
  func.func @_matmul_kernel(%arg0: i32, %arg1: memref<64x128xbf16, #tpu.memory_space<vmem>>, %arg2: memref<128x128xbf16, #tpu.memory_space<vmem>>, %arg3: memref<1x128xf32, #tpu.memory_space<vmem>>, %arg4: memref<64x8xbf16, #tpu.memory_space<vmem>>) attributes {dimension_semantics = [#tpu.dimension_semantics<parallel>], iteration_bounds = array<i64: 1>, scalar_prefetch = 0 : i64, scratch_operands = 0 : i64, tpu.core_type = #tpu.core_type<tc>, window_params = [{transform_indices = @transform_0, window_bounds = array<i64: 64, 128>}, {pipeline_mode = #tpu.pipeline_mode<synchronous>, transform_indices = @transform_1, window_bounds = array<i64: 128, 128>}, {pipeline_mode = #tpu.pipeline_mode<synchronous>, transform_indices = @transform_2, window_bounds = array<i64: 1, 128>}, {transform_indices = @transform_3, window_bounds = array<i64: 64, 8>}]} {
    %c0 = arith.constant 0 : index
    %c0_0 = arith.constant 0 : index
    %0 = vector.load %arg1[%c0, %c0_0] : memref<64x128xbf16, #tpu.memory_space<vmem>>, vector<64x128xbf16>
    %c0_1 = arith.constant 0 : index
    %c0_2 = arith.constant 0 : index
    %1 = vector.load %arg2[%c0_1, %c0_2] : memref<128x128xbf16, #tpu.memory_space<vmem>>, vector<128x128xbf16>
    %cst = arith.constant dense<0.000000e+00> : vector<64x128xf32>
    %2 = tpu.matmul %0, %1, %cst {dimension_numbers = #tpu.dot_dimension_numbers<[1], [0], [0], [1], [0, 0, 1, 1], [], []>} : vector<64x128xbf16>, vector<128x128xbf16>, vector<64x128xf32> -> vector<64x128xf32>
    %c0_3 = arith.constant 0 : index
    %c0_4 = arith.constant 0 : index
    %3 = vector.load %arg3[%c0_3, %c0_4] : memref<1x128xf32, #tpu.memory_space<vmem>>, vector<1x128xf32>
    %4 = vector.broadcast %3 : vector<1x128xf32> to vector<64x128xf32>
    %5 = arith.addf %2, %4 : vector<64x128xf32>
    %cst_5 = arith.constant 0.000000e+00 : f32
    %6 = vector.broadcast %cst_5 : f32 to vector<64x128xf32>
    %7 = arith.maximumf %5, %6 : vector<64x128xf32>
    %8 = vector.extract_strided_slice %7 {offsets = [0, 0], sizes = [64, 8], strides = [1, 1]} : vector<64x128xf32> to vector<64x8xf32>
    %9 = arith.truncf %8 : vector<64x8xf32> to vector<64x8xbf16>
    %c0_6 = arith.constant 0 : index
    %c0_7 = arith.constant 0 : index
    %10 = vector.load %arg4[%c0_6, %c0_7] : memref<64x8xbf16, #tpu.memory_space<vmem>>, vector<64x8xbf16>
    tpu.vector_store %arg4[%c0_6, %c0_7], %9 {strides = array<i32>} : memref<64x8xbf16, #tpu.memory_space<vmem>>, vector<64x8xbf16>,
    return
  }
  func.func @transform_0(%arg0: i32) -> (i32, i32) {
    %c0_i32 = arith.constant 0 : i32
    %c0_i32_0 = arith.constant 0 : i32
    return %arg0, %c0_i32 : i32, i32
  }
  func.func @transform_1(%arg0: i32) -> (i32, i32) {
    %c0_i32 = arith.constant 0 : i32
    %c0_i32_0 = arith.constant 0 : i32
    %c0_i32_1 = arith.constant 0 : i32
    return %c0_i32, %c0_i32_0 : i32, i32
  }
  func.func @transform_2(%arg0: i32) -> (i32, i32) {
    %c0_i32 = arith.constant 0 : i32
    %c0_i32_0 = arith.constant 0 : i32
    %c0_i32_1 = arith.constant 0 : i32
    return %c0_i32, %c0_i32_0 : i32, i32
  }
  func.func @transform_3(%arg0: i32) -> (i32, i32) {
    %c0_i32 = arith.constant 0 : i32
    %c0_i32_0 = arith.constant 0 : i32
    return %arg0, %c0_i32 : i32, i32
  }
}

module attributes {stable_mosaic.version = 11 : i64} {
  func.func @_latent_head_kernel(%arg0: i32, %arg1: memref<16x256xbf16, #tpu.memory_space<vmem>>, %arg2: memref<16x128xbf16, #tpu.memory_space<vmem>>, %arg3: memref<256x128xbf16, #tpu.memory_space<vmem>>, %arg4: memref<1x128xf32, #tpu.memory_space<vmem>>, %arg5: memref<128x256xbf16, #tpu.memory_space<vmem>>, %arg6: memref<1x256xf32, #tpu.memory_space<vmem>>, %arg7: memref<128x128xbf16, #tpu.memory_space<vmem>>, %arg8: memref<1x128xf32, #tpu.memory_space<vmem>>, %arg9: memref<128x128xbf16, #tpu.memory_space<vmem>>, %arg10: memref<1x128xf32, #tpu.memory_space<vmem>>, %arg11: memref<16x32xf32, #tpu.memory_space<vmem>>, %arg12: memref<16x256xbf16, #tpu.memory_space<vmem>>, %arg13: memref<16x16xf32, #tpu.memory_space<vmem>>) attributes {dimension_semantics = [#tpu.dimension_semantics<arbitrary>], iteration_bounds = array<i64: 1>, scalar_prefetch = 0 : i64, scratch_operands = 0 : i64, tpu.core_type = #tpu.core_type<tc>, window_params = [{pipeline_mode = #tpu.pipeline_mode<synchronous>, transform_indices = @transform_0, window_bounds = array<i64: 16, 256>}, {pipeline_mode = #tpu.pipeline_mode<synchronous>, transform_indices = @transform_1, window_bounds = array<i64: 16, 128>}, {pipeline_mode = #tpu.pipeline_mode<synchronous>, transform_indices = @transform_2, window_bounds = array<i64: 256, 128>}, {pipeline_mode = #tpu.pipeline_mode<synchronous>, transform_indices = @transform_3, window_bounds = array<i64: 1, 128>}, {pipeline_mode = #tpu.pipeline_mode<synchronous>, transform_indices = @transform_4, window_bounds = array<i64: 128, 256>}, {pipeline_mode = #tpu.pipeline_mode<synchronous>, transform_indices = @transform_5, window_bounds = array<i64: 1, 256>}, {pipeline_mode = #tpu.pipeline_mode<synchronous>, transform_indices = @transform_6, window_bounds = array<i64: 128, 128>}, {pipeline_mode = #tpu.pipeline_mode<synchronous>, transform_indices = @transform_7, window_bounds = array<i64: 1, 128>}, {pipeline_mode = #tpu.pipeline_mode<synchronous>, transform_indices = @transform_8, window_bounds = array<i64: 128, 128>}, {pipeline_mode = #tpu.pipeline_mode<synchronous>, transform_indices = @transform_9, window_bounds = array<i64: 1, 128>}, {pipeline_mode = #tpu.pipeline_mode<synchronous>, transform_indices = @transform_10, window_bounds = array<i64: 16, 32>}, {pipeline_mode = #tpu.pipeline_mode<synchronous>, transform_indices = @transform_11, window_bounds = array<i64: 16, 256>}, {pipeline_mode = #tpu.pipeline_mode<synchronous>, transform_indices = @transform_12, window_bounds = array<i64: 16, 16>}]} {
    %c0 = arith.constant 0 : index
    %c0_0 = arith.constant 0 : index
    %0 = vector.load %arg1[%c0, %c0_0] : memref<16x256xbf16, #tpu.memory_space<vmem>>, vector<16x256xbf16>
    %c0_1 = arith.constant 0 : index
    %c0_2 = arith.constant 0 : index
    %1 = vector.load %arg3[%c0_1, %c0_2] : memref<256x128xbf16, #tpu.memory_space<vmem>>, vector<256x128xbf16>
    %cst = arith.constant dense<0.000000e+00> : vector<16x128xf32>
    %2 = tpu.matmul %0, %1, %cst {dimension_numbers = #tpu.dot_dimension_numbers<[1], [0], [0], [1], [0, 0, 1, 1], [], []>} : vector<16x256xbf16>, vector<256x128xbf16>, vector<16x128xf32> -> vector<16x128xf32>
    %c0_3 = arith.constant 0 : index
    %c0_4 = arith.constant 0 : index
    %3 = vector.load %arg4[%c0_3, %c0_4] : memref<1x128xf32, #tpu.memory_space<vmem>>, vector<1x128xf32>
    %4 = vector.broadcast %3 : vector<1x128xf32> to vector<16x128xf32>
    %5 = arith.addf %2, %4 : vector<16x128xf32>
    %6 = vector.extract_strided_slice %5 {offsets = [0, 0], sizes = [16, 32], strides = [1, 1]} : vector<16x128xf32> to vector<16x32xf32>
    %c0_5 = arith.constant 0 : index
    %c0_6 = arith.constant 0 : index
    %7 = vector.load %arg11[%c0_5, %c0_6] : memref<16x32xf32, #tpu.memory_space<vmem>>, vector<16x32xf32>
    tpu.vector_store %arg11[%c0_5, %c0_6], %6 {strides = array<i32>} : memref<16x32xf32, #tpu.memory_space<vmem>>, vector<16x32xf32>,
    %8 = arith.truncf %5 : vector<16x128xf32> to vector<16x128xbf16>
    %c0_7 = arith.constant 0 : index
    %c0_8 = arith.constant 0 : index
    %9 = vector.load %arg5[%c0_7, %c0_8] : memref<128x256xbf16, #tpu.memory_space<vmem>>, vector<128x256xbf16>
    %cst_9 = arith.constant dense<0.000000e+00> : vector<16x256xf32>
    %10 = tpu.matmul %8, %9, %cst_9 {dimension_numbers = #tpu.dot_dimension_numbers<[1], [0], [0], [1], [0, 0, 1, 1], [], []>} : vector<16x128xbf16>, vector<128x256xbf16>, vector<16x256xf32> -> vector<16x256xf32>
    %c0_10 = arith.constant 0 : index
    %c0_11 = arith.constant 0 : index
    %11 = vector.load %arg6[%c0_10, %c0_11] : memref<1x256xf32, #tpu.memory_space<vmem>>, vector<1x256xf32>
    %12 = vector.broadcast %11 : vector<1x256xf32> to vector<16x256xf32>
    %13 = arith.addf %10, %12 : vector<16x256xf32>
    %14 = arith.truncf %13 : vector<16x256xf32> to vector<16x256xbf16>
    %c0_12 = arith.constant 0 : index
    %c0_13 = arith.constant 0 : index
    %15 = vector.load %arg12[%c0_12, %c0_13] : memref<16x256xbf16, #tpu.memory_space<vmem>>, vector<16x256xbf16>
    tpu.vector_store %arg12[%c0_12, %c0_13], %14 {strides = array<i32>} : memref<16x256xbf16, #tpu.memory_space<vmem>>, vector<16x256xbf16>,
    %c0_14 = arith.constant 0 : index
    %c0_15 = arith.constant 0 : index
    %16 = vector.load %arg2[%c0_14, %c0_15] : memref<16x128xbf16, #tpu.memory_space<vmem>>, vector<16x128xbf16>
    %c0_16 = arith.constant 0 : index
    %c0_17 = arith.constant 0 : index
    %17 = vector.load %arg7[%c0_16, %c0_17] : memref<128x128xbf16, #tpu.memory_space<vmem>>, vector<128x128xbf16>
    %cst_18 = arith.constant dense<0.000000e+00> : vector<16x128xf32>
    %18 = tpu.matmul %16, %17, %cst_18 {dimension_numbers = #tpu.dot_dimension_numbers<[1], [0], [0], [1], [0, 0, 1, 1], [], []>} : vector<16x128xbf16>, vector<128x128xbf16>, vector<16x128xf32> -> vector<16x128xf32>
    %c0_19 = arith.constant 0 : index
    %c0_20 = arith.constant 0 : index
    %19 = vector.load %arg8[%c0_19, %c0_20] : memref<1x128xf32, #tpu.memory_space<vmem>>, vector<1x128xf32>
    %20 = vector.broadcast %19 : vector<1x128xf32> to vector<16x128xf32>
    %21 = arith.addf %18, %20 : vector<16x128xf32>
    %cst_21 = arith.constant 0.000000e+00 : f32
    %22 = vector.broadcast %cst_21 : f32 to vector<16x128xf32>
    %23 = arith.maximumf %21, %22 : vector<16x128xf32>
    %24 = arith.truncf %23 : vector<16x128xf32> to vector<16x128xbf16>
    %c0_22 = arith.constant 0 : index
    %c0_23 = arith.constant 0 : index
    %25 = vector.load %arg9[%c0_22, %c0_23] : memref<128x128xbf16, #tpu.memory_space<vmem>>, vector<128x128xbf16>
    %cst_24 = arith.constant dense<0.000000e+00> : vector<16x128xf32>
    %26 = tpu.matmul %24, %25, %cst_24 {dimension_numbers = #tpu.dot_dimension_numbers<[1], [0], [0], [1], [0, 0, 1, 1], [], []>} : vector<16x128xbf16>, vector<128x128xbf16>, vector<16x128xf32> -> vector<16x128xf32>
    %c0_25 = arith.constant 0 : index
    %c0_26 = arith.constant 0 : index
    %27 = vector.load %arg10[%c0_25, %c0_26] : memref<1x128xf32, #tpu.memory_space<vmem>>, vector<1x128xf32>
    %28 = vector.broadcast %27 : vector<1x128xf32> to vector<16x128xf32>
    %29 = arith.addf %26, %28 : vector<16x128xf32>
    %30 = vector.extract_strided_slice %29 {offsets = [0, 0], sizes = [16, 16], strides = [1, 1]} : vector<16x128xf32> to vector<16x16xf32>
    %c0_27 = arith.constant 0 : index
    %c0_28 = arith.constant 0 : index
    %31 = vector.load %arg13[%c0_27, %c0_28] : memref<16x16xf32, #tpu.memory_space<vmem>>, vector<16x16xf32>
    tpu.vector_store %arg13[%c0_27, %c0_28], %30 {strides = array<i32>} : memref<16x16xf32, #tpu.memory_space<vmem>>, vector<16x16xf32>,
    return
  }
  func.func @transform_0(%arg0: i32) -> (i32, i32) {
    %c0_i32 = arith.constant 0 : i32
    %c0_i32_0 = arith.constant 0 : i32
    %c0_i32_1 = arith.constant 0 : i32
    return %c0_i32, %c0_i32_0 : i32, i32
  }
  func.func @transform_1(%arg0: i32) -> (i32, i32) {
    %c0_i32 = arith.constant 0 : i32
    %c0_i32_0 = arith.constant 0 : i32
    %c0_i32_1 = arith.constant 0 : i32
    return %c0_i32, %c0_i32_0 : i32, i32
  }
  func.func @transform_2(%arg0: i32) -> (i32, i32) {
    %c0_i32 = arith.constant 0 : i32
    %c0_i32_0 = arith.constant 0 : i32
    %c0_i32_1 = arith.constant 0 : i32
    return %c0_i32, %c0_i32_0 : i32, i32
  }
  func.func @transform_3(%arg0: i32) -> (i32, i32) {
    %c0_i32 = arith.constant 0 : i32
    %c0_i32_0 = arith.constant 0 : i32
    %c0_i32_1 = arith.constant 0 : i32
    return %c0_i32, %c0_i32_0 : i32, i32
  }
  func.func @transform_4(%arg0: i32) -> (i32, i32) {
    %c0_i32 = arith.constant 0 : i32
    %c0_i32_0 = arith.constant 0 : i32
    %c0_i32_1 = arith.constant 0 : i32
    return %c0_i32, %c0_i32_0 : i32, i32
  }
  func.func @transform_5(%arg0: i32) -> (i32, i32) {
    %c0_i32 = arith.constant 0 : i32
    %c0_i32_0 = arith.constant 0 : i32
    %c0_i32_1 = arith.constant 0 : i32
    return %c0_i32, %c0_i32_0 : i32, i32
  }
  func.func @transform_6(%arg0: i32) -> (i32, i32) {
    %c0_i32 = arith.constant 0 : i32
    %c0_i32_0 = arith.constant 0 : i32
    %c0_i32_1 = arith.constant 0 : i32
    return %c0_i32, %c0_i32_0 : i32, i32
  }
  func.func @transform_7(%arg0: i32) -> (i32, i32) {
    %c0_i32 = arith.constant 0 : i32
    %c0_i32_0 = arith.constant 0 : i32
    %c0_i32_1 = arith.constant 0 : i32
    return %c0_i32, %c0_i32_0 : i32, i32
  }
  func.func @transform_8(%arg0: i32) -> (i32, i32) {
    %c0_i32 = arith.constant 0 : i32
    %c0_i32_0 = arith.constant 0 : i32
    %c0_i32_1 = arith.constant 0 : i32
    return %c0_i32, %c0_i32_0 : i32, i32
  }
  func.func @transform_9(%arg0: i32) -> (i32, i32) {
    %c0_i32 = arith.constant 0 : i32
    %c0_i32_0 = arith.constant 0 : i32
    %c0_i32_1 = arith.constant 0 : i32
    return %c0_i32, %c0_i32_0 : i32, i32
  }
  func.func @transform_10(%arg0: i32) -> (i32, i32) {
    %c0_i32 = arith.constant 0 : i32
    %c0_i32_0 = arith.constant 0 : i32
    %c0_i32_1 = arith.constant 0 : i32
    return %c0_i32, %c0_i32_0 : i32, i32
  }
  func.func @transform_11(%arg0: i32) -> (i32, i32) {
    %c0_i32 = arith.constant 0 : i32
    %c0_i32_0 = arith.constant 0 : i32
    %c0_i32_1 = arith.constant 0 : i32
    return %c0_i32, %c0_i32_0 : i32, i32
  }
  func.func @transform_12(%arg0: i32) -> (i32, i32) {
    %c0_i32 = arith.constant 0 : i32
    %c0_i32_0 = arith.constant 0 : i32
    %c0_i32_1 = arith.constant 0 : i32
    return %c0_i32, %c0_i32_0 : i32, i32
  }
}

module attributes {stable_mosaic.version = 11 : i64} {
  func.func @_matmul_kernel(%arg0: i32, %arg1: memref<64x256xbf16, #tpu.memory_space<vmem>>, %arg2: memref<256x128xbf16, #tpu.memory_space<vmem>>, %arg3: memref<1x128xf32, #tpu.memory_space<vmem>>, %arg4: memref<64x8xbf16, #tpu.memory_space<vmem>>) attributes {dimension_semantics = [#tpu.dimension_semantics<parallel>], iteration_bounds = array<i64: 1>, scalar_prefetch = 0 : i64, scratch_operands = 0 : i64, tpu.core_type = #tpu.core_type<tc>, window_params = [{transform_indices = @transform_0, window_bounds = array<i64: 64, 256>}, {pipeline_mode = #tpu.pipeline_mode<synchronous>, transform_indices = @transform_1, window_bounds = array<i64: 256, 128>}, {pipeline_mode = #tpu.pipeline_mode<synchronous>, transform_indices = @transform_2, window_bounds = array<i64: 1, 128>}, {transform_indices = @transform_3, window_bounds = array<i64: 64, 8>}]} {
    %c0 = arith.constant 0 : index
    %c0_0 = arith.constant 0 : index
    %0 = vector.load %arg1[%c0, %c0_0] : memref<64x256xbf16, #tpu.memory_space<vmem>>, vector<64x256xbf16>
    %c0_1 = arith.constant 0 : index
    %c0_2 = arith.constant 0 : index
    %1 = vector.load %arg2[%c0_1, %c0_2] : memref<256x128xbf16, #tpu.memory_space<vmem>>, vector<256x128xbf16>
    %cst = arith.constant dense<0.000000e+00> : vector<64x128xf32>
    %2 = tpu.matmul %0, %1, %cst {dimension_numbers = #tpu.dot_dimension_numbers<[1], [0], [0], [1], [0, 0, 1, 1], [], []>} : vector<64x256xbf16>, vector<256x128xbf16>, vector<64x128xf32> -> vector<64x128xf32>
    %c0_3 = arith.constant 0 : index
    %c0_4 = arith.constant 0 : index
    %3 = vector.load %arg3[%c0_3, %c0_4] : memref<1x128xf32, #tpu.memory_space<vmem>>, vector<1x128xf32>
    %4 = vector.broadcast %3 : vector<1x128xf32> to vector<64x128xf32>
    %5 = arith.addf %2, %4 : vector<64x128xf32>
    %cst_5 = arith.constant 0.000000e+00 : f32
    %6 = vector.broadcast %cst_5 : f32 to vector<64x128xf32>
    %7 = arith.maximumf %5, %6 : vector<64x128xf32>
    %8 = vector.extract_strided_slice %7 {offsets = [0, 0], sizes = [64, 8], strides = [1, 1]} : vector<64x128xf32> to vector<64x8xf32>
    %9 = arith.truncf %8 : vector<64x8xf32> to vector<64x8xbf16>
    %c0_6 = arith.constant 0 : index
    %c0_7 = arith.constant 0 : index
    %10 = vector.load %arg4[%c0_6, %c0_7] : memref<64x8xbf16, #tpu.memory_space<vmem>>, vector<64x8xbf16>
    tpu.vector_store %arg4[%c0_6, %c0_7], %9 {strides = array<i32>} : memref<64x8xbf16, #tpu.memory_space<vmem>>, vector<64x8xbf16>,
    return
  }
  func.func @transform_0(%arg0: i32) -> (i32, i32) {
    %c0_i32 = arith.constant 0 : i32
    %c0_i32_0 = arith.constant 0 : i32
    return %arg0, %c0_i32 : i32, i32
  }
  func.func @transform_1(%arg0: i32) -> (i32, i32) {
    %c0_i32 = arith.constant 0 : i32
    %c0_i32_0 = arith.constant 0 : i32
    %c0_i32_1 = arith.constant 0 : i32
    return %c0_i32, %c0_i32_0 : i32, i32
  }
  func.func @transform_2(%arg0: i32) -> (i32, i32) {
    %c0_i32 = arith.constant 0 : i32
    %c0_i32_0 = arith.constant 0 : i32
    %c0_i32_1 = arith.constant 0 : i32
    return %c0_i32, %c0_i32_0 : i32, i32
  }
  func.func @transform_3(%arg0: i32) -> (i32, i32) {
    %c0_i32 = arith.constant 0 : i32
    %c0_i32_0 = arith.constant 0 : i32
    return %arg0, %c0_i32 : i32, i32
  }
}

module attributes {stable_mosaic.version = 11 : i64} {
  func.func @_matmul_kernel(%arg0: i32, %arg1: memref<512x256xbf16, #tpu.memory_space<vmem>>, %arg2: memref<256x128xbf16, #tpu.memory_space<vmem>>, %arg3: memref<1x128xf32, #tpu.memory_space<vmem>>, %arg4: memref<512x8xbf16, #tpu.memory_space<vmem>>) attributes {dimension_semantics = [#tpu.dimension_semantics<parallel>], iteration_bounds = array<i64: 1>, scalar_prefetch = 0 : i64, scratch_operands = 0 : i64, tpu.core_type = #tpu.core_type<tc>, window_params = [{transform_indices = @transform_0, window_bounds = array<i64: 512, 256>}, {pipeline_mode = #tpu.pipeline_mode<synchronous>, transform_indices = @transform_1, window_bounds = array<i64: 256, 128>}, {pipeline_mode = #tpu.pipeline_mode<synchronous>, transform_indices = @transform_2, window_bounds = array<i64: 1, 128>}, {transform_indices = @transform_3, window_bounds = array<i64: 512, 8>}]} {
    %c0 = arith.constant 0 : index
    %c0_0 = arith.constant 0 : index
    %0 = vector.load %arg1[%c0, %c0_0] : memref<512x256xbf16, #tpu.memory_space<vmem>>, vector<512x256xbf16>
    %c0_1 = arith.constant 0 : index
    %c0_2 = arith.constant 0 : index
    %1 = vector.load %arg2[%c0_1, %c0_2] : memref<256x128xbf16, #tpu.memory_space<vmem>>, vector<256x128xbf16>
    %cst = arith.constant dense<0.000000e+00> : vector<512x128xf32>
    %2 = tpu.matmul %0, %1, %cst {dimension_numbers = #tpu.dot_dimension_numbers<[1], [0], [0], [1], [0, 0, 1, 1], [], []>} : vector<512x256xbf16>, vector<256x128xbf16>, vector<512x128xf32> -> vector<512x128xf32>
    %c0_3 = arith.constant 0 : index
    %c0_4 = arith.constant 0 : index
    %3 = vector.load %arg3[%c0_3, %c0_4] : memref<1x128xf32, #tpu.memory_space<vmem>>, vector<1x128xf32>
    %4 = vector.broadcast %3 : vector<1x128xf32> to vector<512x128xf32>
    %5 = arith.addf %2, %4 : vector<512x128xf32>
    %cst_5 = arith.constant 0.000000e+00 : f32
    %6 = vector.broadcast %cst_5 : f32 to vector<512x128xf32>
    %7 = arith.maximumf %5, %6 : vector<512x128xf32>
    %8 = vector.extract_strided_slice %7 {offsets = [0, 0], sizes = [512, 8], strides = [1, 1]} : vector<512x128xf32> to vector<512x8xf32>
    %9 = arith.truncf %8 : vector<512x8xf32> to vector<512x8xbf16>
    %c0_6 = arith.constant 0 : index
    %c0_7 = arith.constant 0 : index
    %10 = vector.load %arg4[%c0_6, %c0_7] : memref<512x8xbf16, #tpu.memory_space<vmem>>, vector<512x8xbf16>
    tpu.vector_store %arg4[%c0_6, %c0_7], %9 {strides = array<i32>} : memref<512x8xbf16, #tpu.memory_space<vmem>>, vector<512x8xbf16>,
    return
  }
  func.func @transform_0(%arg0: i32) -> (i32, i32) {
    %c0_i32 = arith.constant 0 : i32
    %c0_i32_0 = arith.constant 0 : i32
    return %arg0, %c0_i32 : i32, i32
  }
  func.func @transform_1(%arg0: i32) -> (i32, i32) {
    %c0_i32 = arith.constant 0 : i32
    %c0_i32_0 = arith.constant 0 : i32
    %c0_i32_1 = arith.constant 0 : i32
    return %c0_i32, %c0_i32_0 : i32, i32
  }
  func.func @transform_2(%arg0: i32) -> (i32, i32) {
    %c0_i32 = arith.constant 0 : i32
    %c0_i32_0 = arith.constant 0 : i32
    %c0_i32_1 = arith.constant 0 : i32
    return %c0_i32, %c0_i32_0 : i32, i32
  }
  func.func @transform_3(%arg0: i32) -> (i32, i32) {
    %c0_i32 = arith.constant 0 : i32
    %c0_i32_0 = arith.constant 0 : i32
    return %arg0, %c0_i32 : i32, i32
  }
}

module attributes {stable_mosaic.version = 11 : i64} {
  func.func @_matmul_kernel(%arg0: i32, %arg1: memref<2048x256xbf16, #tpu.memory_space<vmem>>, %arg2: memref<256x128xbf16, #tpu.memory_space<vmem>>, %arg3: memref<1x128xf32, #tpu.memory_space<vmem>>, %arg4: memref<2048x4xbf16, #tpu.memory_space<vmem>>) attributes {dimension_semantics = [#tpu.dimension_semantics<parallel>], iteration_bounds = array<i64: 2>, scalar_prefetch = 0 : i64, scratch_operands = 0 : i64, tpu.core_type = #tpu.core_type<tc>, window_params = [{transform_indices = @transform_0, window_bounds = array<i64: 2048, 256>}, {pipeline_mode = #tpu.pipeline_mode<synchronous>, transform_indices = @transform_1, window_bounds = array<i64: 256, 128>}, {pipeline_mode = #tpu.pipeline_mode<synchronous>, transform_indices = @transform_2, window_bounds = array<i64: 1, 128>}, {transform_indices = @transform_3, window_bounds = array<i64: 2048, 4>}]} {
    %c0 = arith.constant 0 : index
    %c0_0 = arith.constant 0 : index
    %0 = vector.load %arg1[%c0, %c0_0] : memref<2048x256xbf16, #tpu.memory_space<vmem>>, vector<2048x256xbf16>
    %c0_1 = arith.constant 0 : index
    %c0_2 = arith.constant 0 : index
    %1 = vector.load %arg2[%c0_1, %c0_2] : memref<256x128xbf16, #tpu.memory_space<vmem>>, vector<256x128xbf16>
    %cst = arith.constant dense<0.000000e+00> : vector<2048x128xf32>
    %2 = tpu.matmul %0, %1, %cst {dimension_numbers = #tpu.dot_dimension_numbers<[1], [0], [0], [1], [0, 0, 1, 1], [], []>} : vector<2048x256xbf16>, vector<256x128xbf16>, vector<2048x128xf32> -> vector<2048x128xf32>
    %c0_3 = arith.constant 0 : index
    %c0_4 = arith.constant 0 : index
    %3 = vector.load %arg3[%c0_3, %c0_4] : memref<1x128xf32, #tpu.memory_space<vmem>>, vector<1x128xf32>
    %4 = vector.broadcast %3 : vector<1x128xf32> to vector<2048x128xf32>
    %5 = arith.addf %2, %4 : vector<2048x128xf32>
    %cst_5 = arith.constant 0.000000e+00 : f32
    %6 = vector.broadcast %cst_5 : f32 to vector<2048x128xf32>
    %7 = arith.maximumf %5, %6 : vector<2048x128xf32>
    %8 = vector.extract_strided_slice %7 {offsets = [0, 0], sizes = [2048, 4], strides = [1, 1]} : vector<2048x128xf32> to vector<2048x4xf32>
    %9 = arith.truncf %8 : vector<2048x4xf32> to vector<2048x4xbf16>
    %c0_6 = arith.constant 0 : index
    %c0_7 = arith.constant 0 : index
    %10 = vector.load %arg4[%c0_6, %c0_7] : memref<2048x4xbf16, #tpu.memory_space<vmem>>, vector<2048x4xbf16>
    tpu.vector_store %arg4[%c0_6, %c0_7], %9 {strides = array<i32>} : memref<2048x4xbf16, #tpu.memory_space<vmem>>, vector<2048x4xbf16>,
    return
  }
  func.func @transform_0(%arg0: i32) -> (i32, i32) {
    %c0_i32 = arith.constant 0 : i32
    %c0_i32_0 = arith.constant 0 : i32
    return %arg0, %c0_i32 : i32, i32
  }
  func.func @transform_1(%arg0: i32) -> (i32, i32) {
    %c0_i32 = arith.constant 0 : i32
    %c0_i32_0 = arith.constant 0 : i32
    %c0_i32_1 = arith.constant 0 : i32
    return %c0_i32, %c0_i32_0 : i32, i32
  }
  func.func @transform_2(%arg0: i32) -> (i32, i32) {
    %c0_i32 = arith.constant 0 : i32
    %c0_i32_0 = arith.constant 0 : i32
    %c0_i32_1 = arith.constant 0 : i32
    return %c0_i32, %c0_i32_0 : i32, i32
  }
  func.func @transform_3(%arg0: i32) -> (i32, i32) {
    %c0_i32 = arith.constant 0 : i32
    %c0_i32_0 = arith.constant 0 : i32
    return %arg0, %c0_i32 : i32, i32
  }
}

module attributes {stable_mosaic.version = 11 : i64} {
  func.func @_matmul_kernel(%arg0: i32, %arg1: memref<2048x128xbf16, #tpu.memory_space<vmem>>, %arg2: memref<128x128xbf16, #tpu.memory_space<vmem>>, %arg3: memref<1x128xf32, #tpu.memory_space<vmem>>, %arg4: memref<2048x1xf32, #tpu.memory_space<vmem>>) attributes {dimension_semantics = [#tpu.dimension_semantics<parallel>], iteration_bounds = array<i64: 2>, scalar_prefetch = 0 : i64, scratch_operands = 0 : i64, tpu.core_type = #tpu.core_type<tc>, window_params = [{transform_indices = @transform_0, window_bounds = array<i64: 2048, 128>}, {pipeline_mode = #tpu.pipeline_mode<synchronous>, transform_indices = @transform_1, window_bounds = array<i64: 128, 128>}, {pipeline_mode = #tpu.pipeline_mode<synchronous>, transform_indices = @transform_2, window_bounds = array<i64: 1, 128>}, {transform_indices = @transform_3, window_bounds = array<i64: 2048, 1>}]} {
    %c0 = arith.constant 0 : index
    %c0_0 = arith.constant 0 : index
    %0 = vector.load %arg1[%c0, %c0_0] : memref<2048x128xbf16, #tpu.memory_space<vmem>>, vector<2048x128xbf16>
    %c0_1 = arith.constant 0 : index
    %c0_2 = arith.constant 0 : index
    %1 = vector.load %arg2[%c0_1, %c0_2] : memref<128x128xbf16, #tpu.memory_space<vmem>>, vector<128x128xbf16>
    %cst = arith.constant dense<0.000000e+00> : vector<2048x128xf32>
    %2 = tpu.matmul %0, %1, %cst {dimension_numbers = #tpu.dot_dimension_numbers<[1], [0], [0], [1], [0, 0, 1, 1], [], []>} : vector<2048x128xbf16>, vector<128x128xbf16>, vector<2048x128xf32> -> vector<2048x128xf32>
    %c0_3 = arith.constant 0 : index
    %c0_4 = arith.constant 0 : index
    %3 = vector.load %arg3[%c0_3, %c0_4] : memref<1x128xf32, #tpu.memory_space<vmem>>, vector<1x128xf32>
    %4 = vector.broadcast %3 : vector<1x128xf32> to vector<2048x128xf32>
    %5 = arith.addf %2, %4 : vector<2048x128xf32>
    %6 = vector.extract_strided_slice %5 {offsets = [0, 0], sizes = [2048, 1], strides = [1, 1]} : vector<2048x128xf32> to vector<2048x1xf32>
    %c0_5 = arith.constant 0 : index
    %c0_6 = arith.constant 0 : index
    %7 = vector.load %arg4[%c0_5, %c0_6] : memref<2048x1xf32, #tpu.memory_space<vmem>>, vector<2048x1xf32>
    tpu.vector_store %arg4[%c0_5, %c0_6], %6 {strides = array<i32>} : memref<2048x1xf32, #tpu.memory_space<vmem>>, vector<2048x1xf32>,
    return
  }
  func.func @transform_0(%arg0: i32) -> (i32, i32) {
    %c0_i32 = arith.constant 0 : i32
    %c0_i32_0 = arith.constant 0 : i32
    return %arg0, %c0_i32 : i32, i32
  }
  func.func @transform_1(%arg0: i32) -> (i32, i32) {
    %c0_i32 = arith.constant 0 : i32
    %c0_i32_0 = arith.constant 0 : i32
    %c0_i32_1 = arith.constant 0 : i32
    return %c0_i32, %c0_i32_0 : i32, i32
  }
  func.func @transform_2(%arg0: i32) -> (i32, i32) {
    %c0_i32 = arith.constant 0 : i32
    %c0_i32_0 = arith.constant 0 : i32
    %c0_i32_1 = arith.constant 0 : i32
    return %c0_i32, %c0_i32_0 : i32, i32
  }
  func.func @transform_3(%arg0: i32) -> (i32, i32) {
    %c0_i32 = arith.constant 0 : i32
    %c0_i32_0 = arith.constant 0 : i32
    return %arg0, %c0_i32 : i32, i32
  }
}

</mosaic_0001>

<llo_original>
// kernel: _lambda_.7
$region0: #{_lambda_.7}
  #allocation0 [shape = 'u32[]', space=smem, size = 0x4, offset = 0x4, fixed_abs, tag = 'smem constant byte address 0x4 - core index']
  #allocation1 [shape = 'u32[144,128]{1,0:T(1,128)}', space=vmem, size = 0x12000, scoped, tag = 'internal scratch']
  %s0 = inlined_call_operand.vmem [shape: bf16[512,128], index: 0, kind: input, shape index: {}]
  %s1 = inlined_call_operand.vmem [shape: bf16[128,128], index: 1, kind: input, shape index: {}]
  %s2 = inlined_call_operand.vmem [shape: f32[1,128], index: 2, kind: input, shape index: {}]
  %s3 = inlined_call_operand.vmem [shape: bf16[512,4], index: 3, kind: output, shape index: {}]
  %s4 = sld [smem:[#allocation0]]
  $region22: #{_lambda_.7} parent=0
    _
  %s6 = ssub.s32 1, %s4
  %s7 = scalar_select 0, %s6, %s4
  // Predicated region
  $region2: #{_lambda_.7} parent=0 // pred_check
    _
  $region3: #{_lambda_.7} parent=0 // pred_check_branch
    %9 = sbr.rel (0) target = $region5
  $region4: #{_lambda_.7} parent=0 // pred_region
    _
  $region5: #{_lambda_.7} parent=0 // pred_fallthru
    _
  // Predicated region
  $region6: #{_lambda_.7} parent=0 // pred_check
    _
  $region7: #{_lambda_.7} parent=0 // pred_check_branch
    %11 = sbr.rel (0) target = $region9
  $region8: #{_lambda_.7} parent=0 // pred_region
    _
  $region9: #{_lambda_.7} parent=0 // pred_fallthru
    _
  // Predicated region
  $region10: #{_lambda_.7} parent=0 // pred_check
    _
  $region11: #{_lambda_.7} parent=0 // pred_check_branch
    %13 = sbr.rel (0) target = $region13
  $region12: #{_lambda_.7} parent=0 // pred_region
    _
  $region13: #{_lambda_.7} parent=0 // pred_fallthru
    _
  %v15 = vld [vmem:[%s0] sm:$0xf]
  %v16 = vld [vmem:[%s0 + $0x4] sm:$0xf]
  %v17 = vld [vmem:[%s0 + $0x8] sm:$0xf]
  %v18 = vld [vmem:[%s0 + $0xc] sm:$0xf]
  %v19 = vld [vmem:[%s0 + $0x10] sm:$0xf]
  %v20 = vld [vmem:[%s0 + $0x14] sm:$0xf]
  %v21 = vld [vmem:[%s0 + $0x18] sm:$0xf]
  %v22 = vld [vmem:[%s0 + $0x1c] sm:$0xf]
  %v23 = vld [vmem:[%s0 + $0x20] sm:$0xf]
  %v24 = vld [vmem:[%s0 + $0x24] sm:$0xf]
  %v25 = vld [vmem:[%s0 + $0x28] sm:$0xf]
  %v26 = vld [vmem:[%s0 + $0x2c] sm:$0xf]
  %v27 = vld [vmem:[%s0 + $0x30] sm:$0xf]
  %v28 = vld [vmem:[%s0 + $0x34] sm:$0xf]
  %v29 = vld [vmem:[%s0 + $0x38] sm:$0xf]
  %v30 = vld [vmem:[%s0 + $0x3c] sm:$0xf]
  %v31 = vld [vmem:[%s0 + $0x40] sm:$0xf]
  %v32 = vld [vmem:[%s0 + $0x44] sm:$0xf]
  %v33 = vld [vmem:[%s0 + $0x48] sm:$0xf]
  %v34 = vld [vmem:[%s0 + $0x4c] sm:$0xf]
  %v35 = vld [vmem:[%s0 + $0x50] sm:$0xf]
  %v36 = vld [vmem:[%s0 + $0x54] sm:$0xf]
  %v37 = vld [vmem:[%s0 + $0x58] sm:$0xf]
  %v38 = vld [vmem:[%s0 + $0x5c] sm:$0xf]
  %v39 = vld [vmem:[%s0 + $0x60] sm:$0xf]
  %v40 = vld [vmem:[%s0 + $0x64] sm:$0xf]
  %v41 = vld [vmem:[%s0 + $0x68] sm:$0xf]
  %v42 = vld [vmem:[%s0 + $0x6c] sm:$0xf]
  %v43 = vld [vmem:[%s0 + $0x70] sm:$0xf]
  %v44 = vld [vmem:[%s0 + $0x74] sm:$0xf]
  %v45 = vld [vmem:[%s0 + $0x78] sm:$0xf]
  %v46 = vld [vmem:[%s0 + $0x7c] sm:$0xf]
  %v47 = vld [vmem:[%s0 + $0x80] sm:$0xf]
  %v48 = vld [vmem:[%s0 + $0x84] sm:$0xf]
  %v49 = vld [vmem:[%s0 + $0x88] sm:$0xf]
  %v50 = vld [vmem:[%s0 + $0x8c] sm:$0xf]
  %v51 = vld [vmem:[%s0 + $0x90] sm:$0xf]
  %v52 = vld [vmem:[%s0 + $0x94] sm:$0xf]
  %v53 = vld [vmem:[%s0 + $0x98] sm:$0xf]
  %v54 = vld [vmem:[%s0 + $0x9c] sm:$0xf]
  %v55 = vld [vmem:[%s0 + $0xa0] sm:$0xf]
  %v56 = vld [vmem:[%s0 + $0xa4] sm:$0xf]
  %v57 = vld [vmem:[%s0 + $0xa8] sm:$0xf]
  %v58 = vld [vmem:[%s0 + $0xac] sm:$0xf]
  %v59 = vld [vmem:[%s0 + $0xb0] sm:$0xf]
  %v60 = vld [vmem:[%s0 + $0xb4] sm:$0xf]
  %v61 = vld [vmem:[%s0 + $0xb8] sm:$0xf]
  %v62 = vld [vmem:[%s0 + $0xbc] sm:$0xf]
  %v63 = vld [vmem:[%s0 + $0xc0] sm:$0xf]
  %v64 = vld [vmem:[%s0 + $0xc4] sm:$0xf]
  %v65 = vld [vmem:[%s0 + $0xc8] sm:$0xf]
  %v66 = vld [vmem:[%s0 + $0xcc] sm:$0xf]
  %v67 = vld [vmem:[%s0 + $0xd0] sm:$0xf]
  %v68 = vld [vmem:[%s0 + $0xd4] sm:$0xf]
  %v69 = vld [vmem:[%s0 + $0xd8] sm:$0xf]
  %v70 = vld [vmem:[%s0 + $0xdc] sm:$0xf]
  %v71 = vld [vmem:[%s0 + $0xe0] sm:$0xf]
  %v72 = vld [vmem:[%s0 + $0xe4] sm:$0xf]
  %v73 = vld [vmem:[%s0 + $0xe8] sm:$0xf]
  %v74 = vld [vmem:[%s0 + $0xec] sm:$0xf]
  %v75 = vld [vmem:[%s0 + $0xf0] sm:$0xf]
  %v76 = vld [vmem:[%s0 + $0xf4] sm:$0xf]
  %v77 = vld [vmem:[%s0 + $0xf8] sm:$0xf]
  %v78 = vld [vmem:[%s0 + $0xfc] sm:$0xf]
  %v79 = vld [vmem:[%s1] sm:$0xf]
  %v80 = vld [vmem:[%s1 + $0x4] sm:$0xf]
  %v81 = vld [vmem:[%s1 + $0x8] sm:$0xf]
  %v82 = vld [vmem:[%s1 + $0xc] sm:$0xf]
  %v83 = vld [vmem:[%s1 + $0x10] sm:$0xf]
  %v84 = vld [vmem:[%s1 + $0x14] sm:$0xf]
  %v85 = vld [vmem:[%s1 + $0x18] sm:$0xf]
  %v86 = vld [vmem:[%s1 + $0x1c] sm:$0xf]
  %v87 = vld [vmem:[%s1 + $0x20] sm:$0xf]
  %v88 = vld [vmem:[%s1 + $0x24] sm:$0xf]
  %v89 = vld [vmem:[%s1 + $0x28] sm:$0xf]
  %v90 = vld [vmem:[%s1 + $0x2c] sm:$0xf]
  %v91 = vld [vmem:[%s1 + $0x30] sm:$0xf]
  %v92 = vld [vmem:[%s1 + $0x34] sm:$0xf]
  %v93 = vld [vmem:[%s1 + $0x38] sm:$0xf]
  %v94 = vld [vmem:[%s1 + $0x3c] sm:$0xf]
  %v95 = vld [vmem:[%s2] sm:$0x1]
  %v97 = vlaneseq
  %v98 = vshrl.u32 %v97, 7
  %v99 = vsub.s32 0, %v98
  %v100 = vrot.slane %v95, %v99
  %v166 = vunpack.c.l.b16 %v15
  %v167 = vunpack.c.l.b16 %v16
  %v168 = vunpack.c.l.b16 %v17
  %v169 = vunpack.c.l.b16 %v18
  %v170 = vunpack.c.l.b16 %v19
  %v171 = vunpack.c.l.b16 %v20
  %v172 = vunpack.c.l.b16 %v21
  %v173 = vunpack.c.l.b16 %v22
  %v174 = vunpack.c.l.b16 %v23
  %v175 = vunpack.c.l.b16 %v24
  %v176 = vunpack.c.l.b16 %v25
  %v177 = vunpack.c.l.b16 %v26
  %v178 = vunpack.c.l.b16 %v27
  %v179 = vunpack.c.l.b16 %v28
  %v180 = vunpack.c.l.b16 %v29
  %v181 = vunpack.c.l.b16 %v30
  %v182 = vunpack.c.l.b16 %v31
  %v183 = vunpack.c.l.b16 %v32
  %v184 = vunpack.c.l.b16 %v33
  %v185 = vunpack.c.l.b16 %v34
  %v186 = vunpack.c.l.b16 %v35
  %v187 = vunpack.c.l.b16 %v36
  %v188 = vunpack.c.l.b16 %v37
  %v189 = vunpack.c.l.b16 %v38
  %v190 = vunpack.c.l.b16 %v39
  %v191 = vunpack.c.l.b16 %v40
  %v192 = vunpack.c.l.b16 %v41
  %v193 = vunpack.c.l.b16 %v42
  %v194 = vunpack.c.l.b16 %v43
  %v195 = vunpack.c.l.b16 %v44
  %v196 = vunpack.c.l.b16 %v45
  %v197 = vunpack.c.l.b16 %v46
  %v198 = vunpack.c.l.b16 %v47
  %v199 = vunpack.c.l.b16 %v48
  %v200 = vunpack.c.l.b16 %v49
  %v201 = vunpack.c.l.b16 %v50
  %v202 = vunpack.c.l.b16 %v51
  %v203 = vunpack.c.l.b16 %v52
  %v204 = vunpack.c.l.b16 %v53
  %v205 = vunpack.c.l.b16 %v54
  %v206 = vunpack.c.l.b16 %v55
  %v207 = vunpack.c.l.b16 %v56
  %v208 = vunpack.c.l.b16 %v57
  %v209 = vunpack.c.l.b16 %v58
  %v210 = vunpack.c.l.b16 %v59
  %v211 = vunpack.c.l.b16 %v60
  %v212 = vunpack.c.l.b16 %v61
  %v213 = vunpack.c.l.b16 %v62
  %v214 = vunpack.c.l.b16 %v63
  %v215 = vunpack.c.l.b16 %v64
  %v216 = vunpack.c.l.b16 %v65
  %v217 = vunpack.c.l.b16 %v66
  %v218 = vunpack.c.l.b16 %v67
  %v219 = vunpack.c.l.b16 %v68
  %v220 = vunpack.c.l.b16 %v69
  %v221 = vunpack.c.l.b16 %v70
  %v222 = vunpack.c.l.b16 %v71
  %v223 = vunpack.c.l.b16 %v72
  %v224 = vunpack.c.l.b16 %v73
  %v225 = vunpack.c.l.b16 %v74
  %v226 = vunpack.c.l.b16 %v75
  %v227 = vunpack.c.l.b16 %v76
  %v228 = vunpack.c.l.b16 %v77
  %v229 = vunpack.c.l.b16 %v78
  %v230 = vpack.c.b16 %v167, %v166
  %v231 = vpack.c.b16 %v169, %v168
  %v232 = vpack.c.b16 %v171, %v170
  %v233 = vpack.c.b16 %v173, %v172
  %v234 = vpack.c.b16 %v175, %v174
  %v235 = vpack.c.b16 %v177, %v176
  %v236 = vpack.c.b16 %v179, %v178
  %v237 = vpack.c.b16 %v181, %v180
  %v238 = vpack.c.b16 %v183, %v182
  %v239 = vpack.c.b16 %v185, %v184
  %v240 = vpack.c.b16 %v187, %v186
  %v241 = vpack.c.b16 %v189, %v188
  %v242 = vpack.c.b16 %v191, %v190
  %v243 = vpack.c.b16 %v193, %v192
  %v244 = vpack.c.b16 %v195, %v194
  %v245 = vpack.c.b16 %v197, %v196
  %v246 = vpack.c.b16 %v199, %v198
  %v247 = vpack.c.b16 %v201, %v200
  %v248 = vpack.c.b16 %v203, %v202
  %v249 = vpack.c.b16 %v205, %v204
  %v250 = vpack.c.b16 %v207, %v206
  %v251 = vpack.c.b16 %v209, %v208
  %v252 = vpack.c.b16 %v211, %v210
  %v253 = vpack.c.b16 %v213, %v212
  %v254 = vpack.c.b16 %v215, %v214
  %v255 = vpack.c.b16 %v217, %v216
  %v256 = vpack.c.b16 %v219, %v218
  %v257 = vpack.c.b16 %v221, %v220
  %v258 = vpack.c.b16 %v223, %v222
  %v259 = vpack.c.b16 %v225, %v224
  %v260 = vpack.c.b16 %v227, %v226
  %v261 = vpack.c.b16 %v229, %v228
  %v310 = vunpack.c.l.b16 %v79
  %v311 = vunpack.c.l.b16 %v80
  %v312 = vunpack.c.l.b16 %v81
  %v313 = vunpack.c.l.b16 %v82
  %v314 = vunpack.c.l.b16 %v83
  %v315 = vunpack.c.l.b16 %v84
  %v316 = vunpack.c.l.b16 %v85
  %v317 = vunpack.c.l.b16 %v86
  %v318 = vunpack.c.l.b16 %v87
  %v319 = vunpack.c.l.b16 %v88
  %v320 = vunpack.c.l.b16 %v89
  %v321 = vunpack.c.l.b16 %v90
  %v322 = vunpack.c.l.b16 %v91
  %v323 = vunpack.c.l.b16 %v92
  %v324 = vunpack.c.l.b16 %v93
  %v325 = vunpack.c.l.b16 %v94
  %v326 = vpack.c.b16 %v311, %v310
  %v327 = vpack.c.b16 %v313, %v312
  %v328 = vpack.c.b16 %v315, %v314
  %v329 = vpack.c.b16 %v317, %v316
  %v330 = vpack.c.b16 %v319, %v318
  %v331 = vpack.c.b16 %v321, %v320
  %v332 = vpack.c.b16 %v323, %v322
  %v333 = vpack.c.b16 %v325, %v324
  %342 = vmatprep.subr.bf16.mxu0 0
  %343 = vmatpush1.bf16.msra.mxu0 %v326
  %344 = vmatprep.subr.bf16.mxu0 0
  %345 = vmatpush1.bf16.msra.mxu0 %v327
  %346 = vmatprep.subr.bf16.mxu0 0
  %347 = vmatpush1.bf16.msra.mxu0 %v328
  %348 = vmatprep.subr.bf16.mxu0 0
  %349 = vmatpush1.bf16.msra.mxu0 %v329
  %350 = vmatprep.subr.bf16.mxu0 0
  %351 = vmatpush1.bf16.msra.mxu0 %v330
  %352 = vmatprep.subr.bf16.mxu0 0
  %353 = vmatpush1.bf16.msra.mxu0 %v331
  %354 = vmatprep.subr.bf16.mxu0 0
  %355 = vmatpush1.bf16.msra.mxu0 %v332
  %356 = vmatprep.subr.bf16.mxu0 0
  %357 = vmatpush1.bf16.msra.mxu0 %v333
  %358 = vmatprep.subr.bf16.mxu0 0
  %359 = vmatpush1.bf16.msra.mxu0 0
  %360 = vmatprep.subr.bf16.mxu0 0
  %361 = vmatpush1.bf16.msra.mxu0 0
  %362 = vmatprep.subr.bf16.mxu0 0
  %363 = vmatpush1.bf16.msra.mxu0 0
  %364 = vmatprep.subr.bf16.mxu0 0
  %365 = vmatpush1.bf16.msra.mxu0 0
  %366 = vmatprep.subr.bf16.mxu0 0
  %367 = vmatpush1.bf16.msra.mxu0 0
  %368 = vmatprep.subr.bf16.mxu0 0
  %369 = vmatpush1.bf16.msra.mxu0 0
  %370 = vmatprep.subr.bf16.mxu0 0
  %371 = vmatpush1.bf16.msra.mxu0 0
  %372 = vmatprep.subr.bf16.mxu0 0
  %373 = vmatpush1.bf16.msra.mxu0 0
  %374 = vmatprep.mubr.bf16.mxu0 0
  %375 = vmatmul.mubr.bf16.gmra.mrb[0].mxu0 %v230
  %v376 = vpop.f32.mrb[0].mxu0
  %v377 = vadd.f32 %v100, %v376
  %v378 = vpop.f32.mrb[0].mxu0
  %v379 = vpop.f32.mrb[0].mxu0
  %v380 = vadd.f32 %v100, %v379
  %v381 = vpop.f32.mrb[0].mxu0
  %382 = vmatprep.mubr.bf16.mxu0 0
  %383 = vmatmul.mubr.bf16.gmra.mrb[0].mxu0 %v231
  %v384 = vpop.f32.mrb[0].mxu0
  %v385 = vadd.f32 %v100, %v384
  %v386 = vpop.f32.mrb[0].mxu0
  %v387 = vpop.f32.mrb[0].mxu0
  %v388 = vadd.f32 %v100, %v387
  %v389 = vpop.f32.mrb[0].mxu0
  %390 = vmatprep.mubr.bf16.mxu0 0
  %391 = vmatmul.mubr.bf16.gmra.mrb[0].mxu0 %v232
  %v392 = vpop.f32.mrb[0].mxu0
  %v393 = vadd.f32 %v100, %v392
  %v394 = vpop.f32.mrb[0].mxu0
  %v395 = vpop.f32.mrb[0].mxu0
  %v396 = vadd.f32 %v100, %v395
  %v397 = vpop.f32.mrb[0].mxu0
  %398 = vmatprep.mubr.bf16.mxu0 0
  %399 = vmatmul.mubr.bf16.gmra.mrb[0].mxu0 %v233
  %v400 = vpop.f32.mrb[0].mxu0
  %v401 = vadd.f32 %v100, %v400
  %v402 = vpop.f32.mrb[0].mxu0
  %v403 = vpop.f32.mrb[0].mxu0
  %v404 = vadd.f32 %v100, %v403
  %v405 = vpop.f32.mrb[0].mxu0
  %406 = vmatprep.mubr.bf16.mxu0 0
  %407 = vmatmul.mubr.bf16.gmra.mrb[0].mxu0 %v234
  %v408 = vpop.f32.mrb[0].mxu0
  %v409 = vadd.f32 %v100, %v408
  %v410 = vpop.f32.mrb[0].mxu0
  %v411 = vpop.f32.mrb[0].mxu0
  %v412 = vadd.f32 %v100, %v411
  %v413 = vpop.f32.mrb[0].mxu0
  %414 = vmatprep.mubr.bf16.mxu0 0
  %415 = vmatmul.mubr.bf16.gmra.mrb[0].mxu0 %v235
  %v416 = vpop.f32.mrb[0].mxu0
  %v417 = vadd.f32 %v100, %v416
  %v418 = vpop.f32.mrb[0].mxu0
  %v419 = vpop.f32.mrb[0].mxu0
  %v420 = vadd.f32 %v100, %v419
  %v421 = vpop.f32.mrb[0].mxu0
  %422 = vmatprep.mubr.bf16.mxu0 0
  %423 = vmatmul.mubr.bf16.gmra.mrb[0].mxu0 %v236
  %v424 = vpop.f32.mrb[0].mxu0
  %v425 = vadd.f32 %v100, %v424
  %v426 = vpop.f32.mrb[0].mxu0
  %v427 = vpop.f32.mrb[0].mxu0
  %v428 = vadd.f32 %v100, %v427
  %v429 = vpop.f32.mrb[0].mxu0
  %430 = vmatprep.mubr.bf16.mxu0 0
  %431 = vmatmul.mubr.bf16.gmra.mrb[0].mxu0 %v237
  %v432 = vpop.f32.mrb[0].mxu0
  %v433 = vadd.f32 %v100, %v432
  %v434 = vpop.f32.mrb[0].mxu0
  %v435 = vpop.f32.mrb[0].mxu0
  %v436 = vadd.f32 %v100, %v435
  %v437 = vpop.f32.mrb[0].mxu0
  %438 = vmatprep.mubr.bf16.mxu0 0
  %439 = vmatmul.mubr.bf16.gmra.mrb[0].mxu0 %v238
  %v440 = vpop.f32.mrb[0].mxu0
  %v441 = vadd.f32 %v100, %v440
  %v442 = vpop.f32.mrb[0].mxu0
  %v443 = vpop.f32.mrb[0].mxu0
  %v444 = vadd.f32 %v100, %v443
  %v445 = vpop.f32.mrb[0].mxu0
  %446 = vmatprep.mubr.bf16.mxu0 0
  %447 = vmatmul.mubr.bf16.gmra.mrb[0].mxu0 %v239
  %v448 = vpop.f32.mrb[0].mxu0
  %v449 = vadd.f32 %v100, %v448
  %v450 = vpop.f32.mrb[0].mxu0
  %v451 = vpop.f32.mrb[0].mxu0
  %v452 = vadd.f32 %v100, %v451
  %v453 = vpop.f32.mrb[0].mxu0
  %454 = vmatprep.mubr.bf16.mxu0 0
  %455 = vmatmul.mubr.bf16.gmra.mrb[0].mxu0 %v240
  %v456 = vpop.f32.mrb[0].mxu0
  %v457 = vadd.f32 %v100, %v456
  %v458 = vpop.f32.mrb[0].mxu0
  %v459 = vpop.f32.mrb[0].mxu0
  %v460 = vadd.f32 %v100, %v459
  %v461 = vpop.f32.mrb[0].mxu0
  %462 = vmatprep.mubr.bf16.mxu0 0
  %463 = vmatmul.mubr.bf16.gmra.mrb[0].mxu0 %v241
  %v464 = vpop.f32.mrb[0].mxu0
  %v465 = vadd.f32 %v100, %v464
  %v466 = vpop.f32.mrb[0].mxu0
  %v467 = vpop.f32.mrb[0].mxu0
  %v468 = vadd.f32 %v100, %v467
  %v469 = vpop.f32.mrb[0].mxu0
  %470 = vmatprep.mubr.bf16.mxu0 0
  %471 = vmatmul.mubr.bf16.gmra.mrb[0].mxu0 %v242
  %v472 = vpop.f32.mrb[0].mxu0
  %v473 = vadd.f32 %v100, %v472
  %v474 = vpop.f32.mrb[0].mxu0
  %v475 = vpop.f32.mrb[0].mxu0
  %v476 = vadd.f32 %v100, %v475
  %v477 = vpop.f32.mrb[0].mxu0
  %478 = vmatprep.mubr.bf16.mxu0 0
  %479 = vmatmul.mubr.bf16.gmra.mrb[0].mxu0 %v243
  %v480 = vpop.f32.mrb[0].mxu0
  %v481 = vadd.f32 %v100, %v480
  %v482 = vpop.f32.mrb[0].mxu0
  %v483 = vpop.f32.mrb[0].mxu0
  %v484 = vadd.f32 %v100, %v483
  %v485 = vpop.f32.mrb[0].mxu0
  %486 = vmatprep.mubr.bf16.mxu0 0
  %487 = vmatmul.mubr.bf16.gmra.mrb[0].mxu0 %v244
  %v488 = vpop.f32.mrb[0].mxu0
  %v489 = vadd.f32 %v100, %v488
  %v490 = vpop.f32.mrb[0].mxu0
  %v491 = vpop.f32.mrb[0].mxu0
  %v492 = vadd.f32 %v100, %v491
  %v493 = vpop.f32.mrb[0].mxu0
  %494 = vmatprep.mubr.bf16.mxu0 0
  %495 = vmatmul.mubr.bf16.gmra.mrb[0].mxu0 %v245
  %v496 = vpop.f32.mrb[0].mxu0
  %v497 = vadd.f32 %v100, %v496
  %v498 = vpop.f32.mrb[0].mxu0
  %v499 = vpop.f32.mrb[0].mxu0
  %v500 = vadd.f32 %v100, %v499
  %v501 = vpop.f32.mrb[0].mxu0
  %502 = vmatprep.mubr.bf16.mxu0 0
  %503 = vmatmul.mubr.bf16.gmra.mrb[0].mxu0 %v246
  %v504 = vpop.f32.mrb[0].mxu0
  %v505 = vadd.f32 %v100, %v504
  %v506 = vpop.f32.mrb[0].mxu0
  %v507 = vpop.f32.mrb[0].mxu0
  %v508 = vadd.f32 %v100, %v507
  %v509 = vpop.f32.mrb[0].mxu0
  %510 = vmatprep.mubr.bf16.mxu0 0
  %511 = vmatmul.mubr.bf16.gmra.mrb[0].mxu0 %v247
  %v512 = vpop.f32.mrb[0].mxu0
  %v513 = vadd.f32 %v100, %v512
  %v514 = vpop.f32.mrb[0].mxu0
  %v515 = vpop.f32.mrb[0].mxu0
  %v516 = vadd.f32 %v100, %v515
  %v517 = vpop.f32.mrb[0].mxu0
  %518 = vmatprep.mubr.bf16.mxu0 0
  %519 = vmatmul.mubr.bf16.gmra.mrb[0].mxu0 %v248
  %v520 = vpop.f32.mrb[0].mxu0
  %v521 = vadd.f32 %v100, %v520
  %v522 = vpop.f32.mrb[0].mxu0
  %v523 = vpop.f32.mrb[0].mxu0
  %v524 = vadd.f32 %v100, %v523
  %v525 = vpop.f32.mrb[0].mxu0
  %526 = vmatprep.mubr.bf16.mxu0 0
  %527 = vmatmul.mubr.bf16.gmra.mrb[0].mxu0 %v249
  %v528 = vpop.f32.mrb[0].mxu0
  %v529 = vadd.f32 %v100, %v528
  %v530 = vpop.f32.mrb[0].mxu0
  %v531 = vpop.f32.mrb[0].mxu0
  %v532 = vadd.f32 %v100, %v531
  %v533 = vpop.f32.mrb[0].mxu0
  %534 = vmatprep.mubr.bf16.mxu0 0
  %535 = vmatmul.mubr.bf16.gmra.mrb[0].mxu0 %v250
  %v536 = vpop.f32.mrb[0].mxu0
  %v537 = vadd.f32 %v100, %v536
  %v538 = vpop.f32.mrb[0].mxu0
  %v539 = vpop.f32.mrb[0].mxu0
  %v540 = vadd.f32 %v100, %v539
  %v541 = vpop.f32.mrb[0].mxu0
  %542 = vmatprep.mubr.bf16.mxu0 0
  %543 = vmatmul.mubr.bf16.gmra.mrb[0].mxu0 %v251
  %v544 = vpop.f32.mrb[0].mxu0
  %v545 = vadd.f32 %v100, %v544
  %v546 = vpop.f32.mrb[0].mxu0
  %v547 = vpop.f32.mrb[0].mxu0
  %v548 = vadd.f32 %v100, %v547
  %v549 = vpop.f32.mrb[0].mxu0
  %550 = vmatprep.mubr.bf16.mxu0 0
  %551 = vmatmul.mubr.bf16.gmra.mrb[0].mxu0 %v252
  %v552 = vpop.f32.mrb[0].mxu0
  %v553 = vadd.f32 %v100, %v552
  %v554 = vpop.f32.mrb[0].mxu0
  %v555 = vpop.f32.mrb[0].mxu0
  %v556 = vadd.f32 %v100, %v555
  %v557 = vpop.f32.mrb[0].mxu0
  %558 = vmatprep.mubr.bf16.mxu0 0
  %559 = vmatmul.mubr.bf16.gmra.mrb[0].mxu0 %v253
  %v560 = vpop.f32.mrb[0].mxu0
  %v561 = vadd.f32 %v100, %v560
  %v562 = vpop.f32.mrb[0].mxu0
  %v563 = vpop.f32.mrb[0].mxu0
  %v564 = vadd.f32 %v100, %v563
  %v565 = vpop.f32.mrb[0].mxu0
  %566 = vmatprep.mubr.bf16.mxu0 0
  %567 = vmatmul.mubr.bf16.gmra.mrb[0].mxu0 %v254
  %v568 = vpop.f32.mrb[0].mxu0
  %v569 = vadd.f32 %v100, %v568
  %v570 = vpop.f32.mrb[0].mxu0
  %v571 = vpop.f32.mrb[0].mxu0
  %v572 = vadd.f32 %v100, %v571
  %v573 = vpop.f32.mrb[0].mxu0
  %574 = vmatprep.mubr.bf16.mxu0 0
  %575 = vmatmul.mubr.bf16.gmra.mrb[0].mxu0 %v255
  %v576 = vpop.f32.mrb[0].mxu0
  %v577 = vadd.f32 %v100, %v576
  %v578 = vpop.f32.mrb[0].mxu0
  %v579 = vpop.f32.mrb[0].mxu0
  %v580 = vadd.f32 %v100, %v579
  %v581 = vpop.f32.mrb[0].mxu0
  %582 = vmatprep.mubr.bf16.mxu0 0
  %583 = vmatmul.mubr.bf16.gmra.mrb[0].mxu0 %v256
  %v584 = vpop.f32.mrb[0].mxu0
  %v585 = vadd.f32 %v100, %v584
  %v586 = vpop.f32.mrb[0].mxu0
  %v587 = vpop.f32.mrb[0].mxu0
  %v588 = vadd.f32 %v100, %v587
  %v589 = vpop.f32.mrb[0].mxu0
  %590 = vmatprep.mubr.bf16.mxu0 0
  %591 = vmatmul.mubr.bf16.gmra.mrb[0].mxu0 %v257
  %v592 = vpop.f32.mrb[0].mxu0
  %v593 = vadd.f32 %v100, %v592
  %v594 = vpop.f32.mrb[0].mxu0
  %v595 = vpop.f32.mrb[0].mxu0
  %v596 = vadd.f32 %v100, %v595
  %v597 = vpop.f32.mrb[0].mxu0
  %598 = vmatprep.mubr.bf16.mxu0 0
  %599 = vmatmul.mubr.bf16.gmra.mrb[0].mxu0 %v258
  %v600 = vpop.f32.mrb[0].mxu0
  %v601 = vadd.f32 %v100, %v600
  %v602 = vpop.f32.mrb[0].mxu0
  %v603 = vpop.f32.mrb[0].mxu0
  %v604 = vadd.f32 %v100, %v603
  %v605 = vpop.f32.mrb[0].mxu0
  %606 = vmatprep.mubr.bf16.mxu0 0
  %607 = vmatmul.mubr.bf16.gmra.mrb[0].mxu0 %v259
  %v608 = vpop.f32.mrb[0].mxu0
  %v609 = vadd.f32 %v100, %v608
  %v610 = vpop.f32.mrb[0].mxu0
  %v611 = vpop.f32.mrb[0].mxu0
  %v612 = vadd.f32 %v100, %v611
  %v613 = vpop.f32.mrb[0].mxu0
  %614 = vmatprep.mubr.bf16.mxu0 0
  %615 = vmatmul.mubr.bf16.gmra.mrb[0].mxu0 %v260
  %v616 = vpop.f32.mrb[0].mxu0
  %v617 = vadd.f32 %v100, %v616
  %v618 = vpop.f32.mrb[0].mxu0
  %v619 = vpop.f32.mrb[0].mxu0
  %v620 = vadd.f32 %v100, %v619
  %v621 = vpop.f32.mrb[0].mxu0
  %622 = vmatprep.mubr.bf16.mxu0 0
  %623 = vmatmul.mubr.bf16.gmra.mrb[0].mxu0 %v261
  %v624 = vpop.f32.mrb[0].mxu0
  %v625 = vadd.f32 %v100, %v624
  %v626 = vpop.f32.mrb[0].mxu0
  %v627 = vpop.f32.mrb[0].mxu0
  %v628 = vadd.f32 %v100, %v627
  %v629 = vpop.f32.mrb[0].mxu0
  %630 = vdwg.mxu0
  %v631 = vmax.f32 %v377, 0.0
  %v632 = vmax.f32 %v380, 0.0
  %v633 = vmax.f32 %v385, 0.0
  %v634 = vmax.f32 %v388, 0.0
  %v635 = vmax.f32 %v393, 0.0
  %v636 = vmax.f32 %v396, 0.0
  %v637 = vmax.f32 %v401, 0.0
  %v638 = vmax.f32 %v404, 0.0
  %v639 = vmax.f32 %v409, 0.0
  %v640 = vmax.f32 %v412, 0.0
  %v641 = vmax.f32 %v417, 0.0
  %v642 = vmax.f32 %v420, 0.0
  %v643 = vmax.f32 %v425, 0.0
  %v644 = vmax.f32 %v428, 0.0
  %v645 = vmax.f32 %v433, 0.0
  %v646 = vmax.f32 %v436, 0.0
  %v647 = vmax.f32 %v441, 0.0
  %v648 = vmax.f32 %v444, 0.0
  %v649 = vmax.f32 %v449, 0.0
  %v650 = vmax.f32 %v452, 0.0
  %v651 = vmax.f32 %v457, 0.0
  %v652 = vmax.f32 %v460, 0.0
  %v653 = vmax.f32 %v465, 0.0
  %v654 = vmax.f32 %v468, 0.0
  %v655 = vmax.f32 %v473, 0.0
  %v656 = vmax.f32 %v476, 0.0
  %v657 = vmax.f32 %v481, 0.0
  %v658 = vmax.f32 %v484, 0.0
  %v659 = vmax.f32 %v489, 0.0
  %v660 = vmax.f32 %v492, 0.0
  %v661 = vmax.f32 %v497, 0.0
  %v662 = vmax.f32 %v500, 0.0
  %v663 = vmax.f32 %v505, 0.0
  %v664 = vmax.f32 %v508, 0.0
  %v665 = vmax.f32 %v513, 0.0
  %v666 = vmax.f32 %v516, 0.0
  %v667 = vmax.f32 %v521, 0.0
  %v668 = vmax.f32 %v524, 0.0
  %v669 = vmax.f32 %v529, 0.0
  %v670 = vmax.f32 %v532, 0.0
  %v671 = vmax.f32 %v537, 0.0
  %v672 = vmax.f32 %v540, 0.0
  %v673 = vmax.f32 %v545, 0.0
  %v674 = vmax.f32 %v548, 0.0
  %v675 = vmax.f32 %v553, 0.0
  %v676 = vmax.f32 %v556, 0.0
  %v677 = vmax.f32 %v561, 0.0
  %v678 = vmax.f32 %v564, 0.0
  %v679 = vmax.f32 %v569, 0.0
  %v680 = vmax.f32 %v572, 0.0
  %v681 = vmax.f32 %v577, 0.0
  %v682 = vmax.f32 %v580, 0.0
  %v683 = vmax.f32 %v585, 0.0
  %v684 = vmax.f32 %v588, 0.0
  %v685 = vmax.f32 %v593, 0.0
  %v686 = vmax.f32 %v596, 0.0
  %v687 = vmax.f32 %v601, 0.0
  %v688 = vmax.f32 %v604, 0.0
  %v689 = vmax.f32 %v609, 0.0
  %v690 = vmax.f32 %v612, 0.0
  %v691 = vmax.f32 %v617, 0.0
  %v692 = vmax.f32 %v620, 0.0
  %v693 = vmax.f32 %v625, 0.0
  %v694 = vmax.f32 %v628, 0.0
  %v695 = vpack.c.bf16 %v632, %v631
  %v696 = vpack.c.bf16 %v634, %v633
  %v697 = vpack.c.bf16 %v636, %v635
  %v698 = vpack.c.bf16 %v638, %v637
  %v699 = vpack.c.bf16 %v640, %v639
  %v700 = vpack.c.bf16 %v642, %v641
  %v701 = vpack.c.bf16 %v644, %v643
  %v702 = vpack.c.bf16 %v646, %v645
  %v703 = vpack.c.bf16 %v648, %v647
  %v704 = vpack.c.bf16 %v650, %v649
  %v705 = vpack.c.bf16 %v652, %v651
  %v706 = vpack.c.bf16 %v654, %v653
  %v707 = vpack.c.bf16 %v656, %v655
  %v708 = vpack.c.bf16 %v658, %v657
  %v709 = vpack.c.bf16 %v660, %v659
  %v710 = vpack.c.bf16 %v662, %v661
  %v711 = vpack.c.bf16 %v664, %v663
  %v712 = vpack.c.bf16 %v666, %v665
  %v713 = vpack.c.bf16 %v668, %v667
  %v714 = vpack.c.bf16 %v670, %v669
  %v715 = vpack.c.bf16 %v672, %v671
  %v716 = vpack.c.bf16 %v674, %v673
  %v717 = vpack.c.bf16 %v676, %v675
  %v718 = vpack.c.bf16 %v678, %v677
  %v719 = vpack.c.bf16 %v680, %v679
  %v720 = vpack.c.bf16 %v682, %v681
  %v721 = vpack.c.bf16 %v684, %v683
  %v722 = vpack.c.bf16 %v686, %v685
  %v723 = vpack.c.bf16 %v688, %v687
  %v724 = vpack.c.bf16 %v690, %v689
  %v725 = vpack.c.bf16 %v692, %v691
  %v726 = vpack.c.bf16 %v694, %v693
  %v759 = vunpack.c.l.b16 %v695
  %v760 = vunpack.c.h.b16 %v695
  %v761 = vunpack.c.l.b16 %v696
  %v762 = vunpack.c.h.b16 %v696
  %v763 = vunpack.c.l.b16 %v697
  %v764 = vunpack.c.h.b16 %v697
  %v765 = vunpack.c.l.b16 %v698
  %v766 = vunpack.c.h.b16 %v698
  %v767 = vunpack.c.l.b16 %v699
  %v768 = vunpack.c.h.b16 %v699
  %v769 = vunpack.c.l.b16 %v700
  %v770 = vunpack.c.h.b16 %v700
  %v771 = vunpack.c.l.b16 %v701
  %v772 = vunpack.c.h.b16 %v701
  %v773 = vunpack.c.l.b16 %v702
  %v774 = vunpack.c.h.b16 %v702
  %v775 = vunpack.c.l.b16 %v703
  %v776 = vunpack.c.h.b16 %v703
  %v777 = vunpack.c.l.b16 %v704
  %v778 = vunpack.c.h.b16 %v704
  %v779 = vunpack.c.l.b16 %v705
  %v780 = vunpack.c.h.b16 %v705
  %v781 = vunpack.c.l.b16 %v706
  %v782 = vunpack.c.h.b16 %v706
  %v783 = vunpack.c.l.b16 %v707
  %v784 = vunpack.c.h.b16 %v707
  %v785 = vunpack.c.l.b16 %v708
  %v786 = vunpack.c.h.b16 %v708
  %v787 = vunpack.c.l.b16 %v709
  %v788 = vunpack.c.h.b16 %v709
  %v789 = vunpack.c.l.b16 %v710
  %v790 = vunpack.c.h.b16 %v710
  %v791 = vunpack.c.l.b16 %v711
  %v792 = vunpack.c.h.b16 %v711
  %v793 = vunpack.c.l.b16 %v712
  %v794 = vunpack.c.h.b16 %v712
  %v795 = vunpack.c.l.b16 %v713
  %v796 = vunpack.c.h.b16 %v713
  %v797 = vunpack.c.l.b16 %v714
  %v798 = vunpack.c.h.b16 %v714
  %v799 = vunpack.c.l.b16 %v715
  %v800 = vunpack.c.h.b16 %v715
  %v801 = vunpack.c.l.b16 %v716
  %v802 = vunpack.c.h.b16 %v716
  %v803 = vunpack.c.l.b16 %v717
  %v804 = vunpack.c.h.b16 %v717
  %v805 = vunpack.c.l.b16 %v718
  %v806 = vunpack.c.h.b16 %v718
  %v807 = vunpack.c.l.b16 %v719
  %v808 = vunpack.c.h.b16 %v719
  %v809 = vunpack.c.l.b16 %v720
  %v810 = vunpack.c.h.b16 %v720
  %v811 = vunpack.c.l.b16 %v721
  %v812 = vunpack.c.h.b16 %v721
  %v813 = vunpack.c.l.b16 %v722
  %v814 = vunpack.c.h.b16 %v722
  %v815 = vunpack.c.l.b16 %v723
  %v816 = vunpack.c.h.b16 %v723
  %v817 = vunpack.c.l.b16 %v724
  %v818 = vunpack.c.h.b16 %v724
  %v819 = vunpack.c.l.b16 %v725
  %v820 = vunpack.c.h.b16 %v725
  %v821 = vunpack.c.l.b16 %v726
  %v822 = vunpack.c.h.b16 %v726
  %v823 = vpack.c.b16 %v759, %v759
  %v824 = vpack.c.b16 %v760, %v760
  %v825 = vpack.c.b16 %v761, %v761
  %v826 = vpack.c.b16 %v762, %v762
  %v827 = vpack.c.b16 %v763, %v763
  %v828 = vpack.c.b16 %v764, %v764
  %v829 = vpack.c.b16 %v765, %v765
  %v830 = vpack.c.b16 %v766, %v766
  %v831 = vpack.c.b16 %v767, %v767
  %v832 = vpack.c.b16 %v768, %v768
  %v833 = vpack.c.b16 %v769, %v769
  %v834 = vpack.c.b16 %v770, %v770
  %v835 = vpack.c.b16 %v771, %v771
  %v836 = vpack.c.b16 %v772, %v772
  %v837 = vpack.c.b16 %v773, %v773
  %v838 = vpack.c.b16 %v774, %v774
  %v839 = vpack.c.b16 %v775, %v775
  %v840 = vpack.c.b16 %v776, %v776
  %v841 = vpack.c.b16 %v777, %v777
  %v842 = vpack.c.b16 %v778, %v778
  %v843 = vpack.c.b16 %v779, %v779
  %v844 = vpack.c.b16 %v780, %v780
  %v845 = vpack.c.b16 %v781, %v781
  %v846 = vpack.c.b16 %v782, %v782
  %v847 = vpack.c.b16 %v783, %v783
  %v848 = vpack.c.b16 %v784, %v784
  %v849 = vpack.c.b16 %v785, %v785
  %v850 = vpack.c.b16 %v786, %v786
  %v851 = vpack.c.b16 %v787, %v787
  %v852 = vpack.c.b16 %v788, %v788
  %v853 = vpack.c.b16 %v789, %v789
  %v854 = vpack.c.b16 %v790, %v790
  %v855 = vpack.c.b16 %v791, %v791
  %v856 = vpack.c.b16 %v792, %v792
  %v857 = vpack.c.b16 %v793, %v793
  %v858 = vpack.c.b16 %v794, %v794
  %v859 = vpack.c.b16 %v795, %v795
  %v860 = vpack.c.b16 %v796, %v796
  %v861 = vpack.c.b16 %v797, %v797
  %v862 = vpack.c.b16 %v798, %v798
  %v863 = vpack.c.b16 %v799, %v799
  %v864 = vpack.c.b16 %v800, %v800
  %v865 = vpack.c.b16 %v801, %v801
  %v866 = vpack.c.b16 %v802, %v802
  %v867 = vpack.c.b16 %v803, %v803
  %v868 = vpack.c.b16 %v804, %v804
  %v869 = vpack.c.b16 %v805, %v805
  %v870 = vpack.c.b16 %v806, %v806
  %v871 = vpack.c.b16 %v807, %v807
  %v872 = vpack.c.b16 %v808, %v808
  %v873 = vpack.c.b16 %v809, %v809
  %v874 = vpack.c.b16 %v810, %v810
  %v875 = vpack.c.b16 %v811, %v811
  %v876 = vpack.c.b16 %v812, %v812
  %v877 = vpack.c.b16 %v813, %v813
  %v878 = vpack.c.b16 %v814, %v814
  %v879 = vpack.c.b16 %v815, %v815
  %v880 = vpack.c.b16 %v816, %v816
  %v881 = vpack.c.b16 %v817, %v817
  %v882 = vpack.c.b16 %v818, %v818
  %v883 = vpack.c.b16 %v819, %v819
  %v884 = vpack.c.b16 %v820, %v820
  %v885 = vpack.c.b16 %v821, %v821
  %v886 = vpack.c.b16 %v822, %v822
  %vm951 = vcmask 27648
  %952 = vst.msk [vmem:[%s3] sm:$0xf] %vm951, %v823
  %953 = vst.msk [vmem:[%s3 + $0x4] sm:$0xf] %vm951, %v824
  %954 = vst.msk [vmem:[%s3 + $0x8] sm:$0xf] %vm951, %v825
  %955 = vst.msk [vmem:[%s3 + $0xc] sm:$0xf] %vm951, %v826
  %956 = vst.msk [vmem:[%s3 + $0x10] sm:$0xf] %vm951, %v827
  %957 = vst.msk [vmem:[%s3 + $0x14] sm:$0xf] %vm951, %v828
  %958 = vst.msk [vmem:[%s3 + $0x18] sm:$0xf] %vm951, %v829
  %959 = vst.msk [vmem:[%s3 + $0x1c] sm:$0xf] %vm951, %v830
  %960 = vst.msk [vmem:[%s3 + $0x20] sm:$0xf] %vm951, %v831
  %961 = vst.msk [vmem:[%s3 + $0x24] sm:$0xf] %vm951, %v832
  %962 = vst.msk [vmem:[%s3 + $0x28] sm:$0xf] %vm951, %v833
  %963 = vst.msk [vmem:[%s3 + $0x2c] sm:$0xf] %vm951, %v834
  %964 = vst.msk [vmem:[%s3 + $0x30] sm:$0xf] %vm951, %v835
  %965 = vst.msk [vmem:[%s3 + $0x34] sm:$0xf] %vm951, %v836
  %966 = vst.msk [vmem:[%s3 + $0x38] sm:$0xf] %vm951, %v837
  %967 = vst.msk [vmem:[%s3 + $0x3c] sm:$0xf] %vm951, %v838
  %968 = vst.msk [vmem:[%s3 + $0x40] sm:$0xf] %vm951, %v839
  %969 = vst.msk [vmem:[%s3 + $0x44] sm:$0xf] %vm951, %v840
  %970 = vst.msk [vmem:[%s3 + $0x48] sm:$0xf] %vm951, %v841
  %971 = vst.msk [vmem:[%s3 + $0x4c] sm:$0xf] %vm951, %v842
  %972 = vst.msk [vmem:[%s3 + $0x50] sm:$0xf] %vm951, %v843
  %973 = vst.msk [vmem:[%s3 + $0x54] sm:$0xf] %vm951, %v844
  %974 = vst.msk [vmem:[%s3 + $0x58] sm:$0xf] %vm951, %v845
  %975 = vst.msk [vmem:[%s3 + $0x5c] sm:$0xf] %vm951, %v846
  %976 = vst.msk [vmem:[%s3 + $0x60] sm:$0xf] %vm951, %v847
  %977 = vst.msk [vmem:[%s3 + $0x64] sm:$0xf] %vm951, %v848
  %978 = vst.msk [vmem:[%s3 + $0x68] sm:$0xf] %vm951, %v849
  %979 = vst.msk [vmem:[%s3 + $0x6c] sm:$0xf] %vm951, %v850
  %980 = vst.msk [vmem:[%s3 + $0x70] sm:$0xf] %vm951, %v851
  %981 = vst.msk [vmem:[%s3 + $0x74] sm:$0xf] %vm951, %v852
  %982 = vst.msk [vmem:[%s3 + $0x78] sm:$0xf] %vm951, %v853
  %983 = vst.msk [vmem:[%s3 + $0x7c] sm:$0xf] %vm951, %v854
  %984 = vst.msk [vmem:[%s3 + $0x80] sm:$0xf] %vm951, %v855
  %985 = vst.msk [vmem:[%s3 + $0x84] sm:$0xf] %vm951, %v856
  %986 = vst.msk [vmem:[%s3 + $0x88] sm:$0xf] %vm951, %v857
  %987 = vst.msk [vmem:[%s3 + $0x8c] sm:$0xf] %vm951, %v858
  %988 = vst.msk [vmem:[%s3 + $0x90] sm:$0xf] %vm951, %v859
  %989 = vst.msk [vmem:[%s3 + $0x94] sm:$0xf] %vm951, %v860
  %990 = vst.msk [vmem:[%s3 + $0x98] sm:$0xf] %vm951, %v861
  %991 = vst.msk [vmem:[%s3 + $0x9c] sm:$0xf] %vm951, %v862
  %992 = vst.msk [vmem:[%s3 + $0xa0] sm:$0xf] %vm951, %v863
  %993 = vst.msk [vmem:[%s3 + $0xa4] sm:$0xf] %vm951, %v864
  %994 = vst.msk [vmem:[%s3 + $0xa8] sm:$0xf] %vm951, %v865
  %995 = vst.msk [vmem:[%s3 + $0xac] sm:$0xf] %vm951, %v866
  %996 = vst.msk [vmem:[%s3 + $0xb0] sm:$0xf] %vm951, %v867
  %997 = vst.msk [vmem:[%s3 + $0xb4] sm:$0xf] %vm951, %v868
  %998 = vst.msk [vmem:[%s3 + $0xb8] sm:$0xf] %vm951, %v869
  %999 = vst.msk [vmem:[%s3 + $0xbc] sm:$0xf] %vm951, %v870
  %1000 = vst.msk [vmem:[%s3 + $0xc0] sm:$0xf] %vm951, %v871
  %1001 = vst.msk [vmem:[%s3 + $0xc4] sm:$0xf] %vm951, %v872
  %1002 = vst.msk [vmem:[%s3 + $0xc8] sm:$0xf] %vm951, %v873
  %1003 = vst.msk [vmem:[%s3 + $0xcc] sm:$0xf] %vm951, %v874
  %1004 = vst.msk [vmem:[%s3 + $0xd0] sm:$0xf] %vm951, %v875
  %1005 = vst.msk [vmem:[%s3 + $0xd4] sm:$0xf] %vm951, %v876
  %1006 = vst.msk [vmem:[%s3 + $0xd8] sm:$0xf] %vm951, %v877
  %1007 = vst.msk [vmem:[%s3 + $0xdc] sm:$0xf] %vm951, %v878
  %1008 = vst.msk [vmem:[%s3 + $0xe0] sm:$0xf] %vm951, %v879
  %1009 = vst.msk [vmem:[%s3 + $0xe4] sm:$0xf] %vm951, %v880
  %1010 = vst.msk [vmem:[%s3 + $0xe8] sm:$0xf] %vm951, %v881
  %1011 = vst.msk [vmem:[%s3 + $0xec] sm:$0xf] %vm951, %v882
  %1012 = vst.msk [vmem:[%s3 + $0xf0] sm:$0xf] %vm951, %v883
  %1013 = vst.msk [vmem:[%s3 + $0xf4] sm:$0xf] %vm951, %v884
  %1014 = vst.msk [vmem:[%s3 + $0xf8] sm:$0xf] %vm951, %v885
  %1015 = vst.msk [vmem:[%s3 + $0xfc] sm:$0xf] %vm951, %v886
  // Predicated region
  $region14: #{_lambda_.7} parent=0 // pred_check
    _
  $region15: #{_lambda_.7} parent=0 // pred_check_branch
    %1017 = sbr.rel (0) target = $region17
  $region16: #{_lambda_.7} parent=0 // pred_region
    _
  $region17: #{_lambda_.7} parent=0 // pred_fallthru
    _
  // Predicated region
  $region18: #{_lambda_.7} parent=0 // pred_check
    _
  $region19: #{_lambda_.7} parent=0 // pred_check_branch
    %1019 = sbr.rel (0) target = $region21
  $region20: #{_lambda_.7} parent=0 // pred_region
    _
  $region21: #{_lambda_.7} parent=0 // pred_fallthru
    _

// kernel: _lambda_.8
$region0: #{_lambda_.8}
  #allocation0 [shape = 'u32[]', space=smem, size = 0x4, offset = 0x4, fixed_abs, tag = 'smem constant byte address 0x4 - core index']
  #allocation1 [shape = 'u32[144,128]{1,0:T(1,128)}', space=vmem, size = 0x12000, scoped, tag = 'internal scratch']
  %s0 = inlined_call_operand.vmem [shape: bf16[64,128], index: 0, kind: input, shape index: {}]
  %s1 = inlined_call_operand.vmem [shape: bf16[128,128], index: 1, kind: input, shape index: {}]
  %s2 = inlined_call_operand.vmem [shape: f32[1,128], index: 2, kind: input, shape index: {}]
  %s3 = inlined_call_operand.vmem [shape: bf16[64,8], index: 3, kind: output, shape index: {}]
  %s4 = sld [smem:[#allocation0]]
  $region22: #{_lambda_.8} parent=0
    _
  %s6 = ssub.s32 1, %s4
  %s7 = scalar_select 0, %s6, %s4
  // Predicated region
  $region2: #{_lambda_.8} parent=0 // pred_check
    _
  $region3: #{_lambda_.8} parent=0 // pred_check_branch
    %9 = sbr.rel (0) target = $region5
  $region4: #{_lambda_.8} parent=0 // pred_region
    _
  $region5: #{_lambda_.8} parent=0 // pred_fallthru
    _
  // Predicated region
  $region6: #{_lambda_.8} parent=0 // pred_check
    _
  $region7: #{_lambda_.8} parent=0 // pred_check_branch
    %11 = sbr.rel (0) target = $region9
  $region8: #{_lambda_.8} parent=0 // pred_region
    _
  $region9: #{_lambda_.8} parent=0 // pred_fallthru
    _
  // Predicated region
  $region10: #{_lambda_.8} parent=0 // pred_check
    _
  $region11: #{_lambda_.8} parent=0 // pred_check_branch
    %13 = sbr.rel (0) target = $region13
  $region12: #{_lambda_.8} parent=0 // pred_region
    _
  $region13: #{_lambda_.8} parent=0 // pred_fallthru
    _
  %v15 = vld [vmem:[%s0] sm:$0xf]
  %v16 = vld [vmem:[%s0 + $0x4] sm:$0xf]
  %v17 = vld [vmem:[%s0 + $0x8] sm:$0xf]
  %v18 = vld [vmem:[%s0 + $0xc] sm:$0xf]
  %v19 = vld [vmem:[%s0 + $0x10] sm:$0xf]
  %v20 = vld [vmem:[%s0 + $0x14] sm:$0xf]
  %v21 = vld [vmem:[%s0 + $0x18] sm:$0xf]
  %v22 = vld [vmem:[%s0 + $0x1c] sm:$0xf]
  %v23 = vld [vmem:[%s1] sm:$0xf]
  %v24 = vld [vmem:[%s1 + $0x4] sm:$0xf]
  %v25 = vld [vmem:[%s1 + $0x8] sm:$0xf]
  %v26 = vld [vmem:[%s1 + $0xc] sm:$0xf]
  %v27 = vld [vmem:[%s1 + $0x10] sm:$0xf]
  %v28 = vld [vmem:[%s1 + $0x14] sm:$0xf]
  %v29 = vld [vmem:[%s1 + $0x18] sm:$0xf]
  %v30 = vld [vmem:[%s1 + $0x1c] sm:$0xf]
  %v31 = vld [vmem:[%s1 + $0x20] sm:$0xf]
  %v32 = vld [vmem:[%s1 + $0x24] sm:$0xf]
  %v33 = vld [vmem:[%s1 + $0x28] sm:$0xf]
  %v34 = vld [vmem:[%s1 + $0x2c] sm:$0xf]
  %v35 = vld [vmem:[%s1 + $0x30] sm:$0xf]
  %v36 = vld [vmem:[%s1 + $0x34] sm:$0xf]
  %v37 = vld [vmem:[%s1 + $0x38] sm:$0xf]
  %v38 = vld [vmem:[%s1 + $0x3c] sm:$0xf]
  %v39 = vld [vmem:[%s2] sm:$0x1]
  %v41 = vlaneseq
  %v42 = vshrl.u32 %v41, 7
  %v43 = vsub.s32 0, %v42
  %v44 = vrot.slane %v39, %v43
  %v54 = vunpack.c.l.b16 %v15
  %v55 = vunpack.c.l.b16 %v16
  %v56 = vunpack.c.l.b16 %v17
  %v57 = vunpack.c.l.b16 %v18
  %v58 = vunpack.c.l.b16 %v19
  %v59 = vunpack.c.l.b16 %v20
  %v60 = vunpack.c.l.b16 %v21
  %v61 = vunpack.c.l.b16 %v22
  %v62 = vpack.c.b16 %v55, %v54
  %v63 = vpack.c.b16 %v57, %v56
  %v64 = vpack.c.b16 %v59, %v58
  %v65 = vpack.c.b16 %v61, %v60
  %v86 = vunpack.c.l.b16 %v23
  %v87 = vunpack.c.l.b16 %v24
  %v88 = vunpack.c.l.b16 %v25
  %v89 = vunpack.c.l.b16 %v26
  %v90 = vunpack.c.l.b16 %v27
  %v91 = vunpack.c.l.b16 %v28
  %v92 = vunpack.c.l.b16 %v29
  %v93 = vunpack.c.l.b16 %v30
  %v94 = vunpack.c.l.b16 %v31
  %v95 = vunpack.c.l.b16 %v32
  %v96 = vunpack.c.l.b16 %v33
  %v97 = vunpack.c.l.b16 %v34
  %v98 = vunpack.c.l.b16 %v35
  %v99 = vunpack.c.l.b16 %v36
  %v100 = vunpack.c.l.b16 %v37
  %v101 = vunpack.c.l.b16 %v38
  %v102 = vpack.c.b16 %v87, %v86
  %v103 = vpack.c.b16 %v89, %v88
  %v104 = vpack.c.b16 %v91, %v90
  %v105 = vpack.c.b16 %v93, %v92
  %v106 = vpack.c.b16 %v95, %v94
  %v107 = vpack.c.b16 %v97, %v96
  %v108 = vpack.c.b16 %v99, %v98
  %v109 = vpack.c.b16 %v101, %v100
  %118 = vmatprep.subr.bf16.mxu0 0
  %119 = vmatpush1.bf16.msra.mxu0 %v102
  %120 = vmatprep.subr.bf16.mxu0 0
  %121 = vmatpush1.bf16.msra.mxu0 %v103
  %122 = vmatprep.subr.bf16.mxu0 0
  %123 = vmatpush1.bf16.msra.mxu0 %v104
  %124 = vmatprep.subr.bf16.mxu0 0
  %125 = vmatpush1.bf16.msra.mxu0 %v105
  %126 = vmatprep.subr.bf16.mxu0 0
  %127 = vmatpush1.bf16.msra.mxu0 %v106
  %128 = vmatprep.subr.bf16.mxu0 0
  %129 = vmatpush1.bf16.msra.mxu0 %v107
  %130 = vmatprep.subr.bf16.mxu0 0
  %131 = vmatpush1.bf16.msra.mxu0 %v108
  %132 = vmatprep.subr.bf16.mxu0 0
  %133 = vmatpush1.bf16.msra.mxu0 %v109
  %134 = vmatprep.subr.bf16.mxu0 0
  %135 = vmatpush1.bf16.msra.mxu0 0
  %136 = vmatprep.subr.bf16.mxu0 0
  %137 = vmatpush1.bf16.msra.mxu0 0
  %138 = vmatprep.subr.bf16.mxu0 0
  %139 = vmatpush1.bf16.msra.mxu0 0
  %140 = vmatprep.subr.bf16.mxu0 0
  %141 = vmatpush1.bf16.msra.mxu0 0
  %142 = vmatprep.subr.bf16.mxu0 0
  %143 = vmatpush1.bf16.msra.mxu0 0
  %144 = vmatprep.subr.bf16.mxu0 0
  %145 = vmatpush1.bf16.msra.mxu0 0
  %146 = vmatprep.subr.bf16.mxu0 0
  %147 = vmatpush1.bf16.msra.mxu0 0
  %148 = vmatprep.subr.bf16.mxu0 0
  %149 = vmatpush1.bf16.msra.mxu0 0
  %150 = vmatprep.mubr.bf16.mxu0 0
  %151 = vmatmul.mubr.bf16.gmra.mrb[0].mxu0 %v62
  %v152 = vpop.f32.mrb[0].mxu0
  %v153 = vadd.f32 %v44, %v152
  %v154 = vpop.f32.mrb[0].mxu0
  %v155 = vpop.f32.mrb[0].mxu0
  %v156 = vadd.f32 %v44, %v155
  %v157 = vpop.f32.mrb[0].mxu0
  %158 = vmatprep.mubr.bf16.mxu0 0
  %159 = vmatmul.mubr.bf16.gmra.mrb[0].mxu0 %v63
  %v160 = vpop.f32.mrb[0].mxu0
  %v161 = vadd.f32 %v44, %v160
  %v162 = vpop.f32.mrb[0].mxu0
  %v163 = vpop.f32.mrb[0].mxu0
  %v164 = vadd.f32 %v44, %v163
  %v165 = vpop.f32.mrb[0].mxu0
  %166 = vmatprep.mubr.bf16.mxu0 0
  %167 = vmatmul.mubr.bf16.gmra.mrb[0].mxu0 %v64
  %v168 = vpop.f32.mrb[0].mxu0
  %v169 = vadd.f32 %v44, %v168
  %v170 = vpop.f32.mrb[0].mxu0
  %v171 = vpop.f32.mrb[0].mxu0
  %v172 = vadd.f32 %v44, %v171
  %v173 = vpop.f32.mrb[0].mxu0
  %174 = vmatprep.mubr.bf16.mxu0 0
  %175 = vmatmul.mubr.bf16.gmra.mrb[0].mxu0 %v65
  %v176 = vpop.f32.mrb[0].mxu0
  %v177 = vadd.f32 %v44, %v176
  %v178 = vpop.f32.mrb[0].mxu0
  %v179 = vpop.f32.mrb[0].mxu0
  %v180 = vadd.f32 %v44, %v179
  %v181 = vpop.f32.mrb[0].mxu0
  %182 = vdwg.mxu0
  %v183 = vmax.f32 %v153, 0.0
  %v184 = vmax.f32 %v156, 0.0
  %v185 = vmax.f32 %v161, 0.0
  %v186 = vmax.f32 %v164, 0.0
  %v187 = vmax.f32 %v169, 0.0
  %v188 = vmax.f32 %v172, 0.0
  %v189 = vmax.f32 %v177, 0.0
  %v190 = vmax.f32 %v180, 0.0
  %v191 = vpack.c.bf16 %v184, %v183
  %v192 = vpack.c.bf16 %v186, %v185
  %v193 = vpack.c.bf16 %v188, %v187
  %v194 = vpack.c.bf16 %v190, %v189
  %v199 = vunpack.c.l.b16 %v191
  %v200 = vunpack.c.h.b16 %v191
  %v201 = vunpack.c.l.b16 %v192
  %v202 = vunpack.c.h.b16 %v192
  %v203 = vunpack.c.l.b16 %v193
  %v204 = vunpack.c.h.b16 %v193
  %v205 = vunpack.c.l.b16 %v194
  %v206 = vunpack.c.h.b16 %v194
  %v207 = vpack.c.b16 %v199, %v199
  %v208 = vpack.c.b16 %v200, %v200
  %v209 = vpack.c.b16 %v201, %v201
  %v210 = vpack.c.b16 %v202, %v202
  %v211 = vpack.c.b16 %v203, %v203
  %v212 = vpack.c.b16 %v204, %v204
  %v213 = vpack.c.b16 %v205, %v205
  %v214 = vpack.c.b16 %v206, %v206
  %vm223 = vcmask 60416
  %224 = vst.msk [vmem:[%s3] sm:$0xf] %vm223, %v207
  %225 = vst.msk [vmem:[%s3 + $0x4] sm:$0xf] %vm223, %v208
  %226 = vst.msk [vmem:[%s3 + $0x8] sm:$0xf] %vm223, %v209
  %227 = vst.msk [vmem:[%s3 + $0xc] sm:$0xf] %vm223, %v210
  %228 = vst.msk [vmem:[%s3 + $0x10] sm:$0xf] %vm223, %v211
  %229 = vst.msk [vmem:[%s3 + $0x14] sm:$0xf] %vm223, %v212
  %230 = vst.msk [vmem:[%s3 + $0x18] sm:$0xf] %vm223, %v213
  %231 = vst.msk [vmem:[%s3 + $0x1c] sm:$0xf] %vm223, %v214
  // Predicated region
  $region14: #{_lambda_.8} parent=0 // pred_check
    _
  $region15: #{_lambda_.8} parent=0 // pred_check_branch
    %233 = sbr.rel (0) target = $region17
  $region16: #{_lambda_.8} parent=0 // pred_region
    _
  $region17: #{_lambda_.8} parent=0 // pred_fallthru
    _
  // Predicated region
  $region18: #{_lambda_.8} parent=0 // pred_check
    _
  $region19: #{_lambda_.8} parent=0 // pred_check_branch
    %235 = sbr.rel (0) target = $region21
  $region20: #{_lambda_.8} parent=0 // pred_region
    _
  $region21: #{_lambda_.8} parent=0 // pred_fallthru
    _

// kernel: _lambda_.9
$region0: #{_lambda_.9}
  #allocation0 [shape = 'u32[]', space=smem, size = 0x4, offset = 0x4, fixed_abs, tag = 'smem constant byte address 0x4 - core index']
  #allocation1 [shape = 'u32[144,128]{1,0:T(1,128)}', space=vmem, size = 0x12000, scoped, tag = 'internal scratch']
  %s0 = inlined_call_operand.vmem [shape: bf16[16,256], index: 0, kind: input, shape index: {}]
  %s1 = inlined_call_operand.vmem [shape: bf16[16,128], index: 1, kind: input, shape index: {}]
  %s2 = inlined_call_operand.vmem [shape: bf16[256,128], index: 2, kind: input, shape index: {}]
  %s3 = inlined_call_operand.vmem [shape: f32[1,128], index: 3, kind: input, shape index: {}]
  %s4 = inlined_call_operand.vmem [shape: bf16[128,256], index: 4, kind: input, shape index: {}]
  %s5 = inlined_call_operand.vmem [shape: f32[1,256], index: 5, kind: input, shape index: {}]
  %s6 = inlined_call_operand.vmem [shape: bf16[128,128], index: 6, kind: input, shape index: {}]
  %s7 = inlined_call_operand.vmem [shape: f32[1,128], index: 7, kind: input, shape index: {}]
  %s8 = inlined_call_operand.vmem [shape: bf16[128,128], index: 8, kind: input, shape index: {}]
  %s9 = inlined_call_operand.vmem [shape: f32[1,128], index: 9, kind: input, shape index: {}]
  %s10 = inlined_call_operand.vmem [shape: f32[16,32], index: 10, kind: output, shape index: {0}]
  %s11 = inlined_call_operand.vmem [shape: bf16[16,256], index: 11, kind: output, shape index: {1}]
  %s12 = inlined_call_operand.vmem [shape: f32[16,16], index: 12, kind: output, shape index: {2}]
  %13 = xla_tuple %s10, %s11, %s12
  %s14 = sld [smem:[#allocation0]]
  $region66: #{_lambda_.9} parent=0
    _
  %s16 = ssub.s32 1, %s14
  %s17 = scalar_select 0, %s16, %s14
  // Predicated region
  $region2: #{_lambda_.9} parent=0 // pred_check
    _
  $region3: #{_lambda_.9} parent=0 // pred_check_branch
    %19 = sbr.rel (0) target = $region5
  $region4: #{_lambda_.9} parent=0 // pred_region
    _
  $region5: #{_lambda_.9} parent=0 // pred_fallthru
    _
  // Predicated region
  $region6: #{_lambda_.9} parent=0 // pred_check
    _
  $region7: #{_lambda_.9} parent=0 // pred_check_branch
    %21 = sbr.rel (0) target = $region9
  $region8: #{_lambda_.9} parent=0 // pred_region
    _
  $region9: #{_lambda_.9} parent=0 // pred_fallthru
    _
  // Predicated region
  $region10: #{_lambda_.9} parent=0 // pred_check
    _
  $region11: #{_lambda_.9} parent=0 // pred_check_branch
    %23 = sbr.rel (0) target = $region13
  $region12: #{_lambda_.9} parent=0 // pred_region
    _
  $region13: #{_lambda_.9} parent=0 // pred_fallthru
    _
  // Predicated region
  $region14: #{_lambda_.9} parent=0 // pred_check
    _
  $region15: #{_lambda_.9} parent=0 // pred_check_branch
    %25 = sbr.rel (0) target = $region17
  $region16: #{_lambda_.9} parent=0 // pred_region
    _
  $region17: #{_lambda_.9} parent=0 // pred_fallthru
    _
  // Predicated region
  $region18: #{_lambda_.9} parent=0 // pred_check
    _
  $region19: #{_lambda_.9} parent=0 // pred_check_branch
    %27 = sbr.rel (0) target = $region21
  $region20: #{_lambda_.9} parent=0 // pred_region
    _
  $region21: #{_lambda_.9} parent=0 // pred_fallthru
    _
  // Predicated region
  $region22: #{_lambda_.9} parent=0 // pred_check
    _
  $region23: #{_lambda_.9} parent=0 // pred_check_branch
    %29 = sbr.rel (0) target = $region25
  $region24: #{_lambda_.9} parent=0 // pred_region
    _
  $region25: #{_lambda_.9} parent=0 // pred_fallthru
    _
  // Predicated region
  $region26: #{_lambda_.9} parent=0 // pred_check
    _
  $region27: #{_lambda_.9} parent=0 // pred_check_branch
    %31 = sbr.rel (0) target = $region29
  $region28: #{_lambda_.9} parent=0 // pred_region
    _
  $region29: #{_lambda_.9} parent=0 // pred_fallthru
    _
  // Predicated region
  $region30: #{_lambda_.9} parent=0 // pred_check
    _
  $region31: #{_lambda_.9} parent=0 // pred_check_branch
    %33 = sbr.rel (0) target = $region33
  $region32: #{_lambda_.9} parent=0 // pred_region
    _
  $region33: #{_lambda_.9} parent=0 // pred_fallthru
    _
  // Predicated region
  $region34: #{_lambda_.9} parent=0 // pred_check
    _
  $region35: #{_lambda_.9} parent=0 // pred_check_branch
    %35 = sbr.rel (0) target = $region37
  $region36: #{_lambda_.9} parent=0 // pred_region
    _
  $region37: #{_lambda_.9} parent=0 // pred_fallthru
    _
  // Predicated region
  $region38: #{_lambda_.9} parent=0 // pred_check
    _
  $region39: #{_lambda_.9} parent=0 // pred_check_branch
    %37 = sbr.rel (0) target = $region41
  $region40: #{_lambda_.9} parent=0 // pred_region
    _
  $region41: #{_lambda_.9} parent=0 // pred_fallthru
    _
  %v39 = vld [vmem:[%s0] sm:$0xff]
  %v40 = vld [vmem:[%s0 + $0x8] sm:$0xff]
  %v41 = vld [vmem:[%s2] sm:$0xf]
  %v42 = vld [vmem:[%s2 + $0x4] sm:$0xf]
  %v43 = vld [vmem:[%s2 + $0x8] sm:$0xf]
  %v44 = vld [vmem:[%s2 + $0xc] sm:$0xf]
  %v45 = vld [vmem:[%s2 + $0x10] sm:$0xf]
  %v46 = vld [vmem:[%s2 + $0x14] sm:$0xf]
  %v47 = vld [vmem:[%s2 + $0x18] sm:$0xf]
  %v48 = vld [vmem:[%s2 + $0x1c] sm:$0xf]
  %v49 = vld [vmem:[%s2 + $0x20] sm:$0xf]
  %v50 = vld [vmem:[%s2 + $0x24] sm:$0xf]
  %v51 = vld [vmem:[%s2 + $0x28] sm:$0xf]
  %v52 = vld [vmem:[%s2 + $0x2c] sm:$0xf]
  %v53 = vld [vmem:[%s2 + $0x30] sm:$0xf]
  %v54 = vld [vmem:[%s2 + $0x34] sm:$0xf]
  %v55 = vld [vmem:[%s2 + $0x38] sm:$0xf]
  %v56 = vld [vmem:[%s2 + $0x3c] sm:$0xf]
  %v57 = vld [vmem:[%s2 + $0x40] sm:$0xf]
  %v58 = vld [vmem:[%s2 + $0x44] sm:$0xf]
  %v59 = vld [vmem:[%s2 + $0x48] sm:$0xf]
  %v60 = vld [vmem:[%s2 + $0x4c] sm:$0xf]
  %v61 = vld [vmem:[%s2 + $0x50] sm:$0xf]
  %v62 = vld [vmem:[%s2 + $0x54] sm:$0xf]
  %v63 = vld [vmem:[%s2 + $0x58] sm:$0xf]
  %v64 = vld [vmem:[%s2 + $0x5c] sm:$0xf]
  %v65 = vld [vmem:[%s2 + $0x60] sm:$0xf]
  %v66 = vld [vmem:[%s2 + $0x64] sm:$0xf]
  %v67 = vld [vmem:[%s2 + $0x68] sm:$0xf]
  %v68 = vld [vmem:[%s2 + $0x6c] sm:$0xf]
  %v69 = vld [vmem:[%s2 + $0x70] sm:$0xf]
  %v70 = vld [vmem:[%s2 + $0x74] sm:$0xf]
  %v71 = vld [vmem:[%s2 + $0x78] sm:$0xf]
  %v72 = vld [vmem:[%s2 + $0x7c] sm:$0xf]
  %v73 = vld [vmem:[%s3] sm:$0x1]
  %v75 = vlaneseq
  %v76 = vshrl.u32 %v75, 7
  %v77 = vsub.s32 0, %v76
  %v78 = vrot.slane %v73, %v77
  %v82 = vunpack.c.l.b16 %v39
  %v83 = vunpack.c.h.b16 %v39
  %v84 = vunpack.c.l.b16 %v40
  %v85 = vunpack.c.h.b16 %v40
  %v86 = vpack.c.b16 %v84, %v82
  %v87 = vpack.c.b16 %v85, %v83
  %v122 = vunpack.c.l.b16 %v41
  %v123 = vunpack.c.l.b16 %v42
  %v124 = vunpack.c.l.b16 %v43
  %v125 = vunpack.c.l.b16 %v44
  %v126 = vunpack.c.l.b16 %v45
  %v127 = vunpack.c.l.b16 %v46
  %v128 = vunpack.c.l.b16 %v47
  %v129 = vunpack.c.l.b16 %v48
  %v130 = vunpack.c.l.b16 %v49
  %v131 = vunpack.c.l.b16 %v50
  %v132 = vunpack.c.l.b16 %v51
  %v133 = vunpack.c.l.b16 %v52
  %v134 = vunpack.c.l.b16 %v53
  %v135 = vunpack.c.l.b16 %v54
  %v136 = vunpack.c.l.b16 %v55
  %v137 = vunpack.c.l.b16 %v56
  %v138 = vunpack.c.l.b16 %v57
  %v139 = vunpack.c.l.b16 %v58
  %v140 = vunpack.c.l.b16 %v59
  %v141 = vunpack.c.l.b16 %v60
  %v142 = vunpack.c.l.b16 %v61
  %v143 = vunpack.c.l.b16 %v62
  %v144 = vunpack.c.l.b16 %v63
  %v145 = vunpack.c.l.b16 %v64
  %v146 = vunpack.c.l.b16 %v65
  %v147 = vunpack.c.l.b16 %v66
  %v148 = vunpack.c.l.b16 %v67
  %v149 = vunpack.c.l.b16 %v68
  %v150 = vunpack.c.l.b16 %v69
  %v151 = vunpack.c.l.b16 %v70
  %v152 = vunpack.c.l.b16 %v71
  %v153 = vunpack.c.l.b16 %v72
  %v154 = vpack.c.b16 %v123, %v122
  %v155 = vpack.c.b16 %v125, %v124
  %v156 = vpack.c.b16 %v127, %v126
  %v157 = vpack.c.b16 %v129, %v128
  %v158 = vpack.c.b16 %v131, %v130
  %v159 = vpack.c.b16 %v133, %v132
  %v160 = vpack.c.b16 %v135, %v134
  %v161 = vpack.c.b16 %v137, %v136
  %v162 = vpack.c.b16 %v139, %v138
  %v163 = vpack.c.b16 %v141, %v140
  %v164 = vpack.c.b16 %v143, %v142
  %v165 = vpack.c.b16 %v145, %v144
  %v166 = vpack.c.b16 %v147, %v146
  %v167 = vpack.c.b16 %v149, %v148
  %v168 = vpack.c.b16 %v151, %v150
  %v169 = vpack.c.b16 %v153, %v152
  %186 = vmatprep.subr.bf16.mxu0 0
  %187 = vmatpush1.bf16.msra.mxu0 %v154
  %188 = vmatprep.subr.bf16.mxu0 0
  %189 = vmatpush1.bf16.msra.mxu0 %v155
  %190 = vmatprep.subr.bf16.mxu0 0
  %191 = vmatpush1.bf16.msra.mxu0 %v156
  %192 = vmatprep.subr.bf16.mxu0 0
  %193 = vmatpush1.bf16.msra.mxu0 %v157
  %194 = vmatprep.subr.bf16.mxu0 0
  %195 = vmatpush1.bf16.msra.mxu0 %v158
  %196 = vmatprep.subr.bf16.mxu0 0
  %197 = vmatpush1.bf16.msra.mxu0 %v159
  %198 = vmatprep.subr.bf16.mxu0 0
  %199 = vmatpush1.bf16.msra.mxu0 %v160
  %200 = vmatprep.subr.bf16.mxu0 0
  %201 = vmatpush1.bf16.msra.mxu0 %v161
  %202 = vmatprep.subr.bf16.mxu0 0
  %203 = vmatpush1.bf16.msra.mxu0 %v162
  %204 = vmatprep.subr.bf16.mxu0 0
  %205 = vmatpush1.bf16.msra.mxu0 %v163
  %206 = vmatprep.subr.bf16.mxu0 0
  %207 = vmatpush1.bf16.msra.mxu0 %v164
  %208 = vmatprep.subr.bf16.mxu0 0
  %209 = vmatpush1.bf16.msra.mxu0 %v165
  %210 = vmatprep.subr.bf16.mxu0 0
  %211 = vmatpush1.bf16.msra.mxu0 %v166
  %212 = vmatprep.subr.bf16.mxu0 0
  %213 = vmatpush1.bf16.msra.mxu0 %v167
  %214 = vmatprep.subr.bf16.mxu0 0
  %215 = vmatpush1.bf16.msra.mxu0 %v168
  %216 = vmatprep.subr.bf16.mxu0 0
  %217 = vmatpush1.bf16.msra.mxu0 %v169
  %218 = vmatprep.mubr.bf16.mxu0 %v87
  %219 = vmatmul.mubr.bf16.gmra.mrb[0].mxu0 %v86
  %v220 = vpop.f32.mrb[0].mxu0
  %v221 = vadd.f32 %v78, %v220
  %v222 = vpop.f32.mrb[0].mxu0
  %v223 = vpop.f32.mrb[0].mxu0
  %v224 = vadd.f32 %v78, %v223
  %v225 = vpop.f32.mrb[0].mxu0
  %226 = vdwg.mxu0
  %vm227 = vcmask 261120
  %228 = vst.msk [vmem:[%s10] sm:$0xff] %vm227, %v221
  %229 = vst.msk [vmem:[%s10 + $0x8] sm:$0xff] %vm227, %v224
  %v230 = vpack.c.bf16 %v224, %v221
  %v231 = vld [vmem:[%s4] sm:$0xff]
  %v232 = vld [vmem:[%s4 + $0x8] sm:$0xff]
  %v233 = vld [vmem:[%s4 + $0x10] sm:$0xff]
  %v234 = vld [vmem:[%s4 + $0x18] sm:$0xff]
  %v235 = vld [vmem:[%s4 + $0x20] sm:$0xff]
  %v236 = vld [vmem:[%s4 + $0x28] sm:$0xff]
  %v237 = vld [vmem:[%s4 + $0x30] sm:$0xff]
  %v238 = vld [vmem:[%s4 + $0x38] sm:$0xff]
  %v239 = vld [vmem:[%s4 + $0x40] sm:$0xff]
  %v240 = vld [vmem:[%s4 + $0x48] sm:$0xff]
  %v241 = vld [vmem:[%s4 + $0x50] sm:$0xff]
  %v242 = vld [vmem:[%s4 + $0x58] sm:$0xff]
  %v243 = vld [vmem:[%s4 + $0x60] sm:$0xff]
  %v244 = vld [vmem:[%s4 + $0x68] sm:$0xff]
  %v245 = vld [vmem:[%s4 + $0x70] sm:$0xff]
  %v246 = vld [vmem:[%s4 + $0x78] sm:$0xff]
  %v247 = vld [vmem:[%s5] sm:$0x3]
  %v249 = vlaneseq
  %v250 = vshrl.u32 %v249, 7
  %v251 = vsub.s32 0, %v250
  %v252 = vrot.slane %v247, %v251
  %v253 = vlaneseq
  %v254 = vshrl.u32 %v253, 7
  %v255 = vsub.s32 1, %v254
  %v256 = vrot.slane %v247, %v255
  %v275 = vunpack.c.l.b16 %v231
  %v276 = vunpack.c.h.b16 %v231
  %v277 = vunpack.c.l.b16 %v232
  %v278 = vunpack.c.h.b16 %v232
  %v279 = vunpack.c.l.b16 %v233
  %v280 = vunpack.c.h.b16 %v233
  %v281 = vunpack.c.l.b16 %v234
  %v282 = vunpack.c.h.b16 %v234
  %v283 = vunpack.c.l.b16 %v235
  %v284 = vunpack.c.h.b16 %v235
  %v285 = vunpack.c.l.b16 %v236
  %v286 = vunpack.c.h.b16 %v236
  %v287 = vunpack.c.l.b16 %v237
  %v288 = vunpack.c.h.b16 %v237
  %v289 = vunpack.c.l.b16 %v238
  %v290 = vunpack.c.h.b16 %v238
  %v291 = vunpack.c.l.b16 %v239
  %v292 = vunpack.c.h.b16 %v239
  %v293 = vunpack.c.l.b16 %v240
  %v294 = vunpack.c.h.b16 %v240
  %v295 = vunpack.c.l.b16 %v241
  %v296 = vunpack.c.h.b16 %v241
  %v297 = vunpack.c.l.b16 %v242
  %v298 = vunpack.c.h.b16 %v242
  %v299 = vunpack.c.l.b16 %v243
  %v300 = vunpack.c.h.b16 %v243
  %v301 = vunpack.c.l.b16 %v244
  %v302 = vunpack.c.h.b16 %v244
  %v303 = vunpack.c.l.b16 %v245
  %v304 = vunpack.c.h.b16 %v245
  %v305 = vunpack.c.l.b16 %v246
  %v306 = vunpack.c.h.b16 %v246
  %v307 = vpack.c.b16 %v277, %v275
  %v308 = vpack.c.b16 %v278, %v276
  %v309 = vpack.c.b16 %v281, %v279
  %v310 = vpack.c.b16 %v282, %v280
  %v311 = vpack.c.b16 %v285, %v283
  %v312 = vpack.c.b16 %v286, %v284
  %v313 = vpack.c.b16 %v289, %v287
  %v314 = vpack.c.b16 %v290, %v288
  %v315 = vpack.c.b16 %v293, %v291
  %v316 = vpack.c.b16 %v294, %v292
  %v317 = vpack.c.b16 %v297, %v295
  %v318 = vpack.c.b16 %v298, %v296
  %v319 = vpack.c.b16 %v301, %v299
  %v320 = vpack.c.b16 %v302, %v300
  %v321 = vpack.c.b16 %v305, %v303
  %v322 = vpack.c.b16 %v306, %v304
  %339 = vmatprep.subr.bf16.mxu0 %v308
  %340 = vmatpush1.bf16.msra.mxu0 %v307
  %341 = vmatprep.subr.bf16.mxu0 %v310
  %342 = vmatpush1.bf16.msra.mxu0 %v309
  %343 = vmatprep.subr.bf16.mxu0 %v312
  %344 = vmatpush1.bf16.msra.mxu0 %v311
  %345 = vmatprep.subr.bf16.mxu0 %v314
  %346 = vmatpush1.bf16.msra.mxu0 %v313
  %347 = vmatprep.subr.bf16.mxu0 %v316
  %348 = vmatpush1.bf16.msra.mxu0 %v315
  %349 = vmatprep.subr.bf16.mxu0 %v318
  %350 = vmatpush1.bf16.msra.mxu0 %v317
  %351 = vmatprep.subr.bf16.mxu0 %v320
  %352 = vmatpush1.bf16.msra.mxu0 %v319
  %353 = vmatprep.subr.bf16.mxu0 %v322
  %354 = vmatpush1.bf16.msra.mxu0 %v321
  %355 = vmatprep.subr.bf16.mxu0 0
  %356 = vmatpush1.bf16.msra.mxu0 0
  %357 = vmatprep.subr.bf16.mxu0 0
  %358 = vmatpush1.bf16.msra.mxu0 0
  %359 = vmatprep.subr.bf16.mxu0 0
  %360 = vmatpush1.bf16.msra.mxu0 0
  %361 = vmatprep.subr.bf16.mxu0 0
  %362 = vmatpush1.bf16.msra.mxu0 0
  %363 = vmatprep.subr.bf16.mxu0 0
  %364 = vmatpush1.bf16.msra.mxu0 0
  %365 = vmatprep.subr.bf16.mxu0 0
  %366 = vmatpush1.bf16.msra.mxu0 0
  %367 = vmatprep.subr.bf16.mxu0 0
  %368 = vmatpush1.bf16.msra.mxu0 0
  %369 = vmatprep.subr.bf16.mxu0 0
  %370 = vmatpush1.bf16.msra.mxu0 0
  %371 = vmatprep.mubr.bf16.mxu0 0
  %372 = vmatmul.mubr.bf16.gmra.mrb[0].mxu0 %v230
  %v373 = vpop.f32.mrb[0].mxu0
  %v374 = vadd.f32 %v252, %v373
  %v375 = vpop.f32.mrb[0].mxu0
  %v376 = vadd.f32 %v256, %v375
  %v377 = vpop.f32.mrb[0].mxu0
  %v378 = vadd.f32 %v252, %v377
  %v379 = vpop.f32.mrb[0].mxu0
  %v380 = vadd.f32 %v256, %v379
  %381 = vdwg.mxu0
  %v382 = vpack.c.bf16 %v378, %v374
  %v383 = vpack.c.bf16 %v380, %v376
  %v386 = vunpack.c.l.b16 %v382
  %v387 = vunpack.c.l.b16 %v383
  %v388 = vunpack.c.h.b16 %v382
  %v389 = vunpack.c.h.b16 %v383
  %v390 = vpack.c.b16 %v387, %v386
  %v391 = vpack.c.b16 %v389, %v388
  %394 = vst [vmem:[%s11] sm:$0xff] %v390
  %395 = vst [vmem:[%s11 + $0x8] sm:$0xff] %v391
  %v396 = vld [vmem:[%s1] sm:$0xf]
  %v397 = vld [vmem:[%s1 + $0x4] sm:$0xf]
  %v398 = vld [vmem:[%s6] sm:$0xf]
  %v399 = vld [vmem:[%s6 + $0x4] sm:$0xf]
  %v400 = vld [vmem:[%s6 + $0x8] sm:$0xf]
  %v401 = vld [vmem:[%s6 + $0xc] sm:$0xf]
  %v402 = vld [vmem:[%s6 + $0x10] sm:$0xf]
  %v403 = vld [vmem:[%s6 + $0x14] sm:$0xf]
  %v404 = vld [vmem:[%s6 + $0x18] sm:$0xf]
  %v405 = vld [vmem:[%s6 + $0x1c] sm:$0xf]
  %v406 = vld [vmem:[%s6 + $0x20] sm:$0xf]
  %v407 = vld [vmem:[%s6 + $0x24] sm:$0xf]
  %v408 = vld [vmem:[%s6 + $0x28] sm:$0xf]
  %v409 = vld [vmem:[%s6 + $0x2c] sm:$0xf]
  %v410 = vld [vmem:[%s6 + $0x30] sm:$0xf]
  %v411 = vld [vmem:[%s6 + $0x34] sm:$0xf]
  %v412 = vld [vmem:[%s6 + $0x38] sm:$0xf]
  %v413 = vld [vmem:[%s6 + $0x3c] sm:$0xf]
  %v414 = vld [vmem:[%s7] sm:$0x1]
  %v416 = vlaneseq
  %v417 = vshrl.u32 %v416, 7
  %v418 = vsub.s32 0, %v417
  %v419 = vrot.slane %v414, %v418
  %v423 = vunpack.c.l.b16 %v396
  %v424 = vunpack.c.l.b16 %v397
  %v425 = vpack.c.b16 %v424, %v423
  %v443 = vunpack.c.l.b16 %v398
  %v444 = vunpack.c.l.b16 %v399
  %v445 = vunpack.c.l.b16 %v400
  %v446 = vunpack.c.l.b16 %v401
  %v447 = vunpack.c.l.b16 %v402
  %v448 = vunpack.c.l.b16 %v403
  %v449 = vunpack.c.l.b16 %v404
  %v450 = vunpack.c.l.b16 %v405
  %v451 = vunpack.c.l.b16 %v406
  %v452 = vunpack.c.l.b16 %v407
  %v453 = vunpack.c.l.b16 %v408
  %v454 = vunpack.c.l.b16 %v409
  %v455 = vunpack.c.l.b16 %v410
  %v456 = vunpack.c.l.b16 %v411
  %v457 = vunpack.c.l.b16 %v412
  %v458 = vunpack.c.l.b16 %v413
  %v459 = vpack.c.b16 %v444, %v443
  %v460 = vpack.c.b16 %v446, %v445
  %v461 = vpack.c.b16 %v448, %v447
  %v462 = vpack.c.b16 %v450, %v449
  %v463 = vpack.c.b16 %v452, %v451
  %v464 = vpack.c.b16 %v454, %v453
  %v465 = vpack.c.b16 %v456, %v455
  %v466 = vpack.c.b16 %v458, %v457
  %475 = vmatprep.subr.bf16.mxu0 0
  %476 = vmatpush1.bf16.msra.mxu0 %v459
  %477 = vmatprep.subr.bf16.mxu0 0
  %478 = vmatpush1.bf16.msra.mxu0 %v460
  %479 = vmatprep.subr.bf16.mxu0 0
  %480 = vmatpush1.bf16.msra.mxu0 %v461
  %481 = vmatprep.subr.bf16.mxu0 0
  %482 = vmatpush1.bf16.msra.mxu0 %v462
  %483 = vmatprep.subr.bf16.mxu0 0
  %484 = vmatpush1.bf16.msra.mxu0 %v463
  %485 = vmatprep.subr.bf16.mxu0 0
  %486 = vmatpush1.bf16.msra.mxu0 %v464
  %487 = vmatprep.subr.bf16.mxu0 0
  %488 = vmatpush1.bf16.msra.mxu0 %v465
  %489 = vmatprep.subr.bf16.mxu0 0
  %490 = vmatpush1.bf16.msra.mxu0 %v466
  %491 = vmatprep.subr.bf16.mxu0 0
  %492 = vmatpush1.bf16.msra.mxu0 0
  %493 = vmatprep.subr.bf16.mxu0 0
  %494 = vmatpush1.bf16.msra.mxu0 0
  %495 = vmatprep.subr.bf16.mxu0 0
  %496 = vmatpush1.bf16.msra.mxu0 0
  %497 = vmatprep.subr.bf16.mxu0 0
  %498 = vmatpush1.bf16.msra.mxu0 0
  %499 = vmatprep.subr.bf16.mxu0 0
  %500 = vmatpush1.bf16.msra.mxu0 0
  %501 = vmatprep.subr.bf16.mxu0 0
  %502 = vmatpush1.bf16.msra.mxu0 0
  %503 = vmatprep.subr.bf16.mxu0 0
  %504 = vmatpush1.bf16.msra.mxu0 0
  %505 = vmatprep.subr.bf16.mxu0 0
  %506 = vmatpush1.bf16.msra.mxu0 0
  %507 = vmatprep.mubr.bf16.mxu0 0
  %508 = vmatmul.mubr.bf16.gmra.mrb[0].mxu0 %v425
  %v509 = vpop.f32.mrb[0].mxu0
  %v510 = vadd.f32 %v419, %v509
  %v511 = vpop.f32.mrb[0].mxu0
  %v512 = vpop.f32.mrb[0].mxu0
  %v513 = vadd.f32 %v419, %v512
  %v514 = vpop.f32.mrb[0].mxu0
  %515 = vdwg.mxu0
  %v516 = vmax.f32 %v510, 0.0
  %v517 = vmax.f32 %v513, 0.0
  %v518 = vpack.c.bf16 %v517, %v516
  %v519 = vld [vmem:[%s8] sm:$0xf]
  %v520 = vld [vmem:[%s8 + $0x4] sm:$0xf]
  %v521 = vld [vmem:[%s8 + $0x8] sm:$0xf]
  %v522 = vld [vmem:[%s8 + $0xc] sm:$0xf]
  %v523 = vld [vmem:[%s8 + $0x10] sm:$0xf]
  %v524 = vld [vmem:[%s8 + $0x14] sm:$0xf]
  %v525 = vld [vmem:[%s8 + $0x18] sm:$0xf]
  %v526 = vld [vmem:[%s8 + $0x1c] sm:$0xf]
  %v527 = vld [vmem:[%s8 + $0x20] sm:$0xf]
  %v528 = vld [vmem:[%s8 + $0x24] sm:$0xf]
  %v529 = vld [vmem:[%s8 + $0x28] sm:$0xf]
  %v530 = vld [vmem:[%s8 + $0x2c] sm:$0xf]
  %v531 = vld [vmem:[%s8 + $0x30] sm:$0xf]
  %v532 = vld [vmem:[%s8 + $0x34] sm:$0xf]
  %v533 = vld [vmem:[%s8 + $0x38] sm:$0xf]
  %v534 = vld [vmem:[%s8 + $0x3c] sm:$0xf]
  %v535 = vld [vmem:[%s9] sm:$0x1]
  %v537 = vlaneseq
  %v538 = vshrl.u32 %v537, 7
  %v539 = vsub.s32 0, %v538
  %v540 = vrot.slane %v535, %v539
  %v558 = vunpack.c.l.b16 %v519
  %v559 = vunpack.c.l.b16 %v520
  %v560 = vunpack.c.l.b16 %v521
  %v561 = vunpack.c.l.b16 %v522
  %v562 = vunpack.c.l.b16 %v523
  %v563 = vunpack.c.l.b16 %v524
  %v564 = vunpack.c.l.b16 %v525
  %v565 = vunpack.c.l.b16 %v526
  %v566 = vunpack.c.l.b16 %v527
  %v567 = vunpack.c.l.b16 %v528
  %v568 = vunpack.c.l.b16 %v529
  %v569 = vunpack.c.l.b16 %v530
  %v570 = vunpack.c.l.b16 %v531
  %v571 = vunpack.c.l.b16 %v532
  %v572 = vunpack.c.l.b16 %v533
  %v573 = vunpack.c.l.b16 %v534
  %v574 = vpack.c.b16 %v559, %v558
  %v575 = vpack.c.b16 %v561, %v560
  %v576 = vpack.c.b16 %v563, %v562
  %v577 = vpack.c.b16 %v565, %v564
  %v578 = vpack.c.b16 %v567, %v566
  %v579 = vpack.c.b16 %v569, %v568
  %v580 = vpack.c.b16 %v571, %v570
  %v581 = vpack.c.b16 %v573, %v572
  %590 = vmatprep.subr.bf16.mxu0 0
  %591 = vmatpush1.bf16.msra.mxu0 %v574
  %592 = vmatprep.subr.bf16.mxu0 0
  %593 = vmatpush1.bf16.msra.mxu0 %v575
  %594 = vmatprep.subr.bf16.mxu0 0
  %595 = vmatpush1.bf16.msra.mxu0 %v576
  %596 = vmatprep.subr.bf16.mxu0 0
  %597 = vmatpush1.bf16.msra.mxu0 %v577
  %598 = vmatprep.subr.bf16.mxu0 0
  %599 = vmatpush1.bf16.msra.mxu0 %v578
  %600 = vmatprep.subr.bf16.mxu0 0
  %601 = vmatpush1.bf16.msra.mxu0 %v579
  %602 = vmatprep.subr.bf16.mxu0 0
  %603 = vmatpush1.bf16.msra.mxu0 %v580
  %604 = vmatprep.subr.bf16.mxu0 0
  %605 = vmatpush1.bf16.msra.mxu0 %v581
  %606 = vmatprep.subr.bf16.mxu0 0
  %607 = vmatpush1.bf16.msra.mxu0 0
  %608 = vmatprep.subr.bf16.mxu0 0
  %609 = vmatpush1.bf16.msra.mxu0 0
  %610 = vmatprep.subr.bf16.mxu0 0
  %611 = vmatpush1.bf16.msra.mxu0 0
  %612 = vmatprep.subr.bf16.mxu0 0
  %613 = vmatpush1.bf16.msra.mxu0 0
  %614 = vmatprep.subr.bf16.mxu0 0
  %615 = vmatpush1.bf16.msra.mxu0 0
  %616 = vmatprep.subr.bf16.mxu0 0
  %617 = vmatpush1.bf16.msra.mxu0 0
  %618 = vmatprep.subr.bf16.mxu0 0
  %619 = vmatpush1.bf16.msra.mxu0 0
  %620 = vmatprep.subr.bf16.mxu0 0
  %621 = vmatpush1.bf16.msra.mxu0 0
  %622 = vmatprep.mubr.bf16.mxu0 0
  %623 = vmatmul.mubr.bf16.gmra.mrb[0].mxu0 %v518
  %v624 = vpop.f32.mrb[0].mxu0
  %v625 = vadd.f32 %v540, %v624
  %v626 = vpop.f32.mrb[0].mxu0
  %v627 = vpop.f32.mrb[0].mxu0
  %v628 = vadd.f32 %v540, %v627
  %v629 = vpop.f32.mrb[0].mxu0
  %630 = vdwg.mxu0
  %vm631 = vcmask 130048
  %632 = vst.msk [vmem:[%s12] sm:$0xff] %vm631, %v625
  %633 = vst.msk [vmem:[%s12 + $0x8] sm:$0xff] %vm631, %v628
  // Predicated region
  $region42: #{_lambda_.9} parent=0 // pred_check
    _
  $region43: #{_lambda_.9} parent=0 // pred_check_branch
    %635 = sbr.rel (0) target = $region45
  $region44: #{_lambda_.9} parent=0 // pred_region
    _
  $region45: #{_lambda_.9} parent=0 // pred_fallthru
    _
  // Predicated region
  $region46: #{_lambda_.9} parent=0 // pred_check
    _
  $region47: #{_lambda_.9} parent=0 // pred_check_branch
    %637 = sbr.rel (0) target = $region49
  $region48: #{_lambda_.9} parent=0 // pred_region
    _
  $region49: #{_lambda_.9} parent=0 // pred_fallthru
    _
  // Predicated region
  $region50: #{_lambda_.9} parent=0 // pred_check
    _
  $region51: #{_lambda_.9} parent=0 // pred_check_branch
    %639 = sbr.rel (0) target = $region53
  $region52: #{_lambda_.9} parent=0 // pred_region
    _
  $region53: #{_lambda_.9} parent=0 // pred_fallthru
    _
  // Predicated region
  $region54: #{_lambda_.9} parent=0 // pred_check
    _
  $region55: #{_lambda_.9} parent=0 // pred_check_branch
    %641 = sbr.rel (0) target = $region57
  $region56: #{_lambda_.9} parent=0 // pred_region
    _
  $region57: #{_lambda_.9} parent=0 // pred_fallthru
    _
  // Predicated region
  $region58: #{_lambda_.9} parent=0 // pred_check
    _
  $region59: #{_lambda_.9} parent=0 // pred_check_branch
    %643 = sbr.rel (0) target = $region61
  $region60: #{_lambda_.9} parent=0 // pred_region
    _
  $region61: #{_lambda_.9} parent=0 // pred_fallthru
    _
  // Predicated region
  $region62: #{_lambda_.9} parent=0 // pred_check
    _
  $region63: #{_lambda_.9} parent=0 // pred_check_branch
    %645 = sbr.rel (0) target = $region65
  $region64: #{_lambda_.9} parent=0 // pred_region
    _
  $region65: #{_lambda_.9} parent=0 // pred_fallthru
    _

// kernel: _lambda_.10
$region0: #{_lambda_.10}
  #allocation0 [shape = 'u32[]', space=smem, size = 0x4, offset = 0x4, fixed_abs, tag = 'smem constant byte address 0x4 - core index']
  #allocation1 [shape = 'u32[144,128]{1,0:T(1,128)}', space=vmem, size = 0x12000, scoped, tag = 'internal scratch']
  %s0 = inlined_call_operand.vmem [shape: bf16[64,256], index: 0, kind: input, shape index: {}]
  %s1 = inlined_call_operand.vmem [shape: bf16[256,128], index: 1, kind: input, shape index: {}]
  %s2 = inlined_call_operand.vmem [shape: f32[1,128], index: 2, kind: input, shape index: {}]
  %s3 = inlined_call_operand.vmem [shape: bf16[64,8], index: 3, kind: output, shape index: {}]
  %s4 = sld [smem:[#allocation0]]
  $region22: #{_lambda_.10} parent=0
    _
  %s6 = ssub.s32 1, %s4
  %s7 = scalar_select 0, %s6, %s4
  // Predicated region
  $region2: #{_lambda_.10} parent=0 // pred_check
    _
  $region3: #{_lambda_.10} parent=0 // pred_check_branch
    %9 = sbr.rel (0) target = $region5
  $region4: #{_lambda_.10} parent=0 // pred_region
    _
  $region5: #{_lambda_.10} parent=0 // pred_fallthru
    _
  // Predicated region
  $region6: #{_lambda_.10} parent=0 // pred_check
    _
  $region7: #{_lambda_.10} parent=0 // pred_check_branch
    %11 = sbr.rel (0) target = $region9
  $region8: #{_lambda_.10} parent=0 // pred_region
    _
  $region9: #{_lambda_.10} parent=0 // pred_fallthru
    _
  // Predicated region
  $region10: #{_lambda_.10} parent=0 // pred_check
    _
  $region11: #{_lambda_.10} parent=0 // pred_check_branch
    %13 = sbr.rel (0) target = $region13
  $region12: #{_lambda_.10} parent=0 // pred_region
    _
  $region13: #{_lambda_.10} parent=0 // pred_fallthru
    _
  %v15 = vld [vmem:[%s0] sm:$0xff]
  %v16 = vld [vmem:[%s0 + $0x8] sm:$0xff]
  %v17 = vld [vmem:[%s0 + $0x10] sm:$0xff]
  %v18 = vld [vmem:[%s0 + $0x18] sm:$0xff]
  %v19 = vld [vmem:[%s0 + $0x20] sm:$0xff]
  %v20 = vld [vmem:[%s0 + $0x28] sm:$0xff]
  %v21 = vld [vmem:[%s0 + $0x30] sm:$0xff]
  %v22 = vld [vmem:[%s0 + $0x38] sm:$0xff]
  %v23 = vld [vmem:[%s1] sm:$0xf]
  %v24 = vld [vmem:[%s1 + $0x4] sm:$0xf]
  %v25 = vld [vmem:[%s1 + $0x8] sm:$0xf]
  %v26 = vld [vmem:[%s1 + $0xc] sm:$0xf]
  %v27 = vld [vmem:[%s1 + $0x10] sm:$0xf]
  %v28 = vld [vmem:[%s1 + $0x14] sm:$0xf]
  %v29 = vld [vmem:[%s1 + $0x18] sm:$0xf]
  %v30 = vld [vmem:[%s1 + $0x1c] sm:$0xf]
  %v31 = vld [vmem:[%s1 + $0x20] sm:$0xf]
  %v32 = vld [vmem:[%s1 + $0x24] sm:$0xf]
  %v33 = vld [vmem:[%s1 + $0x28] sm:$0xf]
  %v34 = vld [vmem:[%s1 + $0x2c] sm:$0xf]
  %v35 = vld [vmem:[%s1 + $0x30] sm:$0xf]
  %v36 = vld [vmem:[%s1 + $0x34] sm:$0xf]
  %v37 = vld [vmem:[%s1 + $0x38] sm:$0xf]
  %v38 = vld [vmem:[%s1 + $0x3c] sm:$0xf]
  %v39 = vld [vmem:[%s1 + $0x40] sm:$0xf]
  %v40 = vld [vmem:[%s1 + $0x44] sm:$0xf]
  %v41 = vld [vmem:[%s1 + $0x48] sm:$0xf]
  %v42 = vld [vmem:[%s1 + $0x4c] sm:$0xf]
  %v43 = vld [vmem:[%s1 + $0x50] sm:$0xf]
  %v44 = vld [vmem:[%s1 + $0x54] sm:$0xf]
  %v45 = vld [vmem:[%s1 + $0x58] sm:$0xf]
  %v46 = vld [vmem:[%s1 + $0x5c] sm:$0xf]
  %v47 = vld [vmem:[%s1 + $0x60] sm:$0xf]
  %v48 = vld [vmem:[%s1 + $0x64] sm:$0xf]
  %v49 = vld [vmem:[%s1 + $0x68] sm:$0xf]
  %v50 = vld [vmem:[%s1 + $0x6c] sm:$0xf]
  %v51 = vld [vmem:[%s1 + $0x70] sm:$0xf]
  %v52 = vld [vmem:[%s1 + $0x74] sm:$0xf]
  %v53 = vld [vmem:[%s1 + $0x78] sm:$0xf]
  %v54 = vld [vmem:[%s1 + $0x7c] sm:$0xf]
  %v55 = vld [vmem:[%s2] sm:$0x1]
  %v57 = vlaneseq
  %v58 = vshrl.u32 %v57, 7
  %v59 = vsub.s32 0, %v58
  %v60 = vrot.slane %v55, %v59
  %v70 = vunpack.c.l.b16 %v15
  %v71 = vunpack.c.h.b16 %v15
  %v72 = vunpack.c.l.b16 %v16
  %v73 = vunpack.c.h.b16 %v16
  %v74 = vunpack.c.l.b16 %v17
  %v75 = vunpack.c.h.b16 %v17
  %v76 = vunpack.c.l.b16 %v18
  %v77 = vunpack.c.h.b16 %v18
  %v78 = vunpack.c.l.b16 %v19
  %v79 = vunpack.c.h.b16 %v19
  %v80 = vunpack.c.l.b16 %v20
  %v81 = vunpack.c.h.b16 %v20
  %v82 = vunpack.c.l.b16 %v21
  %v83 = vunpack.c.h.b16 %v21
  %v84 = vunpack.c.l.b16 %v22
  %v85 = vunpack.c.h.b16 %v22
  %v86 = vpack.c.b16 %v72, %v70
  %v87 = vpack.c.b16 %v73, %v71
  %v88 = vpack.c.b16 %v76, %v74
  %v89 = vpack.c.b16 %v77, %v75
  %v90 = vpack.c.b16 %v80, %v78
  %v91 = vpack.c.b16 %v81, %v79
  %v92 = vpack.c.b16 %v84, %v82
  %v93 = vpack.c.b16 %v85, %v83
  %v134 = vunpack.c.l.b16 %v23
  %v135 = vunpack.c.l.b16 %v24
  %v136 = vunpack.c.l.b16 %v25
  %v137 = vunpack.c.l.b16 %v26
  %v138 = vunpack.c.l.b16 %v27
  %v139 = vunpack.c.l.b16 %v28
  %v140 = vunpack.c.l.b16 %v29
  %v141 = vunpack.c.l.b16 %v30
  %v142 = vunpack.c.l.b16 %v31
  %v143 = vunpack.c.l.b16 %v32
  %v144 = vunpack.c.l.b16 %v33
  %v145 = vunpack.c.l.b16 %v34
  %v146 = vunpack.c.l.b16 %v35
  %v147 = vunpack.c.l.b16 %v36
  %v148 = vunpack.c.l.b16 %v37
  %v149 = vunpack.c.l.b16 %v38
  %v150 = vunpack.c.l.b16 %v39
  %v151 = vunpack.c.l.b16 %v40
  %v152 = vunpack.c.l.b16 %v41
  %v153 = vunpack.c.l.b16 %v42
  %v154 = vunpack.c.l.b16 %v43
  %v155 = vunpack.c.l.b16 %v44
  %v156 = vunpack.c.l.b16 %v45
  %v157 = vunpack.c.l.b16 %v46
  %v158 = vunpack.c.l.b16 %v47
  %v159 = vunpack.c.l.b16 %v48
  %v160 = vunpack.c.l.b16 %v49
  %v161 = vunpack.c.l.b16 %v50
  %v162 = vunpack.c.l.b16 %v51
  %v163 = vunpack.c.l.b16 %v52
  %v164 = vunpack.c.l.b16 %v53
  %v165 = vunpack.c.l.b16 %v54
  %v166 = vpack.c.b16 %v135, %v134
  %v167 = vpack.c.b16 %v137, %v136
  %v168 = vpack.c.b16 %v139, %v138
  %v169 = vpack.c.b16 %v141, %v140
  %v170 = vpack.c.b16 %v143, %v142
  %v171 = vpack.c.b16 %v145, %v144
  %v172 = vpack.c.b16 %v147, %v146
  %v173 = vpack.c.b16 %v149, %v148
  %v174 = vpack.c.b16 %v151, %v150
  %v175 = vpack.c.b16 %v153, %v152
  %v176 = vpack.c.b16 %v155, %v154
  %v177 = vpack.c.b16 %v157, %v156
  %v178 = vpack.c.b16 %v159, %v158
  %v179 = vpack.c.b16 %v161, %v160
  %v180 = vpack.c.b16 %v163, %v162
  %v181 = vpack.c.b16 %v165, %v164
  %198 = vmatprep.subr.bf16.mxu0 0
  %199 = vmatpush1.bf16.msra.mxu0 %v166
  %200 = vmatprep.subr.bf16.mxu0 0
  %201 = vmatpush1.bf16.msra.mxu0 %v167
  %202 = vmatprep.subr.bf16.mxu0 0
  %203 = vmatpush1.bf16.msra.mxu0 %v168
  %204 = vmatprep.subr.bf16.mxu0 0
  %205 = vmatpush1.bf16.msra.mxu0 %v169
  %206 = vmatprep.subr.bf16.mxu0 0
  %207 = vmatpush1.bf16.msra.mxu0 %v170
  %208 = vmatprep.subr.bf16.mxu0 0
  %209 = vmatpush1.bf16.msra.mxu0 %v171
  %210 = vmatprep.subr.bf16.mxu0 0
  %211 = vmatpush1.bf16.msra.mxu0 %v172
  %212 = vmatprep.subr.bf16.mxu0 0
  %213 = vmatpush1.bf16.msra.mxu0 %v173
  %214 = vmatprep.subr.bf16.mxu0 0
  %215 = vmatpush1.bf16.msra.mxu0 %v174
  %216 = vmatprep.subr.bf16.mxu0 0
  %217 = vmatpush1.bf16.msra.mxu0 %v175
  %218 = vmatprep.subr.bf16.mxu0 0
  %219 = vmatpush1.bf16.msra.mxu0 %v176
  %220 = vmatprep.subr.bf16.mxu0 0
  %221 = vmatpush1.bf16.msra.mxu0 %v177
  %222 = vmatprep.subr.bf16.mxu0 0
  %223 = vmatpush1.bf16.msra.mxu0 %v178
  %224 = vmatprep.subr.bf16.mxu0 0
  %225 = vmatpush1.bf16.msra.mxu0 %v179
  %226 = vmatprep.subr.bf16.mxu0 0
  %227 = vmatpush1.bf16.msra.mxu0 %v180
  %228 = vmatprep.subr.bf16.mxu0 0
  %229 = vmatpush1.bf16.msra.mxu0 %v181
  %230 = vmatprep.mubr.bf16.mxu0 %v87
  %231 = vmatmul.mubr.bf16.gmra.mrb[0].mxu0 %v86
  %v232 = vpop.f32.mrb[0].mxu0
  %v233 = vadd.f32 %v60, %v232
  %v234 = vpop.f32.mrb[0].mxu0
  %v235 = vpop.f32.mrb[0].mxu0
  %v236 = vadd.f32 %v60, %v235
  %v237 = vpop.f32.mrb[0].mxu0
  %238 = vmatprep.mubr.bf16.mxu0 %v89
  %239 = vmatmul.mubr.bf16.gmra.mrb[0].mxu0 %v88
  %v240 = vpop.f32.mrb[0].mxu0
  %v241 = vadd.f32 %v60, %v240
  %v242 = vpop.f32.mrb[0].mxu0
  %v243 = vpop.f32.mrb[0].mxu0
  %v244 = vadd.f32 %v60, %v243
  %v245 = vpop.f32.mrb[0].mxu0
  %246 = vmatprep.mubr.bf16.mxu0 %v91
  %247 = vmatmul.mubr.bf16.gmra.mrb[0].mxu0 %v90
  %v248 = vpop.f32.mrb[0].mxu0
  %v249 = vadd.f32 %v60, %v248
  %v250 = vpop.f32.mrb[0].mxu0
  %v251 = vpop.f32.mrb[0].mxu0
  %v252 = vadd.f32 %v60, %v251
  %v253 = vpop.f32.mrb[0].mxu0
  %254 = vmatprep.mubr.bf16.mxu0 %v93
  %255 = vmatmul.mubr.bf16.gmra.mrb[0].mxu0 %v92
  %v256 = vpop.f32.mrb[0].mxu0
  %v257 = vadd.f32 %v60, %v256
  %v258 = vpop.f32.mrb[0].mxu0
  %v259 = vpop.f32.mrb[0].mxu0
  %v260 = vadd.f32 %v60, %v259
  %v261 = vpop.f32.mrb[0].mxu0
  %262 = vdwg.mxu0
  %v263 = vmax.f32 %v233, 0.0
  %v264 = vmax.f32 %v236, 0.0
  %v265 = vmax.f32 %v241, 0.0
  %v266 = vmax.f32 %v244, 0.0
  %v267 = vmax.f32 %v249, 0.0
  %v268 = vmax.f32 %v252, 0.0
  %v269 = vmax.f32 %v257, 0.0
  %v270 = vmax.f32 %v260, 0.0
  %v271 = vpack.c.bf16 %v264, %v263
  %v272 = vpack.c.bf16 %v266, %v265
  %v273 = vpack.c.bf16 %v268, %v267
  %v274 = vpack.c.bf16 %v270, %v269
  %v279 = vunpack.c.l.b16 %v271
  %v280 = vunpack.c.h.b16 %v271
  %v281 = vunpack.c.l.b16 %v272
  %v282 = vunpack.c.h.b16 %v272
  %v283 = vunpack.c.l.b16 %v273
  %v284 = vunpack.c.h.b16 %v273
  %v285 = vunpack.c.l.b16 %v274
  %v286 = vunpack.c.h.b16 %v274
  %v287 = vpack.c.b16 %v279, %v279
  %v288 = vpack.c.b16 %v280, %v280
  %v289 = vpack.c.b16 %v281, %v281
  %v290 = vpack.c.b16 %v282, %v282
  %v291 = vpack.c.b16 %v283, %v283
  %v292 = vpack.c.b16 %v284, %v284
  %v293 = vpack.c.b16 %v285, %v285
  %v294 = vpack.c.b16 %v286, %v286
  %vm303 = vcmask 60416
  %304 = vst.msk [vmem:[%s3] sm:$0xf] %vm303, %v287
  %305 = vst.msk [vmem:[%s3 + $0x4] sm:$0xf] %vm303, %v288
  %306 = vst.msk [vmem:[%s3 + $0x8] sm:$0xf] %vm303, %v289
  %307 = vst.msk [vmem:[%s3 + $0xc] sm:$0xf] %vm303, %v290
  %308 = vst.msk [vmem:[%s3 + $0x10] sm:$0xf] %vm303, %v291
  %309 = vst.msk [vmem:[%s3 + $0x14] sm:$0xf] %vm303, %v292
  %310 = vst.msk [vmem:[%s3 + $0x18] sm:$0xf] %vm303, %v293
  %311 = vst.msk [vmem:[%s3 + $0x1c] sm:$0xf] %vm303, %v294
  // Predicated region
  $region14: #{_lambda_.10} parent=0 // pred_check
    _
  $region15: #{_lambda_.10} parent=0 // pred_check_branch
    %313 = sbr.rel (0) target = $region17
  $region16: #{_lambda_.10} parent=0 // pred_region
    _
  $region17: #{_lambda_.10} parent=0 // pred_fallthru
    _
  // Predicated region
  $region18: #{_lambda_.10} parent=0 // pred_check
    _
  $region19: #{_lambda_.10} parent=0 // pred_check_branch
    %315 = sbr.rel (0) target = $region21
  $region20: #{_lambda_.10} parent=0 // pred_region
    _
  $region21: #{_lambda_.10} parent=0 // pred_fallthru
    _

// kernel: _lambda_.11
$region0: #{_lambda_.11}
  #allocation0 [shape = 'u32[]', space=smem, size = 0x4, offset = 0x4, fixed_abs, tag = 'smem constant byte address 0x4 - core index']
  #allocation1 [shape = 'u32[144,128]{1,0:T(1,128)}', space=vmem, size = 0x12000, scoped, tag = 'internal scratch']
  %s0 = inlined_call_operand.vmem [shape: bf16[512,256], index: 0, kind: input, shape index: {}]
  %s1 = inlined_call_operand.vmem [shape: bf16[256,128], index: 1, kind: input, shape index: {}]
  %s2 = inlined_call_operand.vmem [shape: f32[1,128], index: 2, kind: input, shape index: {}]
  %s3 = inlined_call_operand.vmem [shape: bf16[512,8], index: 3, kind: output, shape index: {}]
  %s4 = sld [smem:[#allocation0]]
  $region22: #{_lambda_.11} parent=0
    _
  %s6 = ssub.s32 1, %s4
  %s7 = scalar_select 0, %s6, %s4
  // Predicated region
  $region2: #{_lambda_.11} parent=0 // pred_check
    _
  $region3: #{_lambda_.11} parent=0 // pred_check_branch
    %9 = sbr.rel (0) target = $region5
  $region4: #{_lambda_.11} parent=0 // pred_region
    _
  $region5: #{_lambda_.11} parent=0 // pred_fallthru
    _
  // Predicated region
  $region6: #{_lambda_.11} parent=0 // pred_check
    _
  $region7: #{_lambda_.11} parent=0 // pred_check_branch
    %11 = sbr.rel (0) target = $region9
  $region8: #{_lambda_.11} parent=0 // pred_region
    _
  $region9: #{_lambda_.11} parent=0 // pred_fallthru
    _
  // Predicated region
  $region10: #{_lambda_.11} parent=0 // pred_check
    _
  $region11: #{_lambda_.11} parent=0 // pred_check_branch
    %13 = sbr.rel (0) target = $region13
  $region12: #{_lambda_.11} parent=0 // pred_region
    _
  $region13: #{_lambda_.11} parent=0 // pred_fallthru
    _
  %v15 = vld [vmem:[%s0] sm:$0xff]
  %v16 = vld [vmem:[%s0 + $0x8] sm:$0xff]
  %v17 = vld [vmem:[%s0 + $0x10] sm:$0xff]
  %v18 = vld [vmem:[%s0 + $0x18] sm:$0xff]
  %v19 = vld [vmem:[%s0 + $0x20] sm:$0xff]
  %v20 = vld [vmem:[%s0 + $0x28] sm:$0xff]
  %v21 = vld [vmem:[%s0 + $0x30] sm:$0xff]
  %v22 = vld [vmem:[%s0 + $0x38] sm:$0xff]
  %v23 = vld [vmem:[%s0 + $0x40] sm:$0xff]
  %v24 = vld [vmem:[%s0 + $0x48] sm:$0xff]
  %v25 = vld [vmem:[%s0 + $0x50] sm:$0xff]
  %v26 = vld [vmem:[%s0 + $0x58] sm:$0xff]
  %v27 = vld [vmem:[%s0 + $0x60] sm:$0xff]
  %v28 = vld [vmem:[%s0 + $0x68] sm:$0xff]
  %v29 = vld [vmem:[%s0 + $0x70] sm:$0xff]
  %v30 = vld [vmem:[%s0 + $0x78] sm:$0xff]
  %v31 = vld [vmem:[%s0 + $0x80] sm:$0xff]
  %v32 = vld [vmem:[%s0 + $0x88] sm:$0xff]
  %v33 = vld [vmem:[%s0 + $0x90] sm:$0xff]
  %v34 = vld [vmem:[%s0 + $0x98] sm:$0xff]
  %v35 = vld [vmem:[%s0 + $0xa0] sm:$0xff]
  %v36 = vld [vmem:[%s0 + $0xa8] sm:$0xff]
  %v37 = vld [vmem:[%s0 + $0xb0] sm:$0xff]
  %v38 = vld [vmem:[%s0 + $0xb8] sm:$0xff]
  %v39 = vld [vmem:[%s0 + $0xc0] sm:$0xff]
  %v40 = vld [vmem:[%s0 + $0xc8] sm:$0xff]
  %v41 = vld [vmem:[%s0 + $0xd0] sm:$0xff]
  %v42 = vld [vmem:[%s0 + $0xd8] sm:$0xff]
  %v43 = vld [vmem:[%s0 + $0xe0] sm:$0xff]
  %v44 = vld [vmem:[%s0 + $0xe8] sm:$0xff]
  %v45 = vld [vmem:[%s0 + $0xf0] sm:$0xff]
  %v46 = vld [vmem:[%s0 + $0xf8] sm:$0xff]
  %v47 = vld [vmem:[%s0 + $0x100] sm:$0xff]
  %v48 = vld [vmem:[%s0 + $0x108] sm:$0xff]
  %v49 = vld [vmem:[%s0 + $0x110] sm:$0xff]
  %v50 = vld [vmem:[%s0 + $0x118] sm:$0xff]
  %v51 = vld [vmem:[%s0 + $0x120] sm:$0xff]
  %v52 = vld [vmem:[%s0 + $0x128] sm:$0xff]
  %v53 = vld [vmem:[%s0 + $0x130] sm:$0xff]
  %v54 = vld [vmem:[%s0 + $0x138] sm:$0xff]
  %v55 = vld [vmem:[%s0 + $0x140] sm:$0xff]
  %v56 = vld [vmem:[%s0 + $0x148] sm:$0xff]
  %v57 = vld [vmem:[%s0 + $0x150] sm:$0xff]
  %v58 = vld [vmem:[%s0 + $0x158] sm:$0xff]
  %v59 = vld [vmem:[%s0 + $0x160] sm:$0xff]
  %v60 = vld [vmem:[%s0 + $0x168] sm:$0xff]
  %v61 = vld [vmem:[%s0 + $0x170] sm:$0xff]
  %v62 = vld [vmem:[%s0 + $0x178] sm:$0xff]
  %v63 = vld [vmem:[%s0 + $0x180] sm:$0xff]
  %v64 = vld [vmem:[%s0 + $0x188] sm:$0xff]
  %v65 = vld [vmem:[%s0 + $0x190] sm:$0xff]
  %v66 = vld [vmem:[%s0 + $0x198] sm:$0xff]
  %v67 = vld [vmem:[%s0 + $0x1a0] sm:$0xff]
  %v68 = vld [vmem:[%s0 + $0x1a8] sm:$0xff]
  %v69 = vld [vmem:[%s0 + $0x1b0] sm:$0xff]
  %v70 = vld [vmem:[%s0 + $0x1b8] sm:$0xff]
  %v71 = vld [vmem:[%s0 + $0x1c0] sm:$0xff]
  %v72 = vld [vmem:[%s0 + $0x1c8] sm:$0xff]
  %v73 = vld [vmem:[%s0 + $0x1d0] sm:$0xff]
  %v74 = vld [vmem:[%s0 + $0x1d8] sm:$0xff]
  %v75 = vld [vmem:[%s0 + $0x1e0] sm:$0xff]
  %v76 = vld [vmem:[%s0 + $0x1e8] sm:$0xff]
  %v77 = vld [vmem:[%s0 + $0x1f0] sm:$0xff]
  %v78 = vld [vmem:[%s0 + $0x1f8] sm:$0xff]
  %v79 = vld [vmem:[%s1] sm:$0xf]
  %v80 = vld [vmem:[%s1 + $0x4] sm:$0xf]
  %v81 = vld [vmem:[%s1 + $0x8] sm:$0xf]
  %v82 = vld [vmem:[%s1 + $0xc] sm:$0xf]
  %v83 = vld [vmem:[%s1 + $0x10] sm:$0xf]
  %v84 = vld [vmem:[%s1 + $0x14] sm:$0xf]
  %v85 = vld [vmem:[%s1 + $0x18] sm:$0xf]
  %v86 = vld [vmem:[%s1 + $0x1c] sm:$0xf]
  %v87 = vld [vmem:[%s1 + $0x20] sm:$0xf]
  %v88 = vld [vmem:[%s1 + $0x24] sm:$0xf]
  %v89 = vld [vmem:[%s1 + $0x28] sm:$0xf]
  %v90 = vld [vmem:[%s1 + $0x2c] sm:$0xf]
  %v91 = vld [vmem:[%s1 + $0x30] sm:$0xf]
  %v92 = vld [vmem:[%s1 + $0x34] sm:$0xf]
  %v93 = vld [vmem:[%s1 + $0x38] sm:$0xf]
  %v94 = vld [vmem:[%s1 + $0x3c] sm:$0xf]
  %v95 = vld [vmem:[%s1 + $0x40] sm:$0xf]
  %v96 = vld [vmem:[%s1 + $0x44] sm:$0xf]
  %v97 = vld [vmem:[%s1 + $0x48] sm:$0xf]
  %v98 = vld [vmem:[%s1 + $0x4c] sm:$0xf]
  %v99 = vld [vmem:[%s1 + $0x50] sm:$0xf]
  %v100 = vld [vmem:[%s1 + $0x54] sm:$0xf]
  %v101 = vld [vmem:[%s1 + $0x58] sm:$0xf]
  %v102 = vld [vmem:[%s1 + $0x5c] sm:$0xf]
  %v103 = vld [vmem:[%s1 + $0x60] sm:$0xf]
  %v104 = vld [vmem:[%s1 + $0x64] sm:$0xf]
  %v105 = vld [vmem:[%s1 + $0x68] sm:$0xf]
  %v106 = vld [vmem:[%s1 + $0x6c] sm:$0xf]
  %v107 = vld [vmem:[%s1 + $0x70] sm:$0xf]
  %v108 = vld [vmem:[%s1 + $0x74] sm:$0xf]
  %v109 = vld [vmem:[%s1 + $0x78] sm:$0xf]
  %v110 = vld [vmem:[%s1 + $0x7c] sm:$0xf]
  %v111 = vld [vmem:[%s2] sm:$0x1]
  %v113 = vlaneseq
  %v114 = vshrl.u32 %v113, 7
  %v115 = vsub.s32 0, %v114
  %v116 = vrot.slane %v111, %v115
  %v182 = vunpack.c.l.b16 %v15
  %v183 = vunpack.c.h.b16 %v15
  %v184 = vunpack.c.l.b16 %v16
  %v185 = vunpack.c.h.b16 %v16
  %v186 = vunpack.c.l.b16 %v17
  %v187 = vunpack.c.h.b16 %v17
  %v188 = vunpack.c.l.b16 %v18
  %v189 = vunpack.c.h.b16 %v18
  %v190 = vunpack.c.l.b16 %v19
  %v191 = vunpack.c.h.b16 %v19
  %v192 = vunpack.c.l.b16 %v20
  %v193 = vunpack.c.h.b16 %v20
  %v194 = vunpack.c.l.b16 %v21
  %v195 = vunpack.c.h.b16 %v21
  %v196 = vunpack.c.l.b16 %v22
  %v197 = vunpack.c.h.b16 %v22
  %v198 = vunpack.c.l.b16 %v23
  %v199 = vunpack.c.h.b16 %v23
  %v200 = vunpack.c.l.b16 %v24
  %v201 = vunpack.c.h.b16 %v24
  %v202 = vunpack.c.l.b16 %v25
  %v203 = vunpack.c.h.b16 %v25
  %v204 = vunpack.c.l.b16 %v26
  %v205 = vunpack.c.h.b16 %v26
  %v206 = vunpack.c.l.b16 %v27
  %v207 = vunpack.c.h.b16 %v27
  %v208 = vunpack.c.l.b16 %v28
  %v209 = vunpack.c.h.b16 %v28
  %v210 = vunpack.c.l.b16 %v29
  %v211 = vunpack.c.h.b16 %v29
  %v212 = vunpack.c.l.b16 %v30
  %v213 = vunpack.c.h.b16 %v30
  %v214 = vunpack.c.l.b16 %v31
  %v215 = vunpack.c.h.b16 %v31
  %v216 = vunpack.c.l.b16 %v32
  %v217 = vunpack.c.h.b16 %v32
  %v218 = vunpack.c.l.b16 %v33
  %v219 = vunpack.c.h.b16 %v33
  %v220 = vunpack.c.l.b16 %v34
  %v221 = vunpack.c.h.b16 %v34
  %v222 = vunpack.c.l.b16 %v35
  %v223 = vunpack.c.h.b16 %v35
  %v224 = vunpack.c.l.b16 %v36
  %v225 = vunpack.c.h.b16 %v36
  %v226 = vunpack.c.l.b16 %v37
  %v227 = vunpack.c.h.b16 %v37
  %v228 = vunpack.c.l.b16 %v38
  %v229 = vunpack.c.h.b16 %v38
  %v230 = vunpack.c.l.b16 %v39
  %v231 = vunpack.c.h.b16 %v39
  %v232 = vunpack.c.l.b16 %v40
  %v233 = vunpack.c.h.b16 %v40
  %v234 = vunpack.c.l.b16 %v41
  %v235 = vunpack.c.h.b16 %v41
  %v236 = vunpack.c.l.b16 %v42
  %v237 = vunpack.c.h.b16 %v42
  %v238 = vunpack.c.l.b16 %v43
  %v239 = vunpack.c.h.b16 %v43
  %v240 = vunpack.c.l.b16 %v44
  %v241 = vunpack.c.h.b16 %v44
  %v242 = vunpack.c.l.b16 %v45
  %v243 = vunpack.c.h.b16 %v45
  %v244 = vunpack.c.l.b16 %v46
  %v245 = vunpack.c.h.b16 %v46
  %v246 = vunpack.c.l.b16 %v47
  %v247 = vunpack.c.h.b16 %v47
  %v248 = vunpack.c.l.b16 %v48
  %v249 = vunpack.c.h.b16 %v48
  %v250 = vunpack.c.l.b16 %v49
  %v251 = vunpack.c.h.b16 %v49
  %v252 = vunpack.c.l.b16 %v50
  %v253 = vunpack.c.h.b16 %v50
  %v254 = vunpack.c.l.b16 %v51
  %v255 = vunpack.c.h.b16 %v51
  %v256 = vunpack.c.l.b16 %v52
  %v257 = vunpack.c.h.b16 %v52
  %v258 = vunpack.c.l.b16 %v53
  %v259 = vunpack.c.h.b16 %v53
  %v260 = vunpack.c.l.b16 %v54
  %v261 = vunpack.c.h.b16 %v54
  %v262 = vunpack.c.l.b16 %v55
  %v263 = vunpack.c.h.b16 %v55
  %v264 = vunpack.c.l.b16 %v56
  %v265 = vunpack.c.h.b16 %v56
  %v266 = vunpack.c.l.b16 %v57
  %v267 = vunpack.c.h.b16 %v57
  %v268 = vunpack.c.l.b16 %v58
  %v269 = vunpack.c.h.b16 %v58
  %v270 = vunpack.c.l.b16 %v59
  %v271 = vunpack.c.h.b16 %v59
  %v272 = vunpack.c.l.b16 %v60
  %v273 = vunpack.c.h.b16 %v60
  %v274 = vunpack.c.l.b16 %v61
  %v275 = vunpack.c.h.b16 %v61
  %v276 = vunpack.c.l.b16 %v62
  %v277 = vunpack.c.h.b16 %v62
  %v278 = vunpack.c.l.b16 %v63
  %v279 = vunpack.c.h.b16 %v63
  %v280 = vunpack.c.l.b16 %v64
  %v281 = vunpack.c.h.b16 %v64
  %v282 = vunpack.c.l.b16 %v65
  %v283 = vunpack.c.h.b16 %v65
  %v284 = vunpack.c.l.b16 %v66
  %v285 = vunpack.c.h.b16 %v66
  %v286 = vunpack.c.l.b16 %v67
  %v287 = vunpack.c.h.b16 %v67
  %v288 = vunpack.c.l.b16 %v68
  %v289 = vunpack.c.h.b16 %v68
  %v290 = vunpack.c.l.b16 %v69
  %v291 = vunpack.c.h.b16 %v69
  %v292 = vunpack.c.l.b16 %v70
  %v293 = vunpack.c.h.b16 %v70
  %v294 = vunpack.c.l.b16 %v71
  %v295 = vunpack.c.h.b16 %v71
  %v296 = vunpack.c.l.b16 %v72
  %v297 = vunpack.c.h.b16 %v72
  %v298 = vunpack.c.l.b16 %v73
  %v299 = vunpack.c.h.b16 %v73
  %v300 = vunpack.c.l.b16 %v74
  %v301 = vunpack.c.h.b16 %v74
  %v302 = vunpack.c.l.b16 %v75
  %v303 = vunpack.c.h.b16 %v75
  %v304 = vunpack.c.l.b16 %v76
  %v305 = vunpack.c.h.b16 %v76
  %v306 = vunpack.c.l.b16 %v77
  %v307 = vunpack.c.h.b16 %v77
  %v308 = vunpack.c.l.b16 %v78
  %v309 = vunpack.c.h.b16 %v78
  %v310 = vpack.c.b16 %v184, %v182
  %v311 = vpack.c.b16 %v185, %v183
  %v312 = vpack.c.b16 %v188, %v186
  %v313 = vpack.c.b16 %v189, %v187
  %v314 = vpack.c.b16 %v192, %v190
  %v315 = vpack.c.b16 %v193, %v191
  %v316 = vpack.c.b16 %v196, %v194
  %v317 = vpack.c.b16 %v197, %v195
  %v318 = vpack.c.b16 %v200, %v198
  %v319 = vpack.c.b16 %v201, %v199
  %v320 = vpack.c.b16 %v204, %v202
  %v321 = vpack.c.b16 %v205, %v203
  %v322 = vpack.c.b16 %v208, %v206
  %v323 = vpack.c.b16 %v209, %v207
  %v324 = vpack.c.b16 %v212, %v210
  %v325 = vpack.c.b16 %v213, %v211
  %v326 = vpack.c.b16 %v216, %v214
  %v327 = vpack.c.b16 %v217, %v215
  %v328 = vpack.c.b16 %v220, %v218
  %v329 = vpack.c.b16 %v221, %v219
  %v330 = vpack.c.b16 %v224, %v222
  %v331 = vpack.c.b16 %v225, %v223
  %v332 = vpack.c.b16 %v228, %v226
  %v333 = vpack.c.b16 %v229, %v227
  %v334 = vpack.c.b16 %v232, %v230
  %v335 = vpack.c.b16 %v233, %v231
  %v336 = vpack.c.b16 %v236, %v234
  %v337 = vpack.c.b16 %v237, %v235
  %v338 = vpack.c.b16 %v240, %v238
  %v339 = vpack.c.b16 %v241, %v239
  %v340 = vpack.c.b16 %v244, %v242
  %v341 = vpack.c.b16 %v245, %v243
  %v342 = vpack.c.b16 %v248, %v246
  %v343 = vpack.c.b16 %v249, %v247
  %v344 = vpack.c.b16 %v252, %v250
  %v345 = vpack.c.b16 %v253, %v251
  %v346 = vpack.c.b16 %v256, %v254
  %v347 = vpack.c.b16 %v257, %v255
  %v348 = vpack.c.b16 %v260, %v258
  %v349 = vpack.c.b16 %v261, %v259
  %v350 = vpack.c.b16 %v264, %v262
  %v351 = vpack.c.b16 %v265, %v263
  %v352 = vpack.c.b16 %v268, %v266
  %v353 = vpack.c.b16 %v269, %v267
  %v354 = vpack.c.b16 %v272, %v270
  %v355 = vpack.c.b16 %v273, %v271
  %v356 = vpack.c.b16 %v276, %v274
  %v357 = vpack.c.b16 %v277, %v275
  %v358 = vpack.c.b16 %v280, %v278
  %v359 = vpack.c.b16 %v281, %v279
  %v360 = vpack.c.b16 %v284, %v282
  %v361 = vpack.c.b16 %v285, %v283
  %v362 = vpack.c.b16 %v288, %v286
  %v363 = vpack.c.b16 %v289, %v287
  %v364 = vpack.c.b16 %v292, %v290
  %v365 = vpack.c.b16 %v293, %v291
  %v366 = vpack.c.b16 %v296, %v294
  %v367 = vpack.c.b16 %v297, %v295
  %v368 = vpack.c.b16 %v300, %v298
  %v369 = vpack.c.b16 %v301, %v299
  %v370 = vpack.c.b16 %v304, %v302
  %v371 = vpack.c.b16 %v305, %v303
  %v372 = vpack.c.b16 %v308, %v306
  %v373 = vpack.c.b16 %v309, %v307
  %v470 = vunpack.c.l.b16 %v79
  %v471 = vunpack.c.l.b16 %v80
  %v472 = vunpack.c.l.b16 %v81
  %v473 = vunpack.c.l.b16 %v82
  %v474 = vunpack.c.l.b16 %v83
  %v475 = vunpack.c.l.b16 %v84
  %v476 = vunpack.c.l.b16 %v85
  %v477 = vunpack.c.l.b16 %v86
  %v478 = vunpack.c.l.b16 %v87
  %v479 = vunpack.c.l.b16 %v88
  %v480 = vunpack.c.l.b16 %v89
  %v481 = vunpack.c.l.b16 %v90
  %v482 = vunpack.c.l.b16 %v91
  %v483 = vunpack.c.l.b16 %v92
  %v484 = vunpack.c.l.b16 %v93
  %v485 = vunpack.c.l.b16 %v94
  %v486 = vunpack.c.l.b16 %v95
  %v487 = vunpack.c.l.b16 %v96
  %v488 = vunpack.c.l.b16 %v97
  %v489 = vunpack.c.l.b16 %v98
  %v490 = vunpack.c.l.b16 %v99
  %v491 = vunpack.c.l.b16 %v100
  %v492 = vunpack.c.l.b16 %v101
  %v493 = vunpack.c.l.b16 %v102
  %v494 = vunpack.c.l.b16 %v103
  %v495 = vunpack.c.l.b16 %v104
  %v496 = vunpack.c.l.b16 %v105
  %v497 = vunpack.c.l.b16 %v106
  %v498 = vunpack.c.l.b16 %v107
  %v499 = vunpack.c.l.b16 %v108
  %v500 = vunpack.c.l.b16 %v109
  %v501 = vunpack.c.l.b16 %v110
  %v502 = vpack.c.b16 %v471, %v470
  %v503 = vpack.c.b16 %v473, %v472
  %v504 = vpack.c.b16 %v475, %v474
  %v505 = vpack.c.b16 %v477, %v476
  %v506 = vpack.c.b16 %v479, %v478
  %v507 = vpack.c.b16 %v481, %v480
  %v508 = vpack.c.b16 %v483, %v482
  %v509 = vpack.c.b16 %v485, %v484
  %v510 = vpack.c.b16 %v487, %v486
  %v511 = vpack.c.b16 %v489, %v488
  %v512 = vpack.c.b16 %v491, %v490
  %v513 = vpack.c.b16 %v493, %v492
  %v514 = vpack.c.b16 %v495, %v494
  %v515 = vpack.c.b16 %v497, %v496
  %v516 = vpack.c.b16 %v499, %v498
  %v517 = vpack.c.b16 %v501, %v500
  %534 = vmatprep.subr.bf16.mxu0 0
  %535 = vmatpush1.bf16.msra.mxu0 %v502
  %536 = vmatprep.subr.bf16.mxu0 0
  %537 = vmatpush1.bf16.msra.mxu0 %v503
  %538 = vmatprep.subr.bf16.mxu0 0
  %539 = vmatpush1.bf16.msra.mxu0 %v504
  %540 = vmatprep.subr.bf16.mxu0 0
  %541 = vmatpush1.bf16.msra.mxu0 %v505
  %542 = vmatprep.subr.bf16.mxu0 0
  %543 = vmatpush1.bf16.msra.mxu0 %v506
  %544 = vmatprep.subr.bf16.mxu0 0
  %545 = vmatpush1.bf16.msra.mxu0 %v507
  %546 = vmatprep.subr.bf16.mxu0 0
  %547 = vmatpush1.bf16.msra.mxu0 %v508
  %548 = vmatprep.subr.bf16.mxu0 0
  %549 = vmatpush1.bf16.msra.mxu0 %v509
  %550 = vmatprep.subr.bf16.mxu0 0
  %551 = vmatpush1.bf16.msra.mxu0 %v510
  %552 = vmatprep.subr.bf16.mxu0 0
  %553 = vmatpush1.bf16.msra.mxu0 %v511
  %554 = vmatprep.subr.bf16.mxu0 0
  %555 = vmatpush1.bf16.msra.mxu0 %v512
  %556 = vmatprep.subr.bf16.mxu0 0
  %557 = vmatpush1.bf16.msra.mxu0 %v513
  %558 = vmatprep.subr.bf16.mxu0 0
  %559 = vmatpush1.bf16.msra.mxu0 %v514
  %560 = vmatprep.subr.bf16.mxu0 0
  %561 = vmatpush1.bf16.msra.mxu0 %v515
  %562 = vmatprep.subr.bf16.mxu0 0
  %563 = vmatpush1.bf16.msra.mxu0 %v516
  %564 = vmatprep.subr.bf16.mxu0 0
  %565 = vmatpush1.bf16.msra.mxu0 %v517
  %566 = vmatprep.mubr.bf16.mxu0 %v311
  %567 = vmatmul.mubr.bf16.gmra.mrb[0].mxu0 %v310
  %v568 = vpop.f32.mrb[0].mxu0
  %v569 = vadd.f32 %v116, %v568
  %v570 = vpop.f32.mrb[0].mxu0
  %v571 = vpop.f32.mrb[0].mxu0
  %v572 = vadd.f32 %v116, %v571
  %v573 = vpop.f32.mrb[0].mxu0
  %574 = vmatprep.mubr.bf16.mxu0 %v313
  %575 = vmatmul.mubr.bf16.gmra.mrb[0].mxu0 %v312
  %v576 = vpop.f32.mrb[0].mxu0
  %v577 = vadd.f32 %v116, %v576
  %v578 = vpop.f32.mrb[0].mxu0
  %v579 = vpop.f32.mrb[0].mxu0
  %v580 = vadd.f32 %v116, %v579
  %v581 = vpop.f32.mrb[0].mxu0
  %582 = vmatprep.mubr.bf16.mxu0 %v315
  %583 = vmatmul.mubr.bf16.gmra.mrb[0].mxu0 %v314
  %v584 = vpop.f32.mrb[0].mxu0
  %v585 = vadd.f32 %v116, %v584
  %v586 = vpop.f32.mrb[0].mxu0
  %v587 = vpop.f32.mrb[0].mxu0
  %v588 = vadd.f32 %v116, %v587
  %v589 = vpop.f32.mrb[0].mxu0
  %590 = vmatprep.mubr.bf16.mxu0 %v317
  %591 = vmatmul.mubr.bf16.gmra.mrb[0].mxu0 %v316
  %v592 = vpop.f32.mrb[0].mxu0
  %v593 = vadd.f32 %v116, %v592
  %v594 = vpop.f32.mrb[0].mxu0
  %v595 = vpop.f32.mrb[0].mxu0
  %v596 = vadd.f32 %v116, %v595
  %v597 = vpop.f32.mrb[0].mxu0
  %598 = vmatprep.mubr.bf16.mxu0 %v319
  %599 = vmatmul.mubr.bf16.gmra.mrb[0].mxu0 %v318
  %v600 = vpop.f32.mrb[0].mxu0
  %v601 = vadd.f32 %v116, %v600
  %v602 = vpop.f32.mrb[0].mxu0
  %v603 = vpop.f32.mrb[0].mxu0
  %v604 = vadd.f32 %v116, %v603
  %v605 = vpop.f32.mrb[0].mxu0
  %606 = vmatprep.mubr.bf16.mxu0 %v321
  %607 = vmatmul.mubr.bf16.gmra.mrb[0].mxu0 %v320
  %v608 = vpop.f32.mrb[0].mxu0
  %v609 = vadd.f32 %v116, %v608
  %v610 = vpop.f32.mrb[0].mxu0
  %v611 = vpop.f32.mrb[0].mxu0
  %v612 = vadd.f32 %v116, %v611
  %v613 = vpop.f32.mrb[0].mxu0
  %614 = vmatprep.mubr.bf16.mxu0 %v323
  %615 = vmatmul.mubr.bf16.gmra.mrb[0].mxu0 %v322
  %v616 = vpop.f32.mrb[0].mxu0
  %v617 = vadd.f32 %v116, %v616
  %v618 = vpop.f32.mrb[0].mxu0
  %v619 = vpop.f32.mrb[0].mxu0
  %v620 = vadd.f32 %v116, %v619
  %v621 = vpop.f32.mrb[0].mxu0
  %622 = vmatprep.mubr.bf16.mxu0 %v325
  %623 = vmatmul.mubr.bf16.gmra.mrb[0].mxu0 %v324
  %v624 = vpop.f32.mrb[0].mxu0
  %v625 = vadd.f32 %v116, %v624
  %v626 = vpop.f32.mrb[0].mxu0
  %v627 = vpop.f32.mrb[0].mxu0
  %v628 = vadd.f32 %v116, %v627
  %v629 = vpop.f32.mrb[0].mxu0
  %630 = vmatprep.mubr.bf16.mxu0 %v327
  %631 = vmatmul.mubr.bf16.gmra.mrb[0].mxu0 %v326
  %v632 = vpop.f32.mrb[0].mxu0
  %v633 = vadd.f32 %v116, %v632
  %v634 = vpop.f32.mrb[0].mxu0
  %v635 = vpop.f32.mrb[0].mxu0
  %v636 = vadd.f32 %v116, %v635
  %v637 = vpop.f32.mrb[0].mxu0
  %638 = vmatprep.mubr.bf16.mxu0 %v329
  %639 = vmatmul.mubr.bf16.gmra.mrb[0].mxu0 %v328
  %v640 = vpop.f32.mrb[0].mxu0
  %v641 = vadd.f32 %v116, %v640
  %v642 = vpop.f32.mrb[0].mxu0
  %v643 = vpop.f32.mrb[0].mxu0
  %v644 = vadd.f32 %v116, %v643
  %v645 = vpop.f32.mrb[0].mxu0
  %646 = vmatprep.mubr.bf16.mxu0 %v331
  %647 = vmatmul.mubr.bf16.gmra.mrb[0].mxu0 %v330
  %v648 = vpop.f32.mrb[0].mxu0
  %v649 = vadd.f32 %v116, %v648
  %v650 = vpop.f32.mrb[0].mxu0
  %v651 = vpop.f32.mrb[0].mxu0
  %v652 = vadd.f32 %v116, %v651
  %v653 = vpop.f32.mrb[0].mxu0
  %654 = vmatprep.mubr.bf16.mxu0 %v333
  %655 = vmatmul.mubr.bf16.gmra.mrb[0].mxu0 %v332
  %v656 = vpop.f32.mrb[0].mxu0
  %v657 = vadd.f32 %v116, %v656
  %v658 = vpop.f32.mrb[0].mxu0
  %v659 = vpop.f32.mrb[0].mxu0
  %v660 = vadd.f32 %v116, %v659
  %v661 = vpop.f32.mrb[0].mxu0
  %662 = vmatprep.mubr.bf16.mxu0 %v335
  %663 = vmatmul.mubr.bf16.gmra.mrb[0].mxu0 %v334
  %v664 = vpop.f32.mrb[0].mxu0
  %v665 = vadd.f32 %v116, %v664
  %v666 = vpop.f32.mrb[0].mxu0
  %v667 = vpop.f32.mrb[0].mxu0
  %v668 = vadd.f32 %v116, %v667
  %v669 = vpop.f32.mrb[0].mxu0
  %670 = vmatprep.mubr.bf16.mxu0 %v337
  %671 = vmatmul.mubr.bf16.gmra.mrb[0].mxu0 %v336
  %v672 = vpop.f32.mrb[0].mxu0
  %v673 = vadd.f32 %v116, %v672
  %v674 = vpop.f32.mrb[0].mxu0
  %v675 = vpop.f32.mrb[0].mxu0
  %v676 = vadd.f32 %v116, %v675
  %v677 = vpop.f32.mrb[0].mxu0
  %678 = vmatprep.mubr.bf16.mxu0 %v339
  %679 = vmatmul.mubr.bf16.gmra.mrb[0].mxu0 %v338
  %v680 = vpop.f32.mrb[0].mxu0
  %v681 = vadd.f32 %v116, %v680
  %v682 = vpop.f32.mrb[0].mxu0
  %v683 = vpop.f32.mrb[0].mxu0
  %v684 = vadd.f32 %v116, %v683
  %v685 = vpop.f32.mrb[0].mxu0
  %686 = vmatprep.mubr.bf16.mxu0 %v341
  %687 = vmatmul.mubr.bf16.gmra.mrb[0].mxu0 %v340
  %v688 = vpop.f32.mrb[0].mxu0
  %v689 = vadd.f32 %v116, %v688
  %v690 = vpop.f32.mrb[0].mxu0
  %v691 = vpop.f32.mrb[0].mxu0
  %v692 = vadd.f32 %v116, %v691
  %v693 = vpop.f32.mrb[0].mxu0
  %694 = vmatprep.mubr.bf16.mxu0 %v343
  %695 = vmatmul.mubr.bf16.gmra.mrb[0].mxu0 %v342
  %v696 = vpop.f32.mrb[0].mxu0
  %v697 = vadd.f32 %v116, %v696
  %v698 = vpop.f32.mrb[0].mxu0
  %v699 = vpop.f32.mrb[0].mxu0
  %v700 = vadd.f32 %v116, %v699
  %v701 = vpop.f32.mrb[0].mxu0
  %702 = vmatprep.mubr.bf16.mxu0 %v345
  %703 = vmatmul.mubr.bf16.gmra.mrb[0].mxu0 %v344
  %v704 = vpop.f32.mrb[0].mxu0
  %v705 = vadd.f32 %v116, %v704
  %v706 = vpop.f32.mrb[0].mxu0
  %v707 = vpop.f32.mrb[0].mxu0
  %v708 = vadd.f32 %v116, %v707
  %v709 = vpop.f32.mrb[0].mxu0
  %710 = vmatprep.mubr.bf16.mxu0 %v347
  %711 = vmatmul.mubr.bf16.gmra.mrb[0].mxu0 %v346
  %v712 = vpop.f32.mrb[0].mxu0
  %v713 = vadd.f32 %v116, %v712
  %v714 = vpop.f32.mrb[0].mxu0
  %v715 = vpop.f32.mrb[0].mxu0
  %v716 = vadd.f32 %v116, %v715
  %v717 = vpop.f32.mrb[0].mxu0
  %718 = vmatprep.mubr.bf16.mxu0 %v349
  %719 = vmatmul.mubr.bf16.gmra.mrb[0].mxu0 %v348
  %v720 = vpop.f32.mrb[0].mxu0
  %v721 = vadd.f32 %v116, %v720
  %v722 = vpop.f32.mrb[0].mxu0
  %v723 = vpop.f32.mrb[0].mxu0
  %v724 = vadd.f32 %v116, %v723
  %v725 = vpop.f32.mrb[0].mxu0
  %726 = vmatprep.mubr.bf16.mxu0 %v351
  %727 = vmatmul.mubr.bf16.gmra.mrb[0].mxu0 %v350
  %v728 = vpop.f32.mrb[0].mxu0
  %v729 = vadd.f32 %v116, %v728
  %v730 = vpop.f32.mrb[0].mxu0
  %v731 = vpop.f32.mrb[0].mxu0
  %v732 = vadd.f32 %v116, %v731
  %v733 = vpop.f32.mrb[0].mxu0
  %734 = vmatprep.mubr.bf16.mxu0 %v353
  %735 = vmatmul.mubr.bf16.gmra.mrb[0].mxu0 %v352
  %v736 = vpop.f32.mrb[0].mxu0
  %v737 = vadd.f32 %v116, %v736
  %v738 = vpop.f32.mrb[0].mxu0
  %v739 = vpop.f32.mrb[0].mxu0
  %v740 = vadd.f32 %v116, %v739
  %v741 = vpop.f32.mrb[0].mxu0
  %742 = vmatprep.mubr.bf16.mxu0 %v355
  %743 = vmatmul.mubr.bf16.gmra.mrb[0].mxu0 %v354
  %v744 = vpop.f32.mrb[0].mxu0
  %v745 = vadd.f32 %v116, %v744
  %v746 = vpop.f32.mrb[0].mxu0
  %v747 = vpop.f32.mrb[0].mxu0
  %v748 = vadd.f32 %v116, %v747
  %v749 = vpop.f32.mrb[0].mxu0
  %750 = vmatprep.mubr.bf16.mxu0 %v357
  %751 = vmatmul.mubr.bf16.gmra.mrb[0].mxu0 %v356
  %v752 = vpop.f32.mrb[0].mxu0
  %v753 = vadd.f32 %v116, %v752
  %v754 = vpop.f32.mrb[0].mxu0
  %v755 = vpop.f32.mrb[0].mxu0
  %v756 = vadd.f32 %v116, %v755
  %v757 = vpop.f32.mrb[0].mxu0
  %758 = vmatprep.mubr.bf16.mxu0 %v359
  %759 = vmatmul.mubr.bf16.gmra.mrb[0].mxu0 %v358
  %v760 = vpop.f32.mrb[0].mxu0
  %v761 = vadd.f32 %v116, %v760
  %v762 = vpop.f32.mrb[0].mxu0
  %v763 = vpop.f32.mrb[0].mxu0
  %v764 = vadd.f32 %v116, %v763
  %v765 = vpop.f32.mrb[0].mxu0
  %766 = vmatprep.mubr.bf16.mxu0 %v361
  %767 = vmatmul.mubr.bf16.gmra.mrb[0].mxu0 %v360
  %v768 = vpop.f32.mrb[0].mxu0
  %v769 = vadd.f32 %v116, %v768
  %v770 = vpop.f32.mrb[0].mxu0
  %v771 = vpop.f32.mrb[0].mxu0
  %v772 = vadd.f32 %v116, %v771
  %v773 = vpop.f32.mrb[0].mxu0
  %774 = vmatprep.mubr.bf16.mxu0 %v363
  %775 = vmatmul.mubr.bf16.gmra.mrb[0].mxu0 %v362
  %v776 = vpop.f32.mrb[0].mxu0
  %v777 = vadd.f32 %v116, %v776
  %v778 = vpop.f32.mrb[0].mxu0
  %v779 = vpop.f32.mrb[0].mxu0
  %v780 = vadd.f32 %v116, %v779
  %v781 = vpop.f32.mrb[0].mxu0
  %782 = vmatprep.mubr.bf16.mxu0 %v365
  %783 = vmatmul.mubr.bf16.gmra.mrb[0].mxu0 %v364
  %v784 = vpop.f32.mrb[0].mxu0
  %v785 = vadd.f32 %v116, %v784
  %v786 = vpop.f32.mrb[0].mxu0
  %v787 = vpop.f32.mrb[0].mxu0
  %v788 = vadd.f32 %v116, %v787
  %v789 = vpop.f32.mrb[0].mxu0
  %790 = vmatprep.mubr.bf16.mxu0 %v367
  %791 = vmatmul.mubr.bf16.gmra.mrb[0].mxu0 %v366
  %v792 = vpop.f32.mrb[0].mxu0
  %v793 = vadd.f32 %v116, %v792
  %v794 = vpop.f32.mrb[0].mxu0
  %v795 = vpop.f32.mrb[0].mxu0
  %v796 = vadd.f32 %v116, %v795
  %v797 = vpop.f32.mrb[0].mxu0
  %798 = vmatprep.mubr.bf16.mxu0 %v369
  %799 = vmatmul.mubr.bf16.gmra.mrb[0].mxu0 %v368
  %v800 = vpop.f32.mrb[0].mxu0
  %v801 = vadd.f32 %v116, %v800
  %v802 = vpop.f32.mrb[0].mxu0
  %v803 = vpop.f32.mrb[0].mxu0
  %v804 = vadd.f32 %v116, %v803
  %v805 = vpop.f32.mrb[0].mxu0
  %806 = vmatprep.mubr.bf16.mxu0 %v371
  %807 = vmatmul.mubr.bf16.gmra.mrb[0].mxu0 %v370
  %v808 = vpop.f32.mrb[0].mxu0
  %v809 = vadd.f32 %v116, %v808
  %v810 = vpop.f32.mrb[0].mxu0
  %v811 = vpop.f32.mrb[0].mxu0
  %v812 = vadd.f32 %v116, %v811
  %v813 = vpop.f32.mrb[0].mxu0
  %814 = vmatprep.mubr.bf16.mxu0 %v373
  %815 = vmatmul.mubr.bf16.gmra.mrb[0].mxu0 %v372
  %v816 = vpop.f32.mrb[0].mxu0
  %v817 = vadd.f32 %v116, %v816
  %v818 = vpop.f32.mrb[0].mxu0
  %v819 = vpop.f32.mrb[0].mxu0
  %v820 = vadd.f32 %v116, %v819
  %v821 = vpop.f32.mrb[0].mxu0
  %822 = vdwg.mxu0
  %v823 = vmax.f32 %v569, 0.0
  %v824 = vmax.f32 %v572, 0.0
  %v825 = vmax.f32 %v577, 0.0
  %v826 = vmax.f32 %v580, 0.0
  %v827 = vmax.f32 %v585, 0.0
  %v828 = vmax.f32 %v588, 0.0
  %v829 = vmax.f32 %v593, 0.0
  %v830 = vmax.f32 %v596, 0.0
  %v831 = vmax.f32 %v601, 0.0
  %v832 = vmax.f32 %v604, 0.0
  %v833 = vmax.f32 %v609, 0.0
  %v834 = vmax.f32 %v612, 0.0
  %v835 = vmax.f32 %v617, 0.0
  %v836 = vmax.f32 %v620, 0.0
  %v837 = vmax.f32 %v625, 0.0
  %v838 = vmax.f32 %v628, 0.0
  %v839 = vmax.f32 %v633, 0.0
  %v840 = vmax.f32 %v636, 0.0
  %v841 = vmax.f32 %v641, 0.0
  %v842 = vmax.f32 %v644, 0.0
  %v843 = vmax.f32 %v649, 0.0
  %v844 = vmax.f32 %v652, 0.0
  %v845 = vmax.f32 %v657, 0.0
  %v846 = vmax.f32 %v660, 0.0
  %v847 = vmax.f32 %v665, 0.0
  %v848 = vmax.f32 %v668, 0.0
  %v849 = vmax.f32 %v673, 0.0
  %v850 = vmax.f32 %v676, 0.0
  %v851 = vmax.f32 %v681, 0.0
  %v852 = vmax.f32 %v684, 0.0
  %v853 = vmax.f32 %v689, 0.0
  %v854 = vmax.f32 %v692, 0.0
  %v855 = vmax.f32 %v697, 0.0
  %v856 = vmax.f32 %v700, 0.0
  %v857 = vmax.f32 %v705, 0.0
  %v858 = vmax.f32 %v708, 0.0
  %v859 = vmax.f32 %v713, 0.0
  %v860 = vmax.f32 %v716, 0.0
  %v861 = vmax.f32 %v721, 0.0
  %v862 = vmax.f32 %v724, 0.0
  %v863 = vmax.f32 %v729, 0.0
  %v864 = vmax.f32 %v732, 0.0
  %v865 = vmax.f32 %v737, 0.0
  %v866 = vmax.f32 %v740, 0.0
  %v867 = vmax.f32 %v745, 0.0
  %v868 = vmax.f32 %v748, 0.0
  %v869 = vmax.f32 %v753, 0.0
  %v870 = vmax.f32 %v756, 0.0
  %v871 = vmax.f32 %v761, 0.0
  %v872 = vmax.f32 %v764, 0.0
  %v873 = vmax.f32 %v769, 0.0
  %v874 = vmax.f32 %v772, 0.0
  %v875 = vmax.f32 %v777, 0.0
  %v876 = vmax.f32 %v780, 0.0
  %v877 = vmax.f32 %v785, 0.0
  %v878 = vmax.f32 %v788, 0.0
  %v879 = vmax.f32 %v793, 0.0
  %v880 = vmax.f32 %v796, 0.0
  %v881 = vmax.f32 %v801, 0.0
  %v882 = vmax.f32 %v804, 0.0
  %v883 = vmax.f32 %v809, 0.0
  %v884 = vmax.f32 %v812, 0.0
  %v885 = vmax.f32 %v817, 0.0
  %v886 = vmax.f32 %v820, 0.0
  %v887 = vpack.c.bf16 %v824, %v823
  %v888 = vpack.c.bf16 %v826, %v825
  %v889 = vpack.c.bf16 %v828, %v827
  %v890 = vpack.c.bf16 %v830, %v829
  %v891 = vpack.c.bf16 %v832, %v831
  %v892 = vpack.c.bf16 %v834, %v833
  %v893 = vpack.c.bf16 %v836, %v835
  %v894 = vpack.c.bf16 %v838, %v837
  %v895 = vpack.c.bf16 %v840, %v839
  %v896 = vpack.c.bf16 %v842, %v841
  %v897 = vpack.c.bf16 %v844, %v843
  %v898 = vpack.c.bf16 %v846, %v845
  %v899 = vpack.c.bf16 %v848, %v847
  %v900 = vpack.c.bf16 %v850, %v849
  %v901 = vpack.c.bf16 %v852, %v851
  %v902 = vpack.c.bf16 %v854, %v853
  %v903 = vpack.c.bf16 %v856, %v855
  %v904 = vpack.c.bf16 %v858, %v857
  %v905 = vpack.c.bf16 %v860, %v859
  %v906 = vpack.c.bf16 %v862, %v861
  %v907 = vpack.c.bf16 %v864, %v863
  %v908 = vpack.c.bf16 %v866, %v865
  %v909 = vpack.c.bf16 %v868, %v867
  %v910 = vpack.c.bf16 %v870, %v869
  %v911 = vpack.c.bf16 %v872, %v871
  %v912 = vpack.c.bf16 %v874, %v873
  %v913 = vpack.c.bf16 %v876, %v875
  %v914 = vpack.c.bf16 %v878, %v877
  %v915 = vpack.c.bf16 %v880, %v879
  %v916 = vpack.c.bf16 %v882, %v881
  %v917 = vpack.c.bf16 %v884, %v883
  %v918 = vpack.c.bf16 %v886, %v885
  %v951 = vunpack.c.l.b16 %v887
  %v952 = vunpack.c.h.b16 %v887
  %v953 = vunpack.c.l.b16 %v888
  %v954 = vunpack.c.h.b16 %v888
  %v955 = vunpack.c.l.b16 %v889
  %v956 = vunpack.c.h.b16 %v889
  %v957 = vunpack.c.l.b16 %v890
  %v958 = vunpack.c.h.b16 %v890
  %v959 = vunpack.c.l.b16 %v891
  %v960 = vunpack.c.h.b16 %v891
  %v961 = vunpack.c.l.b16 %v892
  %v962 = vunpack.c.h.b16 %v892
  %v963 = vunpack.c.l.b16 %v893
  %v964 = vunpack.c.h.b16 %v893
  %v965 = vunpack.c.l.b16 %v894
  %v966 = vunpack.c.h.b16 %v894
  %v967 = vunpack.c.l.b16 %v895
  %v968 = vunpack.c.h.b16 %v895
  %v969 = vunpack.c.l.b16 %v896
  %v970 = vunpack.c.h.b16 %v896
  %v971 = vunpack.c.l.b16 %v897
  %v972 = vunpack.c.h.b16 %v897
  %v973 = vunpack.c.l.b16 %v898
  %v974 = vunpack.c.h.b16 %v898
  %v975 = vunpack.c.l.b16 %v899
  %v976 = vunpack.c.h.b16 %v899
  %v977 = vunpack.c.l.b16 %v900
  %v978 = vunpack.c.h.b16 %v900
  %v979 = vunpack.c.l.b16 %v901
  %v980 = vunpack.c.h.b16 %v901
  %v981 = vunpack.c.l.b16 %v902
  %v982 = vunpack.c.h.b16 %v902
  %v983 = vunpack.c.l.b16 %v903
  %v984 = vunpack.c.h.b16 %v903
  %v985 = vunpack.c.l.b16 %v904
  %v986 = vunpack.c.h.b16 %v904
  %v987 = vunpack.c.l.b16 %v905
  %v988 = vunpack.c.h.b16 %v905
  %v989 = vunpack.c.l.b16 %v906
  %v990 = vunpack.c.h.b16 %v906
  %v991 = vunpack.c.l.b16 %v907
  %v992 = vunpack.c.h.b16 %v907
  %v993 = vunpack.c.l.b16 %v908
  %v994 = vunpack.c.h.b16 %v908
  %v995 = vunpack.c.l.b16 %v909
  %v996 = vunpack.c.h.b16 %v909
  %v997 = vunpack.c.l.b16 %v910
  %v998 = vunpack.c.h.b16 %v910
  %v999 = vunpack.c.l.b16 %v911
  %v1000 = vunpack.c.h.b16 %v911
  %v1001 = vunpack.c.l.b16 %v912
  %v1002 = vunpack.c.h.b16 %v912
  %v1003 = vunpack.c.l.b16 %v913
  %v1004 = vunpack.c.h.b16 %v913
  %v1005 = vunpack.c.l.b16 %v914
  %v1006 = vunpack.c.h.b16 %v914
  %v1007 = vunpack.c.l.b16 %v915
  %v1008 = vunpack.c.h.b16 %v915
  %v1009 = vunpack.c.l.b16 %v916
  %v1010 = vunpack.c.h.b16 %v916
  %v1011 = vunpack.c.l.b16 %v917
  %v1012 = vunpack.c.h.b16 %v917
  %v1013 = vunpack.c.l.b16 %v918
  %v1014 = vunpack.c.h.b16 %v918
  %v1015 = vpack.c.b16 %v951, %v951
  %v1016 = vpack.c.b16 %v952, %v952
  %v1017 = vpack.c.b16 %v953, %v953
  %v1018 = vpack.c.b16 %v954, %v954
  %v1019 = vpack.c.b16 %v955, %v955
  %v1020 = vpack.c.b16 %v956, %v956
  %v1021 = vpack.c.b16 %v957, %v957
  %v1022 = vpack.c.b16 %v958, %v958
  %v1023 = vpack.c.b16 %v959, %v959
  %v1024 = vpack.c.b16 %v960, %v960
  %v1025 = vpack.c.b16 %v961, %v961
  %v1026 = vpack.c.b16 %v962, %v962
  %v1027 = vpack.c.b16 %v963, %v963
  %v1028 = vpack.c.b16 %v964, %v964
  %v1029 = vpack.c.b16 %v965, %v965
  %v1030 = vpack.c.b16 %v966, %v966
  %v1031 = vpack.c.b16 %v967, %v967
  %v1032 = vpack.c.b16 %v968, %v968
  %v1033 = vpack.c.b16 %v969, %v969
  %v1034 = vpack.c.b16 %v970, %v970
  %v1035 = vpack.c.b16 %v971, %v971
  %v1036 = vpack.c.b16 %v972, %v972
  %v1037 = vpack.c.b16 %v973, %v973
  %v1038 = vpack.c.b16 %v974, %v974
  %v1039 = vpack.c.b16 %v975, %v975
  %v1040 = vpack.c.b16 %v976, %v976
  %v1041 = vpack.c.b16 %v977, %v977
  %v1042 = vpack.c.b16 %v978, %v978
  %v1043 = vpack.c.b16 %v979, %v979
  %v1044 = vpack.c.b16 %v980, %v980
  %v1045 = vpack.c.b16 %v981, %v981
  %v1046 = vpack.c.b16 %v982, %v982
  %v1047 = vpack.c.b16 %v983, %v983
  %v1048 = vpack.c.b16 %v984, %v984
  %v1049 = vpack.c.b16 %v985, %v985
  %v1050 = vpack.c.b16 %v986, %v986
  %v1051 = vpack.c.b16 %v987, %v987
  %v1052 = vpack.c.b16 %v988, %v988
  %v1053 = vpack.c.b16 %v989, %v989
  %v1054 = vpack.c.b16 %v990, %v990
  %v1055 = vpack.c.b16 %v991, %v991
  %v1056 = vpack.c.b16 %v992, %v992
  %v1057 = vpack.c.b16 %v993, %v993
  %v1058 = vpack.c.b16 %v994, %v994
  %v1059 = vpack.c.b16 %v995, %v995
  %v1060 = vpack.c.b16 %v996, %v996
  %v1061 = vpack.c.b16 %v997, %v997
  %v1062 = vpack.c.b16 %v998, %v998
  %v1063 = vpack.c.b16 %v999, %v999
  %v1064 = vpack.c.b16 %v1000, %v1000
  %v1065 = vpack.c.b16 %v1001, %v1001
  %v1066 = vpack.c.b16 %v1002, %v1002
  %v1067 = vpack.c.b16 %v1003, %v1003
  %v1068 = vpack.c.b16 %v1004, %v1004
  %v1069 = vpack.c.b16 %v1005, %v1005
  %v1070 = vpack.c.b16 %v1006, %v1006
  %v1071 = vpack.c.b16 %v1007, %v1007
  %v1072 = vpack.c.b16 %v1008, %v1008
  %v1073 = vpack.c.b16 %v1009, %v1009
  %v1074 = vpack.c.b16 %v1010, %v1010
  %v1075 = vpack.c.b16 %v1011, %v1011
  %v1076 = vpack.c.b16 %v1012, %v1012
  %v1077 = vpack.c.b16 %v1013, %v1013
  %v1078 = vpack.c.b16 %v1014, %v1014
  %vm1143 = vcmask 60416
  %1144 = vst.msk [vmem:[%s3] sm:$0xf] %vm1143, %v1015
  %1145 = vst.msk [vmem:[%s3 + $0x4] sm:$0xf] %vm1143, %v1016
  %1146 = vst.msk [vmem:[%s3 + $0x8] sm:$0xf] %vm1143, %v1017
  %1147 = vst.msk [vmem:[%s3 + $0xc] sm:$0xf] %vm1143, %v1018
  %1148 = vst.msk [vmem:[%s3 + $0x10] sm:$0xf] %vm1143, %v1019
  %1149 = vst.msk [vmem:[%s3 + $0x14] sm:$0xf] %vm1143, %v1020
  %1150 = vst.msk [vmem:[%s3 + $0x18] sm:$0xf] %vm1143, %v1021
  %1151 = vst.msk [vmem:[%s3 + $0x1c] sm:$0xf] %vm1143, %v1022
  %1152 = vst.msk [vmem:[%s3 + $0x20] sm:$0xf] %vm1143, %v1023
  %1153 = vst.msk [vmem:[%s3 + $0x24] sm:$0xf] %vm1143, %v1024
  %1154 = vst.msk [vmem:[%s3 + $0x28] sm:$0xf] %vm1143, %v1025
  %1155 = vst.msk [vmem:[%s3 + $0x2c] sm:$0xf] %vm1143, %v1026
  %1156 = vst.msk [vmem:[%s3 + $0x30] sm:$0xf] %vm1143, %v1027
  %1157 = vst.msk [vmem:[%s3 + $0x34] sm:$0xf] %vm1143, %v1028
  %1158 = vst.msk [vmem:[%s3 + $0x38] sm:$0xf] %vm1143, %v1029
  %1159 = vst.msk [vmem:[%s3 + $0x3c] sm:$0xf] %vm1143, %v1030
  %1160 = vst.msk [vmem:[%s3 + $0x40] sm:$0xf] %vm1143, %v1031
  %1161 = vst.msk [vmem:[%s3 + $0x44] sm:$0xf] %vm1143, %v1032
  %1162 = vst.msk [vmem:[%s3 + $0x48] sm:$0xf] %vm1143, %v1033
  %1163 = vst.msk [vmem:[%s3 + $0x4c] sm:$0xf] %vm1143, %v1034
  %1164 = vst.msk [vmem:[%s3 + $0x50] sm:$0xf] %vm1143, %v1035
  %1165 = vst.msk [vmem:[%s3 + $0x54] sm:$0xf] %vm1143, %v1036
  %1166 = vst.msk [vmem:[%s3 + $0x58] sm:$0xf] %vm1143, %v1037
  %1167 = vst.msk [vmem:[%s3 + $0x5c] sm:$0xf] %vm1143, %v1038
  %1168 = vst.msk [vmem:[%s3 + $0x60] sm:$0xf] %vm1143, %v1039
  %1169 = vst.msk [vmem:[%s3 + $0x64] sm:$0xf] %vm1143, %v1040
  %1170 = vst.msk [vmem:[%s3 + $0x68] sm:$0xf] %vm1143, %v1041
  %1171 = vst.msk [vmem:[%s3 + $0x6c] sm:$0xf] %vm1143, %v1042
  %1172 = vst.msk [vmem:[%s3 + $0x70] sm:$0xf] %vm1143, %v1043
  %1173 = vst.msk [vmem:[%s3 + $0x74] sm:$0xf] %vm1143, %v1044
  %1174 = vst.msk [vmem:[%s3 + $0x78] sm:$0xf] %vm1143, %v1045
  %1175 = vst.msk [vmem:[%s3 + $0x7c] sm:$0xf] %vm1143, %v1046
  %1176 = vst.msk [vmem:[%s3 + $0x80] sm:$0xf] %vm1143, %v1047
  %1177 = vst.msk [vmem:[%s3 + $0x84] sm:$0xf] %vm1143, %v1048
  %1178 = vst.msk [vmem:[%s3 + $0x88] sm:$0xf] %vm1143, %v1049
  %1179 = vst.msk [vmem:[%s3 + $0x8c] sm:$0xf] %vm1143, %v1050
  %1180 = vst.msk [vmem:[%s3 + $0x90] sm:$0xf] %vm1143, %v1051
  %1181 = vst.msk [vmem:[%s3 + $0x94] sm:$0xf] %vm1143, %v1052
  %1182 = vst.msk [vmem:[%s3 + $0x98] sm:$0xf] %vm1143, %v1053
  %1183 = vst.msk [vmem:[%s3 + $0x9c] sm:$0xf] %vm1143, %v1054
  %1184 = vst.msk [vmem:[%s3 + $0xa0] sm:$0xf] %vm1143, %v1055
  %1185 = vst.msk [vmem:[%s3 + $0xa4] sm:$0xf] %vm1143, %v1056
  %1186 = vst.msk [vmem:[%s3 + $0xa8] sm:$0xf] %vm1143, %v1057
  %1187 = vst.msk [vmem:[%s3 + $0xac] sm:$0xf] %vm1143, %v1058
  %1188 = vst.msk [vmem:[%s3 + $0xb0] sm:$0xf] %vm1143, %v1059
  %1189 = vst.msk [vmem:[%s3 + $0xb4] sm:$0xf] %vm1143, %v1060
  %1190 = vst.msk [vmem:[%s3 + $0xb8] sm:$0xf] %vm1143, %v1061
  %1191 = vst.msk [vmem:[%s3 + $0xbc] sm:$0xf] %vm1143, %v1062
  %1192 = vst.msk [vmem:[%s3 + $0xc0] sm:$0xf] %vm1143, %v1063
  %1193 = vst.msk [vmem:[%s3 + $0xc4] sm:$0xf] %vm1143, %v1064
  %1194 = vst.msk [vmem:[%s3 + $0xc8] sm:$0xf] %vm1143, %v1065
  %1195 = vst.msk [vmem:[%s3 + $0xcc] sm:$0xf] %vm1143, %v1066
  %1196 = vst.msk [vmem:[%s3 + $0xd0] sm:$0xf] %vm1143, %v1067
  %1197 = vst.msk [vmem:[%s3 + $0xd4] sm:$0xf] %vm1143, %v1068
  %1198 = vst.msk [vmem:[%s3 + $0xd8] sm:$0xf] %vm1143, %v1069
  %1199 = vst.msk [vmem:[%s3 + $0xdc] sm:$0xf] %vm1143, %v1070
  %1200 = vst.msk [vmem:[%s3 + $0xe0] sm:$0xf] %vm1143, %v1071
  %1201 = vst.msk [vmem:[%s3 + $0xe4] sm:$0xf] %vm1143, %v1072
  %1202 = vst.msk [vmem:[%s3 + $0xe8] sm:$0xf] %vm1143, %v1073
  %1203 = vst.msk [vmem:[%s3 + $0xec] sm:$0xf] %vm1143, %v1074
  %1204 = vst.msk [vmem:[%s3 + $0xf0] sm:$0xf] %vm1143, %v1075
  %1205 = vst.msk [vmem:[%s3 + $0xf4] sm:$0xf] %vm1143, %v1076
  %1206 = vst.msk [vmem:[%s3 + $0xf8] sm:$0xf] %vm1143, %v1077
  %1207 = vst.msk [vmem:[%s3 + $0xfc] sm:$0xf] %vm1143, %v1078
  // Predicated region
  $region14: #{_lambda_.11} parent=0 // pred_check
    _
  $region15: #{_lambda_.11} parent=0 // pred_check_branch
    %1209 = sbr.rel (0) target = $region17
  $region16: #{_lambda_.11} parent=0 // pred_region
    _
  $region17: #{_lambda_.11} parent=0 // pred_fallthru
    _
  // Predicated region
  $region18: #{_lambda_.11} parent=0 // pred_check
    _
  $region19: #{_lambda_.11} parent=0 // pred_check_branch
    %1211 = sbr.rel (0) target = $region21
  $region20: #{_lambda_.11} parent=0 // pred_region
    _
  $region21: #{_lambda_.11} parent=0 // pred_fallthru
    _

// kernel: _lambda_.12
$region0: #{_lambda_.12}
  #allocation0 [shape = 'u32[]', space=smem, size = 0x4, offset = 0x4, fixed_abs, tag = 'smem constant byte address 0x4 - core index']
  #allocation1 [shape = 'u32[144,128]{1,0:T(1,128)}', space=vmem, size = 0x12000, scoped, tag = 'internal scratch']
  %s0 = inlined_call_operand.vmem [shape: bf16[4096,256], index: 0, kind: input, shape index: {}]
  %s1 = inlined_call_operand.vmem [shape: bf16[256,128], index: 1, kind: input, shape index: {}]
  %s2 = inlined_call_operand.vmem [shape: f32[1,128], index: 2, kind: input, shape index: {}]
  %s3 = inlined_call_operand.vmem [shape: bf16[4096,4], index: 3, kind: output, shape index: {}]
  %s4 = sld [smem:[#allocation0]]
  $region45: #{_lambda_.12} parent=0
    _
  %s6 = ssub.s32 1, %s4
  %s7 = scalar_select 0, %s6, %s4
  loop: start=0, step=1, limit=4
  $region2: #{_lambda_.12} parent=0 // loop_pre_header
    _
  $region3: #{_lambda_.12} parent=0 // loop_header
    %s9 = sphi 0, %s13
    %p10 = scmp.ge.s32.totalorder %s9, 4
    %s19 = sphi 0, %s21
    %s22 = sphi 0, %s19
    %s23 = sphi 0, %s22
    %s39 = sphi 0, %s23
    %s43 = sphi 0, %s43
    %s45 = sphi 0, %s43
    %s46 = sphi 0, %s45
    %s60 = sphi 0, %s46
    %s64 = sphi 0, %s64
    %s66 = sphi 0, %s64
    %s67 = sphi 0, %s66
    %s81 = sphi 0, %s67
    %s87 = sphi 0, %s89
    %s90 = sphi 0, %s87
    %s91 = sphi 0, %s90
    %s107 = sphi 0, %s91
  $region4: #{_lambda_.12} parent=0 // loop_header_branch
    %12 = sbr.rel (%p10) target = $region8
  $region5: #{_lambda_.12} parent=0 // loop_body
    %s14 = ssub.s32 %s9, 1
    %s15 = ssub.s32 %s9, 2
    %s16 = sadd.s32 %s9, 1
    %s17 = ssub.s32 %s9, %s16
    %p18 = scmp.eq.s32.totalorder %s17, 0
    %s20 = sadd.s32 %s19, 1
    %s21 = scalar_select %p18, %s19, %s20
    %p24 = pneg %p18
    %p25 = scmp.eq.s32.totalorder %s9, 1
    %p26 = por %p24, %p25
    %p27 = scmp.ne.s32.totalorder %s19, %s22
    %p28 = scmp.eq.s32.totalorder %s9, 0
    %p29 = por %p27, %p28
    %p30 = scmp.ne.s32.totalorder %s19, %s22
    %p31 = scmp.eq.s32.totalorder %s14, 1
    %p32 = por %p30, %p31
    %p33 = scmp.ne.s32.totalorder %s22, %s23
    %p34 = scmp.eq.s32.totalorder %s14, 0
    %p35 = por %p33, %p34
    %p36 = scmp.ne.s32.totalorder %s22, %s23
    %p37 = scmp.eq.s32.totalorder %s15, 1
    %p38 = por %p36, %p37
    %p40 = scmp.ne.s32.totalorder %s23, %s39
    %p41 = scmp.eq.s32.totalorder %s15, 0
    %p42 = por %p40, %p41
    %s44 = sadd.s32 %s43, 1
    %p47 = scmp.eq.s32.totalorder %s9, 1
    %p48 = scmp.ne.s32.totalorder %s43, %s45
    %p49 = scmp.eq.s32.totalorder %s9, 0
    %p50 = por %p48, %p49
    %p51 = scmp.ne.s32.totalorder %s43, %s45
    %p52 = scmp.eq.s32.totalorder %s14, 1
    %p53 = por %p51, %p52
    %p54 = scmp.ne.s32.totalorder %s45, %s46
    %p55 = scmp.eq.s32.totalorder %s14, 0
    %p56 = por %p54, %p55
    %p57 = scmp.ne.s32.totalorder %s45, %s46
    %p58 = scmp.eq.s32.totalorder %s15, 1
    %p59 = por %p57, %p58
    %p61 = scmp.ne.s32.totalorder %s46, %s60
    %p62 = scmp.eq.s32.totalorder %s15, 0
    %p63 = por %p61, %p62
    %s65 = sadd.s32 %s64, 1
    %p68 = scmp.eq.s32.totalorder %s9, 1
    %p69 = scmp.ne.s32.totalorder %s64, %s66
    %p70 = scmp.eq.s32.totalorder %s9, 0
    %p71 = por %p69, %p70
    %p72 = scmp.ne.s32.totalorder %s64, %s66
    %p73 = scmp.eq.s32.totalorder %s14, 1
    %p74 = por %p72, %p73
    %p75 = scmp.ne.s32.totalorder %s66, %s67
    %p76 = scmp.eq.s32.totalorder %s14, 0
    %p77 = por %p75, %p76
    %p78 = scmp.ne.s32.totalorder %s66, %s67
    %p79 = scmp.eq.s32.totalorder %s15, 1
    %p80 = por %p78, %p79
    %p82 = scmp.ne.s32.totalorder %s67, %s81
    %p83 = scmp.eq.s32.totalorder %s15, 0
    %p84 = por %p82, %p83
    %s85 = ssub.s32 %s9, %s16
    %p86 = scmp.eq.s32.totalorder %s85, 0
    %s88 = sadd.s32 %s87, 1
    %s89 = scalar_select %p86, %s87, %s88
    %p92 = pneg %p86
    %p93 = scmp.eq.s32.totalorder %s9, 1
    %p94 = por %p92, %p93
    %p95 = scmp.ne.s32.totalorder %s87, %s90
    %p96 = scmp.eq.s32.totalorder %s9, 0
    %p97 = por %p95, %p96
    %p98 = scmp.ne.s32.totalorder %s87, %s90
    %p99 = scmp.eq.s32.totalorder %s14, 1
    %p100 = por %p98, %p99
    %p101 = scmp.ne.s32.totalorder %s90, %s91
    %p102 = scmp.eq.s32.totalorder %s14, 0
    %p103 = por %p101, %p102
    %p104 = scmp.ne.s32.totalorder %s90, %s91
    %p105 = scmp.eq.s32.totalorder %s15, 1
    %p106 = por %p104, %p105
    %p108 = scmp.ne.s32.totalorder %s91, %s107
    %p109 = scmp.eq.s32.totalorder %s15, 0
    %p110 = por %p108, %p109
    %p111 = scmp.le.s32.totalorder 1, %s9
    %p112 = scmp.lt.s32.totalorder %s9, 3
    %p113 = pnand %p111, %p112
    %p114 = pneg %p113
    // Predicated region
    $region9: #{_lambda_.12} parent=5 // pred_check
      _
    $region10: #{_lambda_.12} parent=5 // pred_check_branch
      %116 = sbr.rel (%p113) target = $region12
    $region11: #{_lambda_.12} parent=5 // pred_region
      %s117 = ssub.s32 %s9, 1
      // Predicated region
      $region13: #{_lambda_.12} parent=11 // pred_check
        %p118 = pneg %p56
      $region14: #{_lambda_.12} parent=11 // pred_check_branch
        %120 = sbr.rel (%p118) target = $region16
      $region15: #{_lambda_.12} parent=11 // pred_region
        _
      $region16: #{_lambda_.12} parent=11 // pred_fallthru
        _
      // Predicated region
      $region17: #{_lambda_.12} parent=11 // pred_check
        %p121 = pneg %p77
      $region18: #{_lambda_.12} parent=11 // pred_check_branch
        %123 = sbr.rel (%p121) target = $region20
      $region19: #{_lambda_.12} parent=11 // pred_region
        _
      $region20: #{_lambda_.12} parent=11 // pred_fallthru
        _
    $region12: #{_lambda_.12} parent=5 // pred_fallthru
      _
    %p124 = scmp.lt.s32.totalorder %s9, 2
    // Predicated region
    $region21: #{_lambda_.12} parent=5 // pred_check
      %p125 = pneg %p124
    $region22: #{_lambda_.12} parent=5 // pred_check_branch
      %127 = sbr.rel (%p125) target = $region24
    $region23: #{_lambda_.12} parent=5 // pred_region
      // Predicated region
      $region25: #{_lambda_.12} parent=23 // pred_check
        %p128 = pneg %p29
      $region26: #{_lambda_.12} parent=23 // pred_check_branch
        %130 = sbr.rel (%p128) target = $region28
      $region27: #{_lambda_.12} parent=23 // pred_region
        %s131 = smul.u32 256, %s9
        %p132 = scmp.lt.s32.totalorder %s131, 511
        %s133 = scalar_select %p132, %s131, 511
        %s134 = smul.addr %s133, 2
        %s135 = smul.addr %s134, 4
        %s136 = scalar_lea.vmem %s0, %s135
        %s137 = smul.u32 256, %s9
      $region28: #{_lambda_.12} parent=23 // pred_fallthru
        _
    $region24: #{_lambda_.12} parent=5 // pred_fallthru
      _
    %p138 = scmp.le.s32.totalorder 1, %s9
    %p139 = scmp.lt.s32.totalorder %s9, 3
    %p140 = pnand %p138, %p139
    %p141 = pneg %p140
    // Predicated region
    $region29: #{_lambda_.12} parent=5 // pred_check
      _
    $region30: #{_lambda_.12} parent=5 // pred_check_branch
      %143 = sbr.rel (%p140) target = $region32
    $region31: #{_lambda_.12} parent=5 // pred_region
      %s144 = ssub.s32 %s9, 1
      %s145 = smul.u32 256, %s14
      %p146 = scmp.lt.s32.totalorder %s145, 511
      %s147 = scalar_select %p146, %s145, 511
      %s148 = smul.addr %s147, 2
      %s149 = smul.addr %s148, 4
      %s150 = scalar_lea.vmem %s0, %s149
      %p151 = pneg %p35
      %p152 = pneg %p32
      %p153 = pneg %p56
      %p154 = pneg %p53
      %p155 = pneg %p77
      %p156 = pneg %p74
      %p157 = pneg %p103
      %p158 = pneg %p100
      %s159 = smul.u32 256, %s14
      %p160 = scmp.lt.s32.totalorder %s159, 511
      %s161 = scalar_select %p160, %s159, 511
      %s162 = smul.addr %s161, 4
      %s163 = scalar_lea.vmem %s3, %s162
      %s164 = smul.u32 256, %s14
      %p165 = scmp.lt.s32.totalorder %s164, 511
      %s166 = scalar_select %p165, %s164, 511
      %s167 = smul.addr %s166, 2
      %s168 = smul.addr %s167, 4
      %s169 = scalar_lea.vmem %s0, %s168
      %s170 = smul.u32 256, %s14
      %s171 = smul.u32 256, %s14
      %p172 = scmp.lt.s32.totalorder %s171, 511
      %s173 = scalar_select %p172, %s171, 511
      %s174 = smul.addr %s173, 4
      %s175 = scalar_lea.vmem %s3, %s174
      %s176 = smul.u32 256, %s14
      %v178 = vld [vmem:[%s169] sm:$0xff]
      %v179 = vld [vmem:[%s169 + $0x8] sm:$0xff]
      %v180 = vld [vmem:[%s169 + $0x10] sm:$0xff]
      %v181 = vld [vmem:[%s169 + $0x18] sm:$0xff]
      %v182 = vld [vmem:[%s169 + $0x20] sm:$0xff]
      %v183 = vld [vmem:[%s169 + $0x28] sm:$0xff]
      %v184 = vld [vmem:[%s169 + $0x30] sm:$0xff]
      %v185 = vld [vmem:[%s169 + $0x38] sm:$0xff]
      %v186 = vld [vmem:[%s169 + $0x40] sm:$0xff]
      %v187 = vld [vmem:[%s169 + $0x48] sm:$0xff]
      %v188 = vld [vmem:[%s169 + $0x50] sm:$0xff]
      %v189 = vld [vmem:[%s169 + $0x58] sm:$0xff]
      %v190 = vld [vmem:[%s169 + $0x60] sm:$0xff]
      %v191 = vld [vmem:[%s169 + $0x68] sm:$0xff]
      %v192 = vld [vmem:[%s169 + $0x70] sm:$0xff]
      %v193 = vld [vmem:[%s169 + $0x78] sm:$0xff]
      %v194 = vld [vmem:[%s169 + $0x80] sm:$0xff]
      %v195 = vld [vmem:[%s169 + $0x88] sm:$0xff]
      %v196 = vld [vmem:[%s169 + $0x90] sm:$0xff]
      %v197 = vld [vmem:[%s169 + $0x98] sm:$0xff]
      %v198 = vld [vmem:[%s169 + $0xa0] sm:$0xff]
      %v199 = vld [vmem:[%s169 + $0xa8] sm:$0xff]
      %v200 = vld [vmem:[%s169 + $0xb0] sm:$0xff]
      %v201 = vld [vmem:[%s169 + $0xb8] sm:$0xff]
      %v202 = vld [vmem:[%s169 + $0xc0] sm:$0xff]
      %v203 = vld [vmem:[%s169 + $0xc8] sm:$0xff]
      %v204 = vld [vmem:[%s169 + $0xd0] sm:$0xff]
      %v205 = vld [vmem:[%s169 + $0xd8] sm:$0xff]
      %v206 = vld [vmem:[%s169 + $0xe0] sm:$0xff]
      %v207 = vld [vmem:[%s169 + $0xe8] sm:$0xff]
      %v208 = vld [vmem:[%s169 + $0xf0] sm:$0xff]
      %v209 = vld [vmem:[%s169 + $0xf8] sm:$0xff]
      %v210 = vld [vmem:[%s169 + $0x100] sm:$0xff]
      %v211 = vld [vmem:[%s169 + $0x108] sm:$0xff]
      %v212 = vld [vmem:[%s169 + $0x110] sm:$0xff]
      %v213 = vld [vmem:[%s169 + $0x118] sm:$0xff]
      %v214 = vld [vmem:[%s169 + $0x120] sm:$0xff]
      %v215 = vld [vmem:[%s169 + $0x128] sm:$0xff]
      %v216 = vld [vmem:[%s169 + $0x130] sm:$0xff]
      %v217 = vld [vmem:[%s169 + $0x138] sm:$0xff]
      %v218 = vld [vmem:[%s169 + $0x140] sm:$0xff]
      %v219 = vld [vmem:[%s169 + $0x148] sm:$0xff]
      %v220 = vld [vmem:[%s169 + $0x150] sm:$0xff]
      %v221 = vld [vmem:[%s169 + $0x158] sm:$0xff]
      %v222 = vld [vmem:[%s169 + $0x160] sm:$0xff]
      %v223 = vld [vmem:[%s169 + $0x168] sm:$0xff]
      %v224 = vld [vmem:[%s169 + $0x170] sm:$0xff]
      %v225 = vld [vmem:[%s169 + $0x178] sm:$0xff]
      %v226 = vld [vmem:[%s169 + $0x180] sm:$0xff]
      %v227 = vld [vmem:[%s169 + $0x188] sm:$0xff]
      %v228 = vld [vmem:[%s169 + $0x190] sm:$0xff]
      %v229 = vld [vmem:[%s169 + $0x198] sm:$0xff]
      %v230 = vld [vmem:[%s169 + $0x1a0] sm:$0xff]
      %v231 = vld [vmem:[%s169 + $0x1a8] sm:$0xff]
      %v232 = vld [vmem:[%s169 + $0x1b0] sm:$0xff]
      %v233 = vld [vmem:[%s169 + $0x1b8] sm:$0xff]
      %v234 = vld [vmem:[%s169 + $0x1c0] sm:$0xff]
      %v235 = vld [vmem:[%s169 + $0x1c8] sm:$0xff]
      %v236 = vld [vmem:[%s169 + $0x1d0] sm:$0xff]
      %v237 = vld [vmem:[%s169 + $0x1d8] sm:$0xff]
      %v238 = vld [vmem:[%s169 + $0x1e0] sm:$0xff]
      %v239 = vld [vmem:[%s169 + $0x1e8] sm:$0xff]
      %v240 = vld [vmem:[%s169 + $0x1f0] sm:$0xff]
      %v241 = vld [vmem:[%s169 + $0x1f8] sm:$0xff]
      %v242 = vld [vmem:[%s169 + $0x200] sm:$0xff]
      %v243 = vld [vmem:[%s169 + $0x208] sm:$0xff]
      %v244 = vld [vmem:[%s169 + $0x210] sm:$0xff]
      %v245 = vld [vmem:[%s169 + $0x218] sm:$0xff]
      %v246 = vld [vmem:[%s169 + $0x220] sm:$0xff]
      %v247 = vld [vmem:[%s169 + $0x228] sm:$0xff]
      %v248 = vld [vmem:[%s169 + $0x230] sm:$0xff]
      %v249 = vld [vmem:[%s169 + $0x238] sm:$0xff]
      %v250 = vld [vmem:[%s169 + $0x240] sm:$0xff]
      %v251 = vld [vmem:[%s169 + $0x248] sm:$0xff]
      %v252 = vld [vmem:[%s169 + $0x250] sm:$0xff]
      %v253 = vld [vmem:[%s169 + $0x258] sm:$0xff]
      %v254 = vld [vmem:[%s169 + $0x260] sm:$0xff]
      %v255 = vld [vmem:[%s169 + $0x268] sm:$0xff]
      %v256 = vld [vmem:[%s169 + $0x270] sm:$0xff]
      %v257 = vld [vmem:[%s169 + $0x278] sm:$0xff]
      %v258 = vld [vmem:[%s169 + $0x280] sm:$0xff]
      %v259 = vld [vmem:[%s169 + $0x288] sm:$0xff]
      %v260 = vld [vmem:[%s169 + $0x290] sm:$0xff]
      %v261 = vld [vmem:[%s169 + $0x298] sm:$0xff]
      %v262 = vld [vmem:[%s169 + $0x2a0] sm:$0xff]
      %v263 = vld [vmem:[%s169 + $0x2a8] sm:$0xff]
      %v264 = vld [vmem:[%s169 + $0x2b0] sm:$0xff]
      %v265 = vld [vmem:[%s169 + $0x2b8] sm:$0xff]
      %v266 = vld [vmem:[%s169 + $0x2c0] sm:$0xff]
      %v267 = vld [vmem:[%s169 + $0x2c8] sm:$0xff]
      %v268 = vld [vmem:[%s169 + $0x2d0] sm:$0xff]
      %v269 = vld [vmem:[%s169 + $0x2d8] sm:$0xff]
      %v270 = vld [vmem:[%s169 + $0x2e0] sm:$0xff]
      %v271 = vld [vmem:[%s169 + $0x2e8] sm:$0xff]
      %v272 = vld [vmem:[%s169 + $0x2f0] sm:$0xff]
      %v273 = vld [vmem:[%s169 + $0x2f8] sm:$0xff]
      %v274 = vld [vmem:[%s169 + $0x300] sm:$0xff]
      %v275 = vld [vmem:[%s169 + $0x308] sm:$0xff]
      %v276 = vld [vmem:[%s169 + $0x310] sm:$0xff]
      %v277 = vld [vmem:[%s169 + $0x318] sm:$0xff]
      %v278 = vld [vmem:[%s169 + $0x320] sm:$0xff]
      %v279 = vld [vmem:[%s169 + $0x328] sm:$0xff]
      %v280 = vld [vmem:[%s169 + $0x330] sm:$0xff]
      %v281 = vld [vmem:[%s169 + $0x338] sm:$0xff]
      %v282 = vld [vmem:[%s169 + $0x340] sm:$0xff]
      %v283 = vld [vmem:[%s169 + $0x348] sm:$0xff]
      %v284 = vld [vmem:[%s169 + $0x350] sm:$0xff]
      %v285 = vld [vmem:[%s169 + $0x358] sm:$0xff]
      %v286 = vld [vmem:[%s169 + $0x360] sm:$0xff]
      %v287 = vld [vmem:[%s169 + $0x368] sm:$0xff]
      %v288 = vld [vmem:[%s169 + $0x370] sm:$0xff]
      %v289 = vld [vmem:[%s169 + $0x378] sm:$0xff]
      %v290 = vld [vmem:[%s169 + $0x380] sm:$0xff]
      %v291 = vld [vmem:[%s169 + $0x388] sm:$0xff]
      %v292 = vld [vmem:[%s169 + $0x390] sm:$0xff]
      %v293 = vld [vmem:[%s169 + $0x398] sm:$0xff]
      %v294 = vld [vmem:[%s169 + $0x3a0] sm:$0xff]
      %v295 = vld [vmem:[%s169 + $0x3a8] sm:$0xff]
      %v296 = vld [vmem:[%s169 + $0x3b0] sm:$0xff]
      %v297 = vld [vmem:[%s169 + $0x3b8] sm:$0xff]
      %v298 = vld [vmem:[%s169 + $0x3c0] sm:$0xff]
      %v299 = vld [vmem:[%s169 + $0x3c8] sm:$0xff]
      %v300 = vld [vmem:[%s169 + $0x3d0] sm:$0xff]
      %v301 = vld [vmem:[%s169 + $0x3d8] sm:$0xff]
      %v302 = vld [vmem:[%s169 + $0x3e0] sm:$0xff]
      %v303 = vld [vmem:[%s169 + $0x3e8] sm:$0xff]
      %v304 = vld [vmem:[%s169 + $0x3f0] sm:$0xff]
      %v305 = vld [vmem:[%s169 + $0x3f8] sm:$0xff]
      %v306 = vld [vmem:[%s169 + $0x400] sm:$0xff]
      %v307 = vld [vmem:[%s169 + $0x408] sm:$0xff]
      %v308 = vld [vmem:[%s169 + $0x410] sm:$0xff]
      %v309 = vld [vmem:[%s169 + $0x418] sm:$0xff]
      %v310 = vld [vmem:[%s169 + $0x420] sm:$0xff]
      %v311 = vld [vmem:[%s169 + $0x428] sm:$0xff]
      %v312 = vld [vmem:[%s169 + $0x430] sm:$0xff]
      %v313 = vld [vmem:[%s169 + $0x438] sm:$0xff]
      %v314 = vld [vmem:[%s169 + $0x440] sm:$0xff]
      %v315 = vld [vmem:[%s169 + $0x448] sm:$0xff]
      %v316 = vld [vmem:[%s169 + $0x450] sm:$0xff]
      %v317 = vld [vmem:[%s169 + $0x458] sm:$0xff]
      %v318 = vld [vmem:[%s169 + $0x460] sm:$0xff]
      %v319 = vld [vmem:[%s169 + $0x468] sm:$0xff]
      %v320 = vld [vmem:[%s169 + $0x470] sm:$0xff]
      %v321 = vld [vmem:[%s169 + $0x478] sm:$0xff]
      %v322 = vld [vmem:[%s169 + $0x480] sm:$0xff]
      %v323 = vld [vmem:[%s169 + $0x488] sm:$0xff]
      %v324 = vld [vmem:[%s169 + $0x490] sm:$0xff]
      %v325 = vld [vmem:[%s169 + $0x498] sm:$0xff]
      %v326 = vld [vmem:[%s169 + $0x4a0] sm:$0xff]
      %v327 = vld [vmem:[%s169 + $0x4a8] sm:$0xff]
      %v328 = vld [vmem:[%s169 + $0x4b0] sm:$0xff]
      %v329 = vld [vmem:[%s169 + $0x4b8] sm:$0xff]
      %v330 = vld [vmem:[%s169 + $0x4c0] sm:$0xff]
      %v331 = vld [vmem:[%s169 + $0x4c8] sm:$0xff]
      %v332 = vld [vmem:[%s169 + $0x4d0] sm:$0xff]
      %v333 = vld [vmem:[%s169 + $0x4d8] sm:$0xff]
      %v334 = vld [vmem:[%s169 + $0x4e0] sm:$0xff]
      %v335 = vld [vmem:[%s169 + $0x4e8] sm:$0xff]
      %v336 = vld [vmem:[%s169 + $0x4f0] sm:$0xff]
      %v337 = vld [vmem:[%s169 + $0x4f8] sm:$0xff]
      %v338 = vld [vmem:[%s169 + $0x500] sm:$0xff]
      %v339 = vld [vmem:[%s169 + $0x508] sm:$0xff]
      %v340 = vld [vmem:[%s169 + $0x510] sm:$0xff]
      %v341 = vld [vmem:[%s169 + $0x518] sm:$0xff]
      %v342 = vld [vmem:[%s169 + $0x520] sm:$0xff]
      %v343 = vld [vmem:[%s169 + $0x528] sm:$0xff]
      %v344 = vld [vmem:[%s169 + $0x530] sm:$0xff]
      %v345 = vld [vmem:[%s169 + $0x538] sm:$0xff]
      %v346 = vld [vmem:[%s169 + $0x540] sm:$0xff]
      %v347 = vld [vmem:[%s169 + $0x548] sm:$0xff]
      %v348 = vld [vmem:[%s169 + $0x550] sm:$0xff]
      %v349 = vld [vmem:[%s169 + $0x558] sm:$0xff]
      %v350 = vld [vmem:[%s169 + $0x560] sm:$0xff]
      %v351 = vld [vmem:[%s169 + $0x568] sm:$0xff]
      %v352 = vld [vmem:[%s169 + $0x570] sm:$0xff]
      %v353 = vld [vmem:[%s169 + $0x578] sm:$0xff]
      %v354 = vld [vmem:[%s169 + $0x580] sm:$0xff]
      %v355 = vld [vmem:[%s169 + $0x588] sm:$0xff]
      %v356 = vld [vmem:[%s169 + $0x590] sm:$0xff]
      %v357 = vld [vmem:[%s169 + $0x598] sm:$0xff]
      %v358 = vld [vmem:[%s169 + $0x5a0] sm:$0xff]
      %v359 = vld [vmem:[%s169 + $0x5a8] sm:$0xff]
      %v360 = vld [vmem:[%s169 + $0x5b0] sm:$0xff]
      %v361 = vld [vmem:[%s169 + $0x5b8] sm:$0xff]
      %v362 = vld [vmem:[%s169 + $0x5c0] sm:$0xff]
      %v363 = vld [vmem:[%s169 + $0x5c8] sm:$0xff]
      %v364 = vld [vmem:[%s169 + $0x5d0] sm:$0xff]
      %v365 = vld [vmem:[%s169 + $0x5d8] sm:$0xff]
      %v366 = vld [vmem:[%s169 + $0x5e0] sm:$0xff]
      %v367 = vld [vmem:[%s169 + $0x5e8] sm:$0xff]
      %v368 = vld [vmem:[%s169 + $0x5f0] sm:$0xff]
      %v369 = vld [vmem:[%s169 + $0x5f8] sm:$0xff]
      %v370 = vld [vmem:[%s169 + $0x600] sm:$0xff]
      %v371 = vld [vmem:[%s169 + $0x608] sm:$0xff]
      %v372 = vld [vmem:[%s169 + $0x610] sm:$0xff]
      %v373 = vld [vmem:[%s169 + $0x618] sm:$0xff]
      %v374 = vld [vmem:[%s169 + $0x620] sm:$0xff]
      %v375 = vld [vmem:[%s169 + $0x628] sm:$0xff]
      %v376 = vld [vmem:[%s169 + $0x630] sm:$0xff]
      %v377 = vld [vmem:[%s169 + $0x638] sm:$0xff]
      %v378 = vld [vmem:[%s169 + $0x640] sm:$0xff]
      %v379 = vld [vmem:[%s169 + $0x648] sm:$0xff]
      %v380 = vld [vmem:[%s169 + $0x650] sm:$0xff]
      %v381 = vld [vmem:[%s169 + $0x658] sm:$0xff]
      %v382 = vld [vmem:[%s169 + $0x660] sm:$0xff]
      %v383 = vld [vmem:[%s169 + $0x668] sm:$0xff]
      %v384 = vld [vmem:[%s169 + $0x670] sm:$0xff]
      %v385 = vld [vmem:[%s169 + $0x678] sm:$0xff]
      %v386 = vld [vmem:[%s169 + $0x680] sm:$0xff]
      %v387 = vld [vmem:[%s169 + $0x688] sm:$0xff]
      %v388 = vld [vmem:[%s169 + $0x690] sm:$0xff]
      %v389 = vld [vmem:[%s169 + $0x698] sm:$0xff]
      %v390 = vld [vmem:[%s169 + $0x6a0] sm:$0xff]
      %v391 = vld [vmem:[%s169 + $0x6a8] sm:$0xff]
      %v392 = vld [vmem:[%s169 + $0x6b0] sm:$0xff]
      %v393 = vld [vmem:[%s169 + $0x6b8] sm:$0xff]
      %v394 = vld [vmem:[%s169 + $0x6c0] sm:$0xff]
      %v395 = vld [vmem:[%s169 + $0x6c8] sm:$0xff]
      %v396 = vld [vmem:[%s169 + $0x6d0] sm:$0xff]
      %v397 = vld [vmem:[%s169 + $0x6d8] sm:$0xff]
      %v398 = vld [vmem:[%s169 + $0x6e0] sm:$0xff]
      %v399 = vld [vmem:[%s169 + $0x6e8] sm:$0xff]
      %v400 = vld [vmem:[%s169 + $0x6f0] sm:$0xff]
      %v401 = vld [vmem:[%s169 + $0x6f8] sm:$0xff]
      %v402 = vld [vmem:[%s169 + $0x700] sm:$0xff]
      %v403 = vld [vmem:[%s169 + $0x708] sm:$0xff]
      %v404 = vld [vmem:[%s169 + $0x710] sm:$0xff]
      %v405 = vld [vmem:[%s169 + $0x718] sm:$0xff]
      %v406 = vld [vmem:[%s169 + $0x720] sm:$0xff]
      %v407 = vld [vmem:[%s169 + $0x728] sm:$0xff]
      %v408 = vld [vmem:[%s169 + $0x730] sm:$0xff]
      %v409 = vld [vmem:[%s169 + $0x738] sm:$0xff]
      %v410 = vld [vmem:[%s169 + $0x740] sm:$0xff]
      %v411 = vld [vmem:[%s169 + $0x748] sm:$0xff]
      %v412 = vld [vmem:[%s169 + $0x750] sm:$0xff]
      %v413 = vld [vmem:[%s169 + $0x758] sm:$0xff]
      %v414 = vld [vmem:[%s169 + $0x760] sm:$0xff]
      %v415 = vld [vmem:[%s169 + $0x768] sm:$0xff]
      %v416 = vld [vmem:[%s169 + $0x770] sm:$0xff]
      %v417 = vld [vmem:[%s169 + $0x778] sm:$0xff]
      %v418 = vld [vmem:[%s169 + $0x780] sm:$0xff]
      %v419 = vld [vmem:[%s169 + $0x788] sm:$0xff]
      %v420 = vld [vmem:[%s169 + $0x790] sm:$0xff]
      %v421 = vld [vmem:[%s169 + $0x798] sm:$0xff]
      %v422 = vld [vmem:[%s169 + $0x7a0] sm:$0xff]
      %v423 = vld [vmem:[%s169 + $0x7a8] sm:$0xff]
      %v424 = vld [vmem:[%s169 + $0x7b0] sm:$0xff]
      %v425 = vld [vmem:[%s169 + $0x7b8] sm:$0xff]
      %v426 = vld [vmem:[%s169 + $0x7c0] sm:$0xff]
      %v427 = vld [vmem:[%s169 + $0x7c8] sm:$0xff]
      %v428 = vld [vmem:[%s169 + $0x7d0] sm:$0xff]
      %v429 = vld [vmem:[%s169 + $0x7d8] sm:$0xff]
      %v430 = vld [vmem:[%s169 + $0x7e0] sm:$0xff]
      %v431 = vld [vmem:[%s169 + $0x7e8] sm:$0xff]
      %v432 = vld [vmem:[%s169 + $0x7f0] sm:$0xff]
      %v433 = vld [vmem:[%s169 + $0x7f8] sm:$0xff]
      %v434 = vld [vmem:[%s1] sm:$0xf]
      %v435 = vld [vmem:[%s1 + $0x4] sm:$0xf]
      %v436 = vld [vmem:[%s1 + $0x8] sm:$0xf]
      %v437 = vld [vmem:[%s1 + $0xc] sm:$0xf]
      %v438 = vld [vmem:[%s1 + $0x10] sm:$0xf]
      %v439 = vld [vmem:[%s1 + $0x14] sm:$0xf]
      %v440 = vld [vmem:[%s1 + $0x18] sm:$0xf]
      %v441 = vld [vmem:[%s1 + $0x1c] sm:$0xf]
      %v442 = vld [vmem:[%s1 + $0x20] sm:$0xf]
      %v443 = vld [vmem:[%s1 + $0x24] sm:$0xf]
      %v444 = vld [vmem:[%s1 + $0x28] sm:$0xf]
      %v445 = vld [vmem:[%s1 + $0x2c] sm:$0xf]
      %v446 = vld [vmem:[%s1 + $0x30] sm:$0xf]
      %v447 = vld [vmem:[%s1 + $0x34] sm:$0xf]
      %v448 = vld [vmem:[%s1 + $0x38] sm:$0xf]
      %v449 = vld [vmem:[%s1 + $0x3c] sm:$0xf]
      %v450 = vld [vmem:[%s1 + $0x40] sm:$0xf]
      %v451 = vld [vmem:[%s1 + $0x44] sm:$0xf]
      %v452 = vld [vmem:[%s1 + $0x48] sm:$0xf]
      %v453 = vld [vmem:[%s1 + $0x4c] sm:$0xf]
      %v454 = vld [vmem:[%s1 + $0x50] sm:$0xf]
      %v455 = vld [vmem:[%s1 + $0x54] sm:$0xf]
      %v456 = vld [vmem:[%s1 + $0x58] sm:$0xf]
      %v457 = vld [vmem:[%s1 + $0x5c] sm:$0xf]
      %v458 = vld [vmem:[%s1 + $0x60] sm:$0xf]
      %v459 = vld [vmem:[%s1 + $0x64] sm:$0xf]
      %v460 = vld [vmem:[%s1 + $0x68] sm:$0xf]
      %v461 = vld [vmem:[%s1 + $0x6c] sm:$0xf]
      %v462 = vld [vmem:[%s1 + $0x70] sm:$0xf]
      %v463 = vld [vmem:[%s1 + $0x74] sm:$0xf]
      %v464 = vld [vmem:[%s1 + $0x78] sm:$0xf]
      %v465 = vld [vmem:[%s1 + $0x7c] sm:$0xf]
      %v466 = vld [vmem:[%s2] sm:$0x1]
      %v468 = vlaneseq
      %v469 = vshrl.u32 %v468, 7
      %v470 = vsub.s32 0, %v469
      %v471 = vrot.slane %v466, %v470
      %v729 = vunpack.c.l.b16 %v178
      %v730 = vunpack.c.h.b16 %v178
      %v731 = vunpack.c.l.b16 %v179
      %v732 = vunpack.c.h.b16 %v179
      %v733 = vunpack.c.l.b16 %v180
      %v734 = vunpack.c.h.b16 %v180
      %v735 = vunpack.c.l.b16 %v181
      %v736 = vunpack.c.h.b16 %v181
      %v737 = vunpack.c.l.b16 %v182
      %v738 = vunpack.c.h.b16 %v182
      %v739 = vunpack.c.l.b16 %v183
      %v740 = vunpack.c.h.b16 %v183
      %v741 = vunpack.c.l.b16 %v184
      %v742 = vunpack.c.h.b16 %v184
      %v743 = vunpack.c.l.b16 %v185
      %v744 = vunpack.c.h.b16 %v185
      %v745 = vunpack.c.l.b16 %v186
      %v746 = vunpack.c.h.b16 %v186
      %v747 = vunpack.c.l.b16 %v187
      %v748 = vunpack.c.h.b16 %v187
      %v749 = vunpack.c.l.b16 %v188
      %v750 = vunpack.c.h.b16 %v188
      %v751 = vunpack.c.l.b16 %v189
      %v752 = vunpack.c.h.b16 %v189
      %v753 = vunpack.c.l.b16 %v190
      %v754 = vunpack.c.h.b16 %v190
      %v755 = vunpack.c.l.b16 %v191
      %v756 = vunpack.c.h.b16 %v191
      %v757 = vunpack.c.l.b16 %v192
      %v758 = vunpack.c.h.b16 %v192
      %v759 = vunpack.c.l.b16 %v193
      %v760 = vunpack.c.h.b16 %v193
      %v761 = vunpack.c.l.b16 %v194
      %v762 = vunpack.c.h.b16 %v194
      %v763 = vunpack.c.l.b16 %v195
      %v764 = vunpack.c.h.b16 %v195
      %v765 = vunpack.c.l.b16 %v196
      %v766 = vunpack.c.h.b16 %v196
      %v767 = vunpack.c.l.b16 %v197
      %v768 = vunpack.c.h.b16 %v197
      %v769 = vunpack.c.l.b16 %v198
      %v770 = vunpack.c.h.b16 %v198
      %v771 = vunpack.c.l.b16 %v199
      %v772 = vunpack.c.h.b16 %v199
      %v773 = vunpack.c.l.b16 %v200
      %v774 = vunpack.c.h.b16 %v200
      %v775 = vunpack.c.l.b16 %v201
      %v776 = vunpack.c.h.b16 %v201
      %v777 = vunpack.c.l.b16 %v202
      %v778 = vunpack.c.h.b16 %v202
      %v779 = vunpack.c.l.b16 %v203
      %v780 = vunpack.c.h.b16 %v203
      %v781 = vunpack.c.l.b16 %v204
      %v782 = vunpack.c.h.b16 %v204
      %v783 = vunpack.c.l.b16 %v205
      %v784 = vunpack.c.h.b16 %v205
      %v785 = vunpack.c.l.b16 %v206
      %v786 = vunpack.c.h.b16 %v206
      %v787 = vunpack.c.l.b16 %v207
      %v788 = vunpack.c.h.b16 %v207
      %v789 = vunpack.c.l.b16 %v208
      %v790 = vunpack.c.h.b16 %v208
      %v791 = vunpack.c.l.b16 %v209
      %v792 = vunpack.c.h.b16 %v209
      %v793 = vunpack.c.l.b16 %v210
      %v794 = vunpack.c.h.b16 %v210
      %v795 = vunpack.c.l.b16 %v211
      %v796 = vunpack.c.h.b16 %v211
      %v797 = vunpack.c.l.b16 %v212
      %v798 = vunpack.c.h.b16 %v212
      %v799 = vunpack.c.l.b16 %v213
      %v800 = vunpack.c.h.b16 %v213
      %v801 = vunpack.c.l.b16 %v214
      %v802 = vunpack.c.h.b16 %v214
      %v803 = vunpack.c.l.b16 %v215
      %v804 = vunpack.c.h.b16 %v215
      %v805 = vunpack.c.l.b16 %v216
      %v806 = vunpack.c.h.b16 %v216
      %v807 = vunpack.c.l.b16 %v217
      %v808 = vunpack.c.h.b16 %v217
      %v809 = vunpack.c.l.b16 %v218
      %v810 = vunpack.c.h.b16 %v218
      %v811 = vunpack.c.l.b16 %v219
      %v812 = vunpack.c.h.b16 %v219
      %v813 = vunpack.c.l.b16 %v220
      %v814 = vunpack.c.h.b16 %v220
      %v815 = vunpack.c.l.b16 %v221
      %v816 = vunpack.c.h.b16 %v221
      %v817 = vunpack.c.l.b16 %v222
      %v818 = vunpack.c.h.b16 %v222
      %v819 = vunpack.c.l.b16 %v223
      %v820 = vunpack.c.h.b16 %v223
      %v821 = vunpack.c.l.b16 %v224
      %v822 = vunpack.c.h.b16 %v224
      %v823 = vunpack.c.l.b16 %v225
      %v824 = vunpack.c.h.b16 %v225
      %v825 = vunpack.c.l.b16 %v226
      %v826 = vunpack.c.h.b16 %v226
      %v827 = vunpack.c.l.b16 %v227
      %v828 = vunpack.c.h.b16 %v227
      %v829 = vunpack.c.l.b16 %v228
      %v830 = vunpack.c.h.b16 %v228
      %v831 = vunpack.c.l.b16 %v229
      %v832 = vunpack.c.h.b16 %v229
      %v833 = vunpack.c.l.b16 %v230
      %v834 = vunpack.c.h.b16 %v230
      %v835 = vunpack.c.l.b16 %v231
      %v836 = vunpack.c.h.b16 %v231
      %v837 = vunpack.c.l.b16 %v232
      %v838 = vunpack.c.h.b16 %v232
      %v839 = vunpack.c.l.b16 %v233
      %v840 = vunpack.c.h.b16 %v233
      %v841 = vunpack.c.l.b16 %v234
      %v842 = vunpack.c.h.b16 %v234
      %v843 = vunpack.c.l.b16 %v235
      %v844 = vunpack.c.h.b16 %v235
      %v845 = vunpack.c.l.b16 %v236
      %v846 = vunpack.c.h.b16 %v236
      %v847 = vunpack.c.l.b16 %v237
      %v848 = vunpack.c.h.b16 %v237
      %v849 = vunpack.c.l.b16 %v238
      %v850 = vunpack.c.h.b16 %v238
      %v851 = vunpack.c.l.b16 %v239
      %v852 = vunpack.c.h.b16 %v239
      %v853 = vunpack.c.l.b16 %v240
      %v854 = vunpack.c.h.b16 %v240
      %v855 = vunpack.c.l.b16 %v241
      %v856 = vunpack.c.h.b16 %v241
      %v857 = vunpack.c.l.b16 %v242
      %v858 = vunpack.c.h.b16 %v242
      %v859 = vunpack.c.l.b16 %v243
      %v860 = vunpack.c.h.b16 %v243
      %v861 = vunpack.c.l.b16 %v244
      %v862 = vunpack.c.h.b16 %v244
      %v863 = vunpack.c.l.b16 %v245
      %v864 = vunpack.c.h.b16 %v245
      %v865 = vunpack.c.l.b16 %v246
      %v866 = vunpack.c.h.b16 %v246
      %v867 = vunpack.c.l.b16 %v247
      %v868 = vunpack.c.h.b16 %v247
      %v869 = vunpack.c.l.b16 %v248
      %v870 = vunpack.c.h.b16 %v248
      %v871 = vunpack.c.l.b16 %v249
      %v872 = vunpack.c.h.b16 %v249
      %v873 = vunpack.c.l.b16 %v250
      %v874 = vunpack.c.h.b16 %v250
      %v875 = vunpack.c.l.b16 %v251
      %v876 = vunpack.c.h.b16 %v251
      %v877 = vunpack.c.l.b16 %v252
      %v878 = vunpack.c.h.b16 %v252
      %v879 = vunpack.c.l.b16 %v253
      %v880 = vunpack.c.h.b16 %v253
      %v881 = vunpack.c.l.b16 %v254
      %v882 = vunpack.c.h.b16 %v254
      %v883 = vunpack.c.l.b16 %v255
      %v884 = vunpack.c.h.b16 %v255
      %v885 = vunpack.c.l.b16 %v256
      %v886 = vunpack.c.h.b16 %v256
      %v887 = vunpack.c.l.b16 %v257
      %v888 = vunpack.c.h.b16 %v257
      %v889 = vunpack.c.l.b16 %v258
      %v890 = vunpack.c.h.b16 %v258
      %v891 = vunpack.c.l.b16 %v259
      %v892 = vunpack.c.h.b16 %v259
      %v893 = vunpack.c.l.b16 %v260
      %v894 = vunpack.c.h.b16 %v260
      %v895 = vunpack.c.l.b16 %v261
      %v896 = vunpack.c.h.b16 %v261
      %v897 = vunpack.c.l.b16 %v262
      %v898 = vunpack.c.h.b16 %v262
      %v899 = vunpack.c.l.b16 %v263
      %v900 = vunpack.c.h.b16 %v263
      %v901 = vunpack.c.l.b16 %v264
      %v902 = vunpack.c.h.b16 %v264
      %v903 = vunpack.c.l.b16 %v265
      %v904 = vunpack.c.h.b16 %v265
      %v905 = vunpack.c.l.b16 %v266
      %v906 = vunpack.c.h.b16 %v266
      %v907 = vunpack.c.l.b16 %v267
      %v908 = vunpack.c.h.b16 %v267
      %v909 = vunpack.c.l.b16 %v268
      %v910 = vunpack.c.h.b16 %v268
      %v911 = vunpack.c.l.b16 %v269
      %v912 = vunpack.c.h.b16 %v269
      %v913 = vunpack.c.l.b16 %v270
      %v914 = vunpack.c.h.b16 %v270
      %v915 = vunpack.c.l.b16 %v271
      %v916 = vunpack.c.h.b16 %v271
      %v917 = vunpack.c.l.b16 %v272
      %v918 = vunpack.c.h.b16 %v272
      %v919 = vunpack.c.l.b16 %v273
      %v920 = vunpack.c.h.b16 %v273
      %v921 = vunpack.c.l.b16 %v274
      %v922 = vunpack.c.h.b16 %v274
      %v923 = vunpack.c.l.b16 %v275
      %v924 = vunpack.c.h.b16 %v275
      %v925 = vunpack.c.l.b16 %v276
      %v926 = vunpack.c.h.b16 %v276
      %v927 = vunpack.c.l.b16 %v277
      %v928 = vunpack.c.h.b16 %v277
      %v929 = vunpack.c.l.b16 %v278
      %v930 = vunpack.c.h.b16 %v278
      %v931 = vunpack.c.l.b16 %v279
      %v932 = vunpack.c.h.b16 %v279
      %v933 = vunpack.c.l.b16 %v280
      %v934 = vunpack.c.h.b16 %v280
      %v935 = vunpack.c.l.b16 %v281
      %v936 = vunpack.c.h.b16 %v281
      %v937 = vunpack.c.l.b16 %v282
      %v938 = vunpack.c.h.b16 %v282
      %v939 = vunpack.c.l.b16 %v283
      %v940 = vunpack.c.h.b16 %v283
      %v941 = vunpack.c.l.b16 %v284
      %v942 = vunpack.c.h.b16 %v284
      %v943 = vunpack.c.l.b16 %v285
      %v944 = vunpack.c.h.b16 %v285
      %v945 = vunpack.c.l.b16 %v286
      %v946 = vunpack.c.h.b16 %v286
      %v947 = vunpack.c.l.b16 %v287
      %v948 = vunpack.c.h.b16 %v287
      %v949 = vunpack.c.l.b16 %v288
      %v950 = vunpack.c.h.b16 %v288
      %v951 = vunpack.c.l.b16 %v289
      %v952 = vunpack.c.h.b16 %v289
      %v953 = vunpack.c.l.b16 %v290
      %v954 = vunpack.c.h.b16 %v290
      %v955 = vunpack.c.l.b16 %v291
      %v956 = vunpack.c.h.b16 %v291
      %v957 = vunpack.c.l.b16 %v292
      %v958 = vunpack.c.h.b16 %v292
      %v959 = vunpack.c.l.b16 %v293
      %v960 = vunpack.c.h.b16 %v293
      %v961 = vunpack.c.l.b16 %v294
      %v962 = vunpack.c.h.b16 %v294
      %v963 = vunpack.c.l.b16 %v295
      %v964 = vunpack.c.h.b16 %v295
      %v965 = vunpack.c.l.b16 %v296
      %v966 = vunpack.c.h.b16 %v296
      %v967 = vunpack.c.l.b16 %v297
      %v968 = vunpack.c.h.b16 %v297
      %v969 = vunpack.c.l.b16 %v298
      %v970 = vunpack.c.h.b16 %v298
      %v971 = vunpack.c.l.b16 %v299
      %v972 = vunpack.c.h.b16 %v299
      %v973 = vunpack.c.l.b16 %v300
      %v974 = vunpack.c.h.b16 %v300
      %v975 = vunpack.c.l.b16 %v301
      %v976 = vunpack.c.h.b16 %v301
      %v977 = vunpack.c.l.b16 %v302
      %v978 = vunpack.c.h.b16 %v302
      %v979 = vunpack.c.l.b16 %v303
      %v980 = vunpack.c.h.b16 %v303
      %v981 = vunpack.c.l.b16 %v304
      %v982 = vunpack.c.h.b16 %v304
      %v983 = vunpack.c.l.b16 %v305
      %v984 = vunpack.c.h.b16 %v305
      %v985 = vunpack.c.l.b16 %v306
      %v986 = vunpack.c.h.b16 %v306
      %v987 = vunpack.c.l.b16 %v307
      %v988 = vunpack.c.h.b16 %v307
      %v989 = vunpack.c.l.b16 %v308
      %v990 = vunpack.c.h.b16 %v308
      %v991 = vunpack.c.l.b16 %v309
      %v992 = vunpack.c.h.b16 %v309
      %v993 = vunpack.c.l.b16 %v310
      %v994 = vunpack.c.h.b16 %v310
      %v995 = vunpack.c.l.b16 %v311
      %v996 = vunpack.c.h.b16 %v311
      %v997 = vunpack.c.l.b16 %v312
      %v998 = vunpack.c.h.b16 %v312
      %v999 = vunpack.c.l.b16 %v313
      %v1000 = vunpack.c.h.b16 %v313
      %v1001 = vunpack.c.l.b16 %v314
      %v1002 = vunpack.c.h.b16 %v314
      %v1003 = vunpack.c.l.b16 %v315
      %v1004 = vunpack.c.h.b16 %v315
      %v1005 = vunpack.c.l.b16 %v316
      %v1006 = vunpack.c.h.b16 %v316
      %v1007 = vunpack.c.l.b16 %v317
      %v1008 = vunpack.c.h.b16 %v317
      %v1009 = vunpack.c.l.b16 %v318
      %v1010 = vunpack.c.h.b16 %v318
      %v1011 = vunpack.c.l.b16 %v319
      %v1012 = vunpack.c.h.b16 %v319
      %v1013 = vunpack.c.l.b16 %v320
      %v1014 = vunpack.c.h.b16 %v320
      %v1015 = vunpack.c.l.b16 %v321
      %v1016 = vunpack.c.h.b16 %v321
      %v1017 = vunpack.c.l.b16 %v322
      %v1018 = vunpack.c.h.b16 %v322
      %v1019 = vunpack.c.l.b16 %v323
      %v1020 = vunpack.c.h.b16 %v323
      %v1021 = vunpack.c.l.b16 %v324
      %v1022 = vunpack.c.h.b16 %v324
      %v1023 = vunpack.c.l.b16 %v325
      %v1024 = vunpack.c.h.b16 %v325
      %v1025 = vunpack.c.l.b16 %v326
      %v1026 = vunpack.c.h.b16 %v326
      %v1027 = vunpack.c.l.b16 %v327
      %v1028 = vunpack.c.h.b16 %v327
      %v1029 = vunpack.c.l.b16 %v328
      %v1030 = vunpack.c.h.b16 %v328
      %v1031 = vunpack.c.l.b16 %v329
      %v1032 = vunpack.c.h.b16 %v329
      %v1033 = vunpack.c.l.b16 %v330
      %v1034 = vunpack.c.h.b16 %v330
      %v1035 = vunpack.c.l.b16 %v331
      %v1036 = vunpack.c.h.b16 %v331
      %v1037 = vunpack.c.l.b16 %v332
      %v1038 = vunpack.c.h.b16 %v332
      %v1039 = vunpack.c.l.b16 %v333
      %v1040 = vunpack.c.h.b16 %v333
      %v1041 = vunpack.c.l.b16 %v334
      %v1042 = vunpack.c.h.b16 %v334
      %v1043 = vunpack.c.l.b16 %v335
      %v1044 = vunpack.c.h.b16 %v335
      %v1045 = vunpack.c.l.b16 %v336
      %v1046 = vunpack.c.h.b16 %v336
      %v1047 = vunpack.c.l.b16 %v337
      %v1048 = vunpack.c.h.b16 %v337
      %v1049 = vunpack.c.l.b16 %v338
      %v1050 = vunpack.c.h.b16 %v338
      %v1051 = vunpack.c.l.b16 %v339
      %v1052 = vunpack.c.h.b16 %v339
      %v1053 = vunpack.c.l.b16 %v340
      %v1054 = vunpack.c.h.b16 %v340
      %v1055 = vunpack.c.l.b16 %v341
      %v1056 = vunpack.c.h.b16 %v341
      %v1057 = vunpack.c.l.b16 %v342
      %v1058 = vunpack.c.h.b16 %v342
      %v1059 = vunpack.c.l.b16 %v343
      %v1060 = vunpack.c.h.b16 %v343
      %v1061 = vunpack.c.l.b16 %v344
      %v1062 = vunpack.c.h.b16 %v344
      %v1063 = vunpack.c.l.b16 %v345
      %v1064 = vunpack.c.h.b16 %v345
      %v1065 = vunpack.c.l.b16 %v346
      %v1066 = vunpack.c.h.b16 %v346
      %v1067 = vunpack.c.l.b16 %v347
      %v1068 = vunpack.c.h.b16 %v347
      %v1069 = vunpack.c.l.b16 %v348
      %v1070 = vunpack.c.h.b16 %v348
      %v1071 = vunpack.c.l.b16 %v349
      %v1072 = vunpack.c.h.b16 %v349
      %v1073 = vunpack.c.l.b16 %v350
      %v1074 = vunpack.c.h.b16 %v350
      %v1075 = vunpack.c.l.b16 %v351
      %v1076 = vunpack.c.h.b16 %v351
      %v1077 = vunpack.c.l.b16 %v352
      %v1078 = vunpack.c.h.b16 %v352
      %v1079 = vunpack.c.l.b16 %v353
      %v1080 = vunpack.c.h.b16 %v353
      %v1081 = vunpack.c.l.b16 %v354
      %v1082 = vunpack.c.h.b16 %v354
      %v1083 = vunpack.c.l.b16 %v355
      %v1084 = vunpack.c.h.b16 %v355
      %v1085 = vunpack.c.l.b16 %v356
      %v1086 = vunpack.c.h.b16 %v356
      %v1087 = vunpack.c.l.b16 %v357
      %v1088 = vunpack.c.h.b16 %v357
      %v1089 = vunpack.c.l.b16 %v358
      %v1090 = vunpack.c.h.b16 %v358
      %v1091 = vunpack.c.l.b16 %v359
      %v1092 = vunpack.c.h.b16 %v359
      %v1093 = vunpack.c.l.b16 %v360
      %v1094 = vunpack.c.h.b16 %v360
      %v1095 = vunpack.c.l.b16 %v361
      %v1096 = vunpack.c.h.b16 %v361
      %v1097 = vunpack.c.l.b16 %v362
      %v1098 = vunpack.c.h.b16 %v362
      %v1099 = vunpack.c.l.b16 %v363
      %v1100 = vunpack.c.h.b16 %v363
      %v1101 = vunpack.c.l.b16 %v364
      %v1102 = vunpack.c.h.b16 %v364
      %v1103 = vunpack.c.l.b16 %v365
      %v1104 = vunpack.c.h.b16 %v365
      %v1105 = vunpack.c.l.b16 %v366
      %v1106 = vunpack.c.h.b16 %v366
      %v1107 = vunpack.c.l.b16 %v367
      %v1108 = vunpack.c.h.b16 %v367
      %v1109 = vunpack.c.l.b16 %v368
      %v1110 = vunpack.c.h.b16 %v368
      %v1111 = vunpack.c.l.b16 %v369
      %v1112 = vunpack.c.h.b16 %v369
      %v1113 = vunpack.c.l.b16 %v370
      %v1114 = vunpack.c.h.b16 %v370
      %v1115 = vunpack.c.l.b16 %v371
      %v1116 = vunpack.c.h.b16 %v371
      %v1117 = vunpack.c.l.b16 %v372
      %v1118 = vunpack.c.h.b16 %v372
      %v1119 = vunpack.c.l.b16 %v373
      %v1120 = vunpack.c.h.b16 %v373
      %v1121 = vunpack.c.l.b16 %v374
      %v1122 = vunpack.c.h.b16 %v374
      %v1123 = vunpack.c.l.b16 %v375
      %v1124 = vunpack.c.h.b16 %v375
      %v1125 = vunpack.c.l.b16 %v376
      %v1126 = vunpack.c.h.b16 %v376
      %v1127 = vunpack.c.l.b16 %v377
      %v1128 = vunpack.c.h.b16 %v377
      %v1129 = vunpack.c.l.b16 %v378
      %v1130 = vunpack.c.h.b16 %v378
      %v1131 = vunpack.c.l.b16 %v379
      %v1132 = vunpack.c.h.b16 %v379
      %v1133 = vunpack.c.l.b16 %v380
      %v1134 = vunpack.c.h.b16 %v380
      %v1135 = vunpack.c.l.b16 %v381
      %v1136 = vunpack.c.h.b16 %v381
      %v1137 = vunpack.c.l.b16 %v382
      %v1138 = vunpack.c.h.b16 %v382
      %v1139 = vunpack.c.l.b16 %v383
      %v1140 = vunpack.c.h.b16 %v383
      %v1141 = vunpack.c.l.b16 %v384
      %v1142 = vunpack.c.h.b16 %v384
      %v1143 = vunpack.c.l.b16 %v385
      %v1144 = vunpack.c.h.b16 %v385
      %v1145 = vunpack.c.l.b16 %v386
      %v1146 = vunpack.c.h.b16 %v386
      %v1147 = vunpack.c.l.b16 %v387
      %v1148 = vunpack.c.h.b16 %v387
      %v1149 = vunpack.c.l.b16 %v388
      %v1150 = vunpack.c.h.b16 %v388
      %v1151 = vunpack.c.l.b16 %v389
      %v1152 = vunpack.c.h.b16 %v389
      %v1153 = vunpack.c.l.b16 %v390
      %v1154 = vunpack.c.h.b16 %v390
      %v1155 = vunpack.c.l.b16 %v391
      %v1156 = vunpack.c.h.b16 %v391
      %v1157 = vunpack.c.l.b16 %v392
      %v1158 = vunpack.c.h.b16 %v392
      %v1159 = vunpack.c.l.b16 %v393
      %v1160 = vunpack.c.h.b16 %v393
      %v1161 = vunpack.c.l.b16 %v394
      %v1162 = vunpack.c.h.b16 %v394
      %v1163 = vunpack.c.l.b16 %v395
      %v1164 = vunpack.c.h.b16 %v395
      %v1165 = vunpack.c.l.b16 %v396
      %v1166 = vunpack.c.h.b16 %v396
      %v1167 = vunpack.c.l.b16 %v397
      %v1168 = vunpack.c.h.b16 %v397
      %v1169 = vunpack.c.l.b16 %v398
      %v1170 = vunpack.c.h.b16 %v398
      %v1171 = vunpack.c.l.b16 %v399
      %v1172 = vunpack.c.h.b16 %v399
      %v1173 = vunpack.c.l.b16 %v400
      %v1174 = vunpack.c.h.b16 %v400
      %v1175 = vunpack.c.l.b16 %v401
      %v1176 = vunpack.c.h.b16 %v401
      %v1177 = vunpack.c.l.b16 %v402
      %v1178 = vunpack.c.h.b16 %v402
      %v1179 = vunpack.c.l.b16 %v403
      %v1180 = vunpack.c.h.b16 %v403
      %v1181 = vunpack.c.l.b16 %v404
      %v1182 = vunpack.c.h.b16 %v404
      %v1183 = vunpack.c.l.b16 %v405
      %v1184 = vunpack.c.h.b16 %v405
      %v1185 = vunpack.c.l.b16 %v406
      %v1186 = vunpack.c.h.b16 %v406
      %v1187 = vunpack.c.l.b16 %v407
      %v1188 = vunpack.c.h.b16 %v407
      %v1189 = vunpack.c.l.b16 %v408
      %v1190 = vunpack.c.h.b16 %v408
      %v1191 = vunpack.c.l.b16 %v409
      %v1192 = vunpack.c.h.b16 %v409
      %v1193 = vunpack.c.l.b16 %v410
      %v1194 = vunpack.c.h.b16 %v410
      %v1195 = vunpack.c.l.b16 %v411
      %v1196 = vunpack.c.h.b16 %v411
      %v1197 = vunpack.c.l.b16 %v412
      %v1198 = vunpack.c.h.b16 %v412
      %v1199 = vunpack.c.l.b16 %v413
      %v1200 = vunpack.c.h.b16 %v413
      %v1201 = vunpack.c.l.b16 %v414
      %v1202 = vunpack.c.h.b16 %v414
      %v1203 = vunpack.c.l.b16 %v415
      %v1204 = vunpack.c.h.b16 %v415
      %v1205 = vunpack.c.l.b16 %v416
      %v1206 = vunpack.c.h.b16 %v416
      %v1207 = vunpack.c.l.b16 %v417
      %v1208 = vunpack.c.h.b16 %v417
      %v1209 = vunpack.c.l.b16 %v418
      %v1210 = vunpack.c.h.b16 %v418
      %v1211 = vunpack.c.l.b16 %v419
      %v1212 = vunpack.c.h.b16 %v419
      %v1213 = vunpack.c.l.b16 %v420
      %v1214 = vunpack.c.h.b16 %v420
      %v1215 = vunpack.c.l.b16 %v421
      %v1216 = vunpack.c.h.b16 %v421
      %v1217 = vunpack.c.l.b16 %v422
      %v1218 = vunpack.c.h.b16 %v422
      %v1219 = vunpack.c.l.b16 %v423
      %v1220 = vunpack.c.h.b16 %v423
      %v1221 = vunpack.c.l.b16 %v424
      %v1222 = vunpack.c.h.b16 %v424
      %v1223 = vunpack.c.l.b16 %v425
      %v1224 = vunpack.c.h.b16 %v425
      %v1225 = vunpack.c.l.b16 %v426
      %v1226 = vunpack.c.h.b16 %v426
      %v1227 = vunpack.c.l.b16 %v427
      %v1228 = vunpack.c.h.b16 %v427
      %v1229 = vunpack.c.l.b16 %v428
      %v1230 = vunpack.c.h.b16 %v428
      %v1231 = vunpack.c.l.b16 %v429
      %v1232 = vunpack.c.h.b16 %v429
      %v1233 = vunpack.c.l.b16 %v430
      %v1234 = vunpack.c.h.b16 %v430
      %v1235 = vunpack.c.l.b16 %v431
      %v1236 = vunpack.c.h.b16 %v431
      %v1237 = vunpack.c.l.b16 %v432
      %v1238 = vunpack.c.h.b16 %v432
      %v1239 = vunpack.c.l.b16 %v433
      %v1240 = vunpack.c.h.b16 %v433
      %v1241 = vpack.c.b16 %v731, %v729
      %v1242 = vpack.c.b16 %v732, %v730
      %v1243 = vpack.c.b16 %v735, %v733
      %v1244 = vpack.c.b16 %v736, %v734
      %v1245 = vpack.c.b16 %v739, %v737
      %v1246 = vpack.c.b16 %v740, %v738
      %v1247 = vpack.c.b16 %v743, %v741
      %v1248 = vpack.c.b16 %v744, %v742
      %v1249 = vpack.c.b16 %v747, %v745
      %v1250 = vpack.c.b16 %v748, %v746
      %v1251 = vpack.c.b16 %v751, %v749
      %v1252 = vpack.c.b16 %v752, %v750
      %v1253 = vpack.c.b16 %v755, %v753
      %v1254 = vpack.c.b16 %v756, %v754
      %v1255 = vpack.c.b16 %v759, %v757
      %v1256 = vpack.c.b16 %v760, %v758
      %v1257 = vpack.c.b16 %v763, %v761
      %v1258 = vpack.c.b16 %v764, %v762
      %v1259 = vpack.c.b16 %v767, %v765
      %v1260 = vpack.c.b16 %v768, %v766
      %v1261 = vpack.c.b16 %v771, %v769
      %v1262 = vpack.c.b16 %v772, %v770
      %v1263 = vpack.c.b16 %v775, %v773
      %v1264 = vpack.c.b16 %v776, %v774
      %v1265 = vpack.c.b16 %v779, %v777
      %v1266 = vpack.c.b16 %v780, %v778
      %v1267 = vpack.c.b16 %v783, %v781
      %v1268 = vpack.c.b16 %v784, %v782
      %v1269 = vpack.c.b16 %v787, %v785
      %v1270 = vpack.c.b16 %v788, %v786
      %v1271 = vpack.c.b16 %v791, %v789
      %v1272 = vpack.c.b16 %v792, %v790
      %v1273 = vpack.c.b16 %v795, %v793
      %v1274 = vpack.c.b16 %v796, %v794
      %v1275 = vpack.c.b16 %v799, %v797
      %v1276 = vpack.c.b16 %v800, %v798
      %v1277 = vpack.c.b16 %v803, %v801
      %v1278 = vpack.c.b16 %v804, %v802
      %v1279 = vpack.c.b16 %v807, %v805
      %v1280 = vpack.c.b16 %v808, %v806
      %v1281 = vpack.c.b16 %v811, %v809
      %v1282 = vpack.c.b16 %v812, %v810
      %v1283 = vpack.c.b16 %v815, %v813
      %v1284 = vpack.c.b16 %v816, %v814
      %v1285 = vpack.c.b16 %v819, %v817
      %v1286 = vpack.c.b16 %v820, %v818
      %v1287 = vpack.c.b16 %v823, %v821
      %v1288 = vpack.c.b16 %v824, %v822
      %v1289 = vpack.c.b16 %v827, %v825
      %v1290 = vpack.c.b16 %v828, %v826
      %v1291 = vpack.c.b16 %v831, %v829
      %v1292 = vpack.c.b16 %v832, %v830
      %v1293 = vpack.c.b16 %v835, %v833
      %v1294 = vpack.c.b16 %v836, %v834
      %v1295 = vpack.c.b16 %v839, %v837
      %v1296 = vpack.c.b16 %v840, %v838
      %v1297 = vpack.c.b16 %v843, %v841
      %v1298 = vpack.c.b16 %v844, %v842
      %v1299 = vpack.c.b16 %v847, %v845
      %v1300 = vpack.c.b16 %v848, %v846
      %v1301 = vpack.c.b16 %v851, %v849
      %v1302 = vpack.c.b16 %v852, %v850
      %v1303 = vpack.c.b16 %v855, %v853
      %v1304 = vpack.c.b16 %v856, %v854
      %v1305 = vpack.c.b16 %v859, %v857
      %v1306 = vpack.c.b16 %v860, %v858
      %v1307 = vpack.c.b16 %v863, %v861
      %v1308 = vpack.c.b16 %v864, %v862
      %v1309 = vpack.c.b16 %v867, %v865
      %v1310 = vpack.c.b16 %v868, %v866
      %v1311 = vpack.c.b16 %v871, %v869
      %v1312 = vpack.c.b16 %v872, %v870
      %v1313 = vpack.c.b16 %v875, %v873
      %v1314 = vpack.c.b16 %v876, %v874
      %v1315 = vpack.c.b16 %v879, %v877
      %v1316 = vpack.c.b16 %v880, %v878
      %v1317 = vpack.c.b16 %v883, %v881
      %v1318 = vpack.c.b16 %v884, %v882
      %v1319 = vpack.c.b16 %v887, %v885
      %v1320 = vpack.c.b16 %v888, %v886
      %v1321 = vpack.c.b16 %v891, %v889
      %v1322 = vpack.c.b16 %v892, %v890
      %v1323 = vpack.c.b16 %v895, %v893
      %v1324 = vpack.c.b16 %v896, %v894
      %v1325 = vpack.c.b16 %v899, %v897
      %v1326 = vpack.c.b16 %v900, %v898
      %v1327 = vpack.c.b16 %v903, %v901
      %v1328 = vpack.c.b16 %v904, %v902
      %v1329 = vpack.c.b16 %v907, %v905
      %v1330 = vpack.c.b16 %v908, %v906
      %v1331 = vpack.c.b16 %v911, %v909
      %v1332 = vpack.c.b16 %v912, %v910
      %v1333 = vpack.c.b16 %v915, %v913
      %v1334 = vpack.c.b16 %v916, %v914
      %v1335 = vpack.c.b16 %v919, %v917
      %v1336 = vpack.c.b16 %v920, %v918
      %v1337 = vpack.c.b16 %v923, %v921
      %v1338 = vpack.c.b16 %v924, %v922
      %v1339 = vpack.c.b16 %v927, %v925
      %v1340 = vpack.c.b16 %v928, %v926
      %v1341 = vpack.c.b16 %v931, %v929
      %v1342 = vpack.c.b16 %v932, %v930
      %v1343 = vpack.c.b16 %v935, %v933
      %v1344 = vpack.c.b16 %v936, %v934
      %v1345 = vpack.c.b16 %v939, %v937
      %v1346 = vpack.c.b16 %v940, %v938
      %v1347 = vpack.c.b16 %v943, %v941
      %v1348 = vpack.c.b16 %v944, %v942
      %v1349 = vpack.c.b16 %v947, %v945
      %v1350 = vpack.c.b16 %v948, %v946
      %v1351 = vpack.c.b16 %v951, %v949
      %v1352 = vpack.c.b16 %v952, %v950
      %v1353 = vpack.c.b16 %v955, %v953
      %v1354 = vpack.c.b16 %v956, %v954
      %v1355 = vpack.c.b16 %v959, %v957
      %v1356 = vpack.c.b16 %v960, %v958
      %v1357 = vpack.c.b16 %v963, %v961
      %v1358 = vpack.c.b16 %v964, %v962
      %v1359 = vpack.c.b16 %v967, %v965
      %v1360 = vpack.c.b16 %v968, %v966
      %v1361 = vpack.c.b16 %v971, %v969
      %v1362 = vpack.c.b16 %v972, %v970
      %v1363 = vpack.c.b16 %v975, %v973
      %v1364 = vpack.c.b16 %v976, %v974
      %v1365 = vpack.c.b16 %v979, %v977
      %v1366 = vpack.c.b16 %v980, %v978
      %v1367 = vpack.c.b16 %v983, %v981
      %v1368 = vpack.c.b16 %v984, %v982
      %v1369 = vpack.c.b16 %v987, %v985
      %v1370 = vpack.c.b16 %v988, %v986
      %v1371 = vpack.c.b16 %v991, %v989
      %v1372 = vpack.c.b16 %v992, %v990
      %v1373 = vpack.c.b16 %v995, %v993
      %v1374 = vpack.c.b16 %v996, %v994
      %v1375 = vpack.c.b16 %v999, %v997
      %v1376 = vpack.c.b16 %v1000, %v998
      %v1377 = vpack.c.b16 %v1003, %v1001
      %v1378 = vpack.c.b16 %v1004, %v1002
      %v1379 = vpack.c.b16 %v1007, %v1005
      %v1380 = vpack.c.b16 %v1008, %v1006
      %v1381 = vpack.c.b16 %v1011, %v1009
      %v1382 = vpack.c.b16 %v1012, %v1010
      %v1383 = vpack.c.b16 %v1015, %v1013
      %v1384 = vpack.c.b16 %v1016, %v1014
      %v1385 = vpack.c.b16 %v1019, %v1017
      %v1386 = vpack.c.b16 %v1020, %v1018
      %v1387 = vpack.c.b16 %v1023, %v1021
      %v1388 = vpack.c.b16 %v1024, %v1022
      %v1389 = vpack.c.b16 %v1027, %v1025
      %v1390 = vpack.c.b16 %v1028, %v1026
      %v1391 = vpack.c.b16 %v1031, %v1029
      %v1392 = vpack.c.b16 %v1032, %v1030
      %v1393 = vpack.c.b16 %v1035, %v1033
      %v1394 = vpack.c.b16 %v1036, %v1034
      %v1395 = vpack.c.b16 %v1039, %v1037
      %v1396 = vpack.c.b16 %v1040, %v1038
      %v1397 = vpack.c.b16 %v1043, %v1041
      %v1398 = vpack.c.b16 %v1044, %v1042
      %v1399 = vpack.c.b16 %v1047, %v1045
      %v1400 = vpack.c.b16 %v1048, %v1046
      %v1401 = vpack.c.b16 %v1051, %v1049
      %v1402 = vpack.c.b16 %v1052, %v1050
      %v1403 = vpack.c.b16 %v1055, %v1053
      %v1404 = vpack.c.b16 %v1056, %v1054
      %v1405 = vpack.c.b16 %v1059, %v1057
      %v1406 = vpack.c.b16 %v1060, %v1058
      %v1407 = vpack.c.b16 %v1063, %v1061
      %v1408 = vpack.c.b16 %v1064, %v1062
      %v1409 = vpack.c.b16 %v1067, %v1065
      %v1410 = vpack.c.b16 %v1068, %v1066
      %v1411 = vpack.c.b16 %v1071, %v1069
      %v1412 = vpack.c.b16 %v1072, %v1070
      %v1413 = vpack.c.b16 %v1075, %v1073
      %v1414 = vpack.c.b16 %v1076, %v1074
      %v1415 = vpack.c.b16 %v1079, %v1077
      %v1416 = vpack.c.b16 %v1080, %v1078
      %v1417 = vpack.c.b16 %v1083, %v1081
      %v1418 = vpack.c.b16 %v1084, %v1082
      %v1419 = vpack.c.b16 %v1087, %v1085
      %v1420 = vpack.c.b16 %v1088, %v1086
      %v1421 = vpack.c.b16 %v1091, %v1089
      %v1422 = vpack.c.b16 %v1092, %v1090
      %v1423 = vpack.c.b16 %v1095, %v1093
      %v1424 = vpack.c.b16 %v1096, %v1094
      %v1425 = vpack.c.b16 %v1099, %v1097
      %v1426 = vpack.c.b16 %v1100, %v1098
      %v1427 = vpack.c.b16 %v1103, %v1101
      %v1428 = vpack.c.b16 %v1104, %v1102
      %v1429 = vpack.c.b16 %v1107, %v1105
      %v1430 = vpack.c.b16 %v1108, %v1106
      %v1431 = vpack.c.b16 %v1111, %v1109
      %v1432 = vpack.c.b16 %v1112, %v1110
      %v1433 = vpack.c.b16 %v1115, %v1113
      %v1434 = vpack.c.b16 %v1116, %v1114
      %v1435 = vpack.c.b16 %v1119, %v1117
      %v1436 = vpack.c.b16 %v1120, %v1118
      %v1437 = vpack.c.b16 %v1123, %v1121
      %v1438 = vpack.c.b16 %v1124, %v1122
      %v1439 = vpack.c.b16 %v1127, %v1125
      %v1440 = vpack.c.b16 %v1128, %v1126
      %v1441 = vpack.c.b16 %v1131, %v1129
      %v1442 = vpack.c.b16 %v1132, %v1130
      %v1443 = vpack.c.b16 %v1135, %v1133
      %v1444 = vpack.c.b16 %v1136, %v1134
      %v1445 = vpack.c.b16 %v1139, %v1137
      %v1446 = vpack.c.b16 %v1140, %v1138
      %v1447 = vpack.c.b16 %v1143, %v1141
      %v1448 = vpack.c.b16 %v1144, %v1142
      %v1449 = vpack.c.b16 %v1147, %v1145
      %v1450 = vpack.c.b16 %v1148, %v1146
      %v1451 = vpack.c.b16 %v1151, %v1149
      %v1452 = vpack.c.b16 %v1152, %v1150
      %v1453 = vpack.c.b16 %v1155, %v1153
      %v1454 = vpack.c.b16 %v1156, %v1154
      %v1455 = vpack.c.b16 %v1159, %v1157
      %v1456 = vpack.c.b16 %v1160, %v1158
      %v1457 = vpack.c.b16 %v1163, %v1161
      %v1458 = vpack.c.b16 %v1164, %v1162
      %v1459 = vpack.c.b16 %v1167, %v1165
      %v1460 = vpack.c.b16 %v1168, %v1166
      %v1461 = vpack.c.b16 %v1171, %v1169
      %v1462 = vpack.c.b16 %v1172, %v1170
      %v1463 = vpack.c.b16 %v1175, %v1173
      %v1464 = vpack.c.b16 %v1176, %v1174
      %v1465 = vpack.c.b16 %v1179, %v1177
      %v1466 = vpack.c.b16 %v1180, %v1178
      %v1467 = vpack.c.b16 %v1183, %v1181
      %v1468 = vpack.c.b16 %v1184, %v1182
      %v1469 = vpack.c.b16 %v1187, %v1185
      %v1470 = vpack.c.b16 %v1188, %v1186
      %v1471 = vpack.c.b16 %v1191, %v1189
      %v1472 = vpack.c.b16 %v1192, %v1190
      %v1473 = vpack.c.b16 %v1195, %v1193
      %v1474 = vpack.c.b16 %v1196, %v1194
      %v1475 = vpack.c.b16 %v1199, %v1197
      %v1476 = vpack.c.b16 %v1200, %v1198
      %v1477 = vpack.c.b16 %v1203, %v1201
      %v1478 = vpack.c.b16 %v1204, %v1202
      %v1479 = vpack.c.b16 %v1207, %v1205
      %v1480 = vpack.c.b16 %v1208, %v1206
      %v1481 = vpack.c.b16 %v1211, %v1209
      %v1482 = vpack.c.b16 %v1212, %v1210
      %v1483 = vpack.c.b16 %v1215, %v1213
      %v1484 = vpack.c.b16 %v1216, %v1214
      %v1485 = vpack.c.b16 %v1219, %v1217
      %v1486 = vpack.c.b16 %v1220, %v1218
      %v1487 = vpack.c.b16 %v1223, %v1221
      %v1488 = vpack.c.b16 %v1224, %v1222
      %v1489 = vpack.c.b16 %v1227, %v1225
      %v1490 = vpack.c.b16 %v1228, %v1226
      %v1491 = vpack.c.b16 %v1231, %v1229
      %v1492 = vpack.c.b16 %v1232, %v1230
      %v1493 = vpack.c.b16 %v1235, %v1233
      %v1494 = vpack.c.b16 %v1236, %v1234
      %v1495 = vpack.c.b16 %v1239, %v1237
      %v1496 = vpack.c.b16 %v1240, %v1238
      %v1785 = vunpack.c.l.b16 %v434
      %v1786 = vunpack.c.l.b16 %v435
      %v1787 = vunpack.c.l.b16 %v436
      %v1788 = vunpack.c.l.b16 %v437
      %v1789 = vunpack.c.l.b16 %v438
      %v1790 = vunpack.c.l.b16 %v439
      %v1791 = vunpack.c.l.b16 %v440
      %v1792 = vunpack.c.l.b16 %v441
      %v1793 = vunpack.c.l.b16 %v442
      %v1794 = vunpack.c.l.b16 %v443
      %v1795 = vunpack.c.l.b16 %v444
      %v1796 = vunpack.c.l.b16 %v445
      %v1797 = vunpack.c.l.b16 %v446
      %v1798 = vunpack.c.l.b16 %v447
      %v1799 = vunpack.c.l.b16 %v448
      %v1800 = vunpack.c.l.b16 %v449
      %v1801 = vunpack.c.l.b16 %v450
      %v1802 = vunpack.c.l.b16 %v451
      %v1803 = vunpack.c.l.b16 %v452
      %v1804 = vunpack.c.l.b16 %v453
      %v1805 = vunpack.c.l.b16 %v454
      %v1806 = vunpack.c.l.b16 %v455
      %v1807 = vunpack.c.l.b16 %v456
      %v1808 = vunpack.c.l.b16 %v457
      %v1809 = vunpack.c.l.b16 %v458
      %v1810 = vunpack.c.l.b16 %v459
      %v1811 = vunpack.c.l.b16 %v460
      %v1812 = vunpack.c.l.b16 %v461
      %v1813 = vunpack.c.l.b16 %v462
      %v1814 = vunpack.c.l.b16 %v463
      %v1815 = vunpack.c.l.b16 %v464
      %v1816 = vunpack.c.l.b16 %v465
      %v1817 = vpack.c.b16 %v1786, %v1785
      %v1818 = vpack.c.b16 %v1788, %v1787
      %v1819 = vpack.c.b16 %v1790, %v1789
      %v1820 = vpack.c.b16 %v1792, %v1791
      %v1821 = vpack.c.b16 %v1794, %v1793
      %v1822 = vpack.c.b16 %v1796, %v1795
      %v1823 = vpack.c.b16 %v1798, %v1797
      %v1824 = vpack.c.b16 %v1800, %v1799
      %v1825 = vpack.c.b16 %v1802, %v1801
      %v1826 = vpack.c.b16 %v1804, %v1803
      %v1827 = vpack.c.b16 %v1806, %v1805
      %v1828 = vpack.c.b16 %v1808, %v1807
      %v1829 = vpack.c.b16 %v1810, %v1809
      %v1830 = vpack.c.b16 %v1812, %v1811
      %v1831 = vpack.c.b16 %v1814, %v1813
      %v1832 = vpack.c.b16 %v1816, %v1815
      %1849 = vmatprep.subr.bf16.mxu0 0
      %1850 = vmatpush1.bf16.msra.mxu0 %v1817
      %1851 = vmatprep.subr.bf16.mxu0 0
      %1852 = vmatpush1.bf16.msra.mxu0 %v1818
      %1853 = vmatprep.subr.bf16.mxu0 0
      %1854 = vmatpush1.bf16.msra.mxu0 %v1819
      %1855 = vmatprep.subr.bf16.mxu0 0
      %1856 = vmatpush1.bf16.msra.mxu0 %v1820
      %1857 = vmatprep.subr.bf16.mxu0 0
      %1858 = vmatpush1.bf16.msra.mxu0 %v1821
      %1859 = vmatprep.subr.bf16.mxu0 0
      %1860 = vmatpush1.bf16.msra.mxu0 %v1822
      %1861 = vmatprep.subr.bf16.mxu0 0
      %1862 = vmatpush1.bf16.msra.mxu0 %v1823
      %1863 = vmatprep.subr.bf16.mxu0 0
      %1864 = vmatpush1.bf16.msra.mxu0 %v1824
      %1865 = vmatprep.subr.bf16.mxu0 0
      %1866 = vmatpush1.bf16.msra.mxu0 %v1825
      %1867 = vmatprep.subr.bf16.mxu0 0
      %1868 = vmatpush1.bf16.msra.mxu0 %v1826
      %1869 = vmatprep.subr.bf16.mxu0 0
      %1870 = vmatpush1.bf16.msra.mxu0 %v1827
      %1871 = vmatprep.subr.bf16.mxu0 0
      %1872 = vmatpush1.bf16.msra.mxu0 %v1828
      %1873 = vmatprep.subr.bf16.mxu0 0
      %1874 = vmatpush1.bf16.msra.mxu0 %v1829
      %1875 = vmatprep.subr.bf16.mxu0 0
      %1876 = vmatpush1.bf16.msra.mxu0 %v1830
      %1877 = vmatprep.subr.bf16.mxu0 0
      %1878 = vmatpush1.bf16.msra.mxu0 %v1831
      %1879 = vmatprep.subr.bf16.mxu0 0
      %1880 = vmatpush1.bf16.msra.mxu0 %v1832
      %1881 = vmatprep.mubr.bf16.mxu0 %v1242
      %1882 = vmatmul.mubr.bf16.gmra.mrb[0].mxu0 %v1241
      %v1883 = vpop.f32.mrb[0].mxu0
      %v1884 = vadd.f32 %v471, %v1883
      %v1885 = vpop.f32.mrb[0].mxu0
      %v1886 = vpop.f32.mrb[0].mxu0
      %v1887 = vadd.f32 %v471, %v1886
      %v1888 = vpop.f32.mrb[0].mxu0
      %1889 = vmatprep.mubr.bf16.mxu0 %v1244
      %1890 = vmatmul.mubr.bf16.gmra.mrb[0].mxu0 %v1243
      %v1891 = vpop.f32.mrb[0].mxu0
      %v1892 = vadd.f32 %v471, %v1891
      %v1893 = vpop.f32.mrb[0].mxu0
      %v1894 = vpop.f32.mrb[0].mxu0
      %v1895 = vadd.f32 %v471, %v1894
      %v1896 = vpop.f32.mrb[0].mxu0
      %1897 = vmatprep.mubr.bf16.mxu0 %v1246
      %1898 = vmatmul.mubr.bf16.gmra.mrb[0].mxu0 %v1245
      %v1899 = vpop.f32.mrb[0].mxu0
      %v1900 = vadd.f32 %v471, %v1899
      %v1901 = vpop.f32.mrb[0].mxu0
      %v1902 = vpop.f32.mrb[0].mxu0
      %v1903 = vadd.f32 %v471, %v1902
      %v1904 = vpop.f32.mrb[0].mxu0
      %1905 = vmatprep.mubr.bf16.mxu0 %v1248
      %1906 = vmatmul.mubr.bf16.gmra.mrb[0].mxu0 %v1247
      %v1907 = vpop.f32.mrb[0].mxu0
      %v1908 = vadd.f32 %v471, %v1907
      %v1909 = vpop.f32.mrb[0].mxu0
      %v1910 = vpop.f32.mrb[0].mxu0
      %v1911 = vadd.f32 %v471, %v1910
      %v1912 = vpop.f32.mrb[0].mxu0
      %1913 = vmatprep.mubr.bf16.mxu0 %v1250
      %1914 = vmatmul.mubr.bf16.gmra.mrb[0].mxu0 %v1249
      %v1915 = vpop.f32.mrb[0].mxu0
      %v1916 = vadd.f32 %v471, %v1915
      %v1917 = vpop.f32.mrb[0].mxu0
      %v1918 = vpop.f32.mrb[0].mxu0
      %v1919 = vadd.f32 %v471, %v1918
      %v1920 = vpop.f32.mrb[0].mxu0
      %1921 = vmatprep.mubr.bf16.mxu0 %v1252
      %1922 = vmatmul.mubr.bf16.gmra.mrb[0].mxu0 %v1251
      %v1923 = vpop.f32.mrb[0].mxu0
      %v1924 = vadd.f32 %v471, %v1923
      %v1925 = vpop.f32.mrb[0].mxu0
      %v1926 = vpop.f32.mrb[0].mxu0
      %v1927 = vadd.f32 %v471, %v1926
      %v1928 = vpop.f32.mrb[0].mxu0
      %1929 = vmatprep.mubr.bf16.mxu0 %v1254
      %1930 = vmatmul.mubr.bf16.gmra.mrb[0].mxu0 %v1253
      %v1931 = vpop.f32.mrb[0].mxu0
      %v1932 = vadd.f32 %v471, %v1931
      %v1933 = vpop.f32.mrb[0].mxu0
      %v1934 = vpop.f32.mrb[0].mxu0
      %v1935 = vadd.f32 %v471, %v1934
      %v1936 = vpop.f32.mrb[0].mxu0
      %1937 = vmatprep.mubr.bf16.mxu0 %v1256
      %1938 = vmatmul.mubr.bf16.gmra.mrb[0].mxu0 %v1255
      %v1939 = vpop.f32.mrb[0].mxu0
      %v1940 = vadd.f32 %v471, %v1939
      %v1941 = vpop.f32.mrb[0].mxu0
      %v1942 = vpop.f32.mrb[0].mxu0
      %v1943 = vadd.f32 %v471, %v1942
      %v1944 = vpop.f32.mrb[0].mxu0
      %1945 = vmatprep.mubr.bf16.mxu0 %v1258
      %1946 = vmatmul.mubr.bf16.gmra.mrb[0].mxu0 %v1257
      %v1947 = vpop.f32.mrb[0].mxu0
      %v1948 = vadd.f32 %v471, %v1947
      %v1949 = vpop.f32.mrb[0].mxu0
      %v1950 = vpop.f32.mrb[0].mxu0
      %v1951 = vadd.f32 %v471, %v1950
      %v1952 = vpop.f32.mrb[0].mxu0
      %1953 = vmatprep.mubr.bf16.mxu0 %v1260
      %1954 = vmatmul.mubr.bf16.gmra.mrb[0].mxu0 %v1259
      %v1955 = vpop.f32.mrb[0].mxu0
      %v1956 = vadd.f32 %v471, %v1955
      %v1957 = vpop.f32.mrb[0].mxu0
      %v1958 = vpop.f32.mrb[0].mxu0
      %v1959 = vadd.f32 %v471, %v1958
      %v1960 = vpop.f32.mrb[0].mxu0
      %1961 = vmatprep.mubr.bf16.mxu0 %v1262
      %1962 = vmatmul.mubr.bf16.gmra.mrb[0].mxu0 %v1261
      %v1963 = vpop.f32.mrb[0].mxu0
      %v1964 = vadd.f32 %v471, %v1963
      %v1965 = vpop.f32.mrb[0].mxu0
      %v1966 = vpop.f32.mrb[0].mxu0
      %v1967 = vadd.f32 %v471, %v1966
      %v1968 = vpop.f32.mrb[0].mxu0
      %1969 = vmatprep.mubr.bf16.mxu0 %v1264
      %1970 = vmatmul.mubr.bf16.gmra.mrb[0].mxu0 %v1263
      %v1971 = vpop.f32.mrb[0].mxu0
      %v1972 = vadd.f32 %v471, %v1971
      %v1973 = vpop.f32.mrb[0].mxu0
      %v1974 = vpop.f32.mrb[0].mxu0
      %v1975 = vadd.f32 %v471, %v1974
      %v1976 = vpop.f32.mrb[0].mxu0
      %1977 = vmatprep.mubr.bf16.mxu0 %v1266
      %1978 = vmatmul.mubr.bf16.gmra.mrb[0].mxu0 %v1265
      %v1979 = vpop.f32.mrb[0].mxu0
      %v1980 = vadd.f32 %v471, %v1979
      %v1981 = vpop.f32.mrb[0].mxu0
      %v1982 = vpop.f32.mrb[0].mxu0
      %v1983 = vadd.f32 %v471, %v1982
      %v1984 = vpop.f32.mrb[0].mxu0
      %1985 = vmatprep.mubr.bf16.mxu0 %v1268
      %1986 = vmatmul.mubr.bf16.gmra.mrb[0].mxu0 %v1267
      %v1987 = vpop.f32.mrb[0].mxu0
      %v1988 = vadd.f32 %v471, %v1987
      %v1989 = vpop.f32.mrb[0].mxu0
      %v1990 = vpop.f32.mrb[0].mxu0
      %v1991 = vadd.f32 %v471, %v1990
      %v1992 = vpop.f32.mrb[0].mxu0
      %1993 = vmatprep.mubr.bf16.mxu0 %v1270
      %1994 = vmatmul.mubr.bf16.gmra.mrb[0].mxu0 %v1269
      %v1995 = vpop.f32.mrb[0].mxu0
      %v1996 = vadd.f32 %v471, %v1995
      %v1997 = vpop.f32.mrb[0].mxu0
      %v1998 = vpop.f32.mrb[0].mxu0
      %v1999 = vadd.f32 %v471, %v1998
      %v2000 = vpop.f32.mrb[0].mxu0
      %2001 = vmatprep.mubr.bf16.mxu0 %v1272
      %2002 = vmatmul.mubr.bf16.gmra.mrb[0].mxu0 %v1271
      %v2003 = vpop.f32.mrb[0].mxu0
      %v2004 = vadd.f32 %v471, %v2003
      %v2005 = vpop.f32.mrb[0].mxu0
      %v2006 = vpop.f32.mrb[0].mxu0
      %v2007 = vadd.f32 %v471, %v2006
      %v2008 = vpop.f32.mrb[0].mxu0
      %2009 = vmatprep.mubr.bf16.mxu0 %v1274
      %2010 = vmatmul.mubr.bf16.gmra.mrb[0].mxu0 %v1273
      %v2011 = vpop.f32.mrb[0].mxu0
      %v2012 = vadd.f32 %v471, %v2011
      %v2013 = vpop.f32.mrb[0].mxu0
      %v2014 = vpop.f32.mrb[0].mxu0
      %v2015 = vadd.f32 %v471, %v2014
      %v2016 = vpop.f32.mrb[0].mxu0
      %2017 = vmatprep.mubr.bf16.mxu0 %v1276
      %2018 = vmatmul.mubr.bf16.gmra.mrb[0].mxu0 %v1275
      %v2019 = vpop.f32.mrb[0].mxu0
      %v2020 = vadd.f32 %v471, %v2019
      %v2021 = vpop.f32.mrb[0].mxu0
      %v2022 = vpop.f32.mrb[0].mxu0
      %v2023 = vadd.f32 %v471, %v2022
      %v2024 = vpop.f32.mrb[0].mxu0
      %2025 = vmatprep.mubr.bf16.mxu0 %v1278
      %2026 = vmatmul.mubr.bf16.gmra.mrb[0].mxu0 %v1277
      %v2027 = vpop.f32.mrb[0].mxu0
      %v2028 = vadd.f32 %v471, %v2027
      %v2029 = vpop.f32.mrb[0].mxu0
      %v2030 = vpop.f32.mrb[0].mxu0
      %v2031 = vadd.f32 %v471, %v2030
      %v2032 = vpop.f32.mrb[0].mxu0
      %2033 = vmatprep.mubr.bf16.mxu0 %v1280
      %2034 = vmatmul.mubr.bf16.gmra.mrb[0].mxu0 %v1279
      %v2035 = vpop.f32.mrb[0].mxu0
      %v2036 = vadd.f32 %v471, %v2035
      %v2037 = vpop.f32.mrb[0].mxu0
      %v2038 = vpop.f32.mrb[0].mxu0
      %v2039 = vadd.f32 %v471, %v2038
      %v2040 = vpop.f32.mrb[0].mxu0
      %2041 = vmatprep.mubr.bf16.mxu0 %v1282
      %2042 = vmatmul.mubr.bf16.gmra.mrb[0].mxu0 %v1281
      %v2043 = vpop.f32.mrb[0].mxu0
      %v2044 = vadd.f32 %v471, %v2043
      %v2045 = vpop.f32.mrb[0].mxu0
      %v2046 = vpop.f32.mrb[0].mxu0
      %v2047 = vadd.f32 %v471, %v2046
      %v2048 = vpop.f32.mrb[0].mxu0
      %2049 = vmatprep.mubr.bf16.mxu0 %v1284
      %2050 = vmatmul.mubr.bf16.gmra.mrb[0].mxu0 %v1283
      %v2051 = vpop.f32.mrb[0].mxu0
      %v2052 = vadd.f32 %v471, %v2051
      %v2053 = vpop.f32.mrb[0].mxu0
      %v2054 = vpop.f32.mrb[0].mxu0
      %v2055 = vadd.f32 %v471, %v2054
      %v2056 = vpop.f32.mrb[0].mxu0
      %2057 = vmatprep.mubr.bf16.mxu0 %v1286
      %2058 = vmatmul.mubr.bf16.gmra.mrb[0].mxu0 %v1285
      %v2059 = vpop.f32.mrb[0].mxu0
      %v2060 = vadd.f32 %v471, %v2059
      %v2061 = vpop.f32.mrb[0].mxu0
      %v2062 = vpop.f32.mrb[0].mxu0
      %v2063 = vadd.f32 %v471, %v2062
      %v2064 = vpop.f32.mrb[0].mxu0
      %2065 = vmatprep.mubr.bf16.mxu0 %v1288
      %2066 = vmatmul.mubr.bf16.gmra.mrb[0].mxu0 %v1287
      %v2067 = vpop.f32.mrb[0].mxu0
      %v2068 = vadd.f32 %v471, %v2067
      %v2069 = vpop.f32.mrb[0].mxu0
      %v2070 = vpop.f32.mrb[0].mxu0
      %v2071 = vadd.f32 %v471, %v2070
      %v2072 = vpop.f32.mrb[0].mxu0
      %2073 = vmatprep.mubr.bf16.mxu0 %v1290
      %2074 = vmatmul.mubr.bf16.gmra.mrb[0].mxu0 %v1289
      %v2075 = vpop.f32.mrb[0].mxu0
      %v2076 = vadd.f32 %v471, %v2075
      %v2077 = vpop.f32.mrb[0].mxu0
      %v2078 = vpop.f32.mrb[0].mxu0
      %v2079 = vadd.f32 %v471, %v2078
      %v2080 = vpop.f32.mrb[0].mxu0
      %2081 = vmatprep.mubr.bf16.mxu0 %v1292
      %2082 = vmatmul.mubr.bf16.gmra.mrb[0].mxu0 %v1291
      %v2083 = vpop.f32.mrb[0].mxu0
      %v2084 = vadd.f32 %v471, %v2083
      %v2085 = vpop.f32.mrb[0].mxu0
      %v2086 = vpop.f32.mrb[0].mxu0
      %v2087 = vadd.f32 %v471, %v2086
      %v2088 = vpop.f32.mrb[0].mxu0
      %2089 = vmatprep.mubr.bf16.mxu0 %v1294
      %2090 = vmatmul.mubr.bf16.gmra.mrb[0].mxu0 %v1293
      %v2091 = vpop.f32.mrb[0].mxu0
      %v2092 = vadd.f32 %v471, %v2091
      %v2093 = vpop.f32.mrb[0].mxu0
      %v2094 = vpop.f32.mrb[0].mxu0
      %v2095 = vadd.f32 %v471, %v2094
      %v2096 = vpop.f32.mrb[0].mxu0
      %2097 = vmatprep.mubr.bf16.mxu0 %v1296
      %2098 = vmatmul.mubr.bf16.gmra.mrb[0].mxu0 %v1295
      %v2099 = vpop.f32.mrb[0].mxu0
      %v2100 = vadd.f32 %v471, %v2099
      %v2101 = vpop.f32.mrb[0].mxu0
      %v2102 = vpop.f32.mrb[0].mxu0
      %v2103 = vadd.f32 %v471, %v2102
      %v2104 = vpop.f32.mrb[0].mxu0
      %2105 = vmatprep.mubr.bf16.mxu0 %v1298
      %2106 = vmatmul.mubr.bf16.gmra.mrb[0].mxu0 %v1297
      %v2107 = vpop.f32.mrb[0].mxu0
      %v2108 = vadd.f32 %v471, %v2107
      %v2109 = vpop.f32.mrb[0].mxu0
      %v2110 = vpop.f32.mrb[0].mxu0
      %v2111 = vadd.f32 %v471, %v2110
      %v2112 = vpop.f32.mrb[0].mxu0
      %2113 = vmatprep.mubr.bf16.mxu0 %v1300
      %2114 = vmatmul.mubr.bf16.gmra.mrb[0].mxu0 %v1299
      %v2115 = vpop.f32.mrb[0].mxu0
      %v2116 = vadd.f32 %v471, %v2115
      %v2117 = vpop.f32.mrb[0].mxu0
      %v2118 = vpop.f32.mrb[0].mxu0
      %v2119 = vadd.f32 %v471, %v2118
      %v2120 = vpop.f32.mrb[0].mxu0
      %2121 = vmatprep.mubr.bf16.mxu0 %v1302
      %2122 = vmatmul.mubr.bf16.gmra.mrb[0].mxu0 %v1301
      %v2123 = vpop.f32.mrb[0].mxu0
      %v2124 = vadd.f32 %v471, %v2123
      %v2125 = vpop.f32.mrb[0].mxu0
      %v2126 = vpop.f32.mrb[0].mxu0
      %v2127 = vadd.f32 %v471, %v2126
      %v2128 = vpop.f32.mrb[0].mxu0
      %2129 = vmatprep.mubr.bf16.mxu0 %v1304
      %2130 = vmatmul.mubr.bf16.gmra.mrb[0].mxu0 %v1303
      %v2131 = vpop.f32.mrb[0].mxu0
      %v2132 = vadd.f32 %v471, %v2131
      %v2133 = vpop.f32.mrb[0].mxu0
      %v2134 = vpop.f32.mrb[0].mxu0
      %v2135 = vadd.f32 %v471, %v2134
      %v2136 = vpop.f32.mrb[0].mxu0
      %2137 = vmatprep.mubr.bf16.mxu0 %v1306
      %2138 = vmatmul.mubr.bf16.gmra.mrb[0].mxu0 %v1305
      %v2139 = vpop.f32.mrb[0].mxu0
      %v2140 = vadd.f32 %v471, %v2139
      %v2141 = vpop.f32.mrb[0].mxu0
      %v2142 = vpop.f32.mrb[0].mxu0
      %v2143 = vadd.f32 %v471, %v2142
      %v2144 = vpop.f32.mrb[0].mxu0
      %2145 = vmatprep.mubr.bf16.mxu0 %v1308
      %2146 = vmatmul.mubr.bf16.gmra.mrb[0].mxu0 %v1307
      %v2147 = vpop.f32.mrb[0].mxu0
      %v2148 = vadd.f32 %v471, %v2147
      %v2149 = vpop.f32.mrb[0].mxu0
      %v2150 = vpop.f32.mrb[0].mxu0
      %v2151 = vadd.f32 %v471, %v2150
      %v2152 = vpop.f32.mrb[0].mxu0
      %2153 = vmatprep.mubr.bf16.mxu0 %v1310
      %2154 = vmatmul.mubr.bf16.gmra.mrb[0].mxu0 %v1309
      %v2155 = vpop.f32.mrb[0].mxu0
      %v2156 = vadd.f32 %v471, %v2155
      %v2157 = vpop.f32.mrb[0].mxu0
      %v2158 = vpop.f32.mrb[0].mxu0
      %v2159 = vadd.f32 %v471, %v2158
      %v2160 = vpop.f32.mrb[0].mxu0
      %2161 = vmatprep.mubr.bf16.mxu0 %v1312
      %2162 = vmatmul.mubr.bf16.gmra.mrb[0].mxu0 %v1311
      %v2163 = vpop.f32.mrb[0].mxu0
      %v2164 = vadd.f32 %v471, %v2163
      %v2165 = vpop.f32.mrb[0].mxu0
      %v2166 = vpop.f32.mrb[0].mxu0
      %v2167 = vadd.f32 %v471, %v2166
      %v2168 = vpop.f32.mrb[0].mxu0
      %2169 = vmatprep.mubr.bf16.mxu0 %v1314
      %2170 = vmatmul.mubr.bf16.gmra.mrb[0].mxu0 %v1313
      %v2171 = vpop.f32.mrb[0].mxu0
      %v2172 = vadd.f32 %v471, %v2171
      %v2173 = vpop.f32.mrb[0].mxu0
      %v2174 = vpop.f32.mrb[0].mxu0
      %v2175 = vadd.f32 %v471, %v2174
      %v2176 = vpop.f32.mrb[0].mxu0
      %2177 = vmatprep.mubr.bf16.mxu0 %v1316
      %2178 = vmatmul.mubr.bf16.gmra.mrb[0].mxu0 %v1315
      %v2179 = vpop.f32.mrb[0].mxu0
      %v2180 = vadd.f32 %v471, %v2179
      %v2181 = vpop.f32.mrb[0].mxu0
      %v2182 = vpop.f32.mrb[0].mxu0
      %v2183 = vadd.f32 %v471, %v2182
      %v2184 = vpop.f32.mrb[0].mxu0
      %2185 = vmatprep.mubr.bf16.mxu0 %v1318
      %2186 = vmatmul.mubr.bf16.gmra.mrb[0].mxu0 %v1317
      %v2187 = vpop.f32.mrb[0].mxu0
      %v2188 = vadd.f32 %v471, %v2187
      %v2189 = vpop.f32.mrb[0].mxu0
      %v2190 = vpop.f32.mrb[0].mxu0
      %v2191 = vadd.f32 %v471, %v2190
      %v2192 = vpop.f32.mrb[0].mxu0
      %2193 = vmatprep.mubr.bf16.mxu0 %v1320
      %2194 = vmatmul.mubr.bf16.gmra.mrb[0].mxu0 %v1319
      %v2195 = vpop.f32.mrb[0].mxu0
      %v2196 = vadd.f32 %v471, %v2195
      %v2197 = vpop.f32.mrb[0].mxu0
      %v2198 = vpop.f32.mrb[0].mxu0
      %v2199 = vadd.f32 %v471, %v2198
      %v2200 = vpop.f32.mrb[0].mxu0
      %2201 = vmatprep.mubr.bf16.mxu0 %v1322
      %2202 = vmatmul.mubr.bf16.gmra.mrb[0].mxu0 %v1321
      %v2203 = vpop.f32.mrb[0].mxu0
      %v2204 = vadd.f32 %v471, %v2203
      %v2205 = vpop.f32.mrb[0].mxu0
      %v2206 = vpop.f32.mrb[0].mxu0
      %v2207 = vadd.f32 %v471, %v2206
      %v2208 = vpop.f32.mrb[0].mxu0
      %2209 = vmatprep.mubr.bf16.mxu0 %v1324
      %2210 = vmatmul.mubr.bf16.gmra.mrb[0].mxu0 %v1323
      %v2211 = vpop.f32.mrb[0].mxu0
      %v2212 = vadd.f32 %v471, %v2211
      %v2213 = vpop.f32.mrb[0].mxu0
      %v2214 = vpop.f32.mrb[0].mxu0
      %v2215 = vadd.f32 %v471, %v2214
      %v2216 = vpop.f32.mrb[0].mxu0
      %2217 = vmatprep.mubr.bf16.mxu0 %v1326
      %2218 = vmatmul.mubr.bf16.gmra.mrb[0].mxu0 %v1325
      %v2219 = vpop.f32.mrb[0].mxu0
      %v2220 = vadd.f32 %v471, %v2219
      %v2221 = vpop.f32.mrb[0].mxu0
      %v2222 = vpop.f32.mrb[0].mxu0
      %v2223 = vadd.f32 %v471, %v2222
      %v2224 = vpop.f32.mrb[0].mxu0
      %2225 = vmatprep.mubr.bf16.mxu0 %v1328
      %2226 = vmatmul.mubr.bf16.gmra.mrb[0].mxu0 %v1327
      %v2227 = vpop.f32.mrb[0].mxu0
      %v2228 = vadd.f32 %v471, %v2227
      %v2229 = vpop.f32.mrb[0].mxu0
      %v2230 = vpop.f32.mrb[0].mxu0
      %v2231 = vadd.f32 %v471, %v2230
      %v2232 = vpop.f32.mrb[0].mxu0
      %2233 = vmatprep.mubr.bf16.mxu0 %v1330
      %2234 = vmatmul.mubr.bf16.gmra.mrb[0].mxu0 %v1329
      %v2235 = vpop.f32.mrb[0].mxu0
      %v2236 = vadd.f32 %v471, %v2235
      %v2237 = vpop.f32.mrb[0].mxu0
      %v2238 = vpop.f32.mrb[0].mxu0
      %v2239 = vadd.f32 %v471, %v2238
      %v2240 = vpop.f32.mrb[0].mxu0
      %2241 = vmatprep.mubr.bf16.mxu0 %v1332
      %2242 = vmatmul.mubr.bf16.gmra.mrb[0].mxu0 %v1331
      %v2243 = vpop.f32.mrb[0].mxu0
      %v2244 = vadd.f32 %v471, %v2243
      %v2245 = vpop.f32.mrb[0].mxu0
      %v2246 = vpop.f32.mrb[0].mxu0
      %v2247 = vadd.f32 %v471, %v2246
      %v2248 = vpop.f32.mrb[0].mxu0
      %2249 = vmatprep.mubr.bf16.mxu0 %v1334
      %2250 = vmatmul.mubr.bf16.gmra.mrb[0].mxu0 %v1333
      %v2251 = vpop.f32.mrb[0].mxu0
      %v2252 = vadd.f32 %v471, %v2251
      %v2253 = vpop.f32.mrb[0].mxu0
      %v2254 = vpop.f32.mrb[0].mxu0
      %v2255 = vadd.f32 %v471, %v2254
      %v2256 = vpop.f32.mrb[0].mxu0
      %2257 = vmatprep.mubr.bf16.mxu0 %v1336
      %2258 = vmatmul.mubr.bf16.gmra.mrb[0].mxu0 %v1335
      %v2259 = vpop.f32.mrb[0].mxu0
      %v2260 = vadd.f32 %v471, %v2259
      %v2261 = vpop.f32.mrb[0].mxu0
      %v2262 = vpop.f32.mrb[0].mxu0
      %v2263 = vadd.f32 %v471, %v2262
      %v2264 = vpop.f32.mrb[0].mxu0
      %2265 = vmatprep.mubr.bf16.mxu0 %v1338
      %2266 = vmatmul.mubr.bf16.gmra.mrb[0].mxu0 %v1337
      %v2267 = vpop.f32.mrb[0].mxu0
      %v2268 = vadd.f32 %v471, %v2267
      %v2269 = vpop.f32.mrb[0].mxu0
      %v2270 = vpop.f32.mrb[0].mxu0
      %v2271 = vadd.f32 %v471, %v2270
      %v2272 = vpop.f32.mrb[0].mxu0
      %2273 = vmatprep.mubr.bf16.mxu0 %v1340
      %2274 = vmatmul.mubr.bf16.gmra.mrb[0].mxu0 %v1339
      %v2275 = vpop.f32.mrb[0].mxu0
      %v2276 = vadd.f32 %v471, %v2275
      %v2277 = vpop.f32.mrb[0].mxu0
      %v2278 = vpop.f32.mrb[0].mxu0
      %v2279 = vadd.f32 %v471, %v2278
      %v2280 = vpop.f32.mrb[0].mxu0
      %2281 = vmatprep.mubr.bf16.mxu0 %v1342
      %2282 = vmatmul.mubr.bf16.gmra.mrb[0].mxu0 %v1341
      %v2283 = vpop.f32.mrb[0].mxu0
      %v2284 = vadd.f32 %v471, %v2283
      %v2285 = vpop.f32.mrb[0].mxu0
      %v2286 = vpop.f32.mrb[0].mxu0
      %v2287 = vadd.f32 %v471, %v2286
      %v2288 = vpop.f32.mrb[0].mxu0
      %2289 = vmatprep.mubr.bf16.mxu0 %v1344
      %2290 = vmatmul.mubr.bf16.gmra.mrb[0].mxu0 %v1343
      %v2291 = vpop.f32.mrb[0].mxu0
      %v2292 = vadd.f32 %v471, %v2291
      %v2293 = vpop.f32.mrb[0].mxu0
      %v2294 = vpop.f32.mrb[0].mxu0
      %v2295 = vadd.f32 %v471, %v2294
      %v2296 = vpop.f32.mrb[0].mxu0
      %2297 = vmatprep.mubr.bf16.mxu0 %v1346
      %2298 = vmatmul.mubr.bf16.gmra.mrb[0].mxu0 %v1345
      %v2299 = vpop.f32.mrb[0].mxu0
      %v2300 = vadd.f32 %v471, %v2299
      %v2301 = vpop.f32.mrb[0].mxu0
      %v2302 = vpop.f32.mrb[0].mxu0
      %v2303 = vadd.f32 %v471, %v2302
      %v2304 = vpop.f32.mrb[0].mxu0
      %2305 = vmatprep.mubr.bf16.mxu0 %v1348
      %2306 = vmatmul.mubr.bf16.gmra.mrb[0].mxu0 %v1347
      %v2307 = vpop.f32.mrb[0].mxu0
      %v2308 = vadd.f32 %v471, %v2307
      %v2309 = vpop.f32.mrb[0].mxu0
      %v2310 = vpop.f32.mrb[0].mxu0
      %v2311 = vadd.f32 %v471, %v2310
      %v2312 = vpop.f32.mrb[0].mxu0
      %2313 = vmatprep.mubr.bf16.mxu0 %v1350
      %2314 = vmatmul.mubr.bf16.gmra.mrb[0].mxu0 %v1349
      %v2315 = vpop.f32.mrb[0].mxu0
      %v2316 = vadd.f32 %v471, %v2315
      %v2317 = vpop.f32.mrb[0].mxu0
      %v2318 = vpop.f32.mrb[0].mxu0
      %v2319 = vadd.f32 %v471, %v2318
      %v2320 = vpop.f32.mrb[0].mxu0
      %2321 = vmatprep.mubr.bf16.mxu0 %v1352
      %2322 = vmatmul.mubr.bf16.gmra.mrb[0].mxu0 %v1351
      %v2323 = vpop.f32.mrb[0].mxu0
      %v2324 = vadd.f32 %v471, %v2323
      %v2325 = vpop.f32.mrb[0].mxu0
      %v2326 = vpop.f32.mrb[0].mxu0
      %v2327 = vadd.f32 %v471, %v2326
      %v2328 = vpop.f32.mrb[0].mxu0
      %2329 = vmatprep.mubr.bf16.mxu0 %v1354
      %2330 = vmatmul.mubr.bf16.gmra.mrb[0].mxu0 %v1353
      %v2331 = vpop.f32.mrb[0].mxu0
      %v2332 = vadd.f32 %v471, %v2331
      %v2333 = vpop.f32.mrb[0].mxu0
      %v2334 = vpop.f32.mrb[0].mxu0
      %v2335 = vadd.f32 %v471, %v2334
      %v2336 = vpop.f32.mrb[0].mxu0
      %2337 = vmatprep.mubr.bf16.mxu0 %v1356
      %2338 = vmatmul.mubr.bf16.gmra.mrb[0].mxu0 %v1355
      %v2339 = vpop.f32.mrb[0].mxu0
      %v2340 = vadd.f32 %v471, %v2339
      %v2341 = vpop.f32.mrb[0].mxu0
      %v2342 = vpop.f32.mrb[0].mxu0
      %v2343 = vadd.f32 %v471, %v2342
      %v2344 = vpop.f32.mrb[0].mxu0
      %2345 = vmatprep.mubr.bf16.mxu0 %v1358
      %2346 = vmatmul.mubr.bf16.gmra.mrb[0].mxu0 %v1357
      %v2347 = vpop.f32.mrb[0].mxu0
      %v2348 = vadd.f32 %v471, %v2347
      %v2349 = vpop.f32.mrb[0].mxu0
      %v2350 = vpop.f32.mrb[0].mxu0
      %v2351 = vadd.f32 %v471, %v2350
      %v2352 = vpop.f32.mrb[0].mxu0
      %2353 = vmatprep.mubr.bf16.mxu0 %v1360
      %2354 = vmatmul.mubr.bf16.gmra.mrb[0].mxu0 %v1359
      %v2355 = vpop.f32.mrb[0].mxu0
      %v2356 = vadd.f32 %v471, %v2355
      %v2357 = vpop.f32.mrb[0].mxu0
      %v2358 = vpop.f32.mrb[0].mxu0
      %v2359 = vadd.f32 %v471, %v2358
      %v2360 = vpop.f32.mrb[0].mxu0
      %2361 = vmatprep.mubr.bf16.mxu0 %v1362
      %2362 = vmatmul.mubr.bf16.gmra.mrb[0].mxu0 %v1361
      %v2363 = vpop.f32.mrb[0].mxu0
      %v2364 = vadd.f32 %v471, %v2363
      %v2365 = vpop.f32.mrb[0].mxu0
      %v2366 = vpop.f32.mrb[0].mxu0
      %v2367 = vadd.f32 %v471, %v2366
      %v2368 = vpop.f32.mrb[0].mxu0
      %2369 = vmatprep.mubr.bf16.mxu0 %v1364
      %2370 = vmatmul.mubr.bf16.gmra.mrb[0].mxu0 %v1363
      %v2371 = vpop.f32.mrb[0].mxu0
      %v2372 = vadd.f32 %v471, %v2371
      %v2373 = vpop.f32.mrb[0].mxu0
      %v2374 = vpop.f32.mrb[0].mxu0
      %v2375 = vadd.f32 %v471, %v2374
      %v2376 = vpop.f32.mrb[0].mxu0
      %2377 = vmatprep.mubr.bf16.mxu0 %v1366
      %2378 = vmatmul.mubr.bf16.gmra.mrb[0].mxu0 %v1365
      %v2379 = vpop.f32.mrb[0].mxu0
      %v2380 = vadd.f32 %v471, %v2379
      %v2381 = vpop.f32.mrb[0].mxu0
      %v2382 = vpop.f32.mrb[0].mxu0
      %v2383 = vadd.f32 %v471, %v2382
      %v2384 = vpop.f32.mrb[0].mxu0
      %2385 = vmatprep.mubr.bf16.mxu0 %v1368
      %2386 = vmatmul.mubr.bf16.gmra.mrb[0].mxu0 %v1367
      %v2387 = vpop.f32.mrb[0].mxu0
      %v2388 = vadd.f32 %v471, %v2387
      %v2389 = vpop.f32.mrb[0].mxu0
      %v2390 = vpop.f32.mrb[0].mxu0
      %v2391 = vadd.f32 %v471, %v2390
      %v2392 = vpop.f32.mrb[0].mxu0
      %2393 = vmatprep.mubr.bf16.mxu0 %v1370
      %2394 = vmatmul.mubr.bf16.gmra.mrb[0].mxu0 %v1369
      %v2395 = vpop.f32.mrb[0].mxu0
      %v2396 = vadd.f32 %v471, %v2395
      %v2397 = vpop.f32.mrb[0].mxu0
      %v2398 = vpop.f32.mrb[0].mxu0
      %v2399 = vadd.f32 %v471, %v2398
      %v2400 = vpop.f32.mrb[0].mxu0
      %2401 = vmatprep.mubr.bf16.mxu0 %v1372
      %2402 = vmatmul.mubr.bf16.gmra.mrb[0].mxu0 %v1371
      %v2403 = vpop.f32.mrb[0].mxu0
      %v2404 = vadd.f32 %v471, %v2403
      %v2405 = vpop.f32.mrb[0].mxu0
      %v2406 = vpop.f32.mrb[0].mxu0
      %v2407 = vadd.f32 %v471, %v2406
      %v2408 = vpop.f32.mrb[0].mxu0
      %2409 = vmatprep.mubr.bf16.mxu0 %v1374
      %2410 = vmatmul.mubr.bf16.gmra.mrb[0].mxu0 %v1373
      %v2411 = vpop.f32.mrb[0].mxu0
      %v2412 = vadd.f32 %v471, %v2411
      %v2413 = vpop.f32.mrb[0].mxu0
      %v2414 = vpop.f32.mrb[0].mxu0
      %v2415 = vadd.f32 %v471, %v2414
      %v2416 = vpop.f32.mrb[0].mxu0
      %2417 = vmatprep.mubr.bf16.mxu0 %v1376
      %2418 = vmatmul.mubr.bf16.gmra.mrb[0].mxu0 %v1375
      %v2419 = vpop.f32.mrb[0].mxu0
      %v2420 = vadd.f32 %v471, %v2419
      %v2421 = vpop.f32.mrb[0].mxu0
      %v2422 = vpop.f32.mrb[0].mxu0
      %v2423 = vadd.f32 %v471, %v2422
      %v2424 = vpop.f32.mrb[0].mxu0
      %2425 = vmatprep.mubr.bf16.mxu0 %v1378
      %2426 = vmatmul.mubr.bf16.gmra.mrb[0].mxu0 %v1377
      %v2427 = vpop.f32.mrb[0].mxu0
      %v2428 = vadd.f32 %v471, %v2427
      %v2429 = vpop.f32.mrb[0].mxu0
      %v2430 = vpop.f32.mrb[0].mxu0
      %v2431 = vadd.f32 %v471, %v2430
      %v2432 = vpop.f32.mrb[0].mxu0
      %2433 = vmatprep.mubr.bf16.mxu0 %v1380
      %2434 = vmatmul.mubr.bf16.gmra.mrb[0].mxu0 %v1379
      %v2435 = vpop.f32.mrb[0].mxu0
      %v2436 = vadd.f32 %v471, %v2435
      %v2437 = vpop.f32.mrb[0].mxu0
      %v2438 = vpop.f32.mrb[0].mxu0
      %v2439 = vadd.f32 %v471, %v2438
      %v2440 = vpop.f32.mrb[0].mxu0
      %2441 = vmatprep.mubr.bf16.mxu0 %v1382
      %2442 = vmatmul.mubr.bf16.gmra.mrb[0].mxu0 %v1381
      %v2443 = vpop.f32.mrb[0].mxu0
      %v2444 = vadd.f32 %v471, %v2443
      %v2445 = vpop.f32.mrb[0].mxu0
      %v2446 = vpop.f32.mrb[0].mxu0
      %v2447 = vadd.f32 %v471, %v2446
      %v2448 = vpop.f32.mrb[0].mxu0
      %2449 = vmatprep.mubr.bf16.mxu0 %v1384
      %2450 = vmatmul.mubr.bf16.gmra.mrb[0].mxu0 %v1383
      %v2451 = vpop.f32.mrb[0].mxu0
      %v2452 = vadd.f32 %v471, %v2451
      %v2453 = vpop.f32.mrb[0].mxu0
      %v2454 = vpop.f32.mrb[0].mxu0
      %v2455 = vadd.f32 %v471, %v2454
      %v2456 = vpop.f32.mrb[0].mxu0
      %2457 = vmatprep.mubr.bf16.mxu0 %v1386
      %2458 = vmatmul.mubr.bf16.gmra.mrb[0].mxu0 %v1385
      %v2459 = vpop.f32.mrb[0].mxu0
      %v2460 = vadd.f32 %v471, %v2459
      %v2461 = vpop.f32.mrb[0].mxu0
      %v2462 = vpop.f32.mrb[0].mxu0
      %v2463 = vadd.f32 %v471, %v2462
      %v2464 = vpop.f32.mrb[0].mxu0
      %2465 = vmatprep.mubr.bf16.mxu0 %v1388
      %2466 = vmatmul.mubr.bf16.gmra.mrb[0].mxu0 %v1387
      %v2467 = vpop.f32.mrb[0].mxu0
      %v2468 = vadd.f32 %v471, %v2467
      %v2469 = vpop.f32.mrb[0].mxu0
      %v2470 = vpop.f32.mrb[0].mxu0
      %v2471 = vadd.f32 %v471, %v2470
      %v2472 = vpop.f32.mrb[0].mxu0
      %2473 = vmatprep.mubr.bf16.mxu0 %v1390
      %2474 = vmatmul.mubr.bf16.gmra.mrb[0].mxu0 %v1389
      %v2475 = vpop.f32.mrb[0].mxu0
      %v2476 = vadd.f32 %v471, %v2475
      %v2477 = vpop.f32.mrb[0].mxu0
      %v2478 = vpop.f32.mrb[0].mxu0
      %v2479 = vadd.f32 %v471, %v2478
      %v2480 = vpop.f32.mrb[0].mxu0
      %2481 = vmatprep.mubr.bf16.mxu0 %v1392
      %2482 = vmatmul.mubr.bf16.gmra.mrb[0].mxu0 %v1391
      %v2483 = vpop.f32.mrb[0].mxu0
      %v2484 = vadd.f32 %v471, %v2483
      %v2485 = vpop.f32.mrb[0].mxu0
      %v2486 = vpop.f32.mrb[0].mxu0
      %v2487 = vadd.f32 %v471, %v2486
      %v2488 = vpop.f32.mrb[0].mxu0
      %2489 = vmatprep.mubr.bf16.mxu0 %v1394
      %2490 = vmatmul.mubr.bf16.gmra.mrb[0].mxu0 %v1393
      %v2491 = vpop.f32.mrb[0].mxu0
      %v2492 = vadd.f32 %v471, %v2491
      %v2493 = vpop.f32.mrb[0].mxu0
      %v2494 = vpop.f32.mrb[0].mxu0
      %v2495 = vadd.f32 %v471, %v2494
      %v2496 = vpop.f32.mrb[0].mxu0
      %2497 = vmatprep.mubr.bf16.mxu0 %v1396
      %2498 = vmatmul.mubr.bf16.gmra.mrb[0].mxu0 %v1395
      %v2499 = vpop.f32.mrb[0].mxu0
      %v2500 = vadd.f32 %v471, %v2499
      %v2501 = vpop.f32.mrb[0].mxu0
      %v2502 = vpop.f32.mrb[0].mxu0
      %v2503 = vadd.f32 %v471, %v2502
      %v2504 = vpop.f32.mrb[0].mxu0
      %2505 = vmatprep.mubr.bf16.mxu0 %v1398
      %2506 = vmatmul.mubr.bf16.gmra.mrb[0].mxu0 %v1397
      %v2507 = vpop.f32.mrb[0].mxu0
      %v2508 = vadd.f32 %v471, %v2507
      %v2509 = vpop.f32.mrb[0].mxu0
      %v2510 = vpop.f32.mrb[0].mxu0
      %v2511 = vadd.f32 %v471, %v2510
      %v2512 = vpop.f32.mrb[0].mxu0
      %2513 = vmatprep.mubr.bf16.mxu0 %v1400
      %2514 = vmatmul.mubr.bf16.gmra.mrb[0].mxu0 %v1399
      %v2515 = vpop.f32.mrb[0].mxu0
      %v2516 = vadd.f32 %v471, %v2515
      %v2517 = vpop.f32.mrb[0].mxu0
      %v2518 = vpop.f32.mrb[0].mxu0
      %v2519 = vadd.f32 %v471, %v2518
      %v2520 = vpop.f32.mrb[0].mxu0
      %2521 = vmatprep.mubr.bf16.mxu0 %v1402
      %2522 = vmatmul.mubr.bf16.gmra.mrb[0].mxu0 %v1401
      %v2523 = vpop.f32.mrb[0].mxu0
      %v2524 = vadd.f32 %v471, %v2523
      %v2525 = vpop.f32.mrb[0].mxu0
      %v2526 = vpop.f32.mrb[0].mxu0
      %v2527 = vadd.f32 %v471, %v2526
      %v2528 = vpop.f32.mrb[0].mxu0
      %2529 = vmatprep.mubr.bf16.mxu0 %v1404
      %2530 = vmatmul.mubr.bf16.gmra.mrb[0].mxu0 %v1403
      %v2531 = vpop.f32.mrb[0].mxu0
      %v2532 = vadd.f32 %v471, %v2531
      %v2533 = vpop.f32.mrb[0].mxu0
      %v2534 = vpop.f32.mrb[0].mxu0
      %v2535 = vadd.f32 %v471, %v2534
      %v2536 = vpop.f32.mrb[0].mxu0
      %2537 = vmatprep.mubr.bf16.mxu0 %v1406
      %2538 = vmatmul.mubr.bf16.gmra.mrb[0].mxu0 %v1405
      %v2539 = vpop.f32.mrb[0].mxu0
      %v2540 = vadd.f32 %v471, %v2539
      %v2541 = vpop.f32.mrb[0].mxu0
      %v2542 = vpop.f32.mrb[0].mxu0
      %v2543 = vadd.f32 %v471, %v2542
      %v2544 = vpop.f32.mrb[0].mxu0
      %2545 = vmatprep.mubr.bf16.mxu0 %v1408
      %2546 = vmatmul.mubr.bf16.gmra.mrb[0].mxu0 %v1407
      %v2547 = vpop.f32.mrb[0].mxu0
      %v2548 = vadd.f32 %v471, %v2547
      %v2549 = vpop.f32.mrb[0].mxu0
      %v2550 = vpop.f32.mrb[0].mxu0
      %v2551 = vadd.f32 %v471, %v2550
      %v2552 = vpop.f32.mrb[0].mxu0
      %2553 = vmatprep.mubr.bf16.mxu0 %v1410
      %2554 = vmatmul.mubr.bf16.gmra.mrb[0].mxu0 %v1409
      %v2555 = vpop.f32.mrb[0].mxu0
      %v2556 = vadd.f32 %v471, %v2555
      %v2557 = vpop.f32.mrb[0].mxu0
      %v2558 = vpop.f32.mrb[0].mxu0
      %v2559 = vadd.f32 %v471, %v2558
      %v2560 = vpop.f32.mrb[0].mxu0
      %2561 = vmatprep.mubr.bf16.mxu0 %v1412
      %2562 = vmatmul.mubr.bf16.gmra.mrb[0].mxu0 %v1411
      %v2563 = vpop.f32.mrb[0].mxu0
      %v2564 = vadd.f32 %v471, %v2563
      %v2565 = vpop.f32.mrb[0].mxu0
      %v2566 = vpop.f32.mrb[0].mxu0
      %v2567 = vadd.f32 %v471, %v2566
      %v2568 = vpop.f32.mrb[0].mxu0
      %2569 = vmatprep.mubr.bf16.mxu0 %v1414
      %2570 = vmatmul.mubr.bf16.gmra.mrb[0].mxu0 %v1413
      %v2571 = vpop.f32.mrb[0].mxu0
      %v2572 = vadd.f32 %v471, %v2571
      %v2573 = vpop.f32.mrb[0].mxu0
      %v2574 = vpop.f32.mrb[0].mxu0
      %v2575 = vadd.f32 %v471, %v2574
      %v2576 = vpop.f32.mrb[0].mxu0
      %2577 = vmatprep.mubr.bf16.mxu0 %v1416
      %2578 = vmatmul.mubr.bf16.gmra.mrb[0].mxu0 %v1415
      %v2579 = vpop.f32.mrb[0].mxu0
      %v2580 = vadd.f32 %v471, %v2579
      %v2581 = vpop.f32.mrb[0].mxu0
      %v2582 = vpop.f32.mrb[0].mxu0
      %v2583 = vadd.f32 %v471, %v2582
      %v2584 = vpop.f32.mrb[0].mxu0
      %2585 = vmatprep.mubr.bf16.mxu0 %v1418
      %2586 = vmatmul.mubr.bf16.gmra.mrb[0].mxu0 %v1417
      %v2587 = vpop.f32.mrb[0].mxu0
      %v2588 = vadd.f32 %v471, %v2587
      %v2589 = vpop.f32.mrb[0].mxu0
      %v2590 = vpop.f32.mrb[0].mxu0
      %v2591 = vadd.f32 %v471, %v2590
      %v2592 = vpop.f32.mrb[0].mxu0
      %2593 = vmatprep.mubr.bf16.mxu0 %v1420
      %2594 = vmatmul.mubr.bf16.gmra.mrb[0].mxu0 %v1419
      %v2595 = vpop.f32.mrb[0].mxu0
      %v2596 = vadd.f32 %v471, %v2595
      %v2597 = vpop.f32.mrb[0].mxu0
      %v2598 = vpop.f32.mrb[0].mxu0
      %v2599 = vadd.f32 %v471, %v2598
      %v2600 = vpop.f32.mrb[0].mxu0
      %2601 = vmatprep.mubr.bf16.mxu0 %v1422
      %2602 = vmatmul.mubr.bf16.gmra.mrb[0].mxu0 %v1421
      %v2603 = vpop.f32.mrb[0].mxu0
      %v2604 = vadd.f32 %v471, %v2603
      %v2605 = vpop.f32.mrb[0].mxu0
      %v2606 = vpop.f32.mrb[0].mxu0
      %v2607 = vadd.f32 %v471, %v2606
      %v2608 = vpop.f32.mrb[0].mxu0
      %2609 = vmatprep.mubr.bf16.mxu0 %v1424
      %2610 = vmatmul.mubr.bf16.gmra.mrb[0].mxu0 %v1423
      %v2611 = vpop.f32.mrb[0].mxu0
      %v2612 = vadd.f32 %v471, %v2611
      %v2613 = vpop.f32.mrb[0].mxu0
      %v2614 = vpop.f32.mrb[0].mxu0
      %v2615 = vadd.f32 %v471, %v2614
      %v2616 = vpop.f32.mrb[0].mxu0
      %2617 = vmatprep.mubr.bf16.mxu0 %v1426
      %2618 = vmatmul.mubr.bf16.gmra.mrb[0].mxu0 %v1425
      %v2619 = vpop.f32.mrb[0].mxu0
      %v2620 = vadd.f32 %v471, %v2619
      %v2621 = vpop.f32.mrb[0].mxu0
      %v2622 = vpop.f32.mrb[0].mxu0
      %v2623 = vadd.f32 %v471, %v2622
      %v2624 = vpop.f32.mrb[0].mxu0
      %2625 = vmatprep.mubr.bf16.mxu0 %v1428
      %2626 = vmatmul.mubr.bf16.gmra.mrb[0].mxu0 %v1427
      %v2627 = vpop.f32.mrb[0].mxu0
      %v2628 = vadd.f32 %v471, %v2627
      %v2629 = vpop.f32.mrb[0].mxu0
      %v2630 = vpop.f32.mrb[0].mxu0
      %v2631 = vadd.f32 %v471, %v2630
      %v2632 = vpop.f32.mrb[0].mxu0
      %2633 = vmatprep.mubr.bf16.mxu0 %v1430
      %2634 = vmatmul.mubr.bf16.gmra.mrb[0].mxu0 %v1429
      %v2635 = vpop.f32.mrb[0].mxu0
      %v2636 = vadd.f32 %v471, %v2635
      %v2637 = vpop.f32.mrb[0].mxu0
      %v2638 = vpop.f32.mrb[0].mxu0
      %v2639 = vadd.f32 %v471, %v2638
      %v2640 = vpop.f32.mrb[0].mxu0
      %2641 = vmatprep.mubr.bf16.mxu0 %v1432
      %2642 = vmatmul.mubr.bf16.gmra.mrb[0].mxu0 %v1431
      %v2643 = vpop.f32.mrb[0].mxu0
      %v2644 = vadd.f32 %v471, %v2643
      %v2645 = vpop.f32.mrb[0].mxu0
      %v2646 = vpop.f32.mrb[0].mxu0
      %v2647 = vadd.f32 %v471, %v2646
      %v2648 = vpop.f32.mrb[0].mxu0
      %2649 = vmatprep.mubr.bf16.mxu0 %v1434
      %2650 = vmatmul.mubr.bf16.gmra.mrb[0].mxu0 %v1433
      %v2651 = vpop.f32.mrb[0].mxu0
      %v2652 = vadd.f32 %v471, %v2651
      %v2653 = vpop.f32.mrb[0].mxu0
      %v2654 = vpop.f32.mrb[0].mxu0
      %v2655 = vadd.f32 %v471, %v2654
      %v2656 = vpop.f32.mrb[0].mxu0
      %2657 = vmatprep.mubr.bf16.mxu0 %v1436
      %2658 = vmatmul.mubr.bf16.gmra.mrb[0].mxu0 %v1435
      %v2659 = vpop.f32.mrb[0].mxu0
      %v2660 = vadd.f32 %v471, %v2659
      %v2661 = vpop.f32.mrb[0].mxu0
      %v2662 = vpop.f32.mrb[0].mxu0
      %v2663 = vadd.f32 %v471, %v2662
      %v2664 = vpop.f32.mrb[0].mxu0
      %2665 = vmatprep.mubr.bf16.mxu0 %v1438
      %2666 = vmatmul.mubr.bf16.gmra.mrb[0].mxu0 %v1437
      %v2667 = vpop.f32.mrb[0].mxu0
      %v2668 = vadd.f32 %v471, %v2667
      %v2669 = vpop.f32.mrb[0].mxu0
      %v2670 = vpop.f32.mrb[0].mxu0
      %v2671 = vadd.f32 %v471, %v2670
      %v2672 = vpop.f32.mrb[0].mxu0
      %2673 = vmatprep.mubr.bf16.mxu0 %v1440
      %2674 = vmatmul.mubr.bf16.gmra.mrb[0].mxu0 %v1439
      %v2675 = vpop.f32.mrb[0].mxu0
      %v2676 = vadd.f32 %v471, %v2675
      %v2677 = vpop.f32.mrb[0].mxu0
      %v2678 = vpop.f32.mrb[0].mxu0
      %v2679 = vadd.f32 %v471, %v2678
      %v2680 = vpop.f32.mrb[0].mxu0
      %2681 = vmatprep.mubr.bf16.mxu0 %v1442
      %2682 = vmatmul.mubr.bf16.gmra.mrb[0].mxu0 %v1441
      %v2683 = vpop.f32.mrb[0].mxu0
      %v2684 = vadd.f32 %v471, %v2683
      %v2685 = vpop.f32.mrb[0].mxu0
      %v2686 = vpop.f32.mrb[0].mxu0
      %v2687 = vadd.f32 %v471, %v2686
      %v2688 = vpop.f32.mrb[0].mxu0
      %2689 = vmatprep.mubr.bf16.mxu0 %v1444
      %2690 = vmatmul.mubr.bf16.gmra.mrb[0].mxu0 %v1443
      %v2691 = vpop.f32.mrb[0].mxu0
      %v2692 = vadd.f32 %v471, %v2691
      %v2693 = vpop.f32.mrb[0].mxu0
      %v2694 = vpop.f32.mrb[0].mxu0
      %v2695 = vadd.f32 %v471, %v2694
      %v2696 = vpop.f32.mrb[0].mxu0
      %2697 = vmatprep.mubr.bf16.mxu0 %v1446
      %2698 = vmatmul.mubr.bf16.gmra.mrb[0].mxu0 %v1445
      %v2699 = vpop.f32.mrb[0].mxu0
      %v2700 = vadd.f32 %v471, %v2699
      %v2701 = vpop.f32.mrb[0].mxu0
      %v2702 = vpop.f32.mrb[0].mxu0
      %v2703 = vadd.f32 %v471, %v2702
      %v2704 = vpop.f32.mrb[0].mxu0
      %2705 = vmatprep.mubr.bf16.mxu0 %v1448
      %2706 = vmatmul.mubr.bf16.gmra.mrb[0].mxu0 %v1447
      %v2707 = vpop.f32.mrb[0].mxu0
      %v2708 = vadd.f32 %v471, %v2707
      %v2709 = vpop.f32.mrb[0].mxu0
      %v2710 = vpop.f32.mrb[0].mxu0
      %v2711 = vadd.f32 %v471, %v2710
      %v2712 = vpop.f32.mrb[0].mxu0
      %2713 = vmatprep.mubr.bf16.mxu0 %v1450
      %2714 = vmatmul.mubr.bf16.gmra.mrb[0].mxu0 %v1449
      %v2715 = vpop.f32.mrb[0].mxu0
      %v2716 = vadd.f32 %v471, %v2715
      %v2717 = vpop.f32.mrb[0].mxu0
      %v2718 = vpop.f32.mrb[0].mxu0
      %v2719 = vadd.f32 %v471, %v2718
      %v2720 = vpop.f32.mrb[0].mxu0
      %2721 = vmatprep.mubr.bf16.mxu0 %v1452
      %2722 = vmatmul.mubr.bf16.gmra.mrb[0].mxu0 %v1451
      %v2723 = vpop.f32.mrb[0].mxu0
      %v2724 = vadd.f32 %v471, %v2723
      %v2725 = vpop.f32.mrb[0].mxu0
      %v2726 = vpop.f32.mrb[0].mxu0
      %v2727 = vadd.f32 %v471, %v2726
      %v2728 = vpop.f32.mrb[0].mxu0
      %2729 = vmatprep.mubr.bf16.mxu0 %v1454
      %2730 = vmatmul.mubr.bf16.gmra.mrb[0].mxu0 %v1453
      %v2731 = vpop.f32.mrb[0].mxu0
      %v2732 = vadd.f32 %v471, %v2731
      %v2733 = vpop.f32.mrb[0].mxu0
      %v2734 = vpop.f32.mrb[0].mxu0
      %v2735 = vadd.f32 %v471, %v2734
      %v2736 = vpop.f32.mrb[0].mxu0
      %2737 = vmatprep.mubr.bf16.mxu0 %v1456
      %2738 = vmatmul.mubr.bf16.gmra.mrb[0].mxu0 %v1455
      %v2739 = vpop.f32.mrb[0].mxu0
      %v2740 = vadd.f32 %v471, %v2739
      %v2741 = vpop.f32.mrb[0].mxu0
      %v2742 = vpop.f32.mrb[0].mxu0
      %v2743 = vadd.f32 %v471, %v2742
      %v2744 = vpop.f32.mrb[0].mxu0
      %2745 = vmatprep.mubr.bf16.mxu0 %v1458
      %2746 = vmatmul.mubr.bf16.gmra.mrb[0].mxu0 %v1457
      %v2747 = vpop.f32.mrb[0].mxu0
      %v2748 = vadd.f32 %v471, %v2747
      %v2749 = vpop.f32.mrb[0].mxu0
      %v2750 = vpop.f32.mrb[0].mxu0
      %v2751 = vadd.f32 %v471, %v2750
      %v2752 = vpop.f32.mrb[0].mxu0
      %2753 = vmatprep.mubr.bf16.mxu0 %v1460
      %2754 = vmatmul.mubr.bf16.gmra.mrb[0].mxu0 %v1459
      %v2755 = vpop.f32.mrb[0].mxu0
      %v2756 = vadd.f32 %v471, %v2755
      %v2757 = vpop.f32.mrb[0].mxu0
      %v2758 = vpop.f32.mrb[0].mxu0
      %v2759 = vadd.f32 %v471, %v2758
      %v2760 = vpop.f32.mrb[0].mxu0
      %2761 = vmatprep.mubr.bf16.mxu0 %v1462
      %2762 = vmatmul.mubr.bf16.gmra.mrb[0].mxu0 %v1461
      %v2763 = vpop.f32.mrb[0].mxu0
      %v2764 = vadd.f32 %v471, %v2763
      %v2765 = vpop.f32.mrb[0].mxu0
      %v2766 = vpop.f32.mrb[0].mxu0
      %v2767 = vadd.f32 %v471, %v2766
      %v2768 = vpop.f32.mrb[0].mxu0
      %2769 = vmatprep.mubr.bf16.mxu0 %v1464
      %2770 = vmatmul.mubr.bf16.gmra.mrb[0].mxu0 %v1463
      %v2771 = vpop.f32.mrb[0].mxu0
      %v2772 = vadd.f32 %v471, %v2771
      %v2773 = vpop.f32.mrb[0].mxu0
      %v2774 = vpop.f32.mrb[0].mxu0
      %v2775 = vadd.f32 %v471, %v2774
      %v2776 = vpop.f32.mrb[0].mxu0
      %2777 = vmatprep.mubr.bf16.mxu0 %v1466
      %2778 = vmatmul.mubr.bf16.gmra.mrb[0].mxu0 %v1465
      %v2779 = vpop.f32.mrb[0].mxu0
      %v2780 = vadd.f32 %v471, %v2779
      %v2781 = vpop.f32.mrb[0].mxu0
      %v2782 = vpop.f32.mrb[0].mxu0
      %v2783 = vadd.f32 %v471, %v2782
      %v2784 = vpop.f32.mrb[0].mxu0
      %2785 = vmatprep.mubr.bf16.mxu0 %v1468
      %2786 = vmatmul.mubr.bf16.gmra.mrb[0].mxu0 %v1467
      %v2787 = vpop.f32.mrb[0].mxu0
      %v2788 = vadd.f32 %v471, %v2787
      %v2789 = vpop.f32.mrb[0].mxu0
      %v2790 = vpop.f32.mrb[0].mxu0
      %v2791 = vadd.f32 %v471, %v2790
      %v2792 = vpop.f32.mrb[0].mxu0
      %2793 = vmatprep.mubr.bf16.mxu0 %v1470
      %2794 = vmatmul.mubr.bf16.gmra.mrb[0].mxu0 %v1469
      %v2795 = vpop.f32.mrb[0].mxu0
      %v2796 = vadd.f32 %v471, %v2795
      %v2797 = vpop.f32.mrb[0].mxu0
      %v2798 = vpop.f32.mrb[0].mxu0
      %v2799 = vadd.f32 %v471, %v2798
      %v2800 = vpop.f32.mrb[0].mxu0
      %2801 = vmatprep.mubr.bf16.mxu0 %v1472
      %2802 = vmatmul.mubr.bf16.gmra.mrb[0].mxu0 %v1471
      %v2803 = vpop.f32.mrb[0].mxu0
      %v2804 = vadd.f32 %v471, %v2803
      %v2805 = vpop.f32.mrb[0].mxu0
      %v2806 = vpop.f32.mrb[0].mxu0
      %v2807 = vadd.f32 %v471, %v2806
      %v2808 = vpop.f32.mrb[0].mxu0
      %2809 = vmatprep.mubr.bf16.mxu0 %v1474
      %2810 = vmatmul.mubr.bf16.gmra.mrb[0].mxu0 %v1473
      %v2811 = vpop.f32.mrb[0].mxu0
      %v2812 = vadd.f32 %v471, %v2811
      %v2813 = vpop.f32.mrb[0].mxu0
      %v2814 = vpop.f32.mrb[0].mxu0
      %v2815 = vadd.f32 %v471, %v2814
      %v2816 = vpop.f32.mrb[0].mxu0
      %2817 = vmatprep.mubr.bf16.mxu0 %v1476
      %2818 = vmatmul.mubr.bf16.gmra.mrb[0].mxu0 %v1475
      %v2819 = vpop.f32.mrb[0].mxu0
      %v2820 = vadd.f32 %v471, %v2819
      %v2821 = vpop.f32.mrb[0].mxu0
      %v2822 = vpop.f32.mrb[0].mxu0
      %v2823 = vadd.f32 %v471, %v2822
      %v2824 = vpop.f32.mrb[0].mxu0
      %2825 = vmatprep.mubr.bf16.mxu0 %v1478
      %2826 = vmatmul.mubr.bf16.gmra.mrb[0].mxu0 %v1477
      %v2827 = vpop.f32.mrb[0].mxu0
      %v2828 = vadd.f32 %v471, %v2827
      %v2829 = vpop.f32.mrb[0].mxu0
      %v2830 = vpop.f32.mrb[0].mxu0
      %v2831 = vadd.f32 %v471, %v2830
      %v2832 = vpop.f32.mrb[0].mxu0
      %2833 = vmatprep.mubr.bf16.mxu0 %v1480
      %2834 = vmatmul.mubr.bf16.gmra.mrb[0].mxu0 %v1479
      %v2835 = vpop.f32.mrb[0].mxu0
      %v2836 = vadd.f32 %v471, %v2835
      %v2837 = vpop.f32.mrb[0].mxu0
      %v2838 = vpop.f32.mrb[0].mxu0
      %v2839 = vadd.f32 %v471, %v2838
      %v2840 = vpop.f32.mrb[0].mxu0
      %2841 = vmatprep.mubr.bf16.mxu0 %v1482
      %2842 = vmatmul.mubr.bf16.gmra.mrb[0].mxu0 %v1481
      %v2843 = vpop.f32.mrb[0].mxu0
      %v2844 = vadd.f32 %v471, %v2843
      %v2845 = vpop.f32.mrb[0].mxu0
      %v2846 = vpop.f32.mrb[0].mxu0
      %v2847 = vadd.f32 %v471, %v2846
      %v2848 = vpop.f32.mrb[0].mxu0
      %2849 = vmatprep.mubr.bf16.mxu0 %v1484
      %2850 = vmatmul.mubr.bf16.gmra.mrb[0].mxu0 %v1483
      %v2851 = vpop.f32.mrb[0].mxu0
      %v2852 = vadd.f32 %v471, %v2851
      %v2853 = vpop.f32.mrb[0].mxu0
      %v2854 = vpop.f32.mrb[0].mxu0
      %v2855 = vadd.f32 %v471, %v2854
      %v2856 = vpop.f32.mrb[0].mxu0
      %2857 = vmatprep.mubr.bf16.mxu0 %v1486
      %2858 = vmatmul.mubr.bf16.gmra.mrb[0].mxu0 %v1485
      %v2859 = vpop.f32.mrb[0].mxu0
      %v2860 = vadd.f32 %v471, %v2859
      %v2861 = vpop.f32.mrb[0].mxu0
      %v2862 = vpop.f32.mrb[0].mxu0
      %v2863 = vadd.f32 %v471, %v2862
      %v2864 = vpop.f32.mrb[0].mxu0
      %2865 = vmatprep.mubr.bf16.mxu0 %v1488
      %2866 = vmatmul.mubr.bf16.gmra.mrb[0].mxu0 %v1487
      %v2867 = vpop.f32.mrb[0].mxu0
      %v2868 = vadd.f32 %v471, %v2867
      %v2869 = vpop.f32.mrb[0].mxu0
      %v2870 = vpop.f32.mrb[0].mxu0
      %v2871 = vadd.f32 %v471, %v2870
      %v2872 = vpop.f32.mrb[0].mxu0
      %2873 = vmatprep.mubr.bf16.mxu0 %v1490
      %2874 = vmatmul.mubr.bf16.gmra.mrb[0].mxu0 %v1489
      %v2875 = vpop.f32.mrb[0].mxu0
      %v2876 = vadd.f32 %v471, %v2875
      %v2877 = vpop.f32.mrb[0].mxu0
      %v2878 = vpop.f32.mrb[0].mxu0
      %v2879 = vadd.f32 %v471, %v2878
      %v2880 = vpop.f32.mrb[0].mxu0
      %2881 = vmatprep.mubr.bf16.mxu0 %v1492
      %2882 = vmatmul.mubr.bf16.gmra.mrb[0].mxu0 %v1491
      %v2883 = vpop.f32.mrb[0].mxu0
      %v2884 = vadd.f32 %v471, %v2883
      %v2885 = vpop.f32.mrb[0].mxu0
      %v2886 = vpop.f32.mrb[0].mxu0
      %v2887 = vadd.f32 %v471, %v2886
      %v2888 = vpop.f32.mrb[0].mxu0
      %2889 = vmatprep.mubr.bf16.mxu0 %v1494
      %2890 = vmatmul.mubr.bf16.gmra.mrb[0].mxu0 %v1493
      %v2891 = vpop.f32.mrb[0].mxu0
      %v2892 = vadd.f32 %v471, %v2891
      %v2893 = vpop.f32.mrb[0].mxu0
      %v2894 = vpop.f32.mrb[0].mxu0
      %v2895 = vadd.f32 %v471, %v2894
      %v2896 = vpop.f32.mrb[0].mxu0
      %2897 = vmatprep.mubr.bf16.mxu0 %v1496
      %2898 = vmatmul.mubr.bf16.gmra.mrb[0].mxu0 %v1495
      %v2899 = vpop.f32.mrb[0].mxu0
      %v2900 = vadd.f32 %v471, %v2899
      %v2901 = vpop.f32.mrb[0].mxu0
      %v2902 = vpop.f32.mrb[0].mxu0
      %v2903 = vadd.f32 %v471, %v2902
      %v2904 = vpop.f32.mrb[0].mxu0
      %2905 = vdwg.mxu0
      %v2906 = vmax.f32 %v1884, 0.0
      %v2907 = vmax.f32 %v1887, 0.0
      %v2908 = vmax.f32 %v1892, 0.0
      %v2909 = vmax.f32 %v1895, 0.0
      %v2910 = vmax.f32 %v1900, 0.0
      %v2911 = vmax.f32 %v1903, 0.0
      %v2912 = vmax.f32 %v1908, 0.0
      %v2913 = vmax.f32 %v1911, 0.0
      %v2914 = vmax.f32 %v1916, 0.0
      %v2915 = vmax.f32 %v1919, 0.0
      %v2916 = vmax.f32 %v1924, 0.0
      %v2917 = vmax.f32 %v1927, 0.0
      %v2918 = vmax.f32 %v1932, 0.0
      %v2919 = vmax.f32 %v1935, 0.0
      %v2920 = vmax.f32 %v1940, 0.0
      %v2921 = vmax.f32 %v1943, 0.0
      %v2922 = vmax.f32 %v1948, 0.0
      %v2923 = vmax.f32 %v1951, 0.0
      %v2924 = vmax.f32 %v1956, 0.0
      %v2925 = vmax.f32 %v1959, 0.0
      %v2926 = vmax.f32 %v1964, 0.0
      %v2927 = vmax.f32 %v1967, 0.0
      %v2928 = vmax.f32 %v1972, 0.0
      %v2929 = vmax.f32 %v1975, 0.0
      %v2930 = vmax.f32 %v1980, 0.0
      %v2931 = vmax.f32 %v1983, 0.0
      %v2932 = vmax.f32 %v1988, 0.0
      %v2933 = vmax.f32 %v1991, 0.0
      %v2934 = vmax.f32 %v1996, 0.0
      %v2935 = vmax.f32 %v1999, 0.0
      %v2936 = vmax.f32 %v2004, 0.0
      %v2937 = vmax.f32 %v2007, 0.0
      %v2938 = vmax.f32 %v2012, 0.0
      %v2939 = vmax.f32 %v2015, 0.0
      %v2940 = vmax.f32 %v2020, 0.0
      %v2941 = vmax.f32 %v2023, 0.0
      %v2942 = vmax.f32 %v2028, 0.0
      %v2943 = vmax.f32 %v2031, 0.0
      %v2944 = vmax.f32 %v2036, 0.0
      %v2945 = vmax.f32 %v2039, 0.0
      %v2946 = vmax.f32 %v2044, 0.0
      %v2947 = vmax.f32 %v2047, 0.0
      %v2948 = vmax.f32 %v2052, 0.0
      %v2949 = vmax.f32 %v2055, 0.0
      %v2950 = vmax.f32 %v2060, 0.0
      %v2951 = vmax.f32 %v2063, 0.0
      %v2952 = vmax.f32 %v2068, 0.0
      %v2953 = vmax.f32 %v2071, 0.0
      %v2954 = vmax.f32 %v2076, 0.0
      %v2955 = vmax.f32 %v2079, 0.0
      %v2956 = vmax.f32 %v2084, 0.0
      %v2957 = vmax.f32 %v2087, 0.0
      %v2958 = vmax.f32 %v2092, 0.0
      %v2959 = vmax.f32 %v2095, 0.0
      %v2960 = vmax.f32 %v2100, 0.0
      %v2961 = vmax.f32 %v2103, 0.0
      %v2962 = vmax.f32 %v2108, 0.0
      %v2963 = vmax.f32 %v2111, 0.0
      %v2964 = vmax.f32 %v2116, 0.0
      %v2965 = vmax.f32 %v2119, 0.0
      %v2966 = vmax.f32 %v2124, 0.0
      %v2967 = vmax.f32 %v2127, 0.0
      %v2968 = vmax.f32 %v2132, 0.0
      %v2969 = vmax.f32 %v2135, 0.0
      %v2970 = vmax.f32 %v2140, 0.0
      %v2971 = vmax.f32 %v2143, 0.0
      %v2972 = vmax.f32 %v2148, 0.0
      %v2973 = vmax.f32 %v2151, 0.0
      %v2974 = vmax.f32 %v2156, 0.0
      %v2975 = vmax.f32 %v2159, 0.0
      %v2976 = vmax.f32 %v2164, 0.0
      %v2977 = vmax.f32 %v2167, 0.0
      %v2978 = vmax.f32 %v2172, 0.0
      %v2979 = vmax.f32 %v2175, 0.0
      %v2980 = vmax.f32 %v2180, 0.0
      %v2981 = vmax.f32 %v2183, 0.0
      %v2982 = vmax.f32 %v2188, 0.0
      %v2983 = vmax.f32 %v2191, 0.0
      %v2984 = vmax.f32 %v2196, 0.0
      %v2985 = vmax.f32 %v2199, 0.0
      %v2986 = vmax.f32 %v2204, 0.0
      %v2987 = vmax.f32 %v2207, 0.0
      %v2988 = vmax.f32 %v2212, 0.0
      %v2989 = vmax.f32 %v2215, 0.0
      %v2990 = vmax.f32 %v2220, 0.0
      %v2991 = vmax.f32 %v2223, 0.0
      %v2992 = vmax.f32 %v2228, 0.0
      %v2993 = vmax.f32 %v2231, 0.0
      %v2994 = vmax.f32 %v2236, 0.0
      %v2995 = vmax.f32 %v2239, 0.0
      %v2996 = vmax.f32 %v2244, 0.0
      %v2997 = vmax.f32 %v2247, 0.0
      %v2998 = vmax.f32 %v2252, 0.0
      %v2999 = vmax.f32 %v2255, 0.0
      %v3000 = vmax.f32 %v2260, 0.0
      %v3001 = vmax.f32 %v2263, 0.0
      %v3002 = vmax.f32 %v2268, 0.0
      %v3003 = vmax.f32 %v2271, 0.0
      %v3004 = vmax.f32 %v2276, 0.0
      %v3005 = vmax.f32 %v2279, 0.0
      %v3006 = vmax.f32 %v2284, 0.0
      %v3007 = vmax.f32 %v2287, 0.0
      %v3008 = vmax.f32 %v2292, 0.0
      %v3009 = vmax.f32 %v2295, 0.0
      %v3010 = vmax.f32 %v2300, 0.0
      %v3011 = vmax.f32 %v2303, 0.0
      %v3012 = vmax.f32 %v2308, 0.0
      %v3013 = vmax.f32 %v2311, 0.0
      %v3014 = vmax.f32 %v2316, 0.0
      %v3015 = vmax.f32 %v2319, 0.0
      %v3016 = vmax.f32 %v2324, 0.0
      %v3017 = vmax.f32 %v2327, 0.0
      %v3018 = vmax.f32 %v2332, 0.0
      %v3019 = vmax.f32 %v2335, 0.0
      %v3020 = vmax.f32 %v2340, 0.0
      %v3021 = vmax.f32 %v2343, 0.0
      %v3022 = vmax.f32 %v2348, 0.0
      %v3023 = vmax.f32 %v2351, 0.0
      %v3024 = vmax.f32 %v2356, 0.0
      %v3025 = vmax.f32 %v2359, 0.0
      %v3026 = vmax.f32 %v2364, 0.0
      %v3027 = vmax.f32 %v2367, 0.0
      %v3028 = vmax.f32 %v2372, 0.0
      %v3029 = vmax.f32 %v2375, 0.0
      %v3030 = vmax.f32 %v2380, 0.0
      %v3031 = vmax.f32 %v2383, 0.0
      %v3032 = vmax.f32 %v2388, 0.0
      %v3033 = vmax.f32 %v2391, 0.0
      %v3034 = vmax.f32 %v2396, 0.0
      %v3035 = vmax.f32 %v2399, 0.0
      %v3036 = vmax.f32 %v2404, 0.0
      %v3037 = vmax.f32 %v2407, 0.0
      %v3038 = vmax.f32 %v2412, 0.0
      %v3039 = vmax.f32 %v2415, 0.0
      %v3040 = vmax.f32 %v2420, 0.0
      %v3041 = vmax.f32 %v2423, 0.0
      %v3042 = vmax.f32 %v2428, 0.0
      %v3043 = vmax.f32 %v2431, 0.0
      %v3044 = vmax.f32 %v2436, 0.0
      %v3045 = vmax.f32 %v2439, 0.0
      %v3046 = vmax.f32 %v2444, 0.0
      %v3047 = vmax.f32 %v2447, 0.0
      %v3048 = vmax.f32 %v2452, 0.0
      %v3049 = vmax.f32 %v2455, 0.0
      %v3050 = vmax.f32 %v2460, 0.0
      %v3051 = vmax.f32 %v2463, 0.0
      %v3052 = vmax.f32 %v2468, 0.0
      %v3053 = vmax.f32 %v2471, 0.0
      %v3054 = vmax.f32 %v2476, 0.0
      %v3055 = vmax.f32 %v2479, 0.0
      %v3056 = vmax.f32 %v2484, 0.0
      %v3057 = vmax.f32 %v2487, 0.0
      %v3058 = vmax.f32 %v2492, 0.0
      %v3059 = vmax.f32 %v2495, 0.0
      %v3060 = vmax.f32 %v2500, 0.0
      %v3061 = vmax.f32 %v2503, 0.0
      %v3062 = vmax.f32 %v2508, 0.0
      %v3063 = vmax.f32 %v2511, 0.0
      %v3064 = vmax.f32 %v2516, 0.0
      %v3065 = vmax.f32 %v2519, 0.0
      %v3066 = vmax.f32 %v2524, 0.0
      %v3067 = vmax.f32 %v2527, 0.0
      %v3068 = vmax.f32 %v2532, 0.0
      %v3069 = vmax.f32 %v2535, 0.0
      %v3070 = vmax.f32 %v2540, 0.0
      %v3071 = vmax.f32 %v2543, 0.0
      %v3072 = vmax.f32 %v2548, 0.0
      %v3073 = vmax.f32 %v2551, 0.0
      %v3074 = vmax.f32 %v2556, 0.0
      %v3075 = vmax.f32 %v2559, 0.0
      %v3076 = vmax.f32 %v2564, 0.0
      %v3077 = vmax.f32 %v2567, 0.0
      %v3078 = vmax.f32 %v2572, 0.0
      %v3079 = vmax.f32 %v2575, 0.0
      %v3080 = vmax.f32 %v2580, 0.0
      %v3081 = vmax.f32 %v2583, 0.0
      %v3082 = vmax.f32 %v2588, 0.0
      %v3083 = vmax.f32 %v2591, 0.0
      %v3084 = vmax.f32 %v2596, 0.0
      %v3085 = vmax.f32 %v2599, 0.0
      %v3086 = vmax.f32 %v2604, 0.0
      %v3087 = vmax.f32 %v2607, 0.0
      %v3088 = vmax.f32 %v2612, 0.0
      %v3089 = vmax.f32 %v2615, 0.0
      %v3090 = vmax.f32 %v2620, 0.0
      %v3091 = vmax.f32 %v2623, 0.0
      %v3092 = vmax.f32 %v2628, 0.0
      %v3093 = vmax.f32 %v2631, 0.0
      %v3094 = vmax.f32 %v2636, 0.0
      %v3095 = vmax.f32 %v2639, 0.0
      %v3096 = vmax.f32 %v2644, 0.0
      %v3097 = vmax.f32 %v2647, 0.0
      %v3098 = vmax.f32 %v2652, 0.0
      %v3099 = vmax.f32 %v2655, 0.0
      %v3100 = vmax.f32 %v2660, 0.0
      %v3101 = vmax.f32 %v2663, 0.0
      %v3102 = vmax.f32 %v2668, 0.0
      %v3103 = vmax.f32 %v2671, 0.0
      %v3104 = vmax.f32 %v2676, 0.0
      %v3105 = vmax.f32 %v2679, 0.0
      %v3106 = vmax.f32 %v2684, 0.0
      %v3107 = vmax.f32 %v2687, 0.0
      %v3108 = vmax.f32 %v2692, 0.0
      %v3109 = vmax.f32 %v2695, 0.0
      %v3110 = vmax.f32 %v2700, 0.0
      %v3111 = vmax.f32 %v2703, 0.0
      %v3112 = vmax.f32 %v2708, 0.0
      %v3113 = vmax.f32 %v2711, 0.0
      %v3114 = vmax.f32 %v2716, 0.0
      %v3115 = vmax.f32 %v2719, 0.0
      %v3116 = vmax.f32 %v2724, 0.0
      %v3117 = vmax.f32 %v2727, 0.0
      %v3118 = vmax.f32 %v2732, 0.0
      %v3119 = vmax.f32 %v2735, 0.0
      %v3120 = vmax.f32 %v2740, 0.0
      %v3121 = vmax.f32 %v2743, 0.0
      %v3122 = vmax.f32 %v2748, 0.0
      %v3123 = vmax.f32 %v2751, 0.0
      %v3124 = vmax.f32 %v2756, 0.0
      %v3125 = vmax.f32 %v2759, 0.0
      %v3126 = vmax.f32 %v2764, 0.0
      %v3127 = vmax.f32 %v2767, 0.0
      %v3128 = vmax.f32 %v2772, 0.0
      %v3129 = vmax.f32 %v2775, 0.0
      %v3130 = vmax.f32 %v2780, 0.0
      %v3131 = vmax.f32 %v2783, 0.0
      %v3132 = vmax.f32 %v2788, 0.0
      %v3133 = vmax.f32 %v2791, 0.0
      %v3134 = vmax.f32 %v2796, 0.0
      %v3135 = vmax.f32 %v2799, 0.0
      %v3136 = vmax.f32 %v2804, 0.0
      %v3137 = vmax.f32 %v2807, 0.0
      %v3138 = vmax.f32 %v2812, 0.0
      %v3139 = vmax.f32 %v2815, 0.0
      %v3140 = vmax.f32 %v2820, 0.0
      %v3141 = vmax.f32 %v2823, 0.0
      %v3142 = vmax.f32 %v2828, 0.0
      %v3143 = vmax.f32 %v2831, 0.0
      %v3144 = vmax.f32 %v2836, 0.0
      %v3145 = vmax.f32 %v2839, 0.0
      %v3146 = vmax.f32 %v2844, 0.0
      %v3147 = vmax.f32 %v2847, 0.0
      %v3148 = vmax.f32 %v2852, 0.0
      %v3149 = vmax.f32 %v2855, 0.0
      %v3150 = vmax.f32 %v2860, 0.0
      %v3151 = vmax.f32 %v2863, 0.0
      %v3152 = vmax.f32 %v2868, 0.0
      %v3153 = vmax.f32 %v2871, 0.0
      %v3154 = vmax.f32 %v2876, 0.0
      %v3155 = vmax.f32 %v2879, 0.0
      %v3156 = vmax.f32 %v2884, 0.0
      %v3157 = vmax.f32 %v2887, 0.0
      %v3158 = vmax.f32 %v2892, 0.0
      %v3159 = vmax.f32 %v2895, 0.0
      %v3160 = vmax.f32 %v2900, 0.0
      %v3161 = vmax.f32 %v2903, 0.0
      %v3162 = vpack.c.bf16 %v2907, %v2906
      %v3163 = vpack.c.bf16 %v2909, %v2908
      %v3164 = vpack.c.bf16 %v2911, %v2910
      %v3165 = vpack.c.bf16 %v2913, %v2912
      %v3166 = vpack.c.bf16 %v2915, %v2914
      %v3167 = vpack.c.bf16 %v2917, %v2916
      %v3168 = vpack.c.bf16 %v2919, %v2918
      %v3169 = vpack.c.bf16 %v2921, %v2920
      %v3170 = vpack.c.bf16 %v2923, %v2922
      %v3171 = vpack.c.bf16 %v2925, %v2924
      %v3172 = vpack.c.bf16 %v2927, %v2926
      %v3173 = vpack.c.bf16 %v2929, %v2928
      %v3174 = vpack.c.bf16 %v2931, %v2930
      %v3175 = vpack.c.bf16 %v2933, %v2932
      %v3176 = vpack.c.bf16 %v2935, %v2934
      %v3177 = vpack.c.bf16 %v2937, %v2936
      %v3178 = vpack.c.bf16 %v2939, %v2938
      %v3179 = vpack.c.bf16 %v2941, %v2940
      %v3180 = vpack.c.bf16 %v2943, %v2942
      %v3181 = vpack.c.bf16 %v2945, %v2944
      %v3182 = vpack.c.bf16 %v2947, %v2946
      %v3183 = vpack.c.bf16 %v2949, %v2948
      %v3184 = vpack.c.bf16 %v2951, %v2950
      %v3185 = vpack.c.bf16 %v2953, %v2952
      %v3186 = vpack.c.bf16 %v2955, %v2954
      %v3187 = vpack.c.bf16 %v2957, %v2956
      %v3188 = vpack.c.bf16 %v2959, %v2958
      %v3189 = vpack.c.bf16 %v2961, %v2960
      %v3190 = vpack.c.bf16 %v2963, %v2962
      %v3191 = vpack.c.bf16 %v2965, %v2964
      %v3192 = vpack.c.bf16 %v2967, %v2966
      %v3193 = vpack.c.bf16 %v2969, %v2968
      %v3194 = vpack.c.bf16 %v2971, %v2970
      %v3195 = vpack.c.bf16 %v2973, %v2972
      %v3196 = vpack.c.bf16 %v2975, %v2974
      %v3197 = vpack.c.bf16 %v2977, %v2976
      %v3198 = vpack.c.bf16 %v2979, %v2978
      %v3199 = vpack.c.bf16 %v2981, %v2980
      %v3200 = vpack.c.bf16 %v2983, %v2982
      %v3201 = vpack.c.bf16 %v2985, %v2984
      %v3202 = vpack.c.bf16 %v2987, %v2986
      %v3203 = vpack.c.bf16 %v2989, %v2988
      %v3204 = vpack.c.bf16 %v2991, %v2990
      %v3205 = vpack.c.bf16 %v2993, %v2992
      %v3206 = vpack.c.bf16 %v2995, %v2994
      %v3207 = vpack.c.bf16 %v2997, %v2996
      %v3208 = vpack.c.bf16 %v2999, %v2998
      %v3209 = vpack.c.bf16 %v3001, %v3000
      %v3210 = vpack.c.bf16 %v3003, %v3002
      %v3211 = vpack.c.bf16 %v3005, %v3004
      %v3212 = vpack.c.bf16 %v3007, %v3006
      %v3213 = vpack.c.bf16 %v3009, %v3008
      %v3214 = vpack.c.bf16 %v3011, %v3010
      %v3215 = vpack.c.bf16 %v3013, %v3012
      %v3216 = vpack.c.bf16 %v3015, %v3014
      %v3217 = vpack.c.bf16 %v3017, %v3016
      %v3218 = vpack.c.bf16 %v3019, %v3018
      %v3219 = vpack.c.bf16 %v3021, %v3020
      %v3220 = vpack.c.bf16 %v3023, %v3022
      %v3221 = vpack.c.bf16 %v3025, %v3024
      %v3222 = vpack.c.bf16 %v3027, %v3026
      %v3223 = vpack.c.bf16 %v3029, %v3028
      %v3224 = vpack.c.bf16 %v3031, %v3030
      %v3225 = vpack.c.bf16 %v3033, %v3032
      %v3226 = vpack.c.bf16 %v3035, %v3034
      %v3227 = vpack.c.bf16 %v3037, %v3036
      %v3228 = vpack.c.bf16 %v3039, %v3038
      %v3229 = vpack.c.bf16 %v3041, %v3040
      %v3230 = vpack.c.bf16 %v3043, %v3042
      %v3231 = vpack.c.bf16 %v3045, %v3044
      %v3232 = vpack.c.bf16 %v3047, %v3046
      %v3233 = vpack.c.bf16 %v3049, %v3048
      %v3234 = vpack.c.bf16 %v3051, %v3050
      %v3235 = vpack.c.bf16 %v3053, %v3052
      %v3236 = vpack.c.bf16 %v3055, %v3054
      %v3237 = vpack.c.bf16 %v3057, %v3056
      %v3238 = vpack.c.bf16 %v3059, %v3058
      %v3239 = vpack.c.bf16 %v3061, %v3060
      %v3240 = vpack.c.bf16 %v3063, %v3062
      %v3241 = vpack.c.bf16 %v3065, %v3064
      %v3242 = vpack.c.bf16 %v3067, %v3066
      %v3243 = vpack.c.bf16 %v3069, %v3068
      %v3244 = vpack.c.bf16 %v3071, %v3070
      %v3245 = vpack.c.bf16 %v3073, %v3072
      %v3246 = vpack.c.bf16 %v3075, %v3074
      %v3247 = vpack.c.bf16 %v3077, %v3076
      %v3248 = vpack.c.bf16 %v3079, %v3078
      %v3249 = vpack.c.bf16 %v3081, %v3080
      %v3250 = vpack.c.bf16 %v3083, %v3082
      %v3251 = vpack.c.bf16 %v3085, %v3084
      %v3252 = vpack.c.bf16 %v3087, %v3086
      %v3253 = vpack.c.bf16 %v3089, %v3088
      %v3254 = vpack.c.bf16 %v3091, %v3090
      %v3255 = vpack.c.bf16 %v3093, %v3092
      %v3256 = vpack.c.bf16 %v3095, %v3094
      %v3257 = vpack.c.bf16 %v3097, %v3096
      %v3258 = vpack.c.bf16 %v3099, %v3098
      %v3259 = vpack.c.bf16 %v3101, %v3100
      %v3260 = vpack.c.bf16 %v3103, %v3102
      %v3261 = vpack.c.bf16 %v3105, %v3104
      %v3262 = vpack.c.bf16 %v3107, %v3106
      %v3263 = vpack.c.bf16 %v3109, %v3108
      %v3264 = vpack.c.bf16 %v3111, %v3110
      %v3265 = vpack.c.bf16 %v3113, %v3112
      %v3266 = vpack.c.bf16 %v3115, %v3114
      %v3267 = vpack.c.bf16 %v3117, %v3116
      %v3268 = vpack.c.bf16 %v3119, %v3118
      %v3269 = vpack.c.bf16 %v3121, %v3120
      %v3270 = vpack.c.bf16 %v3123, %v3122
      %v3271 = vpack.c.bf16 %v3125, %v3124
      %v3272 = vpack.c.bf16 %v3127, %v3126
      %v3273 = vpack.c.bf16 %v3129, %v3128
      %v3274 = vpack.c.bf16 %v3131, %v3130
      %v3275 = vpack.c.bf16 %v3133, %v3132
      %v3276 = vpack.c.bf16 %v3135, %v3134
      %v3277 = vpack.c.bf16 %v3137, %v3136
      %v3278 = vpack.c.bf16 %v3139, %v3138
      %v3279 = vpack.c.bf16 %v3141, %v3140
      %v3280 = vpack.c.bf16 %v3143, %v3142
      %v3281 = vpack.c.bf16 %v3145, %v3144
      %v3282 = vpack.c.bf16 %v3147, %v3146
      %v3283 = vpack.c.bf16 %v3149, %v3148
      %v3284 = vpack.c.bf16 %v3151, %v3150
      %v3285 = vpack.c.bf16 %v3153, %v3152
      %v3286 = vpack.c.bf16 %v3155, %v3154
      %v3287 = vpack.c.bf16 %v3157, %v3156
      %v3288 = vpack.c.bf16 %v3159, %v3158
      %v3289 = vpack.c.bf16 %v3161, %v3160
      %v3418 = vunpack.c.l.b16 %v3162
      %v3419 = vunpack.c.h.b16 %v3162
      %v3420 = vunpack.c.l.b16 %v3163
      %v3421 = vunpack.c.h.b16 %v3163
      %v3422 = vunpack.c.l.b16 %v3164
      %v3423 = vunpack.c.h.b16 %v3164
      %v3424 = vunpack.c.l.b16 %v3165
      %v3425 = vunpack.c.h.b16 %v3165
      %v3426 = vunpack.c.l.b16 %v3166
      %v3427 = vunpack.c.h.b16 %v3166
      %v3428 = vunpack.c.l.b16 %v3167
      %v3429 = vunpack.c.h.b16 %v3167
      %v3430 = vunpack.c.l.b16 %v3168
      %v3431 = vunpack.c.h.b16 %v3168
      %v3432 = vunpack.c.l.b16 %v3169
      %v3433 = vunpack.c.h.b16 %v3169
      %v3434 = vunpack.c.l.b16 %v3170
      %v3435 = vunpack.c.h.b16 %v3170
      %v3436 = vunpack.c.l.b16 %v3171
      %v3437 = vunpack.c.h.b16 %v3171
      %v3438 = vunpack.c.l.b16 %v3172
      %v3439 = vunpack.c.h.b16 %v3172
      %v3440 = vunpack.c.l.b16 %v3173
      %v3441 = vunpack.c.h.b16 %v3173
      %v3442 = vunpack.c.l.b16 %v3174
      %v3443 = vunpack.c.h.b16 %v3174
      %v3444 = vunpack.c.l.b16 %v3175
      %v3445 = vunpack.c.h.b16 %v3175
      %v3446 = vunpack.c.l.b16 %v3176
      %v3447 = vunpack.c.h.b16 %v3176
      %v3448 = vunpack.c.l.b16 %v3177
      %v3449 = vunpack.c.h.b16 %v3177
      %v3450 = vunpack.c.l.b16 %v3178
      %v3451 = vunpack.c.h.b16 %v3178
      %v3452 = vunpack.c.l.b16 %v3179
      %v3453 = vunpack.c.h.b16 %v3179
      %v3454 = vunpack.c.l.b16 %v3180
      %v3455 = vunpack.c.h.b16 %v3180
      %v3456 = vunpack.c.l.b16 %v3181
      %v3457 = vunpack.c.h.b16 %v3181
      %v3458 = vunpack.c.l.b16 %v3182
      %v3459 = vunpack.c.h.b16 %v3182
      %v3460 = vunpack.c.l.b16 %v3183
      %v3461 = vunpack.c.h.b16 %v3183
      %v3462 = vunpack.c.l.b16 %v3184
      %v3463 = vunpack.c.h.b16 %v3184
      %v3464 = vunpack.c.l.b16 %v3185
      %v3465 = vunpack.c.h.b16 %v3185
      %v3466 = vunpack.c.l.b16 %v3186
      %v3467 = vunpack.c.h.b16 %v3186
      %v3468 = vunpack.c.l.b16 %v3187
      %v3469 = vunpack.c.h.b16 %v3187
      %v3470 = vunpack.c.l.b16 %v3188
      %v3471 = vunpack.c.h.b16 %v3188
      %v3472 = vunpack.c.l.b16 %v3189
      %v3473 = vunpack.c.h.b16 %v3189
      %v3474 = vunpack.c.l.b16 %v3190
      %v3475 = vunpack.c.h.b16 %v3190
      %v3476 = vunpack.c.l.b16 %v3191
      %v3477 = vunpack.c.h.b16 %v3191
      %v3478 = vunpack.c.l.b16 %v3192
      %v3479 = vunpack.c.h.b16 %v3192
      %v3480 = vunpack.c.l.b16 %v3193
      %v3481 = vunpack.c.h.b16 %v3193
      %v3482 = vunpack.c.l.b16 %v3194
      %v3483 = vunpack.c.h.b16 %v3194
      %v3484 = vunpack.c.l.b16 %v3195
      %v3485 = vunpack.c.h.b16 %v3195
      %v3486 = vunpack.c.l.b16 %v3196
      %v3487 = vunpack.c.h.b16 %v3196
      %v3488 = vunpack.c.l.b16 %v3197
      %v3489 = vunpack.c.h.b16 %v3197
      %v3490 = vunpack.c.l.b16 %v3198
      %v3491 = vunpack.c.h.b16 %v3198
      %v3492 = vunpack.c.l.b16 %v3199
      %v3493 = vunpack.c.h.b16 %v3199
      %v3494 = vunpack.c.l.b16 %v3200
      %v3495 = vunpack.c.h.b16 %v3200
      %v3496 = vunpack.c.l.b16 %v3201
      %v3497 = vunpack.c.h.b16 %v3201
      %v3498 = vunpack.c.l.b16 %v3202
      %v3499 = vunpack.c.h.b16 %v3202
      %v3500 = vunpack.c.l.b16 %v3203
      %v3501 = vunpack.c.h.b16 %v3203
      %v3502 = vunpack.c.l.b16 %v3204
      %v3503 = vunpack.c.h.b16 %v3204
      %v3504 = vunpack.c.l.b16 %v3205
      %v3505 = vunpack.c.h.b16 %v3205
      %v3506 = vunpack.c.l.b16 %v3206
      %v3507 = vunpack.c.h.b16 %v3206
      %v3508 = vunpack.c.l.b16 %v3207
      %v3509 = vunpack.c.h.b16 %v3207
      %v3510 = vunpack.c.l.b16 %v3208
      %v3511 = vunpack.c.h.b16 %v3208
      %v3512 = vunpack.c.l.b16 %v3209
      %v3513 = vunpack.c.h.b16 %v3209
      %v3514 = vunpack.c.l.b16 %v3210
      %v3515 = vunpack.c.h.b16 %v3210
      %v3516 = vunpack.c.l.b16 %v3211
      %v3517 = vunpack.c.h.b16 %v3211
      %v3518 = vunpack.c.l.b16 %v3212
      %v3519 = vunpack.c.h.b16 %v3212
      %v3520 = vunpack.c.l.b16 %v3213
      %v3521 = vunpack.c.h.b16 %v3213
      %v3522 = vunpack.c.l.b16 %v3214
      %v3523 = vunpack.c.h.b16 %v3214
      %v3524 = vunpack.c.l.b16 %v3215
      %v3525 = vunpack.c.h.b16 %v3215
      %v3526 = vunpack.c.l.b16 %v3216
      %v3527 = vunpack.c.h.b16 %v3216
      %v3528 = vunpack.c.l.b16 %v3217
      %v3529 = vunpack.c.h.b16 %v3217
      %v3530 = vunpack.c.l.b16 %v3218
      %v3531 = vunpack.c.h.b16 %v3218
      %v3532 = vunpack.c.l.b16 %v3219
      %v3533 = vunpack.c.h.b16 %v3219
      %v3534 = vunpack.c.l.b16 %v3220
      %v3535 = vunpack.c.h.b16 %v3220
      %v3536 = vunpack.c.l.b16 %v3221
      %v3537 = vunpack.c.h.b16 %v3221
      %v3538 = vunpack.c.l.b16 %v3222
      %v3539 = vunpack.c.h.b16 %v3222
      %v3540 = vunpack.c.l.b16 %v3223
      %v3541 = vunpack.c.h.b16 %v3223
      %v3542 = vunpack.c.l.b16 %v3224
      %v3543 = vunpack.c.h.b16 %v3224
      %v3544 = vunpack.c.l.b16 %v3225
      %v3545 = vunpack.c.h.b16 %v3225
      %v3546 = vunpack.c.l.b16 %v3226
      %v3547 = vunpack.c.h.b16 %v3226
      %v3548 = vunpack.c.l.b16 %v3227
      %v3549 = vunpack.c.h.b16 %v3227
      %v3550 = vunpack.c.l.b16 %v3228
      %v3551 = vunpack.c.h.b16 %v3228
      %v3552 = vunpack.c.l.b16 %v3229
      %v3553 = vunpack.c.h.b16 %v3229
      %v3554 = vunpack.c.l.b16 %v3230
      %v3555 = vunpack.c.h.b16 %v3230
      %v3556 = vunpack.c.l.b16 %v3231
      %v3557 = vunpack.c.h.b16 %v3231
      %v3558 = vunpack.c.l.b16 %v3232
      %v3559 = vunpack.c.h.b16 %v3232
      %v3560 = vunpack.c.l.b16 %v3233
      %v3561 = vunpack.c.h.b16 %v3233
      %v3562 = vunpack.c.l.b16 %v3234
      %v3563 = vunpack.c.h.b16 %v3234
      %v3564 = vunpack.c.l.b16 %v3235
      %v3565 = vunpack.c.h.b16 %v3235
      %v3566 = vunpack.c.l.b16 %v3236
      %v3567 = vunpack.c.h.b16 %v3236
      %v3568 = vunpack.c.l.b16 %v3237
      %v3569 = vunpack.c.h.b16 %v3237
      %v3570 = vunpack.c.l.b16 %v3238
      %v3571 = vunpack.c.h.b16 %v3238
      %v3572 = vunpack.c.l.b16 %v3239
      %v3573 = vunpack.c.h.b16 %v3239
      %v3574 = vunpack.c.l.b16 %v3240
      %v3575 = vunpack.c.h.b16 %v3240
      %v3576 = vunpack.c.l.b16 %v3241
      %v3577 = vunpack.c.h.b16 %v3241
      %v3578 = vunpack.c.l.b16 %v3242
      %v3579 = vunpack.c.h.b16 %v3242
      %v3580 = vunpack.c.l.b16 %v3243
      %v3581 = vunpack.c.h.b16 %v3243
      %v3582 = vunpack.c.l.b16 %v3244
      %v3583 = vunpack.c.h.b16 %v3244
      %v3584 = vunpack.c.l.b16 %v3245
      %v3585 = vunpack.c.h.b16 %v3245
      %v3586 = vunpack.c.l.b16 %v3246
      %v3587 = vunpack.c.h.b16 %v3246
      %v3588 = vunpack.c.l.b16 %v3247
      %v3589 = vunpack.c.h.b16 %v3247
      %v3590 = vunpack.c.l.b16 %v3248
      %v3591 = vunpack.c.h.b16 %v3248
      %v3592 = vunpack.c.l.b16 %v3249
      %v3593 = vunpack.c.h.b16 %v3249
      %v3594 = vunpack.c.l.b16 %v3250
      %v3595 = vunpack.c.h.b16 %v3250
      %v3596 = vunpack.c.l.b16 %v3251
      %v3597 = vunpack.c.h.b16 %v3251
      %v3598 = vunpack.c.l.b16 %v3252
      %v3599 = vunpack.c.h.b16 %v3252
      %v3600 = vunpack.c.l.b16 %v3253
      %v3601 = vunpack.c.h.b16 %v3253
      %v3602 = vunpack.c.l.b16 %v3254
      %v3603 = vunpack.c.h.b16 %v3254
      %v3604 = vunpack.c.l.b16 %v3255
      %v3605 = vunpack.c.h.b16 %v3255
      %v3606 = vunpack.c.l.b16 %v3256
      %v3607 = vunpack.c.h.b16 %v3256
      %v3608 = vunpack.c.l.b16 %v3257
      %v3609 = vunpack.c.h.b16 %v3257
      %v3610 = vunpack.c.l.b16 %v3258
      %v3611 = vunpack.c.h.b16 %v3258
      %v3612 = vunpack.c.l.b16 %v3259
      %v3613 = vunpack.c.h.b16 %v3259
      %v3614 = vunpack.c.l.b16 %v3260
      %v3615 = vunpack.c.h.b16 %v3260
      %v3616 = vunpack.c.l.b16 %v3261
      %v3617 = vunpack.c.h.b16 %v3261
      %v3618 = vunpack.c.l.b16 %v3262
      %v3619 = vunpack.c.h.b16 %v3262
      %v3620 = vunpack.c.l.b16 %v3263
      %v3621 = vunpack.c.h.b16 %v3263
      %v3622 = vunpack.c.l.b16 %v3264
      %v3623 = vunpack.c.h.b16 %v3264
      %v3624 = vunpack.c.l.b16 %v3265
      %v3625 = vunpack.c.h.b16 %v3265
      %v3626 = vunpack.c.l.b16 %v3266
      %v3627 = vunpack.c.h.b16 %v3266
      %v3628 = vunpack.c.l.b16 %v3267
      %v3629 = vunpack.c.h.b16 %v3267
      %v3630 = vunpack.c.l.b16 %v3268
      %v3631 = vunpack.c.h.b16 %v3268
      %v3632 = vunpack.c.l.b16 %v3269
      %v3633 = vunpack.c.h.b16 %v3269
      %v3634 = vunpack.c.l.b16 %v3270
      %v3635 = vunpack.c.h.b16 %v3270
      %v3636 = vunpack.c.l.b16 %v3271
      %v3637 = vunpack.c.h.b16 %v3271
      %v3638 = vunpack.c.l.b16 %v3272
      %v3639 = vunpack.c.h.b16 %v3272
      %v3640 = vunpack.c.l.b16 %v3273
      %v3641 = vunpack.c.h.b16 %v3273
      %v3642 = vunpack.c.l.b16 %v3274
      %v3643 = vunpack.c.h.b16 %v3274
      %v3644 = vunpack.c.l.b16 %v3275
      %v3645 = vunpack.c.h.b16 %v3275
      %v3646 = vunpack.c.l.b16 %v3276
      %v3647 = vunpack.c.h.b16 %v3276
      %v3648 = vunpack.c.l.b16 %v3277
      %v3649 = vunpack.c.h.b16 %v3277
      %v3650 = vunpack.c.l.b16 %v3278
      %v3651 = vunpack.c.h.b16 %v3278
      %v3652 = vunpack.c.l.b16 %v3279
      %v3653 = vunpack.c.h.b16 %v3279
      %v3654 = vunpack.c.l.b16 %v3280
      %v3655 = vunpack.c.h.b16 %v3280
      %v3656 = vunpack.c.l.b16 %v3281
      %v3657 = vunpack.c.h.b16 %v3281
      %v3658 = vunpack.c.l.b16 %v3282
      %v3659 = vunpack.c.h.b16 %v3282
      %v3660 = vunpack.c.l.b16 %v3283
      %v3661 = vunpack.c.h.b16 %v3283
      %v3662 = vunpack.c.l.b16 %v3284
      %v3663 = vunpack.c.h.b16 %v3284
      %v3664 = vunpack.c.l.b16 %v3285
      %v3665 = vunpack.c.h.b16 %v3285
      %v3666 = vunpack.c.l.b16 %v3286
      %v3667 = vunpack.c.h.b16 %v3286
      %v3668 = vunpack.c.l.b16 %v3287
      %v3669 = vunpack.c.h.b16 %v3287
      %v3670 = vunpack.c.l.b16 %v3288
      %v3671 = vunpack.c.h.b16 %v3288
      %v3672 = vunpack.c.l.b16 %v3289
      %v3673 = vunpack.c.h.b16 %v3289
      %v3674 = vpack.c.b16 %v3418, %v3418
      %v3675 = vpack.c.b16 %v3419, %v3419
      %v3676 = vpack.c.b16 %v3420, %v3420
      %v3677 = vpack.c.b16 %v3421, %v3421
      %v3678 = vpack.c.b16 %v3422, %v3422
      %v3679 = vpack.c.b16 %v3423, %v3423
      %v3680 = vpack.c.b16 %v3424, %v3424
      %v3681 = vpack.c.b16 %v3425, %v3425
      %v3682 = vpack.c.b16 %v3426, %v3426
      %v3683 = vpack.c.b16 %v3427, %v3427
      %v3684 = vpack.c.b16 %v3428, %v3428
      %v3685 = vpack.c.b16 %v3429, %v3429
      %v3686 = vpack.c.b16 %v3430, %v3430
      %v3687 = vpack.c.b16 %v3431, %v3431
      %v3688 = vpack.c.b16 %v3432, %v3432
      %v3689 = vpack.c.b16 %v3433, %v3433
      %v3690 = vpack.c.b16 %v3434, %v3434
      %v3691 = vpack.c.b16 %v3435, %v3435
      %v3692 = vpack.c.b16 %v3436, %v3436
      %v3693 = vpack.c.b16 %v3437, %v3437
      %v3694 = vpack.c.b16 %v3438, %v3438
      %v3695 = vpack.c.b16 %v3439, %v3439
      %v3696 = vpack.c.b16 %v3440, %v3440
      %v3697 = vpack.c.b16 %v3441, %v3441
      %v3698 = vpack.c.b16 %v3442, %v3442
      %v3699 = vpack.c.b16 %v3443, %v3443
      %v3700 = vpack.c.b16 %v3444, %v3444
      %v3701 = vpack.c.b16 %v3445, %v3445
      %v3702 = vpack.c.b16 %v3446, %v3446
      %v3703 = vpack.c.b16 %v3447, %v3447
      %v3704 = vpack.c.b16 %v3448, %v3448
      %v3705 = vpack.c.b16 %v3449, %v3449
      %v3706 = vpack.c.b16 %v3450, %v3450
      %v3707 = vpack.c.b16 %v3451, %v3451
      %v3708 = vpack.c.b16 %v3452, %v3452
      %v3709 = vpack.c.b16 %v3453, %v3453
      %v3710 = vpack.c.b16 %v3454, %v3454
      %v3711 = vpack.c.b16 %v3455, %v3455
      %v3712 = vpack.c.b16 %v3456, %v3456
      %v3713 = vpack.c.b16 %v3457, %v3457
      %v3714 = vpack.c.b16 %v3458, %v3458
      %v3715 = vpack.c.b16 %v3459, %v3459
      %v3716 = vpack.c.b16 %v3460, %v3460
      %v3717 = vpack.c.b16 %v3461, %v3461
      %v3718 = vpack.c.b16 %v3462, %v3462
      %v3719 = vpack.c.b16 %v3463, %v3463
      %v3720 = vpack.c.b16 %v3464, %v3464
      %v3721 = vpack.c.b16 %v3465, %v3465
      %v3722 = vpack.c.b16 %v3466, %v3466
      %v3723 = vpack.c.b16 %v3467, %v3467
      %v3724 = vpack.c.b16 %v3468, %v3468
      %v3725 = vpack.c.b16 %v3469, %v3469
      %v3726 = vpack.c.b16 %v3470, %v3470
      %v3727 = vpack.c.b16 %v3471, %v3471
      %v3728 = vpack.c.b16 %v3472, %v3472
      %v3729 = vpack.c.b16 %v3473, %v3473
      %v3730 = vpack.c.b16 %v3474, %v3474
      %v3731 = vpack.c.b16 %v3475, %v3475
      %v3732 = vpack.c.b16 %v3476, %v3476
      %v3733 = vpack.c.b16 %v3477, %v3477
      %v3734 = vpack.c.b16 %v3478, %v3478
      %v3735 = vpack.c.b16 %v3479, %v3479
      %v3736 = vpack.c.b16 %v3480, %v3480
      %v3737 = vpack.c.b16 %v3481, %v3481
      %v3738 = vpack.c.b16 %v3482, %v3482
      %v3739 = vpack.c.b16 %v3483, %v3483
      %v3740 = vpack.c.b16 %v3484, %v3484
      %v3741 = vpack.c.b16 %v3485, %v3485
      %v3742 = vpack.c.b16 %v3486, %v3486
      %v3743 = vpack.c.b16 %v3487, %v3487
      %v3744 = vpack.c.b16 %v3488, %v3488
      %v3745 = vpack.c.b16 %v3489, %v3489
      %v3746 = vpack.c.b16 %v3490, %v3490
      %v3747 = vpack.c.b16 %v3491, %v3491
      %v3748 = vpack.c.b16 %v3492, %v3492
      %v3749 = vpack.c.b16 %v3493, %v3493
      %v3750 = vpack.c.b16 %v3494, %v3494
      %v3751 = vpack.c.b16 %v3495, %v3495
      %v3752 = vpack.c.b16 %v3496, %v3496
      %v3753 = vpack.c.b16 %v3497, %v3497
      %v3754 = vpack.c.b16 %v3498, %v3498
      %v3755 = vpack.c.b16 %v3499, %v3499
      %v3756 = vpack.c.b16 %v3500, %v3500
      %v3757 = vpack.c.b16 %v3501, %v3501
      %v3758 = vpack.c.b16 %v3502, %v3502
      %v3759 = vpack.c.b16 %v3503, %v3503
      %v3760 = vpack.c.b16 %v3504, %v3504
      %v3761 = vpack.c.b16 %v3505, %v3505
      %v3762 = vpack.c.b16 %v3506, %v3506
      %v3763 = vpack.c.b16 %v3507, %v3507
      %v3764 = vpack.c.b16 %v3508, %v3508
      %v3765 = vpack.c.b16 %v3509, %v3509
      %v3766 = vpack.c.b16 %v3510, %v3510
      %v3767 = vpack.c.b16 %v3511, %v3511
      %v3768 = vpack.c.b16 %v3512, %v3512
      %v3769 = vpack.c.b16 %v3513, %v3513
      %v3770 = vpack.c.b16 %v3514, %v3514
      %v3771 = vpack.c.b16 %v3515, %v3515
      %v3772 = vpack.c.b16 %v3516, %v3516
      %v3773 = vpack.c.b16 %v3517, %v3517
      %v3774 = vpack.c.b16 %v3518, %v3518
      %v3775 = vpack.c.b16 %v3519, %v3519
      %v3776 = vpack.c.b16 %v3520, %v3520
      %v3777 = vpack.c.b16 %v3521, %v3521
      %v3778 = vpack.c.b16 %v3522, %v3522
      %v3779 = vpack.c.b16 %v3523, %v3523
      %v3780 = vpack.c.b16 %v3524, %v3524
      %v3781 = vpack.c.b16 %v3525, %v3525
      %v3782 = vpack.c.b16 %v3526, %v3526
      %v3783 = vpack.c.b16 %v3527, %v3527
      %v3784 = vpack.c.b16 %v3528, %v3528
      %v3785 = vpack.c.b16 %v3529, %v3529
      %v3786 = vpack.c.b16 %v3530, %v3530
      %v3787 = vpack.c.b16 %v3531, %v3531
      %v3788 = vpack.c.b16 %v3532, %v3532
      %v3789 = vpack.c.b16 %v3533, %v3533
      %v3790 = vpack.c.b16 %v3534, %v3534
      %v3791 = vpack.c.b16 %v3535, %v3535
      %v3792 = vpack.c.b16 %v3536, %v3536
      %v3793 = vpack.c.b16 %v3537, %v3537
      %v3794 = vpack.c.b16 %v3538, %v3538
      %v3795 = vpack.c.b16 %v3539, %v3539
      %v3796 = vpack.c.b16 %v3540, %v3540
      %v3797 = vpack.c.b16 %v3541, %v3541
      %v3798 = vpack.c.b16 %v3542, %v3542
      %v3799 = vpack.c.b16 %v3543, %v3543
      %v3800 = vpack.c.b16 %v3544, %v3544
      %v3801 = vpack.c.b16 %v3545, %v3545
      %v3802 = vpack.c.b16 %v3546, %v3546
      %v3803 = vpack.c.b16 %v3547, %v3547
      %v3804 = vpack.c.b16 %v3548, %v3548
      %v3805 = vpack.c.b16 %v3549, %v3549
      %v3806 = vpack.c.b16 %v3550, %v3550
      %v3807 = vpack.c.b16 %v3551, %v3551
      %v3808 = vpack.c.b16 %v3552, %v3552
      %v3809 = vpack.c.b16 %v3553, %v3553
      %v3810 = vpack.c.b16 %v3554, %v3554
      %v3811 = vpack.c.b16 %v3555, %v3555
      %v3812 = vpack.c.b16 %v3556, %v3556
      %v3813 = vpack.c.b16 %v3557, %v3557
      %v3814 = vpack.c.b16 %v3558, %v3558
      %v3815 = vpack.c.b16 %v3559, %v3559
      %v3816 = vpack.c.b16 %v3560, %v3560
      %v3817 = vpack.c.b16 %v3561, %v3561
      %v3818 = vpack.c.b16 %v3562, %v3562
      %v3819 = vpack.c.b16 %v3563, %v3563
      %v3820 = vpack.c.b16 %v3564, %v3564
      %v3821 = vpack.c.b16 %v3565, %v3565
      %v3822 = vpack.c.b16 %v3566, %v3566
      %v3823 = vpack.c.b16 %v3567, %v3567
      %v3824 = vpack.c.b16 %v3568, %v3568
      %v3825 = vpack.c.b16 %v3569, %v3569
      %v3826 = vpack.c.b16 %v3570, %v3570
      %v3827 = vpack.c.b16 %v3571, %v3571
      %v3828 = vpack.c.b16 %v3572, %v3572
      %v3829 = vpack.c.b16 %v3573, %v3573
      %v3830 = vpack.c.b16 %v3574, %v3574
      %v3831 = vpack.c.b16 %v3575, %v3575
      %v3832 = vpack.c.b16 %v3576, %v3576
      %v3833 = vpack.c.b16 %v3577, %v3577
      %v3834 = vpack.c.b16 %v3578, %v3578
      %v3835 = vpack.c.b16 %v3579, %v3579
      %v3836 = vpack.c.b16 %v3580, %v3580
      %v3837 = vpack.c.b16 %v3581, %v3581
      %v3838 = vpack.c.b16 %v3582, %v3582
      %v3839 = vpack.c.b16 %v3583, %v3583
      %v3840 = vpack.c.b16 %v3584, %v3584
      %v3841 = vpack.c.b16 %v3585, %v3585
      %v3842 = vpack.c.b16 %v3586, %v3586
      %v3843 = vpack.c.b16 %v3587, %v3587
      %v3844 = vpack.c.b16 %v3588, %v3588
      %v3845 = vpack.c.b16 %v3589, %v3589
      %v3846 = vpack.c.b16 %v3590, %v3590
      %v3847 = vpack.c.b16 %v3591, %v3591
      %v3848 = vpack.c.b16 %v3592, %v3592
      %v3849 = vpack.c.b16 %v3593, %v3593
      %v3850 = vpack.c.b16 %v3594, %v3594
      %v3851 = vpack.c.b16 %v3595, %v3595
      %v3852 = vpack.c.b16 %v3596, %v3596
      %v3853 = vpack.c.b16 %v3597, %v3597
      %v3854 = vpack.c.b16 %v3598, %v3598
      %v3855 = vpack.c.b16 %v3599, %v3599
      %v3856 = vpack.c.b16 %v3600, %v3600
      %v3857 = vpack.c.b16 %v3601, %v3601
      %v3858 = vpack.c.b16 %v3602, %v3602
      %v3859 = vpack.c.b16 %v3603, %v3603
      %v3860 = vpack.c.b16 %v3604, %v3604
      %v3861 = vpack.c.b16 %v3605, %v3605
      %v3862 = vpack.c.b16 %v3606, %v3606
      %v3863 = vpack.c.b16 %v3607, %v3607
      %v3864 = vpack.c.b16 %v3608, %v3608
      %v3865 = vpack.c.b16 %v3609, %v3609
      %v3866 = vpack.c.b16 %v3610, %v3610
      %v3867 = vpack.c.b16 %v3611, %v3611
      %v3868 = vpack.c.b16 %v3612, %v3612
      %v3869 = vpack.c.b16 %v3613, %v3613
      %v3870 = vpack.c.b16 %v3614, %v3614
      %v3871 = vpack.c.b16 %v3615, %v3615
      %v3872 = vpack.c.b16 %v3616, %v3616
      %v3873 = vpack.c.b16 %v3617, %v3617
      %v3874 = vpack.c.b16 %v3618, %v3618
      %v3875 = vpack.c.b16 %v3619, %v3619
      %v3876 = vpack.c.b16 %v3620, %v3620
      %v3877 = vpack.c.b16 %v3621, %v3621
      %v3878 = vpack.c.b16 %v3622, %v3622
      %v3879 = vpack.c.b16 %v3623, %v3623
      %v3880 = vpack.c.b16 %v3624, %v3624
      %v3881 = vpack.c.b16 %v3625, %v3625
      %v3882 = vpack.c.b16 %v3626, %v3626
      %v3883 = vpack.c.b16 %v3627, %v3627
      %v3884 = vpack.c.b16 %v3628, %v3628
      %v3885 = vpack.c.b16 %v3629, %v3629
      %v3886 = vpack.c.b16 %v3630, %v3630
      %v3887 = vpack.c.b16 %v3631, %v3631
      %v3888 = vpack.c.b16 %v3632, %v3632
      %v3889 = vpack.c.b16 %v3633, %v3633
      %v3890 = vpack.c.b16 %v3634, %v3634
      %v3891 = vpack.c.b16 %v3635, %v3635
      %v3892 = vpack.c.b16 %v3636, %v3636
      %v3893 = vpack.c.b16 %v3637, %v3637
      %v3894 = vpack.c.b16 %v3638, %v3638
      %v3895 = vpack.c.b16 %v3639, %v3639
      %v3896 = vpack.c.b16 %v3640, %v3640
      %v3897 = vpack.c.b16 %v3641, %v3641
      %v3898 = vpack.c.b16 %v3642, %v3642
      %v3899 = vpack.c.b16 %v3643, %v3643
      %v3900 = vpack.c.b16 %v3644, %v3644
      %v3901 = vpack.c.b16 %v3645, %v3645
      %v3902 = vpack.c.b16 %v3646, %v3646
      %v3903 = vpack.c.b16 %v3647, %v3647
      %v3904 = vpack.c.b16 %v3648, %v3648
      %v3905 = vpack.c.b16 %v3649, %v3649
      %v3906 = vpack.c.b16 %v3650, %v3650
      %v3907 = vpack.c.b16 %v3651, %v3651
      %v3908 = vpack.c.b16 %v3652, %v3652
      %v3909 = vpack.c.b16 %v3653, %v3653
      %v3910 = vpack.c.b16 %v3654, %v3654
      %v3911 = vpack.c.b16 %v3655, %v3655
      %v3912 = vpack.c.b16 %v3656, %v3656
      %v3913 = vpack.c.b16 %v3657, %v3657
      %v3914 = vpack.c.b16 %v3658, %v3658
      %v3915 = vpack.c.b16 %v3659, %v3659
      %v3916 = vpack.c.b16 %v3660, %v3660
      %v3917 = vpack.c.b16 %v3661, %v3661
      %v3918 = vpack.c.b16 %v3662, %v3662
      %v3919 = vpack.c.b16 %v3663, %v3663
      %v3920 = vpack.c.b16 %v3664, %v3664
      %v3921 = vpack.c.b16 %v3665, %v3665
      %v3922 = vpack.c.b16 %v3666, %v3666
      %v3923 = vpack.c.b16 %v3667, %v3667
      %v3924 = vpack.c.b16 %v3668, %v3668
      %v3925 = vpack.c.b16 %v3669, %v3669
      %v3926 = vpack.c.b16 %v3670, %v3670
      %v3927 = vpack.c.b16 %v3671, %v3671
      %v3928 = vpack.c.b16 %v3672, %v3672
      %v3929 = vpack.c.b16 %v3673, %v3673
      %vm4186 = vcmask 27648
      %4187 = vst.msk [vmem:[%s175] sm:$0xf] %vm4186, %v3674
      %4188 = vst.msk [vmem:[%s175 + $0x4] sm:$0xf] %vm4186, %v3675
      %4189 = vst.msk [vmem:[%s175 + $0x8] sm:$0xf] %vm4186, %v3676
      %4190 = vst.msk [vmem:[%s175 + $0xc] sm:$0xf] %vm4186, %v3677
      %4191 = vst.msk [vmem:[%s175 + $0x10] sm:$0xf] %vm4186, %v3678
      %4192 = vst.msk [vmem:[%s175 + $0x14] sm:$0xf] %vm4186, %v3679
      %4193 = vst.msk [vmem:[%s175 + $0x18] sm:$0xf] %vm4186, %v3680
      %4194 = vst.msk [vmem:[%s175 + $0x1c] sm:$0xf] %vm4186, %v3681
      %4195 = vst.msk [vmem:[%s175 + $0x20] sm:$0xf] %vm4186, %v3682
      %4196 = vst.msk [vmem:[%s175 + $0x24] sm:$0xf] %vm4186, %v3683
      %4197 = vst.msk [vmem:[%s175 + $0x28] sm:$0xf] %vm4186, %v3684
      %4198 = vst.msk [vmem:[%s175 + $0x2c] sm:$0xf] %vm4186, %v3685
      %4199 = vst.msk [vmem:[%s175 + $0x30] sm:$0xf] %vm4186, %v3686
      %4200 = vst.msk [vmem:[%s175 + $0x34] sm:$0xf] %vm4186, %v3687
      %4201 = vst.msk [vmem:[%s175 + $0x38] sm:$0xf] %vm4186, %v3688
      %4202 = vst.msk [vmem:[%s175 + $0x3c] sm:$0xf] %vm4186, %v3689
      %4203 = vst.msk [vmem:[%s175 + $0x40] sm:$0xf] %vm4186, %v3690
      %4204 = vst.msk [vmem:[%s175 + $0x44] sm:$0xf] %vm4186, %v3691
      %4205 = vst.msk [vmem:[%s175 + $0x48] sm:$0xf] %vm4186, %v3692
      %4206 = vst.msk [vmem:[%s175 + $0x4c] sm:$0xf] %vm4186, %v3693
      %4207 = vst.msk [vmem:[%s175 + $0x50] sm:$0xf] %vm4186, %v3694
      %4208 = vst.msk [vmem:[%s175 + $0x54] sm:$0xf] %vm4186, %v3695
      %4209 = vst.msk [vmem:[%s175 + $0x58] sm:$0xf] %vm4186, %v3696
      %4210 = vst.msk [vmem:[%s175 + $0x5c] sm:$0xf] %vm4186, %v3697
      %4211 = vst.msk [vmem:[%s175 + $0x60] sm:$0xf] %vm4186, %v3698
      %4212 = vst.msk [vmem:[%s175 + $0x64] sm:$0xf] %vm4186, %v3699
      %4213 = vst.msk [vmem:[%s175 + $0x68] sm:$0xf] %vm4186, %v3700
      %4214 = vst.msk [vmem:[%s175 + $0x6c] sm:$0xf] %vm4186, %v3701
      %4215 = vst.msk [vmem:[%s175 + $0x70] sm:$0xf] %vm4186, %v3702
      %4216 = vst.msk [vmem:[%s175 + $0x74] sm:$0xf] %vm4186, %v3703
      %4217 = vst.msk [vmem:[%s175 + $0x78] sm:$0xf] %vm4186, %v3704
      %4218 = vst.msk [vmem:[%s175 + $0x7c] sm:$0xf] %vm4186, %v3705
      %4219 = vst.msk [vmem:[%s175 + $0x80] sm:$0xf] %vm4186, %v3706
      %4220 = vst.msk [vmem:[%s175 + $0x84] sm:$0xf] %vm4186, %v3707
      %4221 = vst.msk [vmem:[%s175 + $0x88] sm:$0xf] %vm4186, %v3708
      %4222 = vst.msk [vmem:[%s175 + $0x8c] sm:$0xf] %vm4186, %v3709
      %4223 = vst.msk [vmem:[%s175 + $0x90] sm:$0xf] %vm4186, %v3710
      %4224 = vst.msk [vmem:[%s175 + $0x94] sm:$0xf] %vm4186, %v3711
      %4225 = vst.msk [vmem:[%s175 + $0x98] sm:$0xf] %vm4186, %v3712
      %4226 = vst.msk [vmem:[%s175 + $0x9c] sm:$0xf] %vm4186, %v3713
      %4227 = vst.msk [vmem:[%s175 + $0xa0] sm:$0xf] %vm4186, %v3714
      %4228 = vst.msk [vmem:[%s175 + $0xa4] sm:$0xf] %vm4186, %v3715
      %4229 = vst.msk [vmem:[%s175 + $0xa8] sm:$0xf] %vm4186, %v3716
      %4230 = vst.msk [vmem:[%s175 + $0xac] sm:$0xf] %vm4186, %v3717
      %4231 = vst.msk [vmem:[%s175 + $0xb0] sm:$0xf] %vm4186, %v3718
      %4232 = vst.msk [vmem:[%s175 + $0xb4] sm:$0xf] %vm4186, %v3719
      %4233 = vst.msk [vmem:[%s175 + $0xb8] sm:$0xf] %vm4186, %v3720
      %4234 = vst.msk [vmem:[%s175 + $0xbc] sm:$0xf] %vm4186, %v3721
      %4235 = vst.msk [vmem:[%s175 + $0xc0] sm:$0xf] %vm4186, %v3722
      %4236 = vst.msk [vmem:[%s175 + $0xc4] sm:$0xf] %vm4186, %v3723
      %4237 = vst.msk [vmem:[%s175 + $0xc8] sm:$0xf] %vm4186, %v3724
      %4238 = vst.msk [vmem:[%s175 + $0xcc] sm:$0xf] %vm4186, %v3725
      %4239 = vst.msk [vmem:[%s175 + $0xd0] sm:$0xf] %vm4186, %v3726
      %4240 = vst.msk [vmem:[%s175 + $0xd4] sm:$0xf] %vm4186, %v3727
      %4241 = vst.msk [vmem:[%s175 + $0xd8] sm:$0xf] %vm4186, %v3728
      %4242 = vst.msk [vmem:[%s175 + $0xdc] sm:$0xf] %vm4186, %v3729
      %4243 = vst.msk [vmem:[%s175 + $0xe0] sm:$0xf] %vm4186, %v3730
      %4244 = vst.msk [vmem:[%s175 + $0xe4] sm:$0xf] %vm4186, %v3731
      %4245 = vst.msk [vmem:[%s175 + $0xe8] sm:$0xf] %vm4186, %v3732
      %4246 = vst.msk [vmem:[%s175 + $0xec] sm:$0xf] %vm4186, %v3733
      %4247 = vst.msk [vmem:[%s175 + $0xf0] sm:$0xf] %vm4186, %v3734
      %4248 = vst.msk [vmem:[%s175 + $0xf4] sm:$0xf] %vm4186, %v3735
      %4249 = vst.msk [vmem:[%s175 + $0xf8] sm:$0xf] %vm4186, %v3736
      %4250 = vst.msk [vmem:[%s175 + $0xfc] sm:$0xf] %vm4186, %v3737
      %4251 = vst.msk [vmem:[%s175 + $0x100] sm:$0xf] %vm4186, %v3738
      %4252 = vst.msk [vmem:[%s175 + $0x104] sm:$0xf] %vm4186, %v3739
      %4253 = vst.msk [vmem:[%s175 + $0x108] sm:$0xf] %vm4186, %v3740
      %4254 = vst.msk [vmem:[%s175 + $0x10c] sm:$0xf] %vm4186, %v3741
      %4255 = vst.msk [vmem:[%s175 + $0x110] sm:$0xf] %vm4186, %v3742
      %4256 = vst.msk [vmem:[%s175 + $0x114] sm:$0xf] %vm4186, %v3743
      %4257 = vst.msk [vmem:[%s175 + $0x118] sm:$0xf] %vm4186, %v3744
      %4258 = vst.msk [vmem:[%s175 + $0x11c] sm:$0xf] %vm4186, %v3745
      %4259 = vst.msk [vmem:[%s175 + $0x120] sm:$0xf] %vm4186, %v3746
      %4260 = vst.msk [vmem:[%s175 + $0x124] sm:$0xf] %vm4186, %v3747
      %4261 = vst.msk [vmem:[%s175 + $0x128] sm:$0xf] %vm4186, %v3748
      %4262 = vst.msk [vmem:[%s175 + $0x12c] sm:$0xf] %vm4186, %v3749
      %4263 = vst.msk [vmem:[%s175 + $0x130] sm:$0xf] %vm4186, %v3750
      %4264 = vst.msk [vmem:[%s175 + $0x134] sm:$0xf] %vm4186, %v3751
      %4265 = vst.msk [vmem:[%s175 + $0x138] sm:$0xf] %vm4186, %v3752
      %4266 = vst.msk [vmem:[%s175 + $0x13c] sm:$0xf] %vm4186, %v3753
      %4267 = vst.msk [vmem:[%s175 + $0x140] sm:$0xf] %vm4186, %v3754
      %4268 = vst.msk [vmem:[%s175 + $0x144] sm:$0xf] %vm4186, %v3755
      %4269 = vst.msk [vmem:[%s175 + $0x148] sm:$0xf] %vm4186, %v3756
      %4270 = vst.msk [vmem:[%s175 + $0x14c] sm:$0xf] %vm4186, %v3757
      %4271 = vst.msk [vmem:[%s175 + $0x150] sm:$0xf] %vm4186, %v3758
      %4272 = vst.msk [vmem:[%s175 + $0x154] sm:$0xf] %vm4186, %v3759
      %4273 = vst.msk [vmem:[%s175 + $0x158] sm:$0xf] %vm4186, %v3760
      %4274 = vst.msk [vmem:[%s175 + $0x15c] sm:$0xf] %vm4186, %v3761
      %4275 = vst.msk [vmem:[%s175 + $0x160] sm:$0xf] %vm4186, %v3762
      %4276 = vst.msk [vmem:[%s175 + $0x164] sm:$0xf] %vm4186, %v3763
      %4277 = vst.msk [vmem:[%s175 + $0x168] sm:$0xf] %vm4186, %v3764
      %4278 = vst.msk [vmem:[%s175 + $0x16c] sm:$0xf] %vm4186, %v3765
      %4279 = vst.msk [vmem:[%s175 + $0x170] sm:$0xf] %vm4186, %v3766
      %4280 = vst.msk [vmem:[%s175 + $0x174] sm:$0xf] %vm4186, %v3767
      %4281 = vst.msk [vmem:[%s175 + $0x178] sm:$0xf] %vm4186, %v3768
      %4282 = vst.msk [vmem:[%s175 + $0x17c] sm:$0xf] %vm4186, %v3769
      %4283 = vst.msk [vmem:[%s175 + $0x180] sm:$0xf] %vm4186, %v3770
      %4284 = vst.msk [vmem:[%s175 + $0x184] sm:$0xf] %vm4186, %v3771
      %4285 = vst.msk [vmem:[%s175 + $0x188] sm:$0xf] %vm4186, %v3772
      %4286 = vst.msk [vmem:[%s175 + $0x18c] sm:$0xf] %vm4186, %v3773
      %4287 = vst.msk [vmem:[%s175 + $0x190] sm:$0xf] %vm4186, %v3774
      %4288 = vst.msk [vmem:[%s175 + $0x194] sm:$0xf] %vm4186, %v3775
      %4289 = vst.msk [vmem:[%s175 + $0x198] sm:$0xf] %vm4186, %v3776
      %4290 = vst.msk [vmem:[%s175 + $0x19c] sm:$0xf] %vm4186, %v3777
      %4291 = vst.msk [vmem:[%s175 + $0x1a0] sm:$0xf] %vm4186, %v3778
      %4292 = vst.msk [vmem:[%s175 + $0x1a4] sm:$0xf] %vm4186, %v3779
      %4293 = vst.msk [vmem:[%s175 + $0x1a8] sm:$0xf] %vm4186, %v3780
      %4294 = vst.msk [vmem:[%s175 + $0x1ac] sm:$0xf] %vm4186, %v3781
      %4295 = vst.msk [vmem:[%s175 + $0x1b0] sm:$0xf] %vm4186, %v3782
      %4296 = vst.msk [vmem:[%s175 + $0x1b4] sm:$0xf] %vm4186, %v3783
      %4297 = vst.msk [vmem:[%s175 + $0x1b8] sm:$0xf] %vm4186, %v3784
      %4298 = vst.msk [vmem:[%s175 + $0x1bc] sm:$0xf] %vm4186, %v3785
      %4299 = vst.msk [vmem:[%s175 + $0x1c0] sm:$0xf] %vm4186, %v3786
      %4300 = vst.msk [vmem:[%s175 + $0x1c4] sm:$0xf] %vm4186, %v3787
      %4301 = vst.msk [vmem:[%s175 + $0x1c8] sm:$0xf] %vm4186, %v3788
      %4302 = vst.msk [vmem:[%s175 + $0x1cc] sm:$0xf] %vm4186, %v3789
      %4303 = vst.msk [vmem:[%s175 + $0x1d0] sm:$0xf] %vm4186, %v3790
      %4304 = vst.msk [vmem:[%s175 + $0x1d4] sm:$0xf] %vm4186, %v3791
      %4305 = vst.msk [vmem:[%s175 + $0x1d8] sm:$0xf] %vm4186, %v3792
      %4306 = vst.msk [vmem:[%s175 + $0x1dc] sm:$0xf] %vm4186, %v3793
      %4307 = vst.msk [vmem:[%s175 + $0x1e0] sm:$0xf] %vm4186, %v3794
      %4308 = vst.msk [vmem:[%s175 + $0x1e4] sm:$0xf] %vm4186, %v3795
      %4309 = vst.msk [vmem:[%s175 + $0x1e8] sm:$0xf] %vm4186, %v3796
      %4310 = vst.msk [vmem:[%s175 + $0x1ec] sm:$0xf] %vm4186, %v3797
      %4311 = vst.msk [vmem:[%s175 + $0x1f0] sm:$0xf] %vm4186, %v3798
      %4312 = vst.msk [vmem:[%s175 + $0x1f4] sm:$0xf] %vm4186, %v3799
      %4313 = vst.msk [vmem:[%s175 + $0x1f8] sm:$0xf] %vm4186, %v3800
      %4314 = vst.msk [vmem:[%s175 + $0x1fc] sm:$0xf] %vm4186, %v3801
      %4315 = vst.msk [vmem:[%s175 + $0x200] sm:$0xf] %vm4186, %v3802
      %4316 = vst.msk [vmem:[%s175 + $0x204] sm:$0xf] %vm4186, %v3803
      %4317 = vst.msk [vmem:[%s175 + $0x208] sm:$0xf] %vm4186, %v3804
      %4318 = vst.msk [vmem:[%s175 + $0x20c] sm:$0xf] %vm4186, %v3805
      %4319 = vst.msk [vmem:[%s175 + $0x210] sm:$0xf] %vm4186, %v3806
      %4320 = vst.msk [vmem:[%s175 + $0x214] sm:$0xf] %vm4186, %v3807
      %4321 = vst.msk [vmem:[%s175 + $0x218] sm:$0xf] %vm4186, %v3808
      %4322 = vst.msk [vmem:[%s175 + $0x21c] sm:$0xf] %vm4186, %v3809
      %4323 = vst.msk [vmem:[%s175 + $0x220] sm:$0xf] %vm4186, %v3810
      %4324 = vst.msk [vmem:[%s175 + $0x224] sm:$0xf] %vm4186, %v3811
      %4325 = vst.msk [vmem:[%s175 + $0x228] sm:$0xf] %vm4186, %v3812
      %4326 = vst.msk [vmem:[%s175 + $0x22c] sm:$0xf] %vm4186, %v3813
      %4327 = vst.msk [vmem:[%s175 + $0x230] sm:$0xf] %vm4186, %v3814
      %4328 = vst.msk [vmem:[%s175 + $0x234] sm:$0xf] %vm4186, %v3815
      %4329 = vst.msk [vmem:[%s175 + $0x238] sm:$0xf] %vm4186, %v3816
      %4330 = vst.msk [vmem:[%s175 + $0x23c] sm:$0xf] %vm4186, %v3817
      %4331 = vst.msk [vmem:[%s175 + $0x240] sm:$0xf] %vm4186, %v3818
      %4332 = vst.msk [vmem:[%s175 + $0x244] sm:$0xf] %vm4186, %v3819
      %4333 = vst.msk [vmem:[%s175 + $0x248] sm:$0xf] %vm4186, %v3820
      %4334 = vst.msk [vmem:[%s175 + $0x24c] sm:$0xf] %vm4186, %v3821
      %4335 = vst.msk [vmem:[%s175 + $0x250] sm:$0xf] %vm4186, %v3822
      %4336 = vst.msk [vmem:[%s175 + $0x254] sm:$0xf] %vm4186, %v3823
      %4337 = vst.msk [vmem:[%s175 + $0x258] sm:$0xf] %vm4186, %v3824
      %4338 = vst.msk [vmem:[%s175 + $0x25c] sm:$0xf] %vm4186, %v3825
      %4339 = vst.msk [vmem:[%s175 + $0x260] sm:$0xf] %vm4186, %v3826
      %4340 = vst.msk [vmem:[%s175 + $0x264] sm:$0xf] %vm4186, %v3827
      %4341 = vst.msk [vmem:[%s175 + $0x268] sm:$0xf] %vm4186, %v3828
      %4342 = vst.msk [vmem:[%s175 + $0x26c] sm:$0xf] %vm4186, %v3829
      %4343 = vst.msk [vmem:[%s175 + $0x270] sm:$0xf] %vm4186, %v3830
      %4344 = vst.msk [vmem:[%s175 + $0x274] sm:$0xf] %vm4186, %v3831
      %4345 = vst.msk [vmem:[%s175 + $0x278] sm:$0xf] %vm4186, %v3832
      %4346 = vst.msk [vmem:[%s175 + $0x27c] sm:$0xf] %vm4186, %v3833
      %4347 = vst.msk [vmem:[%s175 + $0x280] sm:$0xf] %vm4186, %v3834
      %4348 = vst.msk [vmem:[%s175 + $0x284] sm:$0xf] %vm4186, %v3835
      %4349 = vst.msk [vmem:[%s175 + $0x288] sm:$0xf] %vm4186, %v3836
      %4350 = vst.msk [vmem:[%s175 + $0x28c] sm:$0xf] %vm4186, %v3837
      %4351 = vst.msk [vmem:[%s175 + $0x290] sm:$0xf] %vm4186, %v3838
      %4352 = vst.msk [vmem:[%s175 + $0x294] sm:$0xf] %vm4186, %v3839
      %4353 = vst.msk [vmem:[%s175 + $0x298] sm:$0xf] %vm4186, %v3840
      %4354 = vst.msk [vmem:[%s175 + $0x29c] sm:$0xf] %vm4186, %v3841
      %4355 = vst.msk [vmem:[%s175 + $0x2a0] sm:$0xf] %vm4186, %v3842
      %4356 = vst.msk [vmem:[%s175 + $0x2a4] sm:$0xf] %vm4186, %v3843
      %4357 = vst.msk [vmem:[%s175 + $0x2a8] sm:$0xf] %vm4186, %v3844
      %4358 = vst.msk [vmem:[%s175 + $0x2ac] sm:$0xf] %vm4186, %v3845
      %4359 = vst.msk [vmem:[%s175 + $0x2b0] sm:$0xf] %vm4186, %v3846
      %4360 = vst.msk [vmem:[%s175 + $0x2b4] sm:$0xf] %vm4186, %v3847
      %4361 = vst.msk [vmem:[%s175 + $0x2b8] sm:$0xf] %vm4186, %v3848
      %4362 = vst.msk [vmem:[%s175 + $0x2bc] sm:$0xf] %vm4186, %v3849
      %4363 = vst.msk [vmem:[%s175 + $0x2c0] sm:$0xf] %vm4186, %v3850
      %4364 = vst.msk [vmem:[%s175 + $0x2c4] sm:$0xf] %vm4186, %v3851
      %4365 = vst.msk [vmem:[%s175 + $0x2c8] sm:$0xf] %vm4186, %v3852
      %4366 = vst.msk [vmem:[%s175 + $0x2cc] sm:$0xf] %vm4186, %v3853
      %4367 = vst.msk [vmem:[%s175 + $0x2d0] sm:$0xf] %vm4186, %v3854
      %4368 = vst.msk [vmem:[%s175 + $0x2d4] sm:$0xf] %vm4186, %v3855
      %4369 = vst.msk [vmem:[%s175 + $0x2d8] sm:$0xf] %vm4186, %v3856
      %4370 = vst.msk [vmem:[%s175 + $0x2dc] sm:$0xf] %vm4186, %v3857
      %4371 = vst.msk [vmem:[%s175 + $0x2e0] sm:$0xf] %vm4186, %v3858
      %4372 = vst.msk [vmem:[%s175 + $0x2e4] sm:$0xf] %vm4186, %v3859
      %4373 = vst.msk [vmem:[%s175 + $0x2e8] sm:$0xf] %vm4186, %v3860
      %4374 = vst.msk [vmem:[%s175 + $0x2ec] sm:$0xf] %vm4186, %v3861
      %4375 = vst.msk [vmem:[%s175 + $0x2f0] sm:$0xf] %vm4186, %v3862
      %4376 = vst.msk [vmem:[%s175 + $0x2f4] sm:$0xf] %vm4186, %v3863
      %4377 = vst.msk [vmem:[%s175 + $0x2f8] sm:$0xf] %vm4186, %v3864
      %4378 = vst.msk [vmem:[%s175 + $0x2fc] sm:$0xf] %vm4186, %v3865
      %4379 = vst.msk [vmem:[%s175 + $0x300] sm:$0xf] %vm4186, %v3866
      %4380 = vst.msk [vmem:[%s175 + $0x304] sm:$0xf] %vm4186, %v3867
      %4381 = vst.msk [vmem:[%s175 + $0x308] sm:$0xf] %vm4186, %v3868
      %4382 = vst.msk [vmem:[%s175 + $0x30c] sm:$0xf] %vm4186, %v3869
      %4383 = vst.msk [vmem:[%s175 + $0x310] sm:$0xf] %vm4186, %v3870
      %4384 = vst.msk [vmem:[%s175 + $0x314] sm:$0xf] %vm4186, %v3871
      %4385 = vst.msk [vmem:[%s175 + $0x318] sm:$0xf] %vm4186, %v3872
      %4386 = vst.msk [vmem:[%s175 + $0x31c] sm:$0xf] %vm4186, %v3873
      %4387 = vst.msk [vmem:[%s175 + $0x320] sm:$0xf] %vm4186, %v3874
      %4388 = vst.msk [vmem:[%s175 + $0x324] sm:$0xf] %vm4186, %v3875
      %4389 = vst.msk [vmem:[%s175 + $0x328] sm:$0xf] %vm4186, %v3876
      %4390 = vst.msk [vmem:[%s175 + $0x32c] sm:$0xf] %vm4186, %v3877
      %4391 = vst.msk [vmem:[%s175 + $0x330] sm:$0xf] %vm4186, %v3878
      %4392 = vst.msk [vmem:[%s175 + $0x334] sm:$0xf] %vm4186, %v3879
      %4393 = vst.msk [vmem:[%s175 + $0x338] sm:$0xf] %vm4186, %v3880
      %4394 = vst.msk [vmem:[%s175 + $0x33c] sm:$0xf] %vm4186, %v3881
      %4395 = vst.msk [vmem:[%s175 + $0x340] sm:$0xf] %vm4186, %v3882
      %4396 = vst.msk [vmem:[%s175 + $0x344] sm:$0xf] %vm4186, %v3883
      %4397 = vst.msk [vmem:[%s175 + $0x348] sm:$0xf] %vm4186, %v3884
      %4398 = vst.msk [vmem:[%s175 + $0x34c] sm:$0xf] %vm4186, %v3885
      %4399 = vst.msk [vmem:[%s175 + $0x350] sm:$0xf] %vm4186, %v3886
      %4400 = vst.msk [vmem:[%s175 + $0x354] sm:$0xf] %vm4186, %v3887
      %4401 = vst.msk [vmem:[%s175 + $0x358] sm:$0xf] %vm4186, %v3888
      %4402 = vst.msk [vmem:[%s175 + $0x35c] sm:$0xf] %vm4186, %v3889
      %4403 = vst.msk [vmem:[%s175 + $0x360] sm:$0xf] %vm4186, %v3890
      %4404 = vst.msk [vmem:[%s175 + $0x364] sm:$0xf] %vm4186, %v3891
      %4405 = vst.msk [vmem:[%s175 + $0x368] sm:$0xf] %vm4186, %v3892
      %4406 = vst.msk [vmem:[%s175 + $0x36c] sm:$0xf] %vm4186, %v3893
      %4407 = vst.msk [vmem:[%s175 + $0x370] sm:$0xf] %vm4186, %v3894
      %4408 = vst.msk [vmem:[%s175 + $0x374] sm:$0xf] %vm4186, %v3895
      %4409 = vst.msk [vmem:[%s175 + $0x378] sm:$0xf] %vm4186, %v3896
      %4410 = vst.msk [vmem:[%s175 + $0x37c] sm:$0xf] %vm4186, %v3897
      %4411 = vst.msk [vmem:[%s175 + $0x380] sm:$0xf] %vm4186, %v3898
      %4412 = vst.msk [vmem:[%s175 + $0x384] sm:$0xf] %vm4186, %v3899
      %4413 = vst.msk [vmem:[%s175 + $0x388] sm:$0xf] %vm4186, %v3900
      %4414 = vst.msk [vmem:[%s175 + $0x38c] sm:$0xf] %vm4186, %v3901
      %4415 = vst.msk [vmem:[%s175 + $0x390] sm:$0xf] %vm4186, %v3902
      %4416 = vst.msk [vmem:[%s175 + $0x394] sm:$0xf] %vm4186, %v3903
      %4417 = vst.msk [vmem:[%s175 + $0x398] sm:$0xf] %vm4186, %v3904
      %4418 = vst.msk [vmem:[%s175 + $0x39c] sm:$0xf] %vm4186, %v3905
      %4419 = vst.msk [vmem:[%s175 + $0x3a0] sm:$0xf] %vm4186, %v3906
      %4420 = vst.msk [vmem:[%s175 + $0x3a4] sm:$0xf] %vm4186, %v3907
      %4421 = vst.msk [vmem:[%s175 + $0x3a8] sm:$0xf] %vm4186, %v3908
      %4422 = vst.msk [vmem:[%s175 + $0x3ac] sm:$0xf] %vm4186, %v3909
      %4423 = vst.msk [vmem:[%s175 + $0x3b0] sm:$0xf] %vm4186, %v3910
      %4424 = vst.msk [vmem:[%s175 + $0x3b4] sm:$0xf] %vm4186, %v3911
      %4425 = vst.msk [vmem:[%s175 + $0x3b8] sm:$0xf] %vm4186, %v3912
      %4426 = vst.msk [vmem:[%s175 + $0x3bc] sm:$0xf] %vm4186, %v3913
      %4427 = vst.msk [vmem:[%s175 + $0x3c0] sm:$0xf] %vm4186, %v3914
      %4428 = vst.msk [vmem:[%s175 + $0x3c4] sm:$0xf] %vm4186, %v3915
      %4429 = vst.msk [vmem:[%s175 + $0x3c8] sm:$0xf] %vm4186, %v3916
      %4430 = vst.msk [vmem:[%s175 + $0x3cc] sm:$0xf] %vm4186, %v3917
      %4431 = vst.msk [vmem:[%s175 + $0x3d0] sm:$0xf] %vm4186, %v3918
      %4432 = vst.msk [vmem:[%s175 + $0x3d4] sm:$0xf] %vm4186, %v3919
      %4433 = vst.msk [vmem:[%s175 + $0x3d8] sm:$0xf] %vm4186, %v3920
      %4434 = vst.msk [vmem:[%s175 + $0x3dc] sm:$0xf] %vm4186, %v3921
      %4435 = vst.msk [vmem:[%s175 + $0x3e0] sm:$0xf] %vm4186, %v3922
      %4436 = vst.msk [vmem:[%s175 + $0x3e4] sm:$0xf] %vm4186, %v3923
      %4437 = vst.msk [vmem:[%s175 + $0x3e8] sm:$0xf] %vm4186, %v3924
      %4438 = vst.msk [vmem:[%s175 + $0x3ec] sm:$0xf] %vm4186, %v3925
      %4439 = vst.msk [vmem:[%s175 + $0x3f0] sm:$0xf] %vm4186, %v3926
      %4440 = vst.msk [vmem:[%s175 + $0x3f4] sm:$0xf] %vm4186, %v3927
      %4441 = vst.msk [vmem:[%s175 + $0x3f8] sm:$0xf] %vm4186, %v3928
      %4442 = vst.msk [vmem:[%s175 + $0x3fc] sm:$0xf] %vm4186, %v3929
      %s4443 = smul.u32 256, %s14
      %p4444 = scmp.lt.s32.totalorder %s4443, 511
      %s4445 = scalar_select %p4444, %s4443, 511
      %s4446 = smul.addr %s4445, 4
      %s4447 = scalar_lea.vmem %s3, %s4446
      // Predicated region
      $region33: #{_lambda_.12} parent=31 // pred_check
        %p4448 = pneg %p100
      $region34: #{_lambda_.12} parent=31 // pred_check_branch
        %4450 = sbr.rel (%p4448) target = $region36
      $region35: #{_lambda_.12} parent=31 // pred_region
        %s4451 = smul.u32 256, %s14
      $region36: #{_lambda_.12} parent=31 // pred_fallthru
        _
    $region32: #{_lambda_.12} parent=5 // pred_fallthru
      _
    %p4452 = scmp.le.s32.totalorder 2, %s9
    // Predicated region
    $region37: #{_lambda_.12} parent=5 // pred_check
      %p4453 = pneg %p4452
    $region38: #{_lambda_.12} parent=5 // pred_check_branch
      %4455 = sbr.rel (%p4453) target = $region40
    $region39: #{_lambda_.12} parent=5 // pred_region
      %s4456 = ssub.s32 %s9, 2
      // Predicated region
      $region41: #{_lambda_.12} parent=39 // pred_check
        %p4457 = pneg %p106
      $region42: #{_lambda_.12} parent=39 // pred_check_branch
        %4459 = sbr.rel (%p4457) target = $region44
      $region43: #{_lambda_.12} parent=39 // pred_region
        %s4460 = smul.u32 256, %s15
        %p4461 = scmp.lt.s32.totalorder %s4460, 511
        %s4462 = scalar_select %p4461, %s4460, 511
        %s4463 = smul.addr %s4462, 4
        %s4464 = scalar_lea.vmem %s3, %s4463
      $region44: #{_lambda_.12} parent=39 // pred_fallthru
        _
    $region40: #{_lambda_.12} parent=5 // pred_fallthru
      _
  $region6: #{_lambda_.12} parent=0 // loop_footer
    %s13 = sadd.s32 1, %s9
  $region7: #{_lambda_.12} parent=0 // loop_footer_branch
    %8 = sbr.rel target = $region3
  $region8: #{_lambda_.12} parent=0 // loop_exit
    _

// kernel: _lambda_.13
$region0: #{_lambda_.13}
  #allocation0 [shape = 'u32[]', space=smem, size = 0x4, offset = 0x4, fixed_abs, tag = 'smem constant byte address 0x4 - core index']
  #allocation1 [shape = 'u32[144,128]{1,0:T(1,128)}', space=vmem, size = 0x12000, scoped, tag = 'internal scratch']
  %s0 = inlined_call_operand.vmem [shape: bf16[4096,128], index: 0, kind: input, shape index: {}]
  %s1 = inlined_call_operand.vmem [shape: bf16[128,128], index: 1, kind: input, shape index: {}]
  %s2 = inlined_call_operand.vmem [shape: f32[1,128], index: 2, kind: input, shape index: {}]
  %s3 = inlined_call_operand.vmem [shape: f32[4096,1], index: 3, kind: output, shape index: {}]
  %s4 = sld [smem:[#allocation0]]
  $region45: #{_lambda_.13} parent=0
    _
  %s6 = ssub.s32 1, %s4
  %s7 = scalar_select 0, %s6, %s4
  loop: start=0, step=1, limit=4
  $region2: #{_lambda_.13} parent=0 // loop_pre_header
    _
  $region3: #{_lambda_.13} parent=0 // loop_header
    %s9 = sphi 0, %s13
    %p10 = scmp.ge.s32.totalorder %s9, 4
    %s19 = sphi 0, %s21
    %s22 = sphi 0, %s19
    %s23 = sphi 0, %s22
    %s39 = sphi 0, %s23
    %s43 = sphi 0, %s43
    %s45 = sphi 0, %s43
    %s46 = sphi 0, %s45
    %s60 = sphi 0, %s46
    %s64 = sphi 0, %s64
    %s66 = sphi 0, %s64
    %s67 = sphi 0, %s66
    %s81 = sphi 0, %s67
    %s87 = sphi 0, %s89
    %s90 = sphi 0, %s87
    %s91 = sphi 0, %s90
    %s107 = sphi 0, %s91
  $region4: #{_lambda_.13} parent=0 // loop_header_branch
    %12 = sbr.rel (%p10) target = $region8
  $region5: #{_lambda_.13} parent=0 // loop_body
    %s14 = ssub.s32 %s9, 1
    %s15 = ssub.s32 %s9, 2
    %s16 = sadd.s32 %s9, 1
    %s17 = ssub.s32 %s9, %s16
    %p18 = scmp.eq.s32.totalorder %s17, 0
    %s20 = sadd.s32 %s19, 1
    %s21 = scalar_select %p18, %s19, %s20
    %p24 = pneg %p18
    %p25 = scmp.eq.s32.totalorder %s9, 1
    %p26 = por %p24, %p25
    %p27 = scmp.ne.s32.totalorder %s19, %s22
    %p28 = scmp.eq.s32.totalorder %s9, 0
    %p29 = por %p27, %p28
    %p30 = scmp.ne.s32.totalorder %s19, %s22
    %p31 = scmp.eq.s32.totalorder %s14, 1
    %p32 = por %p30, %p31
    %p33 = scmp.ne.s32.totalorder %s22, %s23
    %p34 = scmp.eq.s32.totalorder %s14, 0
    %p35 = por %p33, %p34
    %p36 = scmp.ne.s32.totalorder %s22, %s23
    %p37 = scmp.eq.s32.totalorder %s15, 1
    %p38 = por %p36, %p37
    %p40 = scmp.ne.s32.totalorder %s23, %s39
    %p41 = scmp.eq.s32.totalorder %s15, 0
    %p42 = por %p40, %p41
    %s44 = sadd.s32 %s43, 1
    %p47 = scmp.eq.s32.totalorder %s9, 1
    %p48 = scmp.ne.s32.totalorder %s43, %s45
    %p49 = scmp.eq.s32.totalorder %s9, 0
    %p50 = por %p48, %p49
    %p51 = scmp.ne.s32.totalorder %s43, %s45
    %p52 = scmp.eq.s32.totalorder %s14, 1
    %p53 = por %p51, %p52
    %p54 = scmp.ne.s32.totalorder %s45, %s46
    %p55 = scmp.eq.s32.totalorder %s14, 0
    %p56 = por %p54, %p55
    %p57 = scmp.ne.s32.totalorder %s45, %s46
    %p58 = scmp.eq.s32.totalorder %s15, 1
    %p59 = por %p57, %p58
    %p61 = scmp.ne.s32.totalorder %s46, %s60
    %p62 = scmp.eq.s32.totalorder %s15, 0
    %p63 = por %p61, %p62
    %s65 = sadd.s32 %s64, 1
    %p68 = scmp.eq.s32.totalorder %s9, 1
    %p69 = scmp.ne.s32.totalorder %s64, %s66
    %p70 = scmp.eq.s32.totalorder %s9, 0
    %p71 = por %p69, %p70
    %p72 = scmp.ne.s32.totalorder %s64, %s66
    %p73 = scmp.eq.s32.totalorder %s14, 1
    %p74 = por %p72, %p73
    %p75 = scmp.ne.s32.totalorder %s66, %s67
    %p76 = scmp.eq.s32.totalorder %s14, 0
    %p77 = por %p75, %p76
    %p78 = scmp.ne.s32.totalorder %s66, %s67
    %p79 = scmp.eq.s32.totalorder %s15, 1
    %p80 = por %p78, %p79
    %p82 = scmp.ne.s32.totalorder %s67, %s81
    %p83 = scmp.eq.s32.totalorder %s15, 0
    %p84 = por %p82, %p83
    %s85 = ssub.s32 %s9, %s16
    %p86 = scmp.eq.s32.totalorder %s85, 0
    %s88 = sadd.s32 %s87, 1
    %s89 = scalar_select %p86, %s87, %s88
    %p92 = pneg %p86
    %p93 = scmp.eq.s32.totalorder %s9, 1
    %p94 = por %p92, %p93
    %p95 = scmp.ne.s32.totalorder %s87, %s90
    %p96 = scmp.eq.s32.totalorder %s9, 0
    %p97 = por %p95, %p96
    %p98 = scmp.ne.s32.totalorder %s87, %s90
    %p99 = scmp.eq.s32.totalorder %s14, 1
    %p100 = por %p98, %p99
    %p101 = scmp.ne.s32.totalorder %s90, %s91
    %p102 = scmp.eq.s32.totalorder %s14, 0
    %p103 = por %p101, %p102
    %p104 = scmp.ne.s32.totalorder %s90, %s91
    %p105 = scmp.eq.s32.totalorder %s15, 1
    %p106 = por %p104, %p105
    %p108 = scmp.ne.s32.totalorder %s91, %s107
    %p109 = scmp.eq.s32.totalorder %s15, 0
    %p110 = por %p108, %p109
    %p111 = scmp.le.s32.totalorder 1, %s9
    %p112 = scmp.lt.s32.totalorder %s9, 3
    %p113 = pnand %p111, %p112
    %p114 = pneg %p113
    // Predicated region
    $region9: #{_lambda_.13} parent=5 // pred_check
      _
    $region10: #{_lambda_.13} parent=5 // pred_check_branch
      %116 = sbr.rel (%p113) target = $region12
    $region11: #{_lambda_.13} parent=5 // pred_region
      %s117 = ssub.s32 %s9, 1
      // Predicated region
      $region13: #{_lambda_.13} parent=11 // pred_check
        %p118 = pneg %p56
      $region14: #{_lambda_.13} parent=11 // pred_check_branch
        %120 = sbr.rel (%p118) target = $region16
      $region15: #{_lambda_.13} parent=11 // pred_region
        _
      $region16: #{_lambda_.13} parent=11 // pred_fallthru
        _
      // Predicated region
      $region17: #{_lambda_.13} parent=11 // pred_check
        %p121 = pneg %p77
      $region18: #{_lambda_.13} parent=11 // pred_check_branch
        %123 = sbr.rel (%p121) target = $region20
      $region19: #{_lambda_.13} parent=11 // pred_region
        _
      $region20: #{_lambda_.13} parent=11 // pred_fallthru
        _
    $region12: #{_lambda_.13} parent=5 // pred_fallthru
      _
    %p124 = scmp.lt.s32.totalorder %s9, 2
    // Predicated region
    $region21: #{_lambda_.13} parent=5 // pred_check
      %p125 = pneg %p124
    $region22: #{_lambda_.13} parent=5 // pred_check_branch
      %127 = sbr.rel (%p125) target = $region24
    $region23: #{_lambda_.13} parent=5 // pred_region
      // Predicated region
      $region25: #{_lambda_.13} parent=23 // pred_check
        %p128 = pneg %p29
      $region26: #{_lambda_.13} parent=23 // pred_check_branch
        %130 = sbr.rel (%p128) target = $region28
      $region27: #{_lambda_.13} parent=23 // pred_region
        %s131 = smul.u32 256, %s9
        %p132 = scmp.lt.s32.totalorder %s131, 511
        %s133 = scalar_select %p132, %s131, 511
        %s134 = smul.addr %s133, 4
        %s135 = scalar_lea.vmem %s0, %s134
        %s136 = smul.u32 256, %s9
      $region28: #{_lambda_.13} parent=23 // pred_fallthru
        _
    $region24: #{_lambda_.13} parent=5 // pred_fallthru
      _
    %p137 = scmp.le.s32.totalorder 1, %s9
    %p138 = scmp.lt.s32.totalorder %s9, 3
    %p139 = pnand %p137, %p138
    %p140 = pneg %p139
    // Predicated region
    $region29: #{_lambda_.13} parent=5 // pred_check
      _
    $region30: #{_lambda_.13} parent=5 // pred_check_branch
      %142 = sbr.rel (%p139) target = $region32
    $region31: #{_lambda_.13} parent=5 // pred_region
      %s143 = ssub.s32 %s9, 1
      %s144 = smul.u32 256, %s14
      %p145 = scmp.lt.s32.totalorder %s144, 511
      %s146 = scalar_select %p145, %s144, 511
      %s147 = smul.addr %s146, 4
      %s148 = scalar_lea.vmem %s0, %s147
      %p149 = pneg %p35
      %p150 = pneg %p32
      %p151 = pneg %p56
      %p152 = pneg %p53
      %p153 = pneg %p77
      %p154 = pneg %p74
      %p155 = pneg %p103
      %p156 = pneg %p100
      %s157 = smul.u32 256, %s14
      %p158 = scmp.lt.s32.totalorder %s157, 511
      %s159 = scalar_select %p158, %s157, 511
      %s160 = smul.addr %s159, 8
      %s161 = scalar_lea.vmem %s3, %s160
      %s162 = smul.u32 256, %s14
      %p163 = scmp.lt.s32.totalorder %s162, 511
      %s164 = scalar_select %p163, %s162, 511
      %s165 = smul.addr %s164, 4
      %s166 = scalar_lea.vmem %s0, %s165
      %s167 = smul.u32 256, %s14
      %s168 = smul.u32 256, %s14
      %p169 = scmp.lt.s32.totalorder %s168, 511
      %s170 = scalar_select %p169, %s168, 511
      %s171 = smul.addr %s170, 8
      %s172 = scalar_lea.vmem %s3, %s171
      %s173 = smul.u32 256, %s14
      %v175 = vld [vmem:[%s166] sm:$0xf]
      %v176 = vld [vmem:[%s166 + $0x4] sm:$0xf]
      %v177 = vld [vmem:[%s166 + $0x8] sm:$0xf]
      %v178 = vld [vmem:[%s166 + $0xc] sm:$0xf]
      %v179 = vld [vmem:[%s166 + $0x10] sm:$0xf]
      %v180 = vld [vmem:[%s166 + $0x14] sm:$0xf]
      %v181 = vld [vmem:[%s166 + $0x18] sm:$0xf]
      %v182 = vld [vmem:[%s166 + $0x1c] sm:$0xf]
      %v183 = vld [vmem:[%s166 + $0x20] sm:$0xf]
      %v184 = vld [vmem:[%s166 + $0x24] sm:$0xf]
      %v185 = vld [vmem:[%s166 + $0x28] sm:$0xf]
      %v186 = vld [vmem:[%s166 + $0x2c] sm:$0xf]
      %v187 = vld [vmem:[%s166 + $0x30] sm:$0xf]
      %v188 = vld [vmem:[%s166 + $0x34] sm:$0xf]
      %v189 = vld [vmem:[%s166 + $0x38] sm:$0xf]
      %v190 = vld [vmem:[%s166 + $0x3c] sm:$0xf]
      %v191 = vld [vmem:[%s166 + $0x40] sm:$0xf]
      %v192 = vld [vmem:[%s166 + $0x44] sm:$0xf]
      %v193 = vld [vmem:[%s166 + $0x48] sm:$0xf]
      %v194 = vld [vmem:[%s166 + $0x4c] sm:$0xf]
      %v195 = vld [vmem:[%s166 + $0x50] sm:$0xf]
      %v196 = vld [vmem:[%s166 + $0x54] sm:$0xf]
      %v197 = vld [vmem:[%s166 + $0x58] sm:$0xf]
      %v198 = vld [vmem:[%s166 + $0x5c] sm:$0xf]
      %v199 = vld [vmem:[%s166 + $0x60] sm:$0xf]
      %v200 = vld [vmem:[%s166 + $0x64] sm:$0xf]
      %v201 = vld [vmem:[%s166 + $0x68] sm:$0xf]
      %v202 = vld [vmem:[%s166 + $0x6c] sm:$0xf]
      %v203 = vld [vmem:[%s166 + $0x70] sm:$0xf]
      %v204 = vld [vmem:[%s166 + $0x74] sm:$0xf]
      %v205 = vld [vmem:[%s166 + $0x78] sm:$0xf]
      %v206 = vld [vmem:[%s166 + $0x7c] sm:$0xf]
      %v207 = vld [vmem:[%s166 + $0x80] sm:$0xf]
      %v208 = vld [vmem:[%s166 + $0x84] sm:$0xf]
      %v209 = vld [vmem:[%s166 + $0x88] sm:$0xf]
      %v210 = vld [vmem:[%s166 + $0x8c] sm:$0xf]
      %v211 = vld [vmem:[%s166 + $0x90] sm:$0xf]
      %v212 = vld [vmem:[%s166 + $0x94] sm:$0xf]
      %v213 = vld [vmem:[%s166 + $0x98] sm:$0xf]
      %v214 = vld [vmem:[%s166 + $0x9c] sm:$0xf]
      %v215 = vld [vmem:[%s166 + $0xa0] sm:$0xf]
      %v216 = vld [vmem:[%s166 + $0xa4] sm:$0xf]
      %v217 = vld [vmem:[%s166 + $0xa8] sm:$0xf]
      %v218 = vld [vmem:[%s166 + $0xac] sm:$0xf]
      %v219 = vld [vmem:[%s166 + $0xb0] sm:$0xf]
      %v220 = vld [vmem:[%s166 + $0xb4] sm:$0xf]
      %v221 = vld [vmem:[%s166 + $0xb8] sm:$0xf]
      %v222 = vld [vmem:[%s166 + $0xbc] sm:$0xf]
      %v223 = vld [vmem:[%s166 + $0xc0] sm:$0xf]
      %v224 = vld [vmem:[%s166 + $0xc4] sm:$0xf]
      %v225 = vld [vmem:[%s166 + $0xc8] sm:$0xf]
      %v226 = vld [vmem:[%s166 + $0xcc] sm:$0xf]
      %v227 = vld [vmem:[%s166 + $0xd0] sm:$0xf]
      %v228 = vld [vmem:[%s166 + $0xd4] sm:$0xf]
      %v229 = vld [vmem:[%s166 + $0xd8] sm:$0xf]
      %v230 = vld [vmem:[%s166 + $0xdc] sm:$0xf]
      %v231 = vld [vmem:[%s166 + $0xe0] sm:$0xf]
      %v232 = vld [vmem:[%s166 + $0xe4] sm:$0xf]
      %v233 = vld [vmem:[%s166 + $0xe8] sm:$0xf]
      %v234 = vld [vmem:[%s166 + $0xec] sm:$0xf]
      %v235 = vld [vmem:[%s166 + $0xf0] sm:$0xf]
      %v236 = vld [vmem:[%s166 + $0xf4] sm:$0xf]
      %v237 = vld [vmem:[%s166 + $0xf8] sm:$0xf]
      %v238 = vld [vmem:[%s166 + $0xfc] sm:$0xf]
      %v239 = vld [vmem:[%s166 + $0x100] sm:$0xf]
      %v240 = vld [vmem:[%s166 + $0x104] sm:$0xf]
      %v241 = vld [vmem:[%s166 + $0x108] sm:$0xf]
      %v242 = vld [vmem:[%s166 + $0x10c] sm:$0xf]
      %v243 = vld [vmem:[%s166 + $0x110] sm:$0xf]
      %v244 = vld [vmem:[%s166 + $0x114] sm:$0xf]
      %v245 = vld [vmem:[%s166 + $0x118] sm:$0xf]
      %v246 = vld [vmem:[%s166 + $0x11c] sm:$0xf]
      %v247 = vld [vmem:[%s166 + $0x120] sm:$0xf]
      %v248 = vld [vmem:[%s166 + $0x124] sm:$0xf]
      %v249 = vld [vmem:[%s166 + $0x128] sm:$0xf]
      %v250 = vld [vmem:[%s166 + $0x12c] sm:$0xf]
      %v251 = vld [vmem:[%s166 + $0x130] sm:$0xf]
      %v252 = vld [vmem:[%s166 + $0x134] sm:$0xf]
      %v253 = vld [vmem:[%s166 + $0x138] sm:$0xf]
      %v254 = vld [vmem:[%s166 + $0x13c] sm:$0xf]
      %v255 = vld [vmem:[%s166 + $0x140] sm:$0xf]
      %v256 = vld [vmem:[%s166 + $0x144] sm:$0xf]
      %v257 = vld [vmem:[%s166 + $0x148] sm:$0xf]
      %v258 = vld [vmem:[%s166 + $0x14c] sm:$0xf]
      %v259 = vld [vmem:[%s166 + $0x150] sm:$0xf]
      %v260 = vld [vmem:[%s166 + $0x154] sm:$0xf]
      %v261 = vld [vmem:[%s166 + $0x158] sm:$0xf]
      %v262 = vld [vmem:[%s166 + $0x15c] sm:$0xf]
      %v263 = vld [vmem:[%s166 + $0x160] sm:$0xf]
      %v264 = vld [vmem:[%s166 + $0x164] sm:$0xf]
      %v265 = vld [vmem:[%s166 + $0x168] sm:$0xf]
      %v266 = vld [vmem:[%s166 + $0x16c] sm:$0xf]
      %v267 = vld [vmem:[%s166 + $0x170] sm:$0xf]
      %v268 = vld [vmem:[%s166 + $0x174] sm:$0xf]
      %v269 = vld [vmem:[%s166 + $0x178] sm:$0xf]
      %v270 = vld [vmem:[%s166 + $0x17c] sm:$0xf]
      %v271 = vld [vmem:[%s166 + $0x180] sm:$0xf]
      %v272 = vld [vmem:[%s166 + $0x184] sm:$0xf]
      %v273 = vld [vmem:[%s166 + $0x188] sm:$0xf]
      %v274 = vld [vmem:[%s166 + $0x18c] sm:$0xf]
      %v275 = vld [vmem:[%s166 + $0x190] sm:$0xf]
      %v276 = vld [vmem:[%s166 + $0x194] sm:$0xf]
      %v277 = vld [vmem:[%s166 + $0x198] sm:$0xf]
      %v278 = vld [vmem:[%s166 + $0x19c] sm:$0xf]
      %v279 = vld [vmem:[%s166 + $0x1a0] sm:$0xf]
      %v280 = vld [vmem:[%s166 + $0x1a4] sm:$0xf]
      %v281 = vld [vmem:[%s166 + $0x1a8] sm:$0xf]
      %v282 = vld [vmem:[%s166 + $0x1ac] sm:$0xf]
      %v283 = vld [vmem:[%s166 + $0x1b0] sm:$0xf]
      %v284 = vld [vmem:[%s166 + $0x1b4] sm:$0xf]
      %v285 = vld [vmem:[%s166 + $0x1b8] sm:$0xf]
      %v286 = vld [vmem:[%s166 + $0x1bc] sm:$0xf]
      %v287 = vld [vmem:[%s166 + $0x1c0] sm:$0xf]
      %v288 = vld [vmem:[%s166 + $0x1c4] sm:$0xf]
      %v289 = vld [vmem:[%s166 + $0x1c8] sm:$0xf]
      %v290 = vld [vmem:[%s166 + $0x1cc] sm:$0xf]
      %v291 = vld [vmem:[%s166 + $0x1d0] sm:$0xf]
      %v292 = vld [vmem:[%s166 + $0x1d4] sm:$0xf]
      %v293 = vld [vmem:[%s166 + $0x1d8] sm:$0xf]
      %v294 = vld [vmem:[%s166 + $0x1dc] sm:$0xf]
      %v295 = vld [vmem:[%s166 + $0x1e0] sm:$0xf]
      %v296 = vld [vmem:[%s166 + $0x1e4] sm:$0xf]
      %v297 = vld [vmem:[%s166 + $0x1e8] sm:$0xf]
      %v298 = vld [vmem:[%s166 + $0x1ec] sm:$0xf]
      %v299 = vld [vmem:[%s166 + $0x1f0] sm:$0xf]
      %v300 = vld [vmem:[%s166 + $0x1f4] sm:$0xf]
      %v301 = vld [vmem:[%s166 + $0x1f8] sm:$0xf]
      %v302 = vld [vmem:[%s166 + $0x1fc] sm:$0xf]
      %v303 = vld [vmem:[%s166 + $0x200] sm:$0xf]
      %v304 = vld [vmem:[%s166 + $0x204] sm:$0xf]
      %v305 = vld [vmem:[%s166 + $0x208] sm:$0xf]
      %v306 = vld [vmem:[%s166 + $0x20c] sm:$0xf]
      %v307 = vld [vmem:[%s166 + $0x210] sm:$0xf]
      %v308 = vld [vmem:[%s166 + $0x214] sm:$0xf]
      %v309 = vld [vmem:[%s166 + $0x218] sm:$0xf]
      %v310 = vld [vmem:[%s166 + $0x21c] sm:$0xf]
      %v311 = vld [vmem:[%s166 + $0x220] sm:$0xf]
      %v312 = vld [vmem:[%s166 + $0x224] sm:$0xf]
      %v313 = vld [vmem:[%s166 + $0x228] sm:$0xf]
      %v314 = vld [vmem:[%s166 + $0x22c] sm:$0xf]
      %v315 = vld [vmem:[%s166 + $0x230] sm:$0xf]
      %v316 = vld [vmem:[%s166 + $0x234] sm:$0xf]
      %v317 = vld [vmem:[%s166 + $0x238] sm:$0xf]
      %v318 = vld [vmem:[%s166 + $0x23c] sm:$0xf]
      %v319 = vld [vmem:[%s166 + $0x240] sm:$0xf]
      %v320 = vld [vmem:[%s166 + $0x244] sm:$0xf]
      %v321 = vld [vmem:[%s166 + $0x248] sm:$0xf]
      %v322 = vld [vmem:[%s166 + $0x24c] sm:$0xf]
      %v323 = vld [vmem:[%s166 + $0x250] sm:$0xf]
      %v324 = vld [vmem:[%s166 + $0x254] sm:$0xf]
      %v325 = vld [vmem:[%s166 + $0x258] sm:$0xf]
      %v326 = vld [vmem:[%s166 + $0x25c] sm:$0xf]
      %v327 = vld [vmem:[%s166 + $0x260] sm:$0xf]
      %v328 = vld [vmem:[%s166 + $0x264] sm:$0xf]
      %v329 = vld [vmem:[%s166 + $0x268] sm:$0xf]
      %v330 = vld [vmem:[%s166 + $0x26c] sm:$0xf]
      %v331 = vld [vmem:[%s166 + $0x270] sm:$0xf]
      %v332 = vld [vmem:[%s166 + $0x274] sm:$0xf]
      %v333 = vld [vmem:[%s166 + $0x278] sm:$0xf]
      %v334 = vld [vmem:[%s166 + $0x27c] sm:$0xf]
      %v335 = vld [vmem:[%s166 + $0x280] sm:$0xf]
      %v336 = vld [vmem:[%s166 + $0x284] sm:$0xf]
      %v337 = vld [vmem:[%s166 + $0x288] sm:$0xf]
      %v338 = vld [vmem:[%s166 + $0x28c] sm:$0xf]
      %v339 = vld [vmem:[%s166 + $0x290] sm:$0xf]
      %v340 = vld [vmem:[%s166 + $0x294] sm:$0xf]
      %v341 = vld [vmem:[%s166 + $0x298] sm:$0xf]
      %v342 = vld [vmem:[%s166 + $0x29c] sm:$0xf]
      %v343 = vld [vmem:[%s166 + $0x2a0] sm:$0xf]
      %v344 = vld [vmem:[%s166 + $0x2a4] sm:$0xf]
      %v345 = vld [vmem:[%s166 + $0x2a8] sm:$0xf]
      %v346 = vld [vmem:[%s166 + $0x2ac] sm:$0xf]
      %v347 = vld [vmem:[%s166 + $0x2b0] sm:$0xf]
      %v348 = vld [vmem:[%s166 + $0x2b4] sm:$0xf]
      %v349 = vld [vmem:[%s166 + $0x2b8] sm:$0xf]
      %v350 = vld [vmem:[%s166 + $0x2bc] sm:$0xf]
      %v351 = vld [vmem:[%s166 + $0x2c0] sm:$0xf]
      %v352 = vld [vmem:[%s166 + $0x2c4] sm:$0xf]
      %v353 = vld [vmem:[%s166 + $0x2c8] sm:$0xf]
      %v354 = vld [vmem:[%s166 + $0x2cc] sm:$0xf]
      %v355 = vld [vmem:[%s166 + $0x2d0] sm:$0xf]
      %v356 = vld [vmem:[%s166 + $0x2d4] sm:$0xf]
      %v357 = vld [vmem:[%s166 + $0x2d8] sm:$0xf]
      %v358 = vld [vmem:[%s166 + $0x2dc] sm:$0xf]
      %v359 = vld [vmem:[%s166 + $0x2e0] sm:$0xf]
      %v360 = vld [vmem:[%s166 + $0x2e4] sm:$0xf]
      %v361 = vld [vmem:[%s166 + $0x2e8] sm:$0xf]
      %v362 = vld [vmem:[%s166 + $0x2ec] sm:$0xf]
      %v363 = vld [vmem:[%s166 + $0x2f0] sm:$0xf]
      %v364 = vld [vmem:[%s166 + $0x2f4] sm:$0xf]
      %v365 = vld [vmem:[%s166 + $0x2f8] sm:$0xf]
      %v366 = vld [vmem:[%s166 + $0x2fc] sm:$0xf]
      %v367 = vld [vmem:[%s166 + $0x300] sm:$0xf]
      %v368 = vld [vmem:[%s166 + $0x304] sm:$0xf]
      %v369 = vld [vmem:[%s166 + $0x308] sm:$0xf]
      %v370 = vld [vmem:[%s166 + $0x30c] sm:$0xf]
      %v371 = vld [vmem:[%s166 + $0x310] sm:$0xf]
      %v372 = vld [vmem:[%s166 + $0x314] sm:$0xf]
      %v373 = vld [vmem:[%s166 + $0x318] sm:$0xf]
      %v374 = vld [vmem:[%s166 + $0x31c] sm:$0xf]
      %v375 = vld [vmem:[%s166 + $0x320] sm:$0xf]
      %v376 = vld [vmem:[%s166 + $0x324] sm:$0xf]
      %v377 = vld [vmem:[%s166 + $0x328] sm:$0xf]
      %v378 = vld [vmem:[%s166 + $0x32c] sm:$0xf]
      %v379 = vld [vmem:[%s166 + $0x330] sm:$0xf]
      %v380 = vld [vmem:[%s166 + $0x334] sm:$0xf]
      %v381 = vld [vmem:[%s166 + $0x338] sm:$0xf]
      %v382 = vld [vmem:[%s166 + $0x33c] sm:$0xf]
      %v383 = vld [vmem:[%s166 + $0x340] sm:$0xf]
      %v384 = vld [vmem:[%s166 + $0x344] sm:$0xf]
      %v385 = vld [vmem:[%s166 + $0x348] sm:$0xf]
      %v386 = vld [vmem:[%s166 + $0x34c] sm:$0xf]
      %v387 = vld [vmem:[%s166 + $0x350] sm:$0xf]
      %v388 = vld [vmem:[%s166 + $0x354] sm:$0xf]
      %v389 = vld [vmem:[%s166 + $0x358] sm:$0xf]
      %v390 = vld [vmem:[%s166 + $0x35c] sm:$0xf]
      %v391 = vld [vmem:[%s166 + $0x360] sm:$0xf]
      %v392 = vld [vmem:[%s166 + $0x364] sm:$0xf]
      %v393 = vld [vmem:[%s166 + $0x368] sm:$0xf]
      %v394 = vld [vmem:[%s166 + $0x36c] sm:$0xf]
      %v395 = vld [vmem:[%s166 + $0x370] sm:$0xf]
      %v396 = vld [vmem:[%s166 + $0x374] sm:$0xf]
      %v397 = vld [vmem:[%s166 + $0x378] sm:$0xf]
      %v398 = vld [vmem:[%s166 + $0x37c] sm:$0xf]
      %v399 = vld [vmem:[%s166 + $0x380] sm:$0xf]
      %v400 = vld [vmem:[%s166 + $0x384] sm:$0xf]
      %v401 = vld [vmem:[%s166 + $0x388] sm:$0xf]
      %v402 = vld [vmem:[%s166 + $0x38c] sm:$0xf]
      %v403 = vld [vmem:[%s166 + $0x390] sm:$0xf]
      %v404 = vld [vmem:[%s166 + $0x394] sm:$0xf]
      %v405 = vld [vmem:[%s166 + $0x398] sm:$0xf]
      %v406 = vld [vmem:[%s166 + $0x39c] sm:$0xf]
      %v407 = vld [vmem:[%s166 + $0x3a0] sm:$0xf]
      %v408 = vld [vmem:[%s166 + $0x3a4] sm:$0xf]
      %v409 = vld [vmem:[%s166 + $0x3a8] sm:$0xf]
      %v410 = vld [vmem:[%s166 + $0x3ac] sm:$0xf]
      %v411 = vld [vmem:[%s166 + $0x3b0] sm:$0xf]
      %v412 = vld [vmem:[%s166 + $0x3b4] sm:$0xf]
      %v413 = vld [vmem:[%s166 + $0x3b8] sm:$0xf]
      %v414 = vld [vmem:[%s166 + $0x3bc] sm:$0xf]
      %v415 = vld [vmem:[%s166 + $0x3c0] sm:$0xf]
      %v416 = vld [vmem:[%s166 + $0x3c4] sm:$0xf]
      %v417 = vld [vmem:[%s166 + $0x3c8] sm:$0xf]
      %v418 = vld [vmem:[%s166 + $0x3cc] sm:$0xf]
      %v419 = vld [vmem:[%s166 + $0x3d0] sm:$0xf]
      %v420 = vld [vmem:[%s166 + $0x3d4] sm:$0xf]
      %v421 = vld [vmem:[%s166 + $0x3d8] sm:$0xf]
      %v422 = vld [vmem:[%s166 + $0x3dc] sm:$0xf]
      %v423 = vld [vmem:[%s166 + $0x3e0] sm:$0xf]
      %v424 = vld [vmem:[%s166 + $0x3e4] sm:$0xf]
      %v425 = vld [vmem:[%s166 + $0x3e8] sm:$0xf]
      %v426 = vld [vmem:[%s166 + $0x3ec] sm:$0xf]
      %v427 = vld [vmem:[%s166 + $0x3f0] sm:$0xf]
      %v428 = vld [vmem:[%s166 + $0x3f4] sm:$0xf]
      %v429 = vld [vmem:[%s166 + $0x3f8] sm:$0xf]
      %v430 = vld [vmem:[%s166 + $0x3fc] sm:$0xf]
      %v431 = vld [vmem:[%s1] sm:$0xf]
      %v432 = vld [vmem:[%s1 + $0x4] sm:$0xf]
      %v433 = vld [vmem:[%s1 + $0x8] sm:$0xf]
      %v434 = vld [vmem:[%s1 + $0xc] sm:$0xf]
      %v435 = vld [vmem:[%s1 + $0x10] sm:$0xf]
      %v436 = vld [vmem:[%s1 + $0x14] sm:$0xf]
      %v437 = vld [vmem:[%s1 + $0x18] sm:$0xf]
      %v438 = vld [vmem:[%s1 + $0x1c] sm:$0xf]
      %v439 = vld [vmem:[%s1 + $0x20] sm:$0xf]
      %v440 = vld [vmem:[%s1 + $0x24] sm:$0xf]
      %v441 = vld [vmem:[%s1 + $0x28] sm:$0xf]
      %v442 = vld [vmem:[%s1 + $0x2c] sm:$0xf]
      %v443 = vld [vmem:[%s1 + $0x30] sm:$0xf]
      %v444 = vld [vmem:[%s1 + $0x34] sm:$0xf]
      %v445 = vld [vmem:[%s1 + $0x38] sm:$0xf]
      %v446 = vld [vmem:[%s1 + $0x3c] sm:$0xf]
      %v447 = vld [vmem:[%s2] sm:$0x1]
      %v449 = vlaneseq
      %v450 = vshrl.u32 %v449, 7
      %v451 = vsub.s32 0, %v450
      %v452 = vrot.slane %v447, %v451
      %v710 = vunpack.c.l.b16 %v175
      %v711 = vunpack.c.l.b16 %v176
      %v712 = vunpack.c.l.b16 %v177
      %v713 = vunpack.c.l.b16 %v178
      %v714 = vunpack.c.l.b16 %v179
      %v715 = vunpack.c.l.b16 %v180
      %v716 = vunpack.c.l.b16 %v181
      %v717 = vunpack.c.l.b16 %v182
      %v718 = vunpack.c.l.b16 %v183
      %v719 = vunpack.c.l.b16 %v184
      %v720 = vunpack.c.l.b16 %v185
      %v721 = vunpack.c.l.b16 %v186
      %v722 = vunpack.c.l.b16 %v187
      %v723 = vunpack.c.l.b16 %v188
      %v724 = vunpack.c.l.b16 %v189
      %v725 = vunpack.c.l.b16 %v190
      %v726 = vunpack.c.l.b16 %v191
      %v727 = vunpack.c.l.b16 %v192
      %v728 = vunpack.c.l.b16 %v193
      %v729 = vunpack.c.l.b16 %v194
      %v730 = vunpack.c.l.b16 %v195
      %v731 = vunpack.c.l.b16 %v196
      %v732 = vunpack.c.l.b16 %v197
      %v733 = vunpack.c.l.b16 %v198
      %v734 = vunpack.c.l.b16 %v199
      %v735 = vunpack.c.l.b16 %v200
      %v736 = vunpack.c.l.b16 %v201
      %v737 = vunpack.c.l.b16 %v202
      %v738 = vunpack.c.l.b16 %v203
      %v739 = vunpack.c.l.b16 %v204
      %v740 = vunpack.c.l.b16 %v205
      %v741 = vunpack.c.l.b16 %v206
      %v742 = vunpack.c.l.b16 %v207
      %v743 = vunpack.c.l.b16 %v208
      %v744 = vunpack.c.l.b16 %v209
      %v745 = vunpack.c.l.b16 %v210
      %v746 = vunpack.c.l.b16 %v211
      %v747 = vunpack.c.l.b16 %v212
      %v748 = vunpack.c.l.b16 %v213
      %v749 = vunpack.c.l.b16 %v214
      %v750 = vunpack.c.l.b16 %v215
      %v751 = vunpack.c.l.b16 %v216
      %v752 = vunpack.c.l.b16 %v217
      %v753 = vunpack.c.l.b16 %v218
      %v754 = vunpack.c.l.b16 %v219
      %v755 = vunpack.c.l.b16 %v220
      %v756 = vunpack.c.l.b16 %v221
      %v757 = vunpack.c.l.b16 %v222
      %v758 = vunpack.c.l.b16 %v223
      %v759 = vunpack.c.l.b16 %v224
      %v760 = vunpack.c.l.b16 %v225
      %v761 = vunpack.c.l.b16 %v226
      %v762 = vunpack.c.l.b16 %v227
      %v763 = vunpack.c.l.b16 %v228
      %v764 = vunpack.c.l.b16 %v229
      %v765 = vunpack.c.l.b16 %v230
      %v766 = vunpack.c.l.b16 %v231
      %v767 = vunpack.c.l.b16 %v232
      %v768 = vunpack.c.l.b16 %v233
      %v769 = vunpack.c.l.b16 %v234
      %v770 = vunpack.c.l.b16 %v235
      %v771 = vunpack.c.l.b16 %v236
      %v772 = vunpack.c.l.b16 %v237
      %v773 = vunpack.c.l.b16 %v238
      %v774 = vunpack.c.l.b16 %v239
      %v775 = vunpack.c.l.b16 %v240
      %v776 = vunpack.c.l.b16 %v241
      %v777 = vunpack.c.l.b16 %v242
      %v778 = vunpack.c.l.b16 %v243
      %v779 = vunpack.c.l.b16 %v244
      %v780 = vunpack.c.l.b16 %v245
      %v781 = vunpack.c.l.b16 %v246
      %v782 = vunpack.c.l.b16 %v247
      %v783 = vunpack.c.l.b16 %v248
      %v784 = vunpack.c.l.b16 %v249
      %v785 = vunpack.c.l.b16 %v250
      %v786 = vunpack.c.l.b16 %v251
      %v787 = vunpack.c.l.b16 %v252
      %v788 = vunpack.c.l.b16 %v253
      %v789 = vunpack.c.l.b16 %v254
      %v790 = vunpack.c.l.b16 %v255
      %v791 = vunpack.c.l.b16 %v256
      %v792 = vunpack.c.l.b16 %v257
      %v793 = vunpack.c.l.b16 %v258
      %v794 = vunpack.c.l.b16 %v259
      %v795 = vunpack.c.l.b16 %v260
      %v796 = vunpack.c.l.b16 %v261
      %v797 = vunpack.c.l.b16 %v262
      %v798 = vunpack.c.l.b16 %v263
      %v799 = vunpack.c.l.b16 %v264
      %v800 = vunpack.c.l.b16 %v265
      %v801 = vunpack.c.l.b16 %v266
      %v802 = vunpack.c.l.b16 %v267
      %v803 = vunpack.c.l.b16 %v268
      %v804 = vunpack.c.l.b16 %v269
      %v805 = vunpack.c.l.b16 %v270
      %v806 = vunpack.c.l.b16 %v271
      %v807 = vunpack.c.l.b16 %v272
      %v808 = vunpack.c.l.b16 %v273
      %v809 = vunpack.c.l.b16 %v274
      %v810 = vunpack.c.l.b16 %v275
      %v811 = vunpack.c.l.b16 %v276
      %v812 = vunpack.c.l.b16 %v277
      %v813 = vunpack.c.l.b16 %v278
      %v814 = vunpack.c.l.b16 %v279
      %v815 = vunpack.c.l.b16 %v280
      %v816 = vunpack.c.l.b16 %v281
      %v817 = vunpack.c.l.b16 %v282
      %v818 = vunpack.c.l.b16 %v283
      %v819 = vunpack.c.l.b16 %v284
      %v820 = vunpack.c.l.b16 %v285
      %v821 = vunpack.c.l.b16 %v286
      %v822 = vunpack.c.l.b16 %v287
      %v823 = vunpack.c.l.b16 %v288
      %v824 = vunpack.c.l.b16 %v289
      %v825 = vunpack.c.l.b16 %v290
      %v826 = vunpack.c.l.b16 %v291
      %v827 = vunpack.c.l.b16 %v292
      %v828 = vunpack.c.l.b16 %v293
      %v829 = vunpack.c.l.b16 %v294
      %v830 = vunpack.c.l.b16 %v295
      %v831 = vunpack.c.l.b16 %v296
      %v832 = vunpack.c.l.b16 %v297
      %v833 = vunpack.c.l.b16 %v298
      %v834 = vunpack.c.l.b16 %v299
      %v835 = vunpack.c.l.b16 %v300
      %v836 = vunpack.c.l.b16 %v301
      %v837 = vunpack.c.l.b16 %v302
      %v838 = vunpack.c.l.b16 %v303
      %v839 = vunpack.c.l.b16 %v304
      %v840 = vunpack.c.l.b16 %v305
      %v841 = vunpack.c.l.b16 %v306
      %v842 = vunpack.c.l.b16 %v307
      %v843 = vunpack.c.l.b16 %v308
      %v844 = vunpack.c.l.b16 %v309
      %v845 = vunpack.c.l.b16 %v310
      %v846 = vunpack.c.l.b16 %v311
      %v847 = vunpack.c.l.b16 %v312
      %v848 = vunpack.c.l.b16 %v313
      %v849 = vunpack.c.l.b16 %v314
      %v850 = vunpack.c.l.b16 %v315
      %v851 = vunpack.c.l.b16 %v316
      %v852 = vunpack.c.l.b16 %v317
      %v853 = vunpack.c.l.b16 %v318
      %v854 = vunpack.c.l.b16 %v319
      %v855 = vunpack.c.l.b16 %v320
      %v856 = vunpack.c.l.b16 %v321
      %v857 = vunpack.c.l.b16 %v322
      %v858 = vunpack.c.l.b16 %v323
      %v859 = vunpack.c.l.b16 %v324
      %v860 = vunpack.c.l.b16 %v325
      %v861 = vunpack.c.l.b16 %v326
      %v862 = vunpack.c.l.b16 %v327
      %v863 = vunpack.c.l.b16 %v328
      %v864 = vunpack.c.l.b16 %v329
      %v865 = vunpack.c.l.b16 %v330
      %v866 = vunpack.c.l.b16 %v331
      %v867 = vunpack.c.l.b16 %v332
      %v868 = vunpack.c.l.b16 %v333
      %v869 = vunpack.c.l.b16 %v334
      %v870 = vunpack.c.l.b16 %v335
      %v871 = vunpack.c.l.b16 %v336
      %v872 = vunpack.c.l.b16 %v337
      %v873 = vunpack.c.l.b16 %v338
      %v874 = vunpack.c.l.b16 %v339
      %v875 = vunpack.c.l.b16 %v340
      %v876 = vunpack.c.l.b16 %v341
      %v877 = vunpack.c.l.b16 %v342
      %v878 = vunpack.c.l.b16 %v343
      %v879 = vunpack.c.l.b16 %v344
      %v880 = vunpack.c.l.b16 %v345
      %v881 = vunpack.c.l.b16 %v346
      %v882 = vunpack.c.l.b16 %v347
      %v883 = vunpack.c.l.b16 %v348
      %v884 = vunpack.c.l.b16 %v349
      %v885 = vunpack.c.l.b16 %v350
      %v886 = vunpack.c.l.b16 %v351
      %v887 = vunpack.c.l.b16 %v352
      %v888 = vunpack.c.l.b16 %v353
      %v889 = vunpack.c.l.b16 %v354
      %v890 = vunpack.c.l.b16 %v355
      %v891 = vunpack.c.l.b16 %v356
      %v892 = vunpack.c.l.b16 %v357
      %v893 = vunpack.c.l.b16 %v358
      %v894 = vunpack.c.l.b16 %v359
      %v895 = vunpack.c.l.b16 %v360
      %v896 = vunpack.c.l.b16 %v361
      %v897 = vunpack.c.l.b16 %v362
      %v898 = vunpack.c.l.b16 %v363
      %v899 = vunpack.c.l.b16 %v364
      %v900 = vunpack.c.l.b16 %v365
      %v901 = vunpack.c.l.b16 %v366
      %v902 = vunpack.c.l.b16 %v367
      %v903 = vunpack.c.l.b16 %v368
      %v904 = vunpack.c.l.b16 %v369
      %v905 = vunpack.c.l.b16 %v370
      %v906 = vunpack.c.l.b16 %v371
      %v907 = vunpack.c.l.b16 %v372
      %v908 = vunpack.c.l.b16 %v373
      %v909 = vunpack.c.l.b16 %v374
      %v910 = vunpack.c.l.b16 %v375
      %v911 = vunpack.c.l.b16 %v376
      %v912 = vunpack.c.l.b16 %v377
      %v913 = vunpack.c.l.b16 %v378
      %v914 = vunpack.c.l.b16 %v379
      %v915 = vunpack.c.l.b16 %v380
      %v916 = vunpack.c.l.b16 %v381
      %v917 = vunpack.c.l.b16 %v382
      %v918 = vunpack.c.l.b16 %v383
      %v919 = vunpack.c.l.b16 %v384
      %v920 = vunpack.c.l.b16 %v385
      %v921 = vunpack.c.l.b16 %v386
      %v922 = vunpack.c.l.b16 %v387
      %v923 = vunpack.c.l.b16 %v388
      %v924 = vunpack.c.l.b16 %v389
      %v925 = vunpack.c.l.b16 %v390
      %v926 = vunpack.c.l.b16 %v391
      %v927 = vunpack.c.l.b16 %v392
      %v928 = vunpack.c.l.b16 %v393
      %v929 = vunpack.c.l.b16 %v394
      %v930 = vunpack.c.l.b16 %v395
      %v931 = vunpack.c.l.b16 %v396
      %v932 = vunpack.c.l.b16 %v397
      %v933 = vunpack.c.l.b16 %v398
      %v934 = vunpack.c.l.b16 %v399
      %v935 = vunpack.c.l.b16 %v400
      %v936 = vunpack.c.l.b16 %v401
      %v937 = vunpack.c.l.b16 %v402
      %v938 = vunpack.c.l.b16 %v403
      %v939 = vunpack.c.l.b16 %v404
      %v940 = vunpack.c.l.b16 %v405
      %v941 = vunpack.c.l.b16 %v406
      %v942 = vunpack.c.l.b16 %v407
      %v943 = vunpack.c.l.b16 %v408
      %v944 = vunpack.c.l.b16 %v409
      %v945 = vunpack.c.l.b16 %v410
      %v946 = vunpack.c.l.b16 %v411
      %v947 = vunpack.c.l.b16 %v412
      %v948 = vunpack.c.l.b16 %v413
      %v949 = vunpack.c.l.b16 %v414
      %v950 = vunpack.c.l.b16 %v415
      %v951 = vunpack.c.l.b16 %v416
      %v952 = vunpack.c.l.b16 %v417
      %v953 = vunpack.c.l.b16 %v418
      %v954 = vunpack.c.l.b16 %v419
      %v955 = vunpack.c.l.b16 %v420
      %v956 = vunpack.c.l.b16 %v421
      %v957 = vunpack.c.l.b16 %v422
      %v958 = vunpack.c.l.b16 %v423
      %v959 = vunpack.c.l.b16 %v424
      %v960 = vunpack.c.l.b16 %v425
      %v961 = vunpack.c.l.b16 %v426
      %v962 = vunpack.c.l.b16 %v427
      %v963 = vunpack.c.l.b16 %v428
      %v964 = vunpack.c.l.b16 %v429
      %v965 = vunpack.c.l.b16 %v430
      %v966 = vpack.c.b16 %v711, %v710
      %v967 = vpack.c.b16 %v713, %v712
      %v968 = vpack.c.b16 %v715, %v714
      %v969 = vpack.c.b16 %v717, %v716
      %v970 = vpack.c.b16 %v719, %v718
      %v971 = vpack.c.b16 %v721, %v720
      %v972 = vpack.c.b16 %v723, %v722
      %v973 = vpack.c.b16 %v725, %v724
      %v974 = vpack.c.b16 %v727, %v726
      %v975 = vpack.c.b16 %v729, %v728
      %v976 = vpack.c.b16 %v731, %v730
      %v977 = vpack.c.b16 %v733, %v732
      %v978 = vpack.c.b16 %v735, %v734
      %v979 = vpack.c.b16 %v737, %v736
      %v980 = vpack.c.b16 %v739, %v738
      %v981 = vpack.c.b16 %v741, %v740
      %v982 = vpack.c.b16 %v743, %v742
      %v983 = vpack.c.b16 %v745, %v744
      %v984 = vpack.c.b16 %v747, %v746
      %v985 = vpack.c.b16 %v749, %v748
      %v986 = vpack.c.b16 %v751, %v750
      %v987 = vpack.c.b16 %v753, %v752
      %v988 = vpack.c.b16 %v755, %v754
      %v989 = vpack.c.b16 %v757, %v756
      %v990 = vpack.c.b16 %v759, %v758
      %v991 = vpack.c.b16 %v761, %v760
      %v992 = vpack.c.b16 %v763, %v762
      %v993 = vpack.c.b16 %v765, %v764
      %v994 = vpack.c.b16 %v767, %v766
      %v995 = vpack.c.b16 %v769, %v768
      %v996 = vpack.c.b16 %v771, %v770
      %v997 = vpack.c.b16 %v773, %v772
      %v998 = vpack.c.b16 %v775, %v774
      %v999 = vpack.c.b16 %v777, %v776
      %v1000 = vpack.c.b16 %v779, %v778
      %v1001 = vpack.c.b16 %v781, %v780
      %v1002 = vpack.c.b16 %v783, %v782
      %v1003 = vpack.c.b16 %v785, %v784
      %v1004 = vpack.c.b16 %v787, %v786
      %v1005 = vpack.c.b16 %v789, %v788
      %v1006 = vpack.c.b16 %v791, %v790
      %v1007 = vpack.c.b16 %v793, %v792
      %v1008 = vpack.c.b16 %v795, %v794
      %v1009 = vpack.c.b16 %v797, %v796
      %v1010 = vpack.c.b16 %v799, %v798
      %v1011 = vpack.c.b16 %v801, %v800
      %v1012 = vpack.c.b16 %v803, %v802
      %v1013 = vpack.c.b16 %v805, %v804
      %v1014 = vpack.c.b16 %v807, %v806
      %v1015 = vpack.c.b16 %v809, %v808
      %v1016 = vpack.c.b16 %v811, %v810
      %v1017 = vpack.c.b16 %v813, %v812
      %v1018 = vpack.c.b16 %v815, %v814
      %v1019 = vpack.c.b16 %v817, %v816
      %v1020 = vpack.c.b16 %v819, %v818
      %v1021 = vpack.c.b16 %v821, %v820
      %v1022 = vpack.c.b16 %v823, %v822
      %v1023 = vpack.c.b16 %v825, %v824
      %v1024 = vpack.c.b16 %v827, %v826
      %v1025 = vpack.c.b16 %v829, %v828
      %v1026 = vpack.c.b16 %v831, %v830
      %v1027 = vpack.c.b16 %v833, %v832
      %v1028 = vpack.c.b16 %v835, %v834
      %v1029 = vpack.c.b16 %v837, %v836
      %v1030 = vpack.c.b16 %v839, %v838
      %v1031 = vpack.c.b16 %v841, %v840
      %v1032 = vpack.c.b16 %v843, %v842
      %v1033 = vpack.c.b16 %v845, %v844
      %v1034 = vpack.c.b16 %v847, %v846
      %v1035 = vpack.c.b16 %v849, %v848
      %v1036 = vpack.c.b16 %v851, %v850
      %v1037 = vpack.c.b16 %v853, %v852
      %v1038 = vpack.c.b16 %v855, %v854
      %v1039 = vpack.c.b16 %v857, %v856
      %v1040 = vpack.c.b16 %v859, %v858
      %v1041 = vpack.c.b16 %v861, %v860
      %v1042 = vpack.c.b16 %v863, %v862
      %v1043 = vpack.c.b16 %v865, %v864
      %v1044 = vpack.c.b16 %v867, %v866
      %v1045 = vpack.c.b16 %v869, %v868
      %v1046 = vpack.c.b16 %v871, %v870
      %v1047 = vpack.c.b16 %v873, %v872
      %v1048 = vpack.c.b16 %v875, %v874
      %v1049 = vpack.c.b16 %v877, %v876
      %v1050 = vpack.c.b16 %v879, %v878
      %v1051 = vpack.c.b16 %v881, %v880
      %v1052 = vpack.c.b16 %v883, %v882
      %v1053 = vpack.c.b16 %v885, %v884
      %v1054 = vpack.c.b16 %v887, %v886
      %v1055 = vpack.c.b16 %v889, %v888
      %v1056 = vpack.c.b16 %v891, %v890
      %v1057 = vpack.c.b16 %v893, %v892
      %v1058 = vpack.c.b16 %v895, %v894
      %v1059 = vpack.c.b16 %v897, %v896
      %v1060 = vpack.c.b16 %v899, %v898
      %v1061 = vpack.c.b16 %v901, %v900
      %v1062 = vpack.c.b16 %v903, %v902
      %v1063 = vpack.c.b16 %v905, %v904
      %v1064 = vpack.c.b16 %v907, %v906
      %v1065 = vpack.c.b16 %v909, %v908
      %v1066 = vpack.c.b16 %v911, %v910
      %v1067 = vpack.c.b16 %v913, %v912
      %v1068 = vpack.c.b16 %v915, %v914
      %v1069 = vpack.c.b16 %v917, %v916
      %v1070 = vpack.c.b16 %v919, %v918
      %v1071 = vpack.c.b16 %v921, %v920
      %v1072 = vpack.c.b16 %v923, %v922
      %v1073 = vpack.c.b16 %v925, %v924
      %v1074 = vpack.c.b16 %v927, %v926
      %v1075 = vpack.c.b16 %v929, %v928
      %v1076 = vpack.c.b16 %v931, %v930
      %v1077 = vpack.c.b16 %v933, %v932
      %v1078 = vpack.c.b16 %v935, %v934
      %v1079 = vpack.c.b16 %v937, %v936
      %v1080 = vpack.c.b16 %v939, %v938
      %v1081 = vpack.c.b16 %v941, %v940
      %v1082 = vpack.c.b16 %v943, %v942
      %v1083 = vpack.c.b16 %v945, %v944
      %v1084 = vpack.c.b16 %v947, %v946
      %v1085 = vpack.c.b16 %v949, %v948
      %v1086 = vpack.c.b16 %v951, %v950
      %v1087 = vpack.c.b16 %v953, %v952
      %v1088 = vpack.c.b16 %v955, %v954
      %v1089 = vpack.c.b16 %v957, %v956
      %v1090 = vpack.c.b16 %v959, %v958
      %v1091 = vpack.c.b16 %v961, %v960
      %v1092 = vpack.c.b16 %v963, %v962
      %v1093 = vpack.c.b16 %v965, %v964
      %v1238 = vunpack.c.l.b16 %v431
      %v1239 = vunpack.c.l.b16 %v432
      %v1240 = vunpack.c.l.b16 %v433
      %v1241 = vunpack.c.l.b16 %v434
      %v1242 = vunpack.c.l.b16 %v435
      %v1243 = vunpack.c.l.b16 %v436
      %v1244 = vunpack.c.l.b16 %v437
      %v1245 = vunpack.c.l.b16 %v438
      %v1246 = vunpack.c.l.b16 %v439
      %v1247 = vunpack.c.l.b16 %v440
      %v1248 = vunpack.c.l.b16 %v441
      %v1249 = vunpack.c.l.b16 %v442
      %v1250 = vunpack.c.l.b16 %v443
      %v1251 = vunpack.c.l.b16 %v444
      %v1252 = vunpack.c.l.b16 %v445
      %v1253 = vunpack.c.l.b16 %v446
      %v1254 = vpack.c.b16 %v1239, %v1238
      %v1255 = vpack.c.b16 %v1241, %v1240
      %v1256 = vpack.c.b16 %v1243, %v1242
      %v1257 = vpack.c.b16 %v1245, %v1244
      %v1258 = vpack.c.b16 %v1247, %v1246
      %v1259 = vpack.c.b16 %v1249, %v1248
      %v1260 = vpack.c.b16 %v1251, %v1250
      %v1261 = vpack.c.b16 %v1253, %v1252
      %1270 = vmatprep.subr.bf16.mxu0 0
      %1271 = vmatpush1.bf16.msra.mxu0 %v1254
      %1272 = vmatprep.subr.bf16.mxu0 0
      %1273 = vmatpush1.bf16.msra.mxu0 %v1255
      %1274 = vmatprep.subr.bf16.mxu0 0
      %1275 = vmatpush1.bf16.msra.mxu0 %v1256
      %1276 = vmatprep.subr.bf16.mxu0 0
      %1277 = vmatpush1.bf16.msra.mxu0 %v1257
      %1278 = vmatprep.subr.bf16.mxu0 0
      %1279 = vmatpush1.bf16.msra.mxu0 %v1258
      %1280 = vmatprep.subr.bf16.mxu0 0
      %1281 = vmatpush1.bf16.msra.mxu0 %v1259
      %1282 = vmatprep.subr.bf16.mxu0 0
      %1283 = vmatpush1.bf16.msra.mxu0 %v1260
      %1284 = vmatprep.subr.bf16.mxu0 0
      %1285 = vmatpush1.bf16.msra.mxu0 %v1261
      %1286 = vmatprep.subr.bf16.mxu0 0
      %1287 = vmatpush1.bf16.msra.mxu0 0
      %1288 = vmatprep.subr.bf16.mxu0 0
      %1289 = vmatpush1.bf16.msra.mxu0 0
      %1290 = vmatprep.subr.bf16.mxu0 0
      %1291 = vmatpush1.bf16.msra.mxu0 0
      %1292 = vmatprep.subr.bf16.mxu0 0
      %1293 = vmatpush1.bf16.msra.mxu0 0
      %1294 = vmatprep.subr.bf16.mxu0 0
      %1295 = vmatpush1.bf16.msra.mxu0 0
      %1296 = vmatprep.subr.bf16.mxu0 0
      %1297 = vmatpush1.bf16.msra.mxu0 0
      %1298 = vmatprep.subr.bf16.mxu0 0
      %1299 = vmatpush1.bf16.msra.mxu0 0
      %1300 = vmatprep.subr.bf16.mxu0 0
      %1301 = vmatpush1.bf16.msra.mxu0 0
      %1302 = vmatprep.mubr.bf16.mxu0 0
      %1303 = vmatmul.mubr.bf16.gmra.mrb[0].mxu0 %v966
      %v1304 = vpop.f32.mrb[0].mxu0
      %v1305 = vadd.f32 %v452, %v1304
      %v1306 = vpop.f32.mrb[0].mxu0
      %v1307 = vpop.f32.mrb[0].mxu0
      %v1308 = vadd.f32 %v452, %v1307
      %v1309 = vpop.f32.mrb[0].mxu0
      %1310 = vmatprep.mubr.bf16.mxu0 0
      %1311 = vmatmul.mubr.bf16.gmra.mrb[0].mxu0 %v967
      %v1312 = vpop.f32.mrb[0].mxu0
      %v1313 = vadd.f32 %v452, %v1312
      %v1314 = vpop.f32.mrb[0].mxu0
      %v1315 = vpop.f32.mrb[0].mxu0
      %v1316 = vadd.f32 %v452, %v1315
      %v1317 = vpop.f32.mrb[0].mxu0
      %1318 = vmatprep.mubr.bf16.mxu0 0
      %1319 = vmatmul.mubr.bf16.gmra.mrb[0].mxu0 %v968
      %v1320 = vpop.f32.mrb[0].mxu0
      %v1321 = vadd.f32 %v452, %v1320
      %v1322 = vpop.f32.mrb[0].mxu0
      %v1323 = vpop.f32.mrb[0].mxu0
      %v1324 = vadd.f32 %v452, %v1323
      %v1325 = vpop.f32.mrb[0].mxu0
      %1326 = vmatprep.mubr.bf16.mxu0 0
      %1327 = vmatmul.mubr.bf16.gmra.mrb[0].mxu0 %v969
      %v1328 = vpop.f32.mrb[0].mxu0
      %v1329 = vadd.f32 %v452, %v1328
      %v1330 = vpop.f32.mrb[0].mxu0
      %v1331 = vpop.f32.mrb[0].mxu0
      %v1332 = vadd.f32 %v452, %v1331
      %v1333 = vpop.f32.mrb[0].mxu0
      %1334 = vmatprep.mubr.bf16.mxu0 0
      %1335 = vmatmul.mubr.bf16.gmra.mrb[0].mxu0 %v970
      %v1336 = vpop.f32.mrb[0].mxu0
      %v1337 = vadd.f32 %v452, %v1336
      %v1338 = vpop.f32.mrb[0].mxu0
      %v1339 = vpop.f32.mrb[0].mxu0
      %v1340 = vadd.f32 %v452, %v1339
      %v1341 = vpop.f32.mrb[0].mxu0
      %1342 = vmatprep.mubr.bf16.mxu0 0
      %1343 = vmatmul.mubr.bf16.gmra.mrb[0].mxu0 %v971
      %v1344 = vpop.f32.mrb[0].mxu0
      %v1345 = vadd.f32 %v452, %v1344
      %v1346 = vpop.f32.mrb[0].mxu0
      %v1347 = vpop.f32.mrb[0].mxu0
      %v1348 = vadd.f32 %v452, %v1347
      %v1349 = vpop.f32.mrb[0].mxu0
      %1350 = vmatprep.mubr.bf16.mxu0 0
      %1351 = vmatmul.mubr.bf16.gmra.mrb[0].mxu0 %v972
      %v1352 = vpop.f32.mrb[0].mxu0
      %v1353 = vadd.f32 %v452, %v1352
      %v1354 = vpop.f32.mrb[0].mxu0
      %v1355 = vpop.f32.mrb[0].mxu0
      %v1356 = vadd.f32 %v452, %v1355
      %v1357 = vpop.f32.mrb[0].mxu0
      %1358 = vmatprep.mubr.bf16.mxu0 0
      %1359 = vmatmul.mubr.bf16.gmra.mrb[0].mxu0 %v973
      %v1360 = vpop.f32.mrb[0].mxu0
      %v1361 = vadd.f32 %v452, %v1360
      %v1362 = vpop.f32.mrb[0].mxu0
      %v1363 = vpop.f32.mrb[0].mxu0
      %v1364 = vadd.f32 %v452, %v1363
      %v1365 = vpop.f32.mrb[0].mxu0
      %1366 = vmatprep.mubr.bf16.mxu0 0
      %1367 = vmatmul.mubr.bf16.gmra.mrb[0].mxu0 %v974
      %v1368 = vpop.f32.mrb[0].mxu0
      %v1369 = vadd.f32 %v452, %v1368
      %v1370 = vpop.f32.mrb[0].mxu0
      %v1371 = vpop.f32.mrb[0].mxu0
      %v1372 = vadd.f32 %v452, %v1371
      %v1373 = vpop.f32.mrb[0].mxu0
      %1374 = vmatprep.mubr.bf16.mxu0 0
      %1375 = vmatmul.mubr.bf16.gmra.mrb[0].mxu0 %v975
      %v1376 = vpop.f32.mrb[0].mxu0
      %v1377 = vadd.f32 %v452, %v1376
      %v1378 = vpop.f32.mrb[0].mxu0
      %v1379 = vpop.f32.mrb[0].mxu0
      %v1380 = vadd.f32 %v452, %v1379
      %v1381 = vpop.f32.mrb[0].mxu0
      %1382 = vmatprep.mubr.bf16.mxu0 0
      %1383 = vmatmul.mubr.bf16.gmra.mrb[0].mxu0 %v976
      %v1384 = vpop.f32.mrb[0].mxu0
      %v1385 = vadd.f32 %v452, %v1384
      %v1386 = vpop.f32.mrb[0].mxu0
      %v1387 = vpop.f32.mrb[0].mxu0
      %v1388 = vadd.f32 %v452, %v1387
      %v1389 = vpop.f32.mrb[0].mxu0
      %1390 = vmatprep.mubr.bf16.mxu0 0
      %1391 = vmatmul.mubr.bf16.gmra.mrb[0].mxu0 %v977
      %v1392 = vpop.f32.mrb[0].mxu0
      %v1393 = vadd.f32 %v452, %v1392
      %v1394 = vpop.f32.mrb[0].mxu0
      %v1395 = vpop.f32.mrb[0].mxu0
      %v1396 = vadd.f32 %v452, %v1395
      %v1397 = vpop.f32.mrb[0].mxu0
      %1398 = vmatprep.mubr.bf16.mxu0 0
      %1399 = vmatmul.mubr.bf16.gmra.mrb[0].mxu0 %v978
      %v1400 = vpop.f32.mrb[0].mxu0
      %v1401 = vadd.f32 %v452, %v1400
      %v1402 = vpop.f32.mrb[0].mxu0
      %v1403 = vpop.f32.mrb[0].mxu0
      %v1404 = vadd.f32 %v452, %v1403
      %v1405 = vpop.f32.mrb[0].mxu0
      %1406 = vmatprep.mubr.bf16.mxu0 0
      %1407 = vmatmul.mubr.bf16.gmra.mrb[0].mxu0 %v979
      %v1408 = vpop.f32.mrb[0].mxu0
      %v1409 = vadd.f32 %v452, %v1408
      %v1410 = vpop.f32.mrb[0].mxu0
      %v1411 = vpop.f32.mrb[0].mxu0
      %v1412 = vadd.f32 %v452, %v1411
      %v1413 = vpop.f32.mrb[0].mxu0
      %1414 = vmatprep.mubr.bf16.mxu0 0
      %1415 = vmatmul.mubr.bf16.gmra.mrb[0].mxu0 %v980
      %v1416 = vpop.f32.mrb[0].mxu0
      %v1417 = vadd.f32 %v452, %v1416
      %v1418 = vpop.f32.mrb[0].mxu0
      %v1419 = vpop.f32.mrb[0].mxu0
      %v1420 = vadd.f32 %v452, %v1419
      %v1421 = vpop.f32.mrb[0].mxu0
      %1422 = vmatprep.mubr.bf16.mxu0 0
      %1423 = vmatmul.mubr.bf16.gmra.mrb[0].mxu0 %v981
      %v1424 = vpop.f32.mrb[0].mxu0
      %v1425 = vadd.f32 %v452, %v1424
      %v1426 = vpop.f32.mrb[0].mxu0
      %v1427 = vpop.f32.mrb[0].mxu0
      %v1428 = vadd.f32 %v452, %v1427
      %v1429 = vpop.f32.mrb[0].mxu0
      %1430 = vmatprep.mubr.bf16.mxu0 0
      %1431 = vmatmul.mubr.bf16.gmra.mrb[0].mxu0 %v982
      %v1432 = vpop.f32.mrb[0].mxu0
      %v1433 = vadd.f32 %v452, %v1432
      %v1434 = vpop.f32.mrb[0].mxu0
      %v1435 = vpop.f32.mrb[0].mxu0
      %v1436 = vadd.f32 %v452, %v1435
      %v1437 = vpop.f32.mrb[0].mxu0
      %1438 = vmatprep.mubr.bf16.mxu0 0
      %1439 = vmatmul.mubr.bf16.gmra.mrb[0].mxu0 %v983
      %v1440 = vpop.f32.mrb[0].mxu0
      %v1441 = vadd.f32 %v452, %v1440
      %v1442 = vpop.f32.mrb[0].mxu0
      %v1443 = vpop.f32.mrb[0].mxu0
      %v1444 = vadd.f32 %v452, %v1443
      %v1445 = vpop.f32.mrb[0].mxu0
      %1446 = vmatprep.mubr.bf16.mxu0 0
      %1447 = vmatmul.mubr.bf16.gmra.mrb[0].mxu0 %v984
      %v1448 = vpop.f32.mrb[0].mxu0
      %v1449 = vadd.f32 %v452, %v1448
      %v1450 = vpop.f32.mrb[0].mxu0
      %v1451 = vpop.f32.mrb[0].mxu0
      %v1452 = vadd.f32 %v452, %v1451
      %v1453 = vpop.f32.mrb[0].mxu0
      %1454 = vmatprep.mubr.bf16.mxu0 0
      %1455 = vmatmul.mubr.bf16.gmra.mrb[0].mxu0 %v985
      %v1456 = vpop.f32.mrb[0].mxu0
      %v1457 = vadd.f32 %v452, %v1456
      %v1458 = vpop.f32.mrb[0].mxu0
      %v1459 = vpop.f32.mrb[0].mxu0
      %v1460 = vadd.f32 %v452, %v1459
      %v1461 = vpop.f32.mrb[0].mxu0
      %1462 = vmatprep.mubr.bf16.mxu0 0
      %1463 = vmatmul.mubr.bf16.gmra.mrb[0].mxu0 %v986
      %v1464 = vpop.f32.mrb[0].mxu0
      %v1465 = vadd.f32 %v452, %v1464
      %v1466 = vpop.f32.mrb[0].mxu0
      %v1467 = vpop.f32.mrb[0].mxu0
      %v1468 = vadd.f32 %v452, %v1467
      %v1469 = vpop.f32.mrb[0].mxu0
      %1470 = vmatprep.mubr.bf16.mxu0 0
      %1471 = vmatmul.mubr.bf16.gmra.mrb[0].mxu0 %v987
      %v1472 = vpop.f32.mrb[0].mxu0
      %v1473 = vadd.f32 %v452, %v1472
      %v1474 = vpop.f32.mrb[0].mxu0
      %v1475 = vpop.f32.mrb[0].mxu0
      %v1476 = vadd.f32 %v452, %v1475
      %v1477 = vpop.f32.mrb[0].mxu0
      %1478 = vmatprep.mubr.bf16.mxu0 0
      %1479 = vmatmul.mubr.bf16.gmra.mrb[0].mxu0 %v988
      %v1480 = vpop.f32.mrb[0].mxu0
      %v1481 = vadd.f32 %v452, %v1480
      %v1482 = vpop.f32.mrb[0].mxu0
      %v1483 = vpop.f32.mrb[0].mxu0
      %v1484 = vadd.f32 %v452, %v1483
      %v1485 = vpop.f32.mrb[0].mxu0
      %1486 = vmatprep.mubr.bf16.mxu0 0
      %1487 = vmatmul.mubr.bf16.gmra.mrb[0].mxu0 %v989
      %v1488 = vpop.f32.mrb[0].mxu0
      %v1489 = vadd.f32 %v452, %v1488
      %v1490 = vpop.f32.mrb[0].mxu0
      %v1491 = vpop.f32.mrb[0].mxu0
      %v1492 = vadd.f32 %v452, %v1491
      %v1493 = vpop.f32.mrb[0].mxu0
      %1494 = vmatprep.mubr.bf16.mxu0 0
      %1495 = vmatmul.mubr.bf16.gmra.mrb[0].mxu0 %v990
      %v1496 = vpop.f32.mrb[0].mxu0
      %v1497 = vadd.f32 %v452, %v1496
      %v1498 = vpop.f32.mrb[0].mxu0
      %v1499 = vpop.f32.mrb[0].mxu0
      %v1500 = vadd.f32 %v452, %v1499
      %v1501 = vpop.f32.mrb[0].mxu0
      %1502 = vmatprep.mubr.bf16.mxu0 0
      %1503 = vmatmul.mubr.bf16.gmra.mrb[0].mxu0 %v991
      %v1504 = vpop.f32.mrb[0].mxu0
      %v1505 = vadd.f32 %v452, %v1504
      %v1506 = vpop.f32.mrb[0].mxu0
      %v1507 = vpop.f32.mrb[0].mxu0
      %v1508 = vadd.f32 %v452, %v1507
      %v1509 = vpop.f32.mrb[0].mxu0
      %1510 = vmatprep.mubr.bf16.mxu0 0
      %1511 = vmatmul.mubr.bf16.gmra.mrb[0].mxu0 %v992
      %v1512 = vpop.f32.mrb[0].mxu0
      %v1513 = vadd.f32 %v452, %v1512
      %v1514 = vpop.f32.mrb[0].mxu0
      %v1515 = vpop.f32.mrb[0].mxu0
      %v1516 = vadd.f32 %v452, %v1515
      %v1517 = vpop.f32.mrb[0].mxu0
      %1518 = vmatprep.mubr.bf16.mxu0 0
      %1519 = vmatmul.mubr.bf16.gmra.mrb[0].mxu0 %v993
      %v1520 = vpop.f32.mrb[0].mxu0
      %v1521 = vadd.f32 %v452, %v1520
      %v1522 = vpop.f32.mrb[0].mxu0
      %v1523 = vpop.f32.mrb[0].mxu0
      %v1524 = vadd.f32 %v452, %v1523
      %v1525 = vpop.f32.mrb[0].mxu0
      %1526 = vmatprep.mubr.bf16.mxu0 0
      %1527 = vmatmul.mubr.bf16.gmra.mrb[0].mxu0 %v994
      %v1528 = vpop.f32.mrb[0].mxu0
      %v1529 = vadd.f32 %v452, %v1528
      %v1530 = vpop.f32.mrb[0].mxu0
      %v1531 = vpop.f32.mrb[0].mxu0
      %v1532 = vadd.f32 %v452, %v1531
      %v1533 = vpop.f32.mrb[0].mxu0
      %1534 = vmatprep.mubr.bf16.mxu0 0
      %1535 = vmatmul.mubr.bf16.gmra.mrb[0].mxu0 %v995
      %v1536 = vpop.f32.mrb[0].mxu0
      %v1537 = vadd.f32 %v452, %v1536
      %v1538 = vpop.f32.mrb[0].mxu0
      %v1539 = vpop.f32.mrb[0].mxu0
      %v1540 = vadd.f32 %v452, %v1539
      %v1541 = vpop.f32.mrb[0].mxu0
      %1542 = vmatprep.mubr.bf16.mxu0 0
      %1543 = vmatmul.mubr.bf16.gmra.mrb[0].mxu0 %v996
      %v1544 = vpop.f32.mrb[0].mxu0
      %v1545 = vadd.f32 %v452, %v1544
      %v1546 = vpop.f32.mrb[0].mxu0
      %v1547 = vpop.f32.mrb[0].mxu0
      %v1548 = vadd.f32 %v452, %v1547
      %v1549 = vpop.f32.mrb[0].mxu0
      %1550 = vmatprep.mubr.bf16.mxu0 0
      %1551 = vmatmul.mubr.bf16.gmra.mrb[0].mxu0 %v997
      %v1552 = vpop.f32.mrb[0].mxu0
      %v1553 = vadd.f32 %v452, %v1552
      %v1554 = vpop.f32.mrb[0].mxu0
      %v1555 = vpop.f32.mrb[0].mxu0
      %v1556 = vadd.f32 %v452, %v1555
      %v1557 = vpop.f32.mrb[0].mxu0
      %1558 = vmatprep.mubr.bf16.mxu0 0
      %1559 = vmatmul.mubr.bf16.gmra.mrb[0].mxu0 %v998
      %v1560 = vpop.f32.mrb[0].mxu0
      %v1561 = vadd.f32 %v452, %v1560
      %v1562 = vpop.f32.mrb[0].mxu0
      %v1563 = vpop.f32.mrb[0].mxu0
      %v1564 = vadd.f32 %v452, %v1563
      %v1565 = vpop.f32.mrb[0].mxu0
      %1566 = vmatprep.mubr.bf16.mxu0 0
      %1567 = vmatmul.mubr.bf16.gmra.mrb[0].mxu0 %v999
      %v1568 = vpop.f32.mrb[0].mxu0
      %v1569 = vadd.f32 %v452, %v1568
      %v1570 = vpop.f32.mrb[0].mxu0
      %v1571 = vpop.f32.mrb[0].mxu0
      %v1572 = vadd.f32 %v452, %v1571
      %v1573 = vpop.f32.mrb[0].mxu0
      %1574 = vmatprep.mubr.bf16.mxu0 0
      %1575 = vmatmul.mubr.bf16.gmra.mrb[0].mxu0 %v1000
      %v1576 = vpop.f32.mrb[0].mxu0
      %v1577 = vadd.f32 %v452, %v1576
      %v1578 = vpop.f32.mrb[0].mxu0
      %v1579 = vpop.f32.mrb[0].mxu0
      %v1580 = vadd.f32 %v452, %v1579
      %v1581 = vpop.f32.mrb[0].mxu0
      %1582 = vmatprep.mubr.bf16.mxu0 0
      %1583 = vmatmul.mubr.bf16.gmra.mrb[0].mxu0 %v1001
      %v1584 = vpop.f32.mrb[0].mxu0
      %v1585 = vadd.f32 %v452, %v1584
      %v1586 = vpop.f32.mrb[0].mxu0
      %v1587 = vpop.f32.mrb[0].mxu0
      %v1588 = vadd.f32 %v452, %v1587
      %v1589 = vpop.f32.mrb[0].mxu0
      %1590 = vmatprep.mubr.bf16.mxu0 0
      %1591 = vmatmul.mubr.bf16.gmra.mrb[0].mxu0 %v1002
      %v1592 = vpop.f32.mrb[0].mxu0
      %v1593 = vadd.f32 %v452, %v1592
      %v1594 = vpop.f32.mrb[0].mxu0
      %v1595 = vpop.f32.mrb[0].mxu0
      %v1596 = vadd.f32 %v452, %v1595
      %v1597 = vpop.f32.mrb[0].mxu0
      %1598 = vmatprep.mubr.bf16.mxu0 0
      %1599 = vmatmul.mubr.bf16.gmra.mrb[0].mxu0 %v1003
      %v1600 = vpop.f32.mrb[0].mxu0
      %v1601 = vadd.f32 %v452, %v1600
      %v1602 = vpop.f32.mrb[0].mxu0
      %v1603 = vpop.f32.mrb[0].mxu0
      %v1604 = vadd.f32 %v452, %v1603
      %v1605 = vpop.f32.mrb[0].mxu0
      %1606 = vmatprep.mubr.bf16.mxu0 0
      %1607 = vmatmul.mubr.bf16.gmra.mrb[0].mxu0 %v1004
      %v1608 = vpop.f32.mrb[0].mxu0
      %v1609 = vadd.f32 %v452, %v1608
      %v1610 = vpop.f32.mrb[0].mxu0
      %v1611 = vpop.f32.mrb[0].mxu0
      %v1612 = vadd.f32 %v452, %v1611
      %v1613 = vpop.f32.mrb[0].mxu0
      %1614 = vmatprep.mubr.bf16.mxu0 0
      %1615 = vmatmul.mubr.bf16.gmra.mrb[0].mxu0 %v1005
      %v1616 = vpop.f32.mrb[0].mxu0
      %v1617 = vadd.f32 %v452, %v1616
      %v1618 = vpop.f32.mrb[0].mxu0
      %v1619 = vpop.f32.mrb[0].mxu0
      %v1620 = vadd.f32 %v452, %v1619
      %v1621 = vpop.f32.mrb[0].mxu0
      %1622 = vmatprep.mubr.bf16.mxu0 0
      %1623 = vmatmul.mubr.bf16.gmra.mrb[0].mxu0 %v1006
      %v1624 = vpop.f32.mrb[0].mxu0
      %v1625 = vadd.f32 %v452, %v1624
      %v1626 = vpop.f32.mrb[0].mxu0
      %v1627 = vpop.f32.mrb[0].mxu0
      %v1628 = vadd.f32 %v452, %v1627
      %v1629 = vpop.f32.mrb[0].mxu0
      %1630 = vmatprep.mubr.bf16.mxu0 0
      %1631 = vmatmul.mubr.bf16.gmra.mrb[0].mxu0 %v1007
      %v1632 = vpop.f32.mrb[0].mxu0
      %v1633 = vadd.f32 %v452, %v1632
      %v1634 = vpop.f32.mrb[0].mxu0
      %v1635 = vpop.f32.mrb[0].mxu0
      %v1636 = vadd.f32 %v452, %v1635
      %v1637 = vpop.f32.mrb[0].mxu0
      %1638 = vmatprep.mubr.bf16.mxu0 0
      %1639 = vmatmul.mubr.bf16.gmra.mrb[0].mxu0 %v1008
      %v1640 = vpop.f32.mrb[0].mxu0
      %v1641 = vadd.f32 %v452, %v1640
      %v1642 = vpop.f32.mrb[0].mxu0
      %v1643 = vpop.f32.mrb[0].mxu0
      %v1644 = vadd.f32 %v452, %v1643
      %v1645 = vpop.f32.mrb[0].mxu0
      %1646 = vmatprep.mubr.bf16.mxu0 0
      %1647 = vmatmul.mubr.bf16.gmra.mrb[0].mxu0 %v1009
      %v1648 = vpop.f32.mrb[0].mxu0
      %v1649 = vadd.f32 %v452, %v1648
      %v1650 = vpop.f32.mrb[0].mxu0
      %v1651 = vpop.f32.mrb[0].mxu0
      %v1652 = vadd.f32 %v452, %v1651
      %v1653 = vpop.f32.mrb[0].mxu0
      %1654 = vmatprep.mubr.bf16.mxu0 0
      %1655 = vmatmul.mubr.bf16.gmra.mrb[0].mxu0 %v1010
      %v1656 = vpop.f32.mrb[0].mxu0
      %v1657 = vadd.f32 %v452, %v1656
      %v1658 = vpop.f32.mrb[0].mxu0
      %v1659 = vpop.f32.mrb[0].mxu0
      %v1660 = vadd.f32 %v452, %v1659
      %v1661 = vpop.f32.mrb[0].mxu0
      %1662 = vmatprep.mubr.bf16.mxu0 0
      %1663 = vmatmul.mubr.bf16.gmra.mrb[0].mxu0 %v1011
      %v1664 = vpop.f32.mrb[0].mxu0
      %v1665 = vadd.f32 %v452, %v1664
      %v1666 = vpop.f32.mrb[0].mxu0
      %v1667 = vpop.f32.mrb[0].mxu0
      %v1668 = vadd.f32 %v452, %v1667
      %v1669 = vpop.f32.mrb[0].mxu0
      %1670 = vmatprep.mubr.bf16.mxu0 0
      %1671 = vmatmul.mubr.bf16.gmra.mrb[0].mxu0 %v1012
      %v1672 = vpop.f32.mrb[0].mxu0
      %v1673 = vadd.f32 %v452, %v1672
      %v1674 = vpop.f32.mrb[0].mxu0
      %v1675 = vpop.f32.mrb[0].mxu0
      %v1676 = vadd.f32 %v452, %v1675
      %v1677 = vpop.f32.mrb[0].mxu0
      %1678 = vmatprep.mubr.bf16.mxu0 0
      %1679 = vmatmul.mubr.bf16.gmra.mrb[0].mxu0 %v1013
      %v1680 = vpop.f32.mrb[0].mxu0
      %v1681 = vadd.f32 %v452, %v1680
      %v1682 = vpop.f32.mrb[0].mxu0
      %v1683 = vpop.f32.mrb[0].mxu0
      %v1684 = vadd.f32 %v452, %v1683
      %v1685 = vpop.f32.mrb[0].mxu0
      %1686 = vmatprep.mubr.bf16.mxu0 0
      %1687 = vmatmul.mubr.bf16.gmra.mrb[0].mxu0 %v1014
      %v1688 = vpop.f32.mrb[0].mxu0
      %v1689 = vadd.f32 %v452, %v1688
      %v1690 = vpop.f32.mrb[0].mxu0
      %v1691 = vpop.f32.mrb[0].mxu0
      %v1692 = vadd.f32 %v452, %v1691
      %v1693 = vpop.f32.mrb[0].mxu0
      %1694 = vmatprep.mubr.bf16.mxu0 0
      %1695 = vmatmul.mubr.bf16.gmra.mrb[0].mxu0 %v1015
      %v1696 = vpop.f32.mrb[0].mxu0
      %v1697 = vadd.f32 %v452, %v1696
      %v1698 = vpop.f32.mrb[0].mxu0
      %v1699 = vpop.f32.mrb[0].mxu0
      %v1700 = vadd.f32 %v452, %v1699
      %v1701 = vpop.f32.mrb[0].mxu0
      %1702 = vmatprep.mubr.bf16.mxu0 0
      %1703 = vmatmul.mubr.bf16.gmra.mrb[0].mxu0 %v1016
      %v1704 = vpop.f32.mrb[0].mxu0
      %v1705 = vadd.f32 %v452, %v1704
      %v1706 = vpop.f32.mrb[0].mxu0
      %v1707 = vpop.f32.mrb[0].mxu0
      %v1708 = vadd.f32 %v452, %v1707
      %v1709 = vpop.f32.mrb[0].mxu0
      %1710 = vmatprep.mubr.bf16.mxu0 0
      %1711 = vmatmul.mubr.bf16.gmra.mrb[0].mxu0 %v1017
      %v1712 = vpop.f32.mrb[0].mxu0
      %v1713 = vadd.f32 %v452, %v1712
      %v1714 = vpop.f32.mrb[0].mxu0
      %v1715 = vpop.f32.mrb[0].mxu0
      %v1716 = vadd.f32 %v452, %v1715
      %v1717 = vpop.f32.mrb[0].mxu0
      %1718 = vmatprep.mubr.bf16.mxu0 0
      %1719 = vmatmul.mubr.bf16.gmra.mrb[0].mxu0 %v1018
      %v1720 = vpop.f32.mrb[0].mxu0
      %v1721 = vadd.f32 %v452, %v1720
      %v1722 = vpop.f32.mrb[0].mxu0
      %v1723 = vpop.f32.mrb[0].mxu0
      %v1724 = vadd.f32 %v452, %v1723
      %v1725 = vpop.f32.mrb[0].mxu0
      %1726 = vmatprep.mubr.bf16.mxu0 0
      %1727 = vmatmul.mubr.bf16.gmra.mrb[0].mxu0 %v1019
      %v1728 = vpop.f32.mrb[0].mxu0
      %v1729 = vadd.f32 %v452, %v1728
      %v1730 = vpop.f32.mrb[0].mxu0
      %v1731 = vpop.f32.mrb[0].mxu0
      %v1732 = vadd.f32 %v452, %v1731
      %v1733 = vpop.f32.mrb[0].mxu0
      %1734 = vmatprep.mubr.bf16.mxu0 0
      %1735 = vmatmul.mubr.bf16.gmra.mrb[0].mxu0 %v1020
      %v1736 = vpop.f32.mrb[0].mxu0
      %v1737 = vadd.f32 %v452, %v1736
      %v1738 = vpop.f32.mrb[0].mxu0
      %v1739 = vpop.f32.mrb[0].mxu0
      %v1740 = vadd.f32 %v452, %v1739
      %v1741 = vpop.f32.mrb[0].mxu0
      %1742 = vmatprep.mubr.bf16.mxu0 0
      %1743 = vmatmul.mubr.bf16.gmra.mrb[0].mxu0 %v1021
      %v1744 = vpop.f32.mrb[0].mxu0
      %v1745 = vadd.f32 %v452, %v1744
      %v1746 = vpop.f32.mrb[0].mxu0
      %v1747 = vpop.f32.mrb[0].mxu0
      %v1748 = vadd.f32 %v452, %v1747
      %v1749 = vpop.f32.mrb[0].mxu0
      %1750 = vmatprep.mubr.bf16.mxu0 0
      %1751 = vmatmul.mubr.bf16.gmra.mrb[0].mxu0 %v1022
      %v1752 = vpop.f32.mrb[0].mxu0
      %v1753 = vadd.f32 %v452, %v1752
      %v1754 = vpop.f32.mrb[0].mxu0
      %v1755 = vpop.f32.mrb[0].mxu0
      %v1756 = vadd.f32 %v452, %v1755
      %v1757 = vpop.f32.mrb[0].mxu0
      %1758 = vmatprep.mubr.bf16.mxu0 0
      %1759 = vmatmul.mubr.bf16.gmra.mrb[0].mxu0 %v1023
      %v1760 = vpop.f32.mrb[0].mxu0
      %v1761 = vadd.f32 %v452, %v1760
      %v1762 = vpop.f32.mrb[0].mxu0
      %v1763 = vpop.f32.mrb[0].mxu0
      %v1764 = vadd.f32 %v452, %v1763
      %v1765 = vpop.f32.mrb[0].mxu0
      %1766 = vmatprep.mubr.bf16.mxu0 0
      %1767 = vmatmul.mubr.bf16.gmra.mrb[0].mxu0 %v1024
      %v1768 = vpop.f32.mrb[0].mxu0
      %v1769 = vadd.f32 %v452, %v1768
      %v1770 = vpop.f32.mrb[0].mxu0
      %v1771 = vpop.f32.mrb[0].mxu0
      %v1772 = vadd.f32 %v452, %v1771
      %v1773 = vpop.f32.mrb[0].mxu0
      %1774 = vmatprep.mubr.bf16.mxu0 0
      %1775 = vmatmul.mubr.bf16.gmra.mrb[0].mxu0 %v1025
      %v1776 = vpop.f32.mrb[0].mxu0
      %v1777 = vadd.f32 %v452, %v1776
      %v1778 = vpop.f32.mrb[0].mxu0
      %v1779 = vpop.f32.mrb[0].mxu0
      %v1780 = vadd.f32 %v452, %v1779
      %v1781 = vpop.f32.mrb[0].mxu0
      %1782 = vmatprep.mubr.bf16.mxu0 0
      %1783 = vmatmul.mubr.bf16.gmra.mrb[0].mxu0 %v1026
      %v1784 = vpop.f32.mrb[0].mxu0
      %v1785 = vadd.f32 %v452, %v1784
      %v1786 = vpop.f32.mrb[0].mxu0
      %v1787 = vpop.f32.mrb[0].mxu0
      %v1788 = vadd.f32 %v452, %v1787
      %v1789 = vpop.f32.mrb[0].mxu0
      %1790 = vmatprep.mubr.bf16.mxu0 0
      %1791 = vmatmul.mubr.bf16.gmra.mrb[0].mxu0 %v1027
      %v1792 = vpop.f32.mrb[0].mxu0
      %v1793 = vadd.f32 %v452, %v1792
      %v1794 = vpop.f32.mrb[0].mxu0
      %v1795 = vpop.f32.mrb[0].mxu0
      %v1796 = vadd.f32 %v452, %v1795
      %v1797 = vpop.f32.mrb[0].mxu0
      %1798 = vmatprep.mubr.bf16.mxu0 0
      %1799 = vmatmul.mubr.bf16.gmra.mrb[0].mxu0 %v1028
      %v1800 = vpop.f32.mrb[0].mxu0
      %v1801 = vadd.f32 %v452, %v1800
      %v1802 = vpop.f32.mrb[0].mxu0
      %v1803 = vpop.f32.mrb[0].mxu0
      %v1804 = vadd.f32 %v452, %v1803
      %v1805 = vpop.f32.mrb[0].mxu0
      %1806 = vmatprep.mubr.bf16.mxu0 0
      %1807 = vmatmul.mubr.bf16.gmra.mrb[0].mxu0 %v1029
      %v1808 = vpop.f32.mrb[0].mxu0
      %v1809 = vadd.f32 %v452, %v1808
      %v1810 = vpop.f32.mrb[0].mxu0
      %v1811 = vpop.f32.mrb[0].mxu0
      %v1812 = vadd.f32 %v452, %v1811
      %v1813 = vpop.f32.mrb[0].mxu0
      %1814 = vmatprep.mubr.bf16.mxu0 0
      %1815 = vmatmul.mubr.bf16.gmra.mrb[0].mxu0 %v1030
      %v1816 = vpop.f32.mrb[0].mxu0
      %v1817 = vadd.f32 %v452, %v1816
      %v1818 = vpop.f32.mrb[0].mxu0
      %v1819 = vpop.f32.mrb[0].mxu0
      %v1820 = vadd.f32 %v452, %v1819
      %v1821 = vpop.f32.mrb[0].mxu0
      %1822 = vmatprep.mubr.bf16.mxu0 0
      %1823 = vmatmul.mubr.bf16.gmra.mrb[0].mxu0 %v1031
      %v1824 = vpop.f32.mrb[0].mxu0
      %v1825 = vadd.f32 %v452, %v1824
      %v1826 = vpop.f32.mrb[0].mxu0
      %v1827 = vpop.f32.mrb[0].mxu0
      %v1828 = vadd.f32 %v452, %v1827
      %v1829 = vpop.f32.mrb[0].mxu0
      %1830 = vmatprep.mubr.bf16.mxu0 0
      %1831 = vmatmul.mubr.bf16.gmra.mrb[0].mxu0 %v1032
      %v1832 = vpop.f32.mrb[0].mxu0
      %v1833 = vadd.f32 %v452, %v1832
      %v1834 = vpop.f32.mrb[0].mxu0
      %v1835 = vpop.f32.mrb[0].mxu0
      %v1836 = vadd.f32 %v452, %v1835
      %v1837 = vpop.f32.mrb[0].mxu0
      %1838 = vmatprep.mubr.bf16.mxu0 0
      %1839 = vmatmul.mubr.bf16.gmra.mrb[0].mxu0 %v1033
      %v1840 = vpop.f32.mrb[0].mxu0
      %v1841 = vadd.f32 %v452, %v1840
      %v1842 = vpop.f32.mrb[0].mxu0
      %v1843 = vpop.f32.mrb[0].mxu0
      %v1844 = vadd.f32 %v452, %v1843
      %v1845 = vpop.f32.mrb[0].mxu0
      %1846 = vmatprep.mubr.bf16.mxu0 0
      %1847 = vmatmul.mubr.bf16.gmra.mrb[0].mxu0 %v1034
      %v1848 = vpop.f32.mrb[0].mxu0
      %v1849 = vadd.f32 %v452, %v1848
      %v1850 = vpop.f32.mrb[0].mxu0
      %v1851 = vpop.f32.mrb[0].mxu0
      %v1852 = vadd.f32 %v452, %v1851
      %v1853 = vpop.f32.mrb[0].mxu0
      %1854 = vmatprep.mubr.bf16.mxu0 0
      %1855 = vmatmul.mubr.bf16.gmra.mrb[0].mxu0 %v1035
      %v1856 = vpop.f32.mrb[0].mxu0
      %v1857 = vadd.f32 %v452, %v1856
      %v1858 = vpop.f32.mrb[0].mxu0
      %v1859 = vpop.f32.mrb[0].mxu0
      %v1860 = vadd.f32 %v452, %v1859
      %v1861 = vpop.f32.mrb[0].mxu0
      %1862 = vmatprep.mubr.bf16.mxu0 0
      %1863 = vmatmul.mubr.bf16.gmra.mrb[0].mxu0 %v1036
      %v1864 = vpop.f32.mrb[0].mxu0
      %v1865 = vadd.f32 %v452, %v1864
      %v1866 = vpop.f32.mrb[0].mxu0
      %v1867 = vpop.f32.mrb[0].mxu0
      %v1868 = vadd.f32 %v452, %v1867
      %v1869 = vpop.f32.mrb[0].mxu0
      %1870 = vmatprep.mubr.bf16.mxu0 0
      %1871 = vmatmul.mubr.bf16.gmra.mrb[0].mxu0 %v1037
      %v1872 = vpop.f32.mrb[0].mxu0
      %v1873 = vadd.f32 %v452, %v1872
      %v1874 = vpop.f32.mrb[0].mxu0
      %v1875 = vpop.f32.mrb[0].mxu0
      %v1876 = vadd.f32 %v452, %v1875
      %v1877 = vpop.f32.mrb[0].mxu0
      %1878 = vmatprep.mubr.bf16.mxu0 0
      %1879 = vmatmul.mubr.bf16.gmra.mrb[0].mxu0 %v1038
      %v1880 = vpop.f32.mrb[0].mxu0
      %v1881 = vadd.f32 %v452, %v1880
      %v1882 = vpop.f32.mrb[0].mxu0
      %v1883 = vpop.f32.mrb[0].mxu0
      %v1884 = vadd.f32 %v452, %v1883
      %v1885 = vpop.f32.mrb[0].mxu0
      %1886 = vmatprep.mubr.bf16.mxu0 0
      %1887 = vmatmul.mubr.bf16.gmra.mrb[0].mxu0 %v1039
      %v1888 = vpop.f32.mrb[0].mxu0
      %v1889 = vadd.f32 %v452, %v1888
      %v1890 = vpop.f32.mrb[0].mxu0
      %v1891 = vpop.f32.mrb[0].mxu0
      %v1892 = vadd.f32 %v452, %v1891
      %v1893 = vpop.f32.mrb[0].mxu0
      %1894 = vmatprep.mubr.bf16.mxu0 0
      %1895 = vmatmul.mubr.bf16.gmra.mrb[0].mxu0 %v1040
      %v1896 = vpop.f32.mrb[0].mxu0
      %v1897 = vadd.f32 %v452, %v1896
      %v1898 = vpop.f32.mrb[0].mxu0
      %v1899 = vpop.f32.mrb[0].mxu0
      %v1900 = vadd.f32 %v452, %v1899
      %v1901 = vpop.f32.mrb[0].mxu0
      %1902 = vmatprep.mubr.bf16.mxu0 0
      %1903 = vmatmul.mubr.bf16.gmra.mrb[0].mxu0 %v1041
      %v1904 = vpop.f32.mrb[0].mxu0
      %v1905 = vadd.f32 %v452, %v1904
      %v1906 = vpop.f32.mrb[0].mxu0
      %v1907 = vpop.f32.mrb[0].mxu0
      %v1908 = vadd.f32 %v452, %v1907
      %v1909 = vpop.f32.mrb[0].mxu0
      %1910 = vmatprep.mubr.bf16.mxu0 0
      %1911 = vmatmul.mubr.bf16.gmra.mrb[0].mxu0 %v1042
      %v1912 = vpop.f32.mrb[0].mxu0
      %v1913 = vadd.f32 %v452, %v1912
      %v1914 = vpop.f32.mrb[0].mxu0
      %v1915 = vpop.f32.mrb[0].mxu0
      %v1916 = vadd.f32 %v452, %v1915
      %v1917 = vpop.f32.mrb[0].mxu0
      %1918 = vmatprep.mubr.bf16.mxu0 0
      %1919 = vmatmul.mubr.bf16.gmra.mrb[0].mxu0 %v1043
      %v1920 = vpop.f32.mrb[0].mxu0
      %v1921 = vadd.f32 %v452, %v1920
      %v1922 = vpop.f32.mrb[0].mxu0
      %v1923 = vpop.f32.mrb[0].mxu0
      %v1924 = vadd.f32 %v452, %v1923
      %v1925 = vpop.f32.mrb[0].mxu0
      %1926 = vmatprep.mubr.bf16.mxu0 0
      %1927 = vmatmul.mubr.bf16.gmra.mrb[0].mxu0 %v1044
      %v1928 = vpop.f32.mrb[0].mxu0
      %v1929 = vadd.f32 %v452, %v1928
      %v1930 = vpop.f32.mrb[0].mxu0
      %v1931 = vpop.f32.mrb[0].mxu0
      %v1932 = vadd.f32 %v452, %v1931
      %v1933 = vpop.f32.mrb[0].mxu0
      %1934 = vmatprep.mubr.bf16.mxu0 0
      %1935 = vmatmul.mubr.bf16.gmra.mrb[0].mxu0 %v1045
      %v1936 = vpop.f32.mrb[0].mxu0
      %v1937 = vadd.f32 %v452, %v1936
      %v1938 = vpop.f32.mrb[0].mxu0
      %v1939 = vpop.f32.mrb[0].mxu0
      %v1940 = vadd.f32 %v452, %v1939
      %v1941 = vpop.f32.mrb[0].mxu0
      %1942 = vmatprep.mubr.bf16.mxu0 0
      %1943 = vmatmul.mubr.bf16.gmra.mrb[0].mxu0 %v1046
      %v1944 = vpop.f32.mrb[0].mxu0
      %v1945 = vadd.f32 %v452, %v1944
      %v1946 = vpop.f32.mrb[0].mxu0
      %v1947 = vpop.f32.mrb[0].mxu0
      %v1948 = vadd.f32 %v452, %v1947
      %v1949 = vpop.f32.mrb[0].mxu0
      %1950 = vmatprep.mubr.bf16.mxu0 0
      %1951 = vmatmul.mubr.bf16.gmra.mrb[0].mxu0 %v1047
      %v1952 = vpop.f32.mrb[0].mxu0
      %v1953 = vadd.f32 %v452, %v1952
      %v1954 = vpop.f32.mrb[0].mxu0
      %v1955 = vpop.f32.mrb[0].mxu0
      %v1956 = vadd.f32 %v452, %v1955
      %v1957 = vpop.f32.mrb[0].mxu0
      %1958 = vmatprep.mubr.bf16.mxu0 0
      %1959 = vmatmul.mubr.bf16.gmra.mrb[0].mxu0 %v1048
      %v1960 = vpop.f32.mrb[0].mxu0
      %v1961 = vadd.f32 %v452, %v1960
      %v1962 = vpop.f32.mrb[0].mxu0
      %v1963 = vpop.f32.mrb[0].mxu0
      %v1964 = vadd.f32 %v452, %v1963
      %v1965 = vpop.f32.mrb[0].mxu0
      %1966 = vmatprep.mubr.bf16.mxu0 0
      %1967 = vmatmul.mubr.bf16.gmra.mrb[0].mxu0 %v1049
      %v1968 = vpop.f32.mrb[0].mxu0
      %v1969 = vadd.f32 %v452, %v1968
      %v1970 = vpop.f32.mrb[0].mxu0
      %v1971 = vpop.f32.mrb[0].mxu0
      %v1972 = vadd.f32 %v452, %v1971
      %v1973 = vpop.f32.mrb[0].mxu0
      %1974 = vmatprep.mubr.bf16.mxu0 0
      %1975 = vmatmul.mubr.bf16.gmra.mrb[0].mxu0 %v1050
      %v1976 = vpop.f32.mrb[0].mxu0
      %v1977 = vadd.f32 %v452, %v1976
      %v1978 = vpop.f32.mrb[0].mxu0
      %v1979 = vpop.f32.mrb[0].mxu0
      %v1980 = vadd.f32 %v452, %v1979
      %v1981 = vpop.f32.mrb[0].mxu0
      %1982 = vmatprep.mubr.bf16.mxu0 0
      %1983 = vmatmul.mubr.bf16.gmra.mrb[0].mxu0 %v1051
      %v1984 = vpop.f32.mrb[0].mxu0
      %v1985 = vadd.f32 %v452, %v1984
      %v1986 = vpop.f32.mrb[0].mxu0
      %v1987 = vpop.f32.mrb[0].mxu0
      %v1988 = vadd.f32 %v452, %v1987
      %v1989 = vpop.f32.mrb[0].mxu0
      %1990 = vmatprep.mubr.bf16.mxu0 0
      %1991 = vmatmul.mubr.bf16.gmra.mrb[0].mxu0 %v1052
      %v1992 = vpop.f32.mrb[0].mxu0
      %v1993 = vadd.f32 %v452, %v1992
      %v1994 = vpop.f32.mrb[0].mxu0
      %v1995 = vpop.f32.mrb[0].mxu0
      %v1996 = vadd.f32 %v452, %v1995
      %v1997 = vpop.f32.mrb[0].mxu0
      %1998 = vmatprep.mubr.bf16.mxu0 0
      %1999 = vmatmul.mubr.bf16.gmra.mrb[0].mxu0 %v1053
      %v2000 = vpop.f32.mrb[0].mxu0
      %v2001 = vadd.f32 %v452, %v2000
      %v2002 = vpop.f32.mrb[0].mxu0
      %v2003 = vpop.f32.mrb[0].mxu0
      %v2004 = vadd.f32 %v452, %v2003
      %v2005 = vpop.f32.mrb[0].mxu0
      %2006 = vmatprep.mubr.bf16.mxu0 0
      %2007 = vmatmul.mubr.bf16.gmra.mrb[0].mxu0 %v1054
      %v2008 = vpop.f32.mrb[0].mxu0
      %v2009 = vadd.f32 %v452, %v2008
      %v2010 = vpop.f32.mrb[0].mxu0
      %v2011 = vpop.f32.mrb[0].mxu0
      %v2012 = vadd.f32 %v452, %v2011
      %v2013 = vpop.f32.mrb[0].mxu0
      %2014 = vmatprep.mubr.bf16.mxu0 0
      %2015 = vmatmul.mubr.bf16.gmra.mrb[0].mxu0 %v1055
      %v2016 = vpop.f32.mrb[0].mxu0
      %v2017 = vadd.f32 %v452, %v2016
      %v2018 = vpop.f32.mrb[0].mxu0
      %v2019 = vpop.f32.mrb[0].mxu0
      %v2020 = vadd.f32 %v452, %v2019
      %v2021 = vpop.f32.mrb[0].mxu0
      %2022 = vmatprep.mubr.bf16.mxu0 0
      %2023 = vmatmul.mubr.bf16.gmra.mrb[0].mxu0 %v1056
      %v2024 = vpop.f32.mrb[0].mxu0
      %v2025 = vadd.f32 %v452, %v2024
      %v2026 = vpop.f32.mrb[0].mxu0
      %v2027 = vpop.f32.mrb[0].mxu0
      %v2028 = vadd.f32 %v452, %v2027
      %v2029 = vpop.f32.mrb[0].mxu0
      %2030 = vmatprep.mubr.bf16.mxu0 0
      %2031 = vmatmul.mubr.bf16.gmra.mrb[0].mxu0 %v1057
      %v2032 = vpop.f32.mrb[0].mxu0
      %v2033 = vadd.f32 %v452, %v2032
      %v2034 = vpop.f32.mrb[0].mxu0
      %v2035 = vpop.f32.mrb[0].mxu0
      %v2036 = vadd.f32 %v452, %v2035
      %v2037 = vpop.f32.mrb[0].mxu0
      %2038 = vmatprep.mubr.bf16.mxu0 0
      %2039 = vmatmul.mubr.bf16.gmra.mrb[0].mxu0 %v1058
      %v2040 = vpop.f32.mrb[0].mxu0
      %v2041 = vadd.f32 %v452, %v2040
      %v2042 = vpop.f32.mrb[0].mxu0
      %v2043 = vpop.f32.mrb[0].mxu0
      %v2044 = vadd.f32 %v452, %v2043
      %v2045 = vpop.f32.mrb[0].mxu0
      %2046 = vmatprep.mubr.bf16.mxu0 0
      %2047 = vmatmul.mubr.bf16.gmra.mrb[0].mxu0 %v1059
      %v2048 = vpop.f32.mrb[0].mxu0
      %v2049 = vadd.f32 %v452, %v2048
      %v2050 = vpop.f32.mrb[0].mxu0
      %v2051 = vpop.f32.mrb[0].mxu0
      %v2052 = vadd.f32 %v452, %v2051
      %v2053 = vpop.f32.mrb[0].mxu0
      %2054 = vmatprep.mubr.bf16.mxu0 0
      %2055 = vmatmul.mubr.bf16.gmra.mrb[0].mxu0 %v1060
      %v2056 = vpop.f32.mrb[0].mxu0
      %v2057 = vadd.f32 %v452, %v2056
      %v2058 = vpop.f32.mrb[0].mxu0
      %v2059 = vpop.f32.mrb[0].mxu0
      %v2060 = vadd.f32 %v452, %v2059
      %v2061 = vpop.f32.mrb[0].mxu0
      %2062 = vmatprep.mubr.bf16.mxu0 0
      %2063 = vmatmul.mubr.bf16.gmra.mrb[0].mxu0 %v1061
      %v2064 = vpop.f32.mrb[0].mxu0
      %v2065 = vadd.f32 %v452, %v2064
      %v2066 = vpop.f32.mrb[0].mxu0
      %v2067 = vpop.f32.mrb[0].mxu0
      %v2068 = vadd.f32 %v452, %v2067
      %v2069 = vpop.f32.mrb[0].mxu0
      %2070 = vmatprep.mubr.bf16.mxu0 0
      %2071 = vmatmul.mubr.bf16.gmra.mrb[0].mxu0 %v1062
      %v2072 = vpop.f32.mrb[0].mxu0
      %v2073 = vadd.f32 %v452, %v2072
      %v2074 = vpop.f32.mrb[0].mxu0
      %v2075 = vpop.f32.mrb[0].mxu0
      %v2076 = vadd.f32 %v452, %v2075
      %v2077 = vpop.f32.mrb[0].mxu0
      %2078 = vmatprep.mubr.bf16.mxu0 0
      %2079 = vmatmul.mubr.bf16.gmra.mrb[0].mxu0 %v1063
      %v2080 = vpop.f32.mrb[0].mxu0
      %v2081 = vadd.f32 %v452, %v2080
      %v2082 = vpop.f32.mrb[0].mxu0
      %v2083 = vpop.f32.mrb[0].mxu0
      %v2084 = vadd.f32 %v452, %v2083
      %v2085 = vpop.f32.mrb[0].mxu0
      %2086 = vmatprep.mubr.bf16.mxu0 0
      %2087 = vmatmul.mubr.bf16.gmra.mrb[0].mxu0 %v1064
      %v2088 = vpop.f32.mrb[0].mxu0
      %v2089 = vadd.f32 %v452, %v2088
      %v2090 = vpop.f32.mrb[0].mxu0
      %v2091 = vpop.f32.mrb[0].mxu0
      %v2092 = vadd.f32 %v452, %v2091
      %v2093 = vpop.f32.mrb[0].mxu0
      %2094 = vmatprep.mubr.bf16.mxu0 0
      %2095 = vmatmul.mubr.bf16.gmra.mrb[0].mxu0 %v1065
      %v2096 = vpop.f32.mrb[0].mxu0
      %v2097 = vadd.f32 %v452, %v2096
      %v2098 = vpop.f32.mrb[0].mxu0
      %v2099 = vpop.f32.mrb[0].mxu0
      %v2100 = vadd.f32 %v452, %v2099
      %v2101 = vpop.f32.mrb[0].mxu0
      %2102 = vmatprep.mubr.bf16.mxu0 0
      %2103 = vmatmul.mubr.bf16.gmra.mrb[0].mxu0 %v1066
      %v2104 = vpop.f32.mrb[0].mxu0
      %v2105 = vadd.f32 %v452, %v2104
      %v2106 = vpop.f32.mrb[0].mxu0
      %v2107 = vpop.f32.mrb[0].mxu0
      %v2108 = vadd.f32 %v452, %v2107
      %v2109 = vpop.f32.mrb[0].mxu0
      %2110 = vmatprep.mubr.bf16.mxu0 0
      %2111 = vmatmul.mubr.bf16.gmra.mrb[0].mxu0 %v1067
      %v2112 = vpop.f32.mrb[0].mxu0
      %v2113 = vadd.f32 %v452, %v2112
      %v2114 = vpop.f32.mrb[0].mxu0
      %v2115 = vpop.f32.mrb[0].mxu0
      %v2116 = vadd.f32 %v452, %v2115
      %v2117 = vpop.f32.mrb[0].mxu0
      %2118 = vmatprep.mubr.bf16.mxu0 0
      %2119 = vmatmul.mubr.bf16.gmra.mrb[0].mxu0 %v1068
      %v2120 = vpop.f32.mrb[0].mxu0
      %v2121 = vadd.f32 %v452, %v2120
      %v2122 = vpop.f32.mrb[0].mxu0
      %v2123 = vpop.f32.mrb[0].mxu0
      %v2124 = vadd.f32 %v452, %v2123
      %v2125 = vpop.f32.mrb[0].mxu0
      %2126 = vmatprep.mubr.bf16.mxu0 0
      %2127 = vmatmul.mubr.bf16.gmra.mrb[0].mxu0 %v1069
      %v2128 = vpop.f32.mrb[0].mxu0
      %v2129 = vadd.f32 %v452, %v2128
      %v2130 = vpop.f32.mrb[0].mxu0
      %v2131 = vpop.f32.mrb[0].mxu0
      %v2132 = vadd.f32 %v452, %v2131
      %v2133 = vpop.f32.mrb[0].mxu0
      %2134 = vmatprep.mubr.bf16.mxu0 0
      %2135 = vmatmul.mubr.bf16.gmra.mrb[0].mxu0 %v1070
      %v2136 = vpop.f32.mrb[0].mxu0
      %v2137 = vadd.f32 %v452, %v2136
      %v2138 = vpop.f32.mrb[0].mxu0
      %v2139 = vpop.f32.mrb[0].mxu0
      %v2140 = vadd.f32 %v452, %v2139
      %v2141 = vpop.f32.mrb[0].mxu0
      %2142 = vmatprep.mubr.bf16.mxu0 0
      %2143 = vmatmul.mubr.bf16.gmra.mrb[0].mxu0 %v1071
      %v2144 = vpop.f32.mrb[0].mxu0
      %v2145 = vadd.f32 %v452, %v2144
      %v2146 = vpop.f32.mrb[0].mxu0
      %v2147 = vpop.f32.mrb[0].mxu0
      %v2148 = vadd.f32 %v452, %v2147
      %v2149 = vpop.f32.mrb[0].mxu0
      %2150 = vmatprep.mubr.bf16.mxu0 0
      %2151 = vmatmul.mubr.bf16.gmra.mrb[0].mxu0 %v1072
      %v2152 = vpop.f32.mrb[0].mxu0
      %v2153 = vadd.f32 %v452, %v2152
      %v2154 = vpop.f32.mrb[0].mxu0
      %v2155 = vpop.f32.mrb[0].mxu0
      %v2156 = vadd.f32 %v452, %v2155
      %v2157 = vpop.f32.mrb[0].mxu0
      %2158 = vmatprep.mubr.bf16.mxu0 0
      %2159 = vmatmul.mubr.bf16.gmra.mrb[0].mxu0 %v1073
      %v2160 = vpop.f32.mrb[0].mxu0
      %v2161 = vadd.f32 %v452, %v2160
      %v2162 = vpop.f32.mrb[0].mxu0
      %v2163 = vpop.f32.mrb[0].mxu0
      %v2164 = vadd.f32 %v452, %v2163
      %v2165 = vpop.f32.mrb[0].mxu0
      %2166 = vmatprep.mubr.bf16.mxu0 0
      %2167 = vmatmul.mubr.bf16.gmra.mrb[0].mxu0 %v1074
      %v2168 = vpop.f32.mrb[0].mxu0
      %v2169 = vadd.f32 %v452, %v2168
      %v2170 = vpop.f32.mrb[0].mxu0
      %v2171 = vpop.f32.mrb[0].mxu0
      %v2172 = vadd.f32 %v452, %v2171
      %v2173 = vpop.f32.mrb[0].mxu0
      %2174 = vmatprep.mubr.bf16.mxu0 0
      %2175 = vmatmul.mubr.bf16.gmra.mrb[0].mxu0 %v1075
      %v2176 = vpop.f32.mrb[0].mxu0
      %v2177 = vadd.f32 %v452, %v2176
      %v2178 = vpop.f32.mrb[0].mxu0
      %v2179 = vpop.f32.mrb[0].mxu0
      %v2180 = vadd.f32 %v452, %v2179
      %v2181 = vpop.f32.mrb[0].mxu0
      %2182 = vmatprep.mubr.bf16.mxu0 0
      %2183 = vmatmul.mubr.bf16.gmra.mrb[0].mxu0 %v1076
      %v2184 = vpop.f32.mrb[0].mxu0
      %v2185 = vadd.f32 %v452, %v2184
      %v2186 = vpop.f32.mrb[0].mxu0
      %v2187 = vpop.f32.mrb[0].mxu0
      %v2188 = vadd.f32 %v452, %v2187
      %v2189 = vpop.f32.mrb[0].mxu0
      %2190 = vmatprep.mubr.bf16.mxu0 0
      %2191 = vmatmul.mubr.bf16.gmra.mrb[0].mxu0 %v1077
      %v2192 = vpop.f32.mrb[0].mxu0
      %v2193 = vadd.f32 %v452, %v2192
      %v2194 = vpop.f32.mrb[0].mxu0
      %v2195 = vpop.f32.mrb[0].mxu0
      %v2196 = vadd.f32 %v452, %v2195
      %v2197 = vpop.f32.mrb[0].mxu0
      %2198 = vmatprep.mubr.bf16.mxu0 0
      %2199 = vmatmul.mubr.bf16.gmra.mrb[0].mxu0 %v1078
      %v2200 = vpop.f32.mrb[0].mxu0
      %v2201 = vadd.f32 %v452, %v2200
      %v2202 = vpop.f32.mrb[0].mxu0
      %v2203 = vpop.f32.mrb[0].mxu0
      %v2204 = vadd.f32 %v452, %v2203
      %v2205 = vpop.f32.mrb[0].mxu0
      %2206 = vmatprep.mubr.bf16.mxu0 0
      %2207 = vmatmul.mubr.bf16.gmra.mrb[0].mxu0 %v1079
      %v2208 = vpop.f32.mrb[0].mxu0
      %v2209 = vadd.f32 %v452, %v2208
      %v2210 = vpop.f32.mrb[0].mxu0
      %v2211 = vpop.f32.mrb[0].mxu0
      %v2212 = vadd.f32 %v452, %v2211
      %v2213 = vpop.f32.mrb[0].mxu0
      %2214 = vmatprep.mubr.bf16.mxu0 0
      %2215 = vmatmul.mubr.bf16.gmra.mrb[0].mxu0 %v1080
      %v2216 = vpop.f32.mrb[0].mxu0
      %v2217 = vadd.f32 %v452, %v2216
      %v2218 = vpop.f32.mrb[0].mxu0
      %v2219 = vpop.f32.mrb[0].mxu0
      %v2220 = vadd.f32 %v452, %v2219
      %v2221 = vpop.f32.mrb[0].mxu0
      %2222 = vmatprep.mubr.bf16.mxu0 0
      %2223 = vmatmul.mubr.bf16.gmra.mrb[0].mxu0 %v1081
      %v2224 = vpop.f32.mrb[0].mxu0
      %v2225 = vadd.f32 %v452, %v2224
      %v2226 = vpop.f32.mrb[0].mxu0
      %v2227 = vpop.f32.mrb[0].mxu0
      %v2228 = vadd.f32 %v452, %v2227
      %v2229 = vpop.f32.mrb[0].mxu0
      %2230 = vmatprep.mubr.bf16.mxu0 0
      %2231 = vmatmul.mubr.bf16.gmra.mrb[0].mxu0 %v1082
      %v2232 = vpop.f32.mrb[0].mxu0
      %v2233 = vadd.f32 %v452, %v2232
      %v2234 = vpop.f32.mrb[0].mxu0
      %v2235 = vpop.f32.mrb[0].mxu0
      %v2236 = vadd.f32 %v452, %v2235
      %v2237 = vpop.f32.mrb[0].mxu0
      %2238 = vmatprep.mubr.bf16.mxu0 0
      %2239 = vmatmul.mubr.bf16.gmra.mrb[0].mxu0 %v1083
      %v2240 = vpop.f32.mrb[0].mxu0
      %v2241 = vadd.f32 %v452, %v2240
      %v2242 = vpop.f32.mrb[0].mxu0
      %v2243 = vpop.f32.mrb[0].mxu0
      %v2244 = vadd.f32 %v452, %v2243
      %v2245 = vpop.f32.mrb[0].mxu0
      %2246 = vmatprep.mubr.bf16.mxu0 0
      %2247 = vmatmul.mubr.bf16.gmra.mrb[0].mxu0 %v1084
      %v2248 = vpop.f32.mrb[0].mxu0
      %v2249 = vadd.f32 %v452, %v2248
      %v2250 = vpop.f32.mrb[0].mxu0
      %v2251 = vpop.f32.mrb[0].mxu0
      %v2252 = vadd.f32 %v452, %v2251
      %v2253 = vpop.f32.mrb[0].mxu0
      %2254 = vmatprep.mubr.bf16.mxu0 0
      %2255 = vmatmul.mubr.bf16.gmra.mrb[0].mxu0 %v1085
      %v2256 = vpop.f32.mrb[0].mxu0
      %v2257 = vadd.f32 %v452, %v2256
      %v2258 = vpop.f32.mrb[0].mxu0
      %v2259 = vpop.f32.mrb[0].mxu0
      %v2260 = vadd.f32 %v452, %v2259
      %v2261 = vpop.f32.mrb[0].mxu0
      %2262 = vmatprep.mubr.bf16.mxu0 0
      %2263 = vmatmul.mubr.bf16.gmra.mrb[0].mxu0 %v1086
      %v2264 = vpop.f32.mrb[0].mxu0
      %v2265 = vadd.f32 %v452, %v2264
      %v2266 = vpop.f32.mrb[0].mxu0
      %v2267 = vpop.f32.mrb[0].mxu0
      %v2268 = vadd.f32 %v452, %v2267
      %v2269 = vpop.f32.mrb[0].mxu0
      %2270 = vmatprep.mubr.bf16.mxu0 0
      %2271 = vmatmul.mubr.bf16.gmra.mrb[0].mxu0 %v1087
      %v2272 = vpop.f32.mrb[0].mxu0
      %v2273 = vadd.f32 %v452, %v2272
      %v2274 = vpop.f32.mrb[0].mxu0
      %v2275 = vpop.f32.mrb[0].mxu0
      %v2276 = vadd.f32 %v452, %v2275
      %v2277 = vpop.f32.mrb[0].mxu0
      %2278 = vmatprep.mubr.bf16.mxu0 0
      %2279 = vmatmul.mubr.bf16.gmra.mrb[0].mxu0 %v1088
      %v2280 = vpop.f32.mrb[0].mxu0
      %v2281 = vadd.f32 %v452, %v2280
      %v2282 = vpop.f32.mrb[0].mxu0
      %v2283 = vpop.f32.mrb[0].mxu0
      %v2284 = vadd.f32 %v452, %v2283
      %v2285 = vpop.f32.mrb[0].mxu0
      %2286 = vmatprep.mubr.bf16.mxu0 0
      %2287 = vmatmul.mubr.bf16.gmra.mrb[0].mxu0 %v1089
      %v2288 = vpop.f32.mrb[0].mxu0
      %v2289 = vadd.f32 %v452, %v2288
      %v2290 = vpop.f32.mrb[0].mxu0
      %v2291 = vpop.f32.mrb[0].mxu0
      %v2292 = vadd.f32 %v452, %v2291
      %v2293 = vpop.f32.mrb[0].mxu0
      %2294 = vmatprep.mubr.bf16.mxu0 0
      %2295 = vmatmul.mubr.bf16.gmra.mrb[0].mxu0 %v1090
      %v2296 = vpop.f32.mrb[0].mxu0
      %v2297 = vadd.f32 %v452, %v2296
      %v2298 = vpop.f32.mrb[0].mxu0
      %v2299 = vpop.f32.mrb[0].mxu0
      %v2300 = vadd.f32 %v452, %v2299
      %v2301 = vpop.f32.mrb[0].mxu0
      %2302 = vmatprep.mubr.bf16.mxu0 0
      %2303 = vmatmul.mubr.bf16.gmra.mrb[0].mxu0 %v1091
      %v2304 = vpop.f32.mrb[0].mxu0
      %v2305 = vadd.f32 %v452, %v2304
      %v2306 = vpop.f32.mrb[0].mxu0
      %v2307 = vpop.f32.mrb[0].mxu0
      %v2308 = vadd.f32 %v452, %v2307
      %v2309 = vpop.f32.mrb[0].mxu0
      %2310 = vmatprep.mubr.bf16.mxu0 0
      %2311 = vmatmul.mubr.bf16.gmra.mrb[0].mxu0 %v1092
      %v2312 = vpop.f32.mrb[0].mxu0
      %v2313 = vadd.f32 %v452, %v2312
      %v2314 = vpop.f32.mrb[0].mxu0
      %v2315 = vpop.f32.mrb[0].mxu0
      %v2316 = vadd.f32 %v452, %v2315
      %v2317 = vpop.f32.mrb[0].mxu0
      %2318 = vmatprep.mubr.bf16.mxu0 0
      %2319 = vmatmul.mubr.bf16.gmra.mrb[0].mxu0 %v1093
      %v2320 = vpop.f32.mrb[0].mxu0
      %v2321 = vadd.f32 %v452, %v2320
      %v2322 = vpop.f32.mrb[0].mxu0
      %v2323 = vpop.f32.mrb[0].mxu0
      %v2324 = vadd.f32 %v452, %v2323
      %v2325 = vpop.f32.mrb[0].mxu0
      %2326 = vdwg.mxu0
      %vm2327 = vcmask 7168
      %2328 = vst.msk [vmem:[%s172] sm:$0xff] %vm2327, %v1305
      %2329 = vst.msk [vmem:[%s172 + $0x8] sm:$0xff] %vm2327, %v1308
      %2330 = vst.msk [vmem:[%s172 + $0x10] sm:$0xff] %vm2327, %v1313
      %2331 = vst.msk [vmem:[%s172 + $0x18] sm:$0xff] %vm2327, %v1316
      %2332 = vst.msk [vmem:[%s172 + $0x20] sm:$0xff] %vm2327, %v1321
      %2333 = vst.msk [vmem:[%s172 + $0x28] sm:$0xff] %vm2327, %v1324
      %2334 = vst.msk [vmem:[%s172 + $0x30] sm:$0xff] %vm2327, %v1329
      %2335 = vst.msk [vmem:[%s172 + $0x38] sm:$0xff] %vm2327, %v1332
      %2336 = vst.msk [vmem:[%s172 + $0x40] sm:$0xff] %vm2327, %v1337
      %2337 = vst.msk [vmem:[%s172 + $0x48] sm:$0xff] %vm2327, %v1340
      %2338 = vst.msk [vmem:[%s172 + $0x50] sm:$0xff] %vm2327, %v1345
      %2339 = vst.msk [vmem:[%s172 + $0x58] sm:$0xff] %vm2327, %v1348
      %2340 = vst.msk [vmem:[%s172 + $0x60] sm:$0xff] %vm2327, %v1353
      %2341 = vst.msk [vmem:[%s172 + $0x68] sm:$0xff] %vm2327, %v1356
      %2342 = vst.msk [vmem:[%s172 + $0x70] sm:$0xff] %vm2327, %v1361
      %2343 = vst.msk [vmem:[%s172 + $0x78] sm:$0xff] %vm2327, %v1364
      %2344 = vst.msk [vmem:[%s172 + $0x80] sm:$0xff] %vm2327, %v1369
      %2345 = vst.msk [vmem:[%s172 + $0x88] sm:$0xff] %vm2327, %v1372
      %2346 = vst.msk [vmem:[%s172 + $0x90] sm:$0xff] %vm2327, %v1377
      %2347 = vst.msk [vmem:[%s172 + $0x98] sm:$0xff] %vm2327, %v1380
      %2348 = vst.msk [vmem:[%s172 + $0xa0] sm:$0xff] %vm2327, %v1385
      %2349 = vst.msk [vmem:[%s172 + $0xa8] sm:$0xff] %vm2327, %v1388
      %2350 = vst.msk [vmem:[%s172 + $0xb0] sm:$0xff] %vm2327, %v1393
      %2351 = vst.msk [vmem:[%s172 + $0xb8] sm:$0xff] %vm2327, %v1396
      %2352 = vst.msk [vmem:[%s172 + $0xc0] sm:$0xff] %vm2327, %v1401
      %2353 = vst.msk [vmem:[%s172 + $0xc8] sm:$0xff] %vm2327, %v1404
      %2354 = vst.msk [vmem:[%s172 + $0xd0] sm:$0xff] %vm2327, %v1409
      %2355 = vst.msk [vmem:[%s172 + $0xd8] sm:$0xff] %vm2327, %v1412
      %2356 = vst.msk [vmem:[%s172 + $0xe0] sm:$0xff] %vm2327, %v1417
      %2357 = vst.msk [vmem:[%s172 + $0xe8] sm:$0xff] %vm2327, %v1420
      %2358 = vst.msk [vmem:[%s172 + $0xf0] sm:$0xff] %vm2327, %v1425
      %2359 = vst.msk [vmem:[%s172 + $0xf8] sm:$0xff] %vm2327, %v1428
      %2360 = vst.msk [vmem:[%s172 + $0x100] sm:$0xff] %vm2327, %v1433
      %2361 = vst.msk [vmem:[%s172 + $0x108] sm:$0xff] %vm2327, %v1436
      %2362 = vst.msk [vmem:[%s172 + $0x110] sm:$0xff] %vm2327, %v1441
      %2363 = vst.msk [vmem:[%s172 + $0x118] sm:$0xff] %vm2327, %v1444
      %2364 = vst.msk [vmem:[%s172 + $0x120] sm:$0xff] %vm2327, %v1449
      %2365 = vst.msk [vmem:[%s172 + $0x128] sm:$0xff] %vm2327, %v1452
      %2366 = vst.msk [vmem:[%s172 + $0x130] sm:$0xff] %vm2327, %v1457
      %2367 = vst.msk [vmem:[%s172 + $0x138] sm:$0xff] %vm2327, %v1460
      %2368 = vst.msk [vmem:[%s172 + $0x140] sm:$0xff] %vm2327, %v1465
      %2369 = vst.msk [vmem:[%s172 + $0x148] sm:$0xff] %vm2327, %v1468
      %2370 = vst.msk [vmem:[%s172 + $0x150] sm:$0xff] %vm2327, %v1473
      %2371 = vst.msk [vmem:[%s172 + $0x158] sm:$0xff] %vm2327, %v1476
      %2372 = vst.msk [vmem:[%s172 + $0x160] sm:$0xff] %vm2327, %v1481
      %2373 = vst.msk [vmem:[%s172 + $0x168] sm:$0xff] %vm2327, %v1484
      %2374 = vst.msk [vmem:[%s172 + $0x170] sm:$0xff] %vm2327, %v1489
      %2375 = vst.msk [vmem:[%s172 + $0x178] sm:$0xff] %vm2327, %v1492
      %2376 = vst.msk [vmem:[%s172 + $0x180] sm:$0xff] %vm2327, %v1497
      %2377 = vst.msk [vmem:[%s172 + $0x188] sm:$0xff] %vm2327, %v1500
      %2378 = vst.msk [vmem:[%s172 + $0x190] sm:$0xff] %vm2327, %v1505
      %2379 = vst.msk [vmem:[%s172 + $0x198] sm:$0xff] %vm2327, %v1508
      %2380 = vst.msk [vmem:[%s172 + $0x1a0] sm:$0xff] %vm2327, %v1513
      %2381 = vst.msk [vmem:[%s172 + $0x1a8] sm:$0xff] %vm2327, %v1516
      %2382 = vst.msk [vmem:[%s172 + $0x1b0] sm:$0xff] %vm2327, %v1521
      %2383 = vst.msk [vmem:[%s172 + $0x1b8] sm:$0xff] %vm2327, %v1524
      %2384 = vst.msk [vmem:[%s172 + $0x1c0] sm:$0xff] %vm2327, %v1529
      %2385 = vst.msk [vmem:[%s172 + $0x1c8] sm:$0xff] %vm2327, %v1532
      %2386 = vst.msk [vmem:[%s172 + $0x1d0] sm:$0xff] %vm2327, %v1537
      %2387 = vst.msk [vmem:[%s172 + $0x1d8] sm:$0xff] %vm2327, %v1540
      %2388 = vst.msk [vmem:[%s172 + $0x1e0] sm:$0xff] %vm2327, %v1545
      %2389 = vst.msk [vmem:[%s172 + $0x1e8] sm:$0xff] %vm2327, %v1548
      %2390 = vst.msk [vmem:[%s172 + $0x1f0] sm:$0xff] %vm2327, %v1553
      %2391 = vst.msk [vmem:[%s172 + $0x1f8] sm:$0xff] %vm2327, %v1556
      %2392 = vst.msk [vmem:[%s172 + $0x200] sm:$0xff] %vm2327, %v1561
      %2393 = vst.msk [vmem:[%s172 + $0x208] sm:$0xff] %vm2327, %v1564
      %2394 = vst.msk [vmem:[%s172 + $0x210] sm:$0xff] %vm2327, %v1569
      %2395 = vst.msk [vmem:[%s172 + $0x218] sm:$0xff] %vm2327, %v1572
      %2396 = vst.msk [vmem:[%s172 + $0x220] sm:$0xff] %vm2327, %v1577
      %2397 = vst.msk [vmem:[%s172 + $0x228] sm:$0xff] %vm2327, %v1580
      %2398 = vst.msk [vmem:[%s172 + $0x230] sm:$0xff] %vm2327, %v1585
      %2399 = vst.msk [vmem:[%s172 + $0x238] sm:$0xff] %vm2327, %v1588
      %2400 = vst.msk [vmem:[%s172 + $0x240] sm:$0xff] %vm2327, %v1593
      %2401 = vst.msk [vmem:[%s172 + $0x248] sm:$0xff] %vm2327, %v1596
      %2402 = vst.msk [vmem:[%s172 + $0x250] sm:$0xff] %vm2327, %v1601
      %2403 = vst.msk [vmem:[%s172 + $0x258] sm:$0xff] %vm2327, %v1604
      %2404 = vst.msk [vmem:[%s172 + $0x260] sm:$0xff] %vm2327, %v1609
      %2405 = vst.msk [vmem:[%s172 + $0x268] sm:$0xff] %vm2327, %v1612
      %2406 = vst.msk [vmem:[%s172 + $0x270] sm:$0xff] %vm2327, %v1617
      %2407 = vst.msk [vmem:[%s172 + $0x278] sm:$0xff] %vm2327, %v1620
      %2408 = vst.msk [vmem:[%s172 + $0x280] sm:$0xff] %vm2327, %v1625
      %2409 = vst.msk [vmem:[%s172 + $0x288] sm:$0xff] %vm2327, %v1628
      %2410 = vst.msk [vmem:[%s172 + $0x290] sm:$0xff] %vm2327, %v1633
      %2411 = vst.msk [vmem:[%s172 + $0x298] sm:$0xff] %vm2327, %v1636
      %2412 = vst.msk [vmem:[%s172 + $0x2a0] sm:$0xff] %vm2327, %v1641
      %2413 = vst.msk [vmem:[%s172 + $0x2a8] sm:$0xff] %vm2327, %v1644
      %2414 = vst.msk [vmem:[%s172 + $0x2b0] sm:$0xff] %vm2327, %v1649
      %2415 = vst.msk [vmem:[%s172 + $0x2b8] sm:$0xff] %vm2327, %v1652
      %2416 = vst.msk [vmem:[%s172 + $0x2c0] sm:$0xff] %vm2327, %v1657
      %2417 = vst.msk [vmem:[%s172 + $0x2c8] sm:$0xff] %vm2327, %v1660
      %2418 = vst.msk [vmem:[%s172 + $0x2d0] sm:$0xff] %vm2327, %v1665
      %2419 = vst.msk [vmem:[%s172 + $0x2d8] sm:$0xff] %vm2327, %v1668
      %2420 = vst.msk [vmem:[%s172 + $0x2e0] sm:$0xff] %vm2327, %v1673
      %2421 = vst.msk [vmem:[%s172 + $0x2e8] sm:$0xff] %vm2327, %v1676
      %2422 = vst.msk [vmem:[%s172 + $0x2f0] sm:$0xff] %vm2327, %v1681
      %2423 = vst.msk [vmem:[%s172 + $0x2f8] sm:$0xff] %vm2327, %v1684
      %2424 = vst.msk [vmem:[%s172 + $0x300] sm:$0xff] %vm2327, %v1689
      %2425 = vst.msk [vmem:[%s172 + $0x308] sm:$0xff] %vm2327, %v1692
      %2426 = vst.msk [vmem:[%s172 + $0x310] sm:$0xff] %vm2327, %v1697
      %2427 = vst.msk [vmem:[%s172 + $0x318] sm:$0xff] %vm2327, %v1700
      %2428 = vst.msk [vmem:[%s172 + $0x320] sm:$0xff] %vm2327, %v1705
      %2429 = vst.msk [vmem:[%s172 + $0x328] sm:$0xff] %vm2327, %v1708
      %2430 = vst.msk [vmem:[%s172 + $0x330] sm:$0xff] %vm2327, %v1713
      %2431 = vst.msk [vmem:[%s172 + $0x338] sm:$0xff] %vm2327, %v1716
      %2432 = vst.msk [vmem:[%s172 + $0x340] sm:$0xff] %vm2327, %v1721
      %2433 = vst.msk [vmem:[%s172 + $0x348] sm:$0xff] %vm2327, %v1724
      %2434 = vst.msk [vmem:[%s172 + $0x350] sm:$0xff] %vm2327, %v1729
      %2435 = vst.msk [vmem:[%s172 + $0x358] sm:$0xff] %vm2327, %v1732
      %2436 = vst.msk [vmem:[%s172 + $0x360] sm:$0xff] %vm2327, %v1737
      %2437 = vst.msk [vmem:[%s172 + $0x368] sm:$0xff] %vm2327, %v1740
      %2438 = vst.msk [vmem:[%s172 + $0x370] sm:$0xff] %vm2327, %v1745
      %2439 = vst.msk [vmem:[%s172 + $0x378] sm:$0xff] %vm2327, %v1748
      %2440 = vst.msk [vmem:[%s172 + $0x380] sm:$0xff] %vm2327, %v1753
      %2441 = vst.msk [vmem:[%s172 + $0x388] sm:$0xff] %vm2327, %v1756
      %2442 = vst.msk [vmem:[%s172 + $0x390] sm:$0xff] %vm2327, %v1761
      %2443 = vst.msk [vmem:[%s172 + $0x398] sm:$0xff] %vm2327, %v1764
      %2444 = vst.msk [vmem:[%s172 + $0x3a0] sm:$0xff] %vm2327, %v1769
      %2445 = vst.msk [vmem:[%s172 + $0x3a8] sm:$0xff] %vm2327, %v1772
      %2446 = vst.msk [vmem:[%s172 + $0x3b0] sm:$0xff] %vm2327, %v1777
      %2447 = vst.msk [vmem:[%s172 + $0x3b8] sm:$0xff] %vm2327, %v1780
      %2448 = vst.msk [vmem:[%s172 + $0x3c0] sm:$0xff] %vm2327, %v1785
      %2449 = vst.msk [vmem:[%s172 + $0x3c8] sm:$0xff] %vm2327, %v1788
      %2450 = vst.msk [vmem:[%s172 + $0x3d0] sm:$0xff] %vm2327, %v1793
      %2451 = vst.msk [vmem:[%s172 + $0x3d8] sm:$0xff] %vm2327, %v1796
      %2452 = vst.msk [vmem:[%s172 + $0x3e0] sm:$0xff] %vm2327, %v1801
      %2453 = vst.msk [vmem:[%s172 + $0x3e8] sm:$0xff] %vm2327, %v1804
      %2454 = vst.msk [vmem:[%s172 + $0x3f0] sm:$0xff] %vm2327, %v1809
      %2455 = vst.msk [vmem:[%s172 + $0x3f8] sm:$0xff] %vm2327, %v1812
      %2456 = vst.msk [vmem:[%s172 + $0x400] sm:$0xff] %vm2327, %v1817
      %2457 = vst.msk [vmem:[%s172 + $0x408] sm:$0xff] %vm2327, %v1820
      %2458 = vst.msk [vmem:[%s172 + $0x410] sm:$0xff] %vm2327, %v1825
      %2459 = vst.msk [vmem:[%s172 + $0x418] sm:$0xff] %vm2327, %v1828
      %2460 = vst.msk [vmem:[%s172 + $0x420] sm:$0xff] %vm2327, %v1833
      %2461 = vst.msk [vmem:[%s172 + $0x428] sm:$0xff] %vm2327, %v1836
      %2462 = vst.msk [vmem:[%s172 + $0x430] sm:$0xff] %vm2327, %v1841
      %2463 = vst.msk [vmem:[%s172 + $0x438] sm:$0xff] %vm2327, %v1844
      %2464 = vst.msk [vmem:[%s172 + $0x440] sm:$0xff] %vm2327, %v1849
      %2465 = vst.msk [vmem:[%s172 + $0x448] sm:$0xff] %vm2327, %v1852
      %2466 = vst.msk [vmem:[%s172 + $0x450] sm:$0xff] %vm2327, %v1857
      %2467 = vst.msk [vmem:[%s172 + $0x458] sm:$0xff] %vm2327, %v1860
      %2468 = vst.msk [vmem:[%s172 + $0x460] sm:$0xff] %vm2327, %v1865
      %2469 = vst.msk [vmem:[%s172 + $0x468] sm:$0xff] %vm2327, %v1868
      %2470 = vst.msk [vmem:[%s172 + $0x470] sm:$0xff] %vm2327, %v1873
      %2471 = vst.msk [vmem:[%s172 + $0x478] sm:$0xff] %vm2327, %v1876
      %2472 = vst.msk [vmem:[%s172 + $0x480] sm:$0xff] %vm2327, %v1881
      %2473 = vst.msk [vmem:[%s172 + $0x488] sm:$0xff] %vm2327, %v1884
      %2474 = vst.msk [vmem:[%s172 + $0x490] sm:$0xff] %vm2327, %v1889
      %2475 = vst.msk [vmem:[%s172 + $0x498] sm:$0xff] %vm2327, %v1892
      %2476 = vst.msk [vmem:[%s172 + $0x4a0] sm:$0xff] %vm2327, %v1897
      %2477 = vst.msk [vmem:[%s172 + $0x4a8] sm:$0xff] %vm2327, %v1900
      %2478 = vst.msk [vmem:[%s172 + $0x4b0] sm:$0xff] %vm2327, %v1905
      %2479 = vst.msk [vmem:[%s172 + $0x4b8] sm:$0xff] %vm2327, %v1908
      %2480 = vst.msk [vmem:[%s172 + $0x4c0] sm:$0xff] %vm2327, %v1913
      %2481 = vst.msk [vmem:[%s172 + $0x4c8] sm:$0xff] %vm2327, %v1916
      %2482 = vst.msk [vmem:[%s172 + $0x4d0] sm:$0xff] %vm2327, %v1921
      %2483 = vst.msk [vmem:[%s172 + $0x4d8] sm:$0xff] %vm2327, %v1924
      %2484 = vst.msk [vmem:[%s172 + $0x4e0] sm:$0xff] %vm2327, %v1929
      %2485 = vst.msk [vmem:[%s172 + $0x4e8] sm:$0xff] %vm2327, %v1932
      %2486 = vst.msk [vmem:[%s172 + $0x4f0] sm:$0xff] %vm2327, %v1937
      %2487 = vst.msk [vmem:[%s172 + $0x4f8] sm:$0xff] %vm2327, %v1940
      %2488 = vst.msk [vmem:[%s172 + $0x500] sm:$0xff] %vm2327, %v1945
      %2489 = vst.msk [vmem:[%s172 + $0x508] sm:$0xff] %vm2327, %v1948
      %2490 = vst.msk [vmem:[%s172 + $0x510] sm:$0xff] %vm2327, %v1953
      %2491 = vst.msk [vmem:[%s172 + $0x518] sm:$0xff] %vm2327, %v1956
      %2492 = vst.msk [vmem:[%s172 + $0x520] sm:$0xff] %vm2327, %v1961
      %2493 = vst.msk [vmem:[%s172 + $0x528] sm:$0xff] %vm2327, %v1964
      %2494 = vst.msk [vmem:[%s172 + $0x530] sm:$0xff] %vm2327, %v1969
      %2495 = vst.msk [vmem:[%s172 + $0x538] sm:$0xff] %vm2327, %v1972
      %2496 = vst.msk [vmem:[%s172 + $0x540] sm:$0xff] %vm2327, %v1977
      %2497 = vst.msk [vmem:[%s172 + $0x548] sm:$0xff] %vm2327, %v1980
      %2498 = vst.msk [vmem:[%s172 + $0x550] sm:$0xff] %vm2327, %v1985
      %2499 = vst.msk [vmem:[%s172 + $0x558] sm:$0xff] %vm2327, %v1988
      %2500 = vst.msk [vmem:[%s172 + $0x560] sm:$0xff] %vm2327, %v1993
      %2501 = vst.msk [vmem:[%s172 + $0x568] sm:$0xff] %vm2327, %v1996
      %2502 = vst.msk [vmem:[%s172 + $0x570] sm:$0xff] %vm2327, %v2001
      %2503 = vst.msk [vmem:[%s172 + $0x578] sm:$0xff] %vm2327, %v2004
      %2504 = vst.msk [vmem:[%s172 + $0x580] sm:$0xff] %vm2327, %v2009
      %2505 = vst.msk [vmem:[%s172 + $0x588] sm:$0xff] %vm2327, %v2012
      %2506 = vst.msk [vmem:[%s172 + $0x590] sm:$0xff] %vm2327, %v2017
      %2507 = vst.msk [vmem:[%s172 + $0x598] sm:$0xff] %vm2327, %v2020
      %2508 = vst.msk [vmem:[%s172 + $0x5a0] sm:$0xff] %vm2327, %v2025
      %2509 = vst.msk [vmem:[%s172 + $0x5a8] sm:$0xff] %vm2327, %v2028
      %2510 = vst.msk [vmem:[%s172 + $0x5b0] sm:$0xff] %vm2327, %v2033
      %2511 = vst.msk [vmem:[%s172 + $0x5b8] sm:$0xff] %vm2327, %v2036
      %2512 = vst.msk [vmem:[%s172 + $0x5c0] sm:$0xff] %vm2327, %v2041
      %2513 = vst.msk [vmem:[%s172 + $0x5c8] sm:$0xff] %vm2327, %v2044
      %2514 = vst.msk [vmem:[%s172 + $0x5d0] sm:$0xff] %vm2327, %v2049
      %2515 = vst.msk [vmem:[%s172 + $0x5d8] sm:$0xff] %vm2327, %v2052
      %2516 = vst.msk [vmem:[%s172 + $0x5e0] sm:$0xff] %vm2327, %v2057
      %2517 = vst.msk [vmem:[%s172 + $0x5e8] sm:$0xff] %vm2327, %v2060
      %2518 = vst.msk [vmem:[%s172 + $0x5f0] sm:$0xff] %vm2327, %v2065
      %2519 = vst.msk [vmem:[%s172 + $0x5f8] sm:$0xff] %vm2327, %v2068
      %2520 = vst.msk [vmem:[%s172 + $0x600] sm:$0xff] %vm2327, %v2073
      %2521 = vst.msk [vmem:[%s172 + $0x608] sm:$0xff] %vm2327, %v2076
      %2522 = vst.msk [vmem:[%s172 + $0x610] sm:$0xff] %vm2327, %v2081
      %2523 = vst.msk [vmem:[%s172 + $0x618] sm:$0xff] %vm2327, %v2084
      %2524 = vst.msk [vmem:[%s172 + $0x620] sm:$0xff] %vm2327, %v2089
      %2525 = vst.msk [vmem:[%s172 + $0x628] sm:$0xff] %vm2327, %v2092
      %2526 = vst.msk [vmem:[%s172 + $0x630] sm:$0xff] %vm2327, %v2097
      %2527 = vst.msk [vmem:[%s172 + $0x638] sm:$0xff] %vm2327, %v2100
      %2528 = vst.msk [vmem:[%s172 + $0x640] sm:$0xff] %vm2327, %v2105
      %2529 = vst.msk [vmem:[%s172 + $0x648] sm:$0xff] %vm2327, %v2108
      %2530 = vst.msk [vmem:[%s172 + $0x650] sm:$0xff] %vm2327, %v2113
      %2531 = vst.msk [vmem:[%s172 + $0x658] sm:$0xff] %vm2327, %v2116
      %2532 = vst.msk [vmem:[%s172 + $0x660] sm:$0xff] %vm2327, %v2121
      %2533 = vst.msk [vmem:[%s172 + $0x668] sm:$0xff] %vm2327, %v2124
      %2534 = vst.msk [vmem:[%s172 + $0x670] sm:$0xff] %vm2327, %v2129
      %2535 = vst.msk [vmem:[%s172 + $0x678] sm:$0xff] %vm2327, %v2132
      %2536 = vst.msk [vmem:[%s172 + $0x680] sm:$0xff] %vm2327, %v2137
      %2537 = vst.msk [vmem:[%s172 + $0x688] sm:$0xff] %vm2327, %v2140
      %2538 = vst.msk [vmem:[%s172 + $0x690] sm:$0xff] %vm2327, %v2145
      %2539 = vst.msk [vmem:[%s172 + $0x698] sm:$0xff] %vm2327, %v2148
      %2540 = vst.msk [vmem:[%s172 + $0x6a0] sm:$0xff] %vm2327, %v2153
      %2541 = vst.msk [vmem:[%s172 + $0x6a8] sm:$0xff] %vm2327, %v2156
      %2542 = vst.msk [vmem:[%s172 + $0x6b0] sm:$0xff] %vm2327, %v2161
      %2543 = vst.msk [vmem:[%s172 + $0x6b8] sm:$0xff] %vm2327, %v2164
      %2544 = vst.msk [vmem:[%s172 + $0x6c0] sm:$0xff] %vm2327, %v2169
      %2545 = vst.msk [vmem:[%s172 + $0x6c8] sm:$0xff] %vm2327, %v2172
      %2546 = vst.msk [vmem:[%s172 + $0x6d0] sm:$0xff] %vm2327, %v2177
      %2547 = vst.msk [vmem:[%s172 + $0x6d8] sm:$0xff] %vm2327, %v2180
      %2548 = vst.msk [vmem:[%s172 + $0x6e0] sm:$0xff] %vm2327, %v2185
      %2549 = vst.msk [vmem:[%s172 + $0x6e8] sm:$0xff] %vm2327, %v2188
      %2550 = vst.msk [vmem:[%s172 + $0x6f0] sm:$0xff] %vm2327, %v2193
      %2551 = vst.msk [vmem:[%s172 + $0x6f8] sm:$0xff] %vm2327, %v2196
      %2552 = vst.msk [vmem:[%s172 + $0x700] sm:$0xff] %vm2327, %v2201
      %2553 = vst.msk [vmem:[%s172 + $0x708] sm:$0xff] %vm2327, %v2204
      %2554 = vst.msk [vmem:[%s172 + $0x710] sm:$0xff] %vm2327, %v2209
      %2555 = vst.msk [vmem:[%s172 + $0x718] sm:$0xff] %vm2327, %v2212
      %2556 = vst.msk [vmem:[%s172 + $0x720] sm:$0xff] %vm2327, %v2217
      %2557 = vst.msk [vmem:[%s172 + $0x728] sm:$0xff] %vm2327, %v2220
      %2558 = vst.msk [vmem:[%s172 + $0x730] sm:$0xff] %vm2327, %v2225
      %2559 = vst.msk [vmem:[%s172 + $0x738] sm:$0xff] %vm2327, %v2228
      %2560 = vst.msk [vmem:[%s172 + $0x740] sm:$0xff] %vm2327, %v2233
      %2561 = vst.msk [vmem:[%s172 + $0x748] sm:$0xff] %vm2327, %v2236
      %2562 = vst.msk [vmem:[%s172 + $0x750] sm:$0xff] %vm2327, %v2241
      %2563 = vst.msk [vmem:[%s172 + $0x758] sm:$0xff] %vm2327, %v2244
      %2564 = vst.msk [vmem:[%s172 + $0x760] sm:$0xff] %vm2327, %v2249
      %2565 = vst.msk [vmem:[%s172 + $0x768] sm:$0xff] %vm2327, %v2252
      %2566 = vst.msk [vmem:[%s172 + $0x770] sm:$0xff] %vm2327, %v2257
      %2567 = vst.msk [vmem:[%s172 + $0x778] sm:$0xff] %vm2327, %v2260
      %2568 = vst.msk [vmem:[%s172 + $0x780] sm:$0xff] %vm2327, %v2265
      %2569 = vst.msk [vmem:[%s172 + $0x788] sm:$0xff] %vm2327, %v2268
      %2570 = vst.msk [vmem:[%s172 + $0x790] sm:$0xff] %vm2327, %v2273
      %2571 = vst.msk [vmem:[%s172 + $0x798] sm:$0xff] %vm2327, %v2276
      %2572 = vst.msk [vmem:[%s172 + $0x7a0] sm:$0xff] %vm2327, %v2281
      %2573 = vst.msk [vmem:[%s172 + $0x7a8] sm:$0xff] %vm2327, %v2284
      %2574 = vst.msk [vmem:[%s172 + $0x7b0] sm:$0xff] %vm2327, %v2289
      %2575 = vst.msk [vmem:[%s172 + $0x7b8] sm:$0xff] %vm2327, %v2292
      %2576 = vst.msk [vmem:[%s172 + $0x7c0] sm:$0xff] %vm2327, %v2297
      %2577 = vst.msk [vmem:[%s172 + $0x7c8] sm:$0xff] %vm2327, %v2300
      %2578 = vst.msk [vmem:[%s172 + $0x7d0] sm:$0xff] %vm2327, %v2305
      %2579 = vst.msk [vmem:[%s172 + $0x7d8] sm:$0xff] %vm2327, %v2308
      %2580 = vst.msk [vmem:[%s172 + $0x7e0] sm:$0xff] %vm2327, %v2313
      %2581 = vst.msk [vmem:[%s172 + $0x7e8] sm:$0xff] %vm2327, %v2316
      %2582 = vst.msk [vmem:[%s172 + $0x7f0] sm:$0xff] %vm2327, %v2321
      %2583 = vst.msk [vmem:[%s172 + $0x7f8] sm:$0xff] %vm2327, %v2324
      %s2584 = smul.u32 256, %s14
      %p2585 = scmp.lt.s32.totalorder %s2584, 511
      %s2586 = scalar_select %p2585, %s2584, 511
      %s2587 = smul.addr %s2586, 8
      %s2588 = scalar_lea.vmem %s3, %s2587
      // Predicated region
      $region33: #{_lambda_.13} parent=31 // pred_check
        %p2589 = pneg %p100
      $region34: #{_lambda_.13} parent=31 // pred_check_branch
        %2591 = sbr.rel (%p2589) target = $region36
      $region35: #{_lambda_.13} parent=31 // pred_region
        %s2592 = smul.u32 256, %s14
      $region36: #{_lambda_.13} parent=31 // pred_fallthru
        _
    $region32: #{_lambda_.13} parent=5 // pred_fallthru
      _
    %p2593 = scmp.le.s32.totalorder 2, %s9
    // Predicated region
    $region37: #{_lambda_.13} parent=5 // pred_check
      %p2594 = pneg %p2593
    $region38: #{_lambda_.13} parent=5 // pred_check_branch
      %2596 = sbr.rel (%p2594) target = $region40
    $region39: #{_lambda_.13} parent=5 // pred_region
      %s2597 = ssub.s32 %s9, 2
      // Predicated region
      $region41: #{_lambda_.13} parent=39 // pred_check
        %p2598 = pneg %p106
      $region42: #{_lambda_.13} parent=39 // pred_check_branch
        %2600 = sbr.rel (%p2598) target = $region44
      $region43: #{_lambda_.13} parent=39 // pred_region
        %s2601 = smul.u32 256, %s15
        %p2602 = scmp.lt.s32.totalorder %s2601, 511
        %s2603 = scalar_select %p2602, %s2601, 511
        %s2604 = smul.addr %s2603, 8
        %s2605 = scalar_lea.vmem %s3, %s2604
      $region44: #{_lambda_.13} parent=39 // pred_fallthru
        _
    $region40: #{_lambda_.13} parent=5 // pred_fallthru
      _
  $region6: #{_lambda_.13} parent=0 // loop_footer
    %s13 = sadd.s32 1, %s9
  $region7: #{_lambda_.13} parent=0 // loop_footer_branch
    %8 = sbr.rel target = $region3
  $region8: #{_lambda_.13} parent=0 // loop_exit
    _

// kernel: squeeze.1
$region0: #{squeeze.1}
  %s0 = inlined_call_operand.vmem [shape: f32[4096], index: 0, kind: input, shape index: {}]
  %s1 = inlined_call_operand.hbm [shape: f32[2,8,16,16], index: 1, kind: output, shape index: {}]
  $region1: #{squeeze.1} parent=0
    #allocation0 [shape = 'u8[131072]{0}', space=vmem, size = 0x20000, scoped, tag = 'operand span for operand 1']
    #allocation1 [shape = 's32[1]{0}', space=sflag, size = 0x4, scoped, tag = 'scoped memory for squeeze.1']
    %2 = vsyncpa [#allocation1], 0
    %v3 = vld [vmem:[%s0] sm:$0xff]
    %vm4 = vcmask 130048
    %5 = vst.msk [vmem:[#allocation0] ss:$8 sm:$0xf] %vm4, %v3
    %6 = vst.msk [vmem:[#allocation0] ss:$8 sm:$0xf0] %vm4, %v3
    %s7 = scalar_lea.vmem %s0, 8
    %v8 = vld [vmem:[%s7] sm:$0xff]
    %vm9 = vcmask 130048
    %s10 = scalar_lea.vmem [#allocation0], 64
    %11 = vst.msk [vmem:[%s10] ss:$8 sm:$0xf] %vm9, %v8
    %s12 = scalar_lea.vmem [#allocation0], 64
    %13 = vst.msk [vmem:[%s12] ss:$8 sm:$0xf0] %vm9, %v8
    %s14 = scalar_lea.vmem %s0, 16
    %v15 = vld [vmem:[%s14] sm:$0xff]
    %vm16 = vcmask 130048
    %s17 = scalar_lea.vmem [#allocation0], 128
    %18 = vst.msk [vmem:[%s17] ss:$8 sm:$0xf] %vm16, %v15
    %s19 = scalar_lea.vmem [#allocation0], 128
    %20 = vst.msk [vmem:[%s19] ss:$8 sm:$0xf0] %vm16, %v15
    %s21 = scalar_lea.vmem %s0, 24
    %v22 = vld [vmem:[%s21] sm:$0xff]
    %vm23 = vcmask 130048
    %s24 = scalar_lea.vmem [#allocation0], 192
    %25 = vst.msk [vmem:[%s24] ss:$8 sm:$0xf] %vm23, %v22
    %s26 = scalar_lea.vmem [#allocation0], 192
    %27 = vst.msk [vmem:[%s26] ss:$8 sm:$0xf0] %vm23, %v22
    %v28 = vld [vmem:[%s0] sm:$0xff]
    %29 = vrot.lane.b32.xlu0 %v28, 112
    %v30 = vpop.permute.xlu0 %29
    %vm31 = vcmask 130048
    %s32 = scalar_lea.vmem [#allocation0], 1
    %33 = vst.msk [vmem:[%s32] ss:$8 sm:$0xf] %vm31, %v30
    %s34 = scalar_lea.vmem [#allocation0], 1
    %35 = vst.msk [vmem:[%s34] ss:$8 sm:$0xf0] %vm31, %v30
    %s36 = scalar_lea.vmem %s0, 8
    %v37 = vld [vmem:[%s36] sm:$0xff]
    %38 = vrot.lane.b32.xlu0 %v37, 112
    %v39 = vpop.permute.xlu0 %38
    %vm40 = vcmask 130048
    %s41 = scalar_lea.vmem [#allocation0], 65
    %42 = vst.msk [vmem:[%s41] ss:$8 sm:$0xf] %vm40, %v39
    %s43 = scalar_lea.vmem [#allocation0], 65
    %44 = vst.msk [vmem:[%s43] ss:$8 sm:$0xf0] %vm40, %v39
    %s45 = scalar_lea.vmem %s0, 16
    %v46 = vld [vmem:[%s45] sm:$0xff]
    %47 = vrot.lane.b32.xlu0 %v46, 112
    %v48 = vpop.permute.xlu0 %47
    %vm49 = vcmask 130048
    %s50 = scalar_lea.vmem [#allocation0], 129
    %51 = vst.msk [vmem:[%s50] ss:$8 sm:$0xf] %vm49, %v48
    %s52 = scalar_lea.vmem [#allocation0], 129
    %53 = vst.msk [vmem:[%s52] ss:$8 sm:$0xf0] %vm49, %v48
    %s54 = scalar_lea.vmem %s0, 24
    %v55 = vld [vmem:[%s54] sm:$0xff]
    %56 = vrot.lane.b32.xlu0 %v55, 112
    %v57 = vpop.permute.xlu0 %56
    %vm58 = vcmask 130048
    %s59 = scalar_lea.vmem [#allocation0], 193
    %60 = vst.msk [vmem:[%s59] ss:$8 sm:$0xf] %vm58, %v57
    %s61 = scalar_lea.vmem [#allocation0], 193
    %62 = vst.msk [vmem:[%s61] ss:$8 sm:$0xf0] %vm58, %v57
    %v63 = vld [vmem:[%s0] sm:$0xff]
    %64 = vrot.lane.b32.xlu0 %v63, 96
    %v65 = vpop.permute.xlu0 %64
    %vm66 = vcmask 130048
    %s67 = scalar_lea.vmem [#allocation0], 2
    %68 = vst.msk [vmem:[%s67] ss:$8 sm:$0xf] %vm66, %v65
    %s69 = scalar_lea.vmem [#allocation0], 2
    %70 = vst.msk [vmem:[%s69] ss:$8 sm:$0xf0] %vm66, %v65
    %s71 = scalar_lea.vmem %s0, 8
    %v72 = vld [vmem:[%s71] sm:$0xff]
    %73 = vrot.lane.b32.xlu0 %v72, 96
    %v74 = vpop.permute.xlu0 %73
    %vm75 = vcmask 130048
    %s76 = scalar_lea.vmem [#allocation0], 66
    %77 = vst.msk [vmem:[%s76] ss:$8 sm:$0xf] %vm75, %v74
    %s78 = scalar_lea.vmem [#allocation0], 66
    %79 = vst.msk [vmem:[%s78] ss:$8 sm:$0xf0] %vm75, %v74
    %s80 = scalar_lea.vmem %s0, 16
    %v81 = vld [vmem:[%s80] sm:$0xff]
    %82 = vrot.lane.b32.xlu0 %v81, 96
    %v83 = vpop.permute.xlu0 %82
    %vm84 = vcmask 130048
    %s85 = scalar_lea.vmem [#allocation0], 130
    %86 = vst.msk [vmem:[%s85] ss:$8 sm:$0xf] %vm84, %v83
    %s87 = scalar_lea.vmem [#allocation0], 130
    %88 = vst.msk [vmem:[%s87] ss:$8 sm:$0xf0] %vm84, %v83
    %s89 = scalar_lea.vmem %s0, 24
    %v90 = vld [vmem:[%s89] sm:$0xff]
    %91 = vrot.lane.b32.xlu0 %v90, 96
    %v92 = vpop.permute.xlu0 %91
    %vm93 = vcmask 130048
    %s94 = scalar_lea.vmem [#allocation0], 194
    %95 = vst.msk [vmem:[%s94] ss:$8 sm:$0xf] %vm93, %v92
    %s96 = scalar_lea.vmem [#allocation0], 194
    %97 = vst.msk [vmem:[%s96] ss:$8 sm:$0xf0] %vm93, %v92
    %v98 = vld [vmem:[%s0] sm:$0xff]
    %99 = vrot.lane.b32.xlu0 %v98, 80
    %v100 = vpop.permute.xlu0 %99
    %vm101 = vcmask 130048
    %s102 = scalar_lea.vmem [#allocation0], 3
    %103 = vst.msk [vmem:[%s102] ss:$8 sm:$0xf] %vm101, %v100
    %s104 = scalar_lea.vmem [#allocation0], 3
    %105 = vst.msk [vmem:[%s104] ss:$8 sm:$0xf0] %vm101, %v100
    %s106 = scalar_lea.vmem %s0, 8
    %v107 = vld [vmem:[%s106] sm:$0xff]
    %108 = vrot.lane.b32.xlu0 %v107, 80
    %v109 = vpop.permute.xlu0 %108
    %vm110 = vcmask 130048
    %s111 = scalar_lea.vmem [#allocation0], 67
    %112 = vst.msk [vmem:[%s111] ss:$8 sm:$0xf] %vm110, %v109
    %s113 = scalar_lea.vmem [#allocation0], 67
    %114 = vst.msk [vmem:[%s113] ss:$8 sm:$0xf0] %vm110, %v109
    %s115 = scalar_lea.vmem %s0, 16
    %v116 = vld [vmem:[%s115] sm:$0xff]
    %117 = vrot.lane.b32.xlu0 %v116, 80
    %v118 = vpop.permute.xlu0 %117
    %vm119 = vcmask 130048
    %s120 = scalar_lea.vmem [#allocation0], 131
    %121 = vst.msk [vmem:[%s120] ss:$8 sm:$0xf] %vm119, %v118
    %s122 = scalar_lea.vmem [#allocation0], 131
    %123 = vst.msk [vmem:[%s122] ss:$8 sm:$0xf0] %vm119, %v118
    %s124 = scalar_lea.vmem %s0, 24
    %v125 = vld [vmem:[%s124] sm:$0xff]
    %126 = vrot.lane.b32.xlu0 %v125, 80
    %v127 = vpop.permute.xlu0 %126
    %vm128 = vcmask 130048
    %s129 = scalar_lea.vmem [#allocation0], 195
    %130 = vst.msk [vmem:[%s129] ss:$8 sm:$0xf] %vm128, %v127
    %s131 = scalar_lea.vmem [#allocation0], 195
    %132 = vst.msk [vmem:[%s131] ss:$8 sm:$0xf0] %vm128, %v127
    %v133 = vld [vmem:[%s0] sm:$0xff]
    %134 = vrot.lane.b32.xlu0 %v133, 64
    %v135 = vpop.permute.xlu0 %134
    %vm136 = vcmask 130048
    %s137 = scalar_lea.vmem [#allocation0], 4
    %138 = vst.msk [vmem:[%s137] ss:$8 sm:$0xf] %vm136, %v135
    %s139 = scalar_lea.vmem [#allocation0], 4
    %140 = vst.msk [vmem:[%s139] ss:$8 sm:$0xf0] %vm136, %v135
    %s141 = scalar_lea.vmem %s0, 8
    %v142 = vld [vmem:[%s141] sm:$0xff]
    %143 = vrot.lane.b32.xlu0 %v142, 64
    %v144 = vpop.permute.xlu0 %143
    %vm145 = vcmask 130048
    %s146 = scalar_lea.vmem [#allocation0], 68
    %147 = vst.msk [vmem:[%s146] ss:$8 sm:$0xf] %vm145, %v144
    %s148 = scalar_lea.vmem [#allocation0], 68
    %149 = vst.msk [vmem:[%s148] ss:$8 sm:$0xf0] %vm145, %v144
    %s150 = scalar_lea.vmem %s0, 16
    %v151 = vld [vmem:[%s150] sm:$0xff]
    %152 = vrot.lane.b32.xlu0 %v151, 64
    %v153 = vpop.permute.xlu0 %152
    %vm154 = vcmask 130048
    %s155 = scalar_lea.vmem [#allocation0], 132
    %156 = vst.msk [vmem:[%s155] ss:$8 sm:$0xf] %vm154, %v153
    %s157 = scalar_lea.vmem [#allocation0], 132
    %158 = vst.msk [vmem:[%s157] ss:$8 sm:$0xf0] %vm154, %v153
    %s159 = scalar_lea.vmem %s0, 24
    %v160 = vld [vmem:[%s159] sm:$0xff]
    %161 = vrot.lane.b32.xlu0 %v160, 64
    %v162 = vpop.permute.xlu0 %161
    %vm163 = vcmask 130048
    %s164 = scalar_lea.vmem [#allocation0], 196
    %165 = vst.msk [vmem:[%s164] ss:$8 sm:$0xf] %vm163, %v162
    %s166 = scalar_lea.vmem [#allocation0], 196
    %167 = vst.msk [vmem:[%s166] ss:$8 sm:$0xf0] %vm163, %v162
    %v168 = vld [vmem:[%s0] sm:$0xff]
    %169 = vrot.lane.b32.xlu0 %v168, 48
    %v170 = vpop.permute.xlu0 %169
    %vm171 = vcmask 130048
    %s172 = scalar_lea.vmem [#allocation0], 5
    %173 = vst.msk [vmem:[%s172] ss:$8 sm:$0xf] %vm171, %v170
    %s174 = scalar_lea.vmem [#allocation0], 5
    %175 = vst.msk [vmem:[%s174] ss:$8 sm:$0xf0] %vm171, %v170
    %s176 = scalar_lea.vmem %s0, 8
    %v177 = vld [vmem:[%s176] sm:$0xff]
    %178 = vrot.lane.b32.xlu0 %v177, 48
    %v179 = vpop.permute.xlu0 %178
    %vm180 = vcmask 130048
    %s181 = scalar_lea.vmem [#allocation0], 69
    %182 = vst.msk [vmem:[%s181] ss:$8 sm:$0xf] %vm180, %v179
    %s183 = scalar_lea.vmem [#allocation0], 69
    %184 = vst.msk [vmem:[%s183] ss:$8 sm:$0xf0] %vm180, %v179
    %s185 = scalar_lea.vmem %s0, 16
    %v186 = vld [vmem:[%s185] sm:$0xff]
    %187 = vrot.lane.b32.xlu0 %v186, 48
    %v188 = vpop.permute.xlu0 %187
    %vm189 = vcmask 130048
    %s190 = scalar_lea.vmem [#allocation0], 133
    %191 = vst.msk [vmem:[%s190] ss:$8 sm:$0xf] %vm189, %v188
    %s192 = scalar_lea.vmem [#allocation0], 133
    %193 = vst.msk [vmem:[%s192] ss:$8 sm:$0xf0] %vm189, %v188
    %s194 = scalar_lea.vmem %s0, 24
    %v195 = vld [vmem:[%s194] sm:$0xff]
    %196 = vrot.lane.b32.xlu0 %v195, 48
    %v197 = vpop.permute.xlu0 %196
    %vm198 = vcmask 130048
    %s199 = scalar_lea.vmem [#allocation0], 197
    %200 = vst.msk [vmem:[%s199] ss:$8 sm:$0xf] %vm198, %v197
    %s201 = scalar_lea.vmem [#allocation0], 197
    %202 = vst.msk [vmem:[%s201] ss:$8 sm:$0xf0] %vm198, %v197
    %v203 = vld [vmem:[%s0] sm:$0xff]
    %204 = vrot.lane.b32.xlu0 %v203, 32
    %v205 = vpop.permute.xlu0 %204
    %vm206 = vcmask 130048
    %s207 = scalar_lea.vmem [#allocation0], 6
    %208 = vst.msk [vmem:[%s207] ss:$8 sm:$0xf] %vm206, %v205
    %s209 = scalar_lea.vmem [#allocation0], 6
    %210 = vst.msk [vmem:[%s209] ss:$8 sm:$0xf0] %vm206, %v205
    %s211 = scalar_lea.vmem %s0, 8
    %v212 = vld [vmem:[%s211] sm:$0xff]
    %213 = vrot.lane.b32.xlu0 %v212, 32
    %v214 = vpop.permute.xlu0 %213
    %vm215 = vcmask 130048
    %s216 = scalar_lea.vmem [#allocation0], 70
    %217 = vst.msk [vmem:[%s216] ss:$8 sm:$0xf] %vm215, %v214
    %s218 = scalar_lea.vmem [#allocation0], 70
    %219 = vst.msk [vmem:[%s218] ss:$8 sm:$0xf0] %vm215, %v214
    %s220 = scalar_lea.vmem %s0, 16
    %v221 = vld [vmem:[%s220] sm:$0xff]
    %222 = vrot.lane.b32.xlu0 %v221, 32
    %v223 = vpop.permute.xlu0 %222
    %vm224 = vcmask 130048
    %s225 = scalar_lea.vmem [#allocation0], 134
    %226 = vst.msk [vmem:[%s225] ss:$8 sm:$0xf] %vm224, %v223
    %s227 = scalar_lea.vmem [#allocation0], 134
    %228 = vst.msk [vmem:[%s227] ss:$8 sm:$0xf0] %vm224, %v223
    %s229 = scalar_lea.vmem %s0, 24
    %v230 = vld [vmem:[%s229] sm:$0xff]
    %231 = vrot.lane.b32.xlu0 %v230, 32
    %v232 = vpop.permute.xlu0 %231
    %vm233 = vcmask 130048
    %s234 = scalar_lea.vmem [#allocation0], 198
    %235 = vst.msk [vmem:[%s234] ss:$8 sm:$0xf] %vm233, %v232
    %s236 = scalar_lea.vmem [#allocation0], 198
    %237 = vst.msk [vmem:[%s236] ss:$8 sm:$0xf0] %vm233, %v232
    %v238 = vld [vmem:[%s0] sm:$0xff]
    %239 = vrot.lane.b32.xlu0 %v238, 16
    %v240 = vpop.permute.xlu0 %239
    %vm241 = vcmask 130048
    %s242 = scalar_lea.vmem [#allocation0], 7
    %243 = vst.msk [vmem:[%s242] ss:$8 sm:$0xf] %vm241, %v240
    %s244 = scalar_lea.vmem [#allocation0], 7
    %245 = vst.msk [vmem:[%s244] ss:$8 sm:$0xf0] %vm241, %v240
    %s246 = scalar_lea.vmem %s0, 8
    %v247 = vld [vmem:[%s246] sm:$0xff]
    %248 = vrot.lane.b32.xlu0 %v247, 16
    %v249 = vpop.permute.xlu0 %248
    %vm250 = vcmask 130048
    %s251 = scalar_lea.vmem [#allocation0], 71
    %252 = vst.msk [vmem:[%s251] ss:$8 sm:$0xf] %vm250, %v249
    %s253 = scalar_lea.vmem [#allocation0], 71
    %254 = vst.msk [vmem:[%s253] ss:$8 sm:$0xf0] %vm250, %v249
    %s255 = scalar_lea.vmem %s0, 16
    %v256 = vld [vmem:[%s255] sm:$0xff]
    %257 = vrot.lane.b32.xlu0 %v256, 16
    %v258 = vpop.permute.xlu0 %257
    %vm259 = vcmask 130048
    %s260 = scalar_lea.vmem [#allocation0], 135
    %261 = vst.msk [vmem:[%s260] ss:$8 sm:$0xf] %vm259, %v258
    %s262 = scalar_lea.vmem [#allocation0], 135
    %263 = vst.msk [vmem:[%s262] ss:$8 sm:$0xf0] %vm259, %v258
    %s264 = scalar_lea.vmem %s0, 24
    %v265 = vld [vmem:[%s264] sm:$0xff]
    %266 = vrot.lane.b32.xlu0 %v265, 16
    %v267 = vpop.permute.xlu0 %266
    %vm268 = vcmask 130048
    %s269 = scalar_lea.vmem [#allocation0], 199
    %270 = vst.msk [vmem:[%s269] ss:$8 sm:$0xf] %vm268, %v267
    %s271 = scalar_lea.vmem [#allocation0], 199
    %272 = vst.msk [vmem:[%s271] ss:$8 sm:$0xf0] %vm268, %v267
    %s274 = ssub.s32 4096, 4096
    %275 = vsyncadd [#allocation1], %s274
    %s277 = sshll.u32 [#allocation0], 4
    %s278 = int_to_ptr.vmem [resolvable:$true] %s277
    %280 = dma.vmem_to_hbm [thread:$0]  %s278, 4096, %s1, [#allocation1]
    %281 = dma.done [#allocation1], 4096
    %282 = vsyncpa [#allocation1], 1

</llo_original>
